<compile_context>
chip_gen: v7x
topology: tpu7x:2x2x1
jax: 0.10.0
libtpu: 0.0.40
codegen_flags: <defaults>
</compile_context>

<pallas_src>
import functools

import jax
import jax.numpy as jnp
import numpy as np
from jax.experimental import pallas as pl
from jax.experimental.pallas import tpu as pltpu


def _round_up(n, m):
    return ((n + m - 1) // m) * m


# ----------------------------------------------------------------------------
# Fused whole-network kernel (batch_tile images per grid step).
# ----------------------------------------------------------------------------
def _conv_bn_relu_pool(x, a_ref, b_ref, H, Cout):
    """One Conv2d(3x3,pad=1)+BN+ReLU+MaxPool(2,2) block on a stacked slab.

    x:     (B*H, L) activations, B images stacked along rows; lane layout is
           l = w*stride + c (the stride of the previous pool is absorbed into
           the banded weights).
    a_ref: (3*L, W*Cout) banded conv weights, K-concatenated over the three
           row offsets dy in {-1, 0, +1}, BatchNorm scale folded in.
    b_ref: (1, W*Cout) folded conv+BN bias.
    Returns (B*H//2, W*Cout); valid pooled values sit on even w lane-blocks
    (the stride-2 lane layout is absorbed by the next layer's weights).
    """
    BH, L = x.shape
    WC = b_ref.shape[-1]
    # Row +/-1 shifted slabs with per-image zero padding at each image's
    # first/last row (mask at image boundaries instead of rebuilding a padded
    # slab every block).
    zrow = jnp.zeros((1, L), jnp.float32)
    h_idx = jax.lax.broadcasted_iota(jnp.int32, (BH, 1), 0) % H
    x_up = jnp.where(h_idx != 0,
                     jnp.concatenate([zrow, x[:-1, :]], axis=0), 0.0)
    x_dn = jnp.where(h_idx != H - 1,
                     jnp.concatenate([x[1:, :], zrow], axis=0), 0.0)
    # Single fat MXU matmul per block: K-concat over dy, M = B*H.
    xcat = jnp.concatenate([x_up, x, x_dn], axis=-1)           # (B*H, 3*L)
    y = jnp.dot(xcat, a_ref[...], preferred_element_type=jnp.float32)
    y = jnp.maximum(y + b_ref[...], 0.0)                       # bias + ReLU
    # MaxPool2d(2,2): rows via pairwise max (per-image heights are even, so
    # row pairs never straddle images); lanes via a one-w-block lane shift.
    y = jnp.max(y.reshape(BH // 2, 2, WC), axis=1)             # (B*H//2, WC)
    ys = jnp.concatenate([y[:, Cout:], y[:, :Cout]], axis=1)
    return jnp.maximum(y, ys)


def fused_forward_kernel(x_ref, a1, b1, a2, b2, a3, b3,
                         f1w, f1b, f2w, f2b, o_ref, *, cfg, batch_tile):
    (H1, C1), (H2, C2), (H3, C3) = cfg
    p = _conv_bn_relu_pool(x_ref[...], a1, b1, H1, C1)         # (B*H1/2, W1*C1)
    p = _conv_bn_relu_pool(p, a2, b2, H2, C2)                  # (B*H2/2, W2*C2)
    p = _conv_bn_relu_pool(p, a3, b3, H3, C3)                  # (B*H3/2, W3*C3)

    # Classifier (Dropout == identity at inference).  Lane-concatenate the
    # three pooled rows of every image so fc1 is one (B, 576) x (576, 128)
    # matmul; fc1 rows were permuted host-side to match the PyTorch NCHW
    # flatten order over the strided lane layout.
    rows_per_img = H3 // 2
    wc3 = p.shape[-1]
    p3 = p.reshape(batch_tile, rows_per_img, wc3)
    feat = jnp.concatenate([p3[:, r, :] for r in range(rows_per_img)], axis=-1)
    h = jnp.maximum(
        jnp.dot(feat, f1w[...], preferred_element_type=jnp.float32) + f1b[...],
        0.0)
    o_ref[...] = (jnp.dot(h, f2w[...], preferred_element_type=jnp.float32)
                  + f2b[...])


def emnist_forward(x_nchw, kp, *, hidden, out_dim, batch_tile=8):
    N, Cin, H, W = x_nchw.shape
    bt = max(1, min(batch_tile, N))
    n_pad = _round_up(N, bt)
    x_rows = jnp.transpose(x_nchw, (0, 2, 3, 1)).reshape(N, H, W * Cin)
    if n_pad != N:
        x_rows = jnp.concatenate(
            [x_rows, jnp.zeros((n_pad - N, H, W * Cin), x_rows.dtype)], axis=0)
    x2 = x_rows.reshape(n_pad * H, W * Cin)                    # stacked slab

    cfg = ((H, hidden), (H // 2, hidden * 2), (H // 4, hidden * 4))
    pout = kp["f2b"].shape[-1]
    const2 = lambda g: (0, 0)

    out = pl.pallas_call(
        functools.partial(fused_forward_kernel, cfg=cfg, batch_tile=bt),
        out_shape=jax.ShapeDtypeStruct((n_pad, pout), jnp.float32),
        grid=(n_pad // bt,),
        in_specs=[
            pl.BlockSpec((bt * H, W * Cin), lambda g: (g, 0)),
            pl.BlockSpec(kp["a1"].shape, const2),
            pl.BlockSpec(kp["b1"].shape, const2),
            pl.BlockSpec(kp["a2"].shape, const2),
            pl.BlockSpec(kp["b2"].shape, const2),
            pl.BlockSpec(kp["a3"].shape, const2),
            pl.BlockSpec(kp["b3"].shape, const2),
            pl.BlockSpec(kp["f1w"].shape, const2),
            pl.BlockSpec(kp["f1b"].shape, const2),
            pl.BlockSpec(kp["f2w"].shape, const2),
            pl.BlockSpec(kp["f2b"].shape, const2),
        ],
        out_specs=pl.BlockSpec((bt, pout), lambda g: (g, 0)),
        compiler_params=pltpu.CompilerParams(
            dimension_semantics=("parallel",)),
    )(x2, kp["a1"], kp["b1"], kp["a2"], kp["b2"], kp["a3"], kp["b3"],
      kp["f1w"], kp["f1b"], kp["f2w"], kp["f2b"])
    return out[:N, :out_dim]


# ----------------------------------------------------------------------------
# Parameters (synthetic, deterministic), BatchNorm folding, kernel packing.
# ----------------------------------------------------------------------------
def fold_bn(conv_b, gamma, beta, mean, var, eps=1e-5):
    inv = gamma / jnp.sqrt(var + eps)
    return inv, beta + (conv_b - mean) * inv


def init_params(key, input_shape, hidden, output_shape):
    raw = {}
    cins = [input_shape, hidden, hidden * 2]
    couts = [hidden, hidden * 2, hidden * 4]
    for i, (cin, cout) in enumerate(zip(cins, couts), start=1):
        key, k1, k2, k3, k4, k5, k6 = jax.random.split(key, 7)
        w = 0.1 * jax.random.normal(k1, (3, 3, cin, cout), jnp.float32)
        b = 0.1 * jax.random.normal(k2, (cout,), jnp.float32)
        gamma = 1.0 + 0.1 * jax.random.normal(k3, (cout,), jnp.float32)
        beta = 0.1 * jax.random.normal(k4, (cout,), jnp.float32)
        mean = 0.1 * jax.random.normal(k5, (cout,), jnp.float32)
        var = jnp.abs(jax.random.normal(k6, (cout,), jnp.float32)) + 0.5
        scale, bias = fold_bn(b, gamma, beta, mean, var)
        raw[f"block{i}"] = {"w": w, "scale": scale, "bias": bias}
    din = hidden * 4 * 3 * 3
    key, k1, k2, k3, k4 = jax.random.split(key, 5)
    raw["fc1_w"] = 0.05 * jax.random.normal(k1, (din, 100), jnp.float32)
    raw["fc1_b"] = 0.05 * jax.random.normal(k2, (100,), jnp.float32)
    raw["fc2_w"] = 0.05 * jax.random.normal(k3, (100, output_shape), jnp.float32)
    raw["fc2_b"] = 0.05 * jax.random.normal(k4, (output_shape,), jnp.float32)
    return raw


def pack_params(raw, in_ch, spatial, hidden, out_dim):
    """Host-side (numpy) construction of K-concatenated banded conv matrices,
    folded biases, and layout-permuted / 128-padded FC weights."""
    kp = {}
    chans = [in_ch, hidden, hidden * 2, hidden * 4]
    widths = [spatial, spatial // 2, spatial // 4]      # conv-input width per block
    strides = [in_ch, 2 * chans[1], 2 * chans[2]]       # lane stride of each input

    for i in range(3):
        blk = raw[f"block{i + 1}"]
        w = np.asarray(blk["w"], np.float32)            # (3,3,Cin,Cout)
        scale = np.asarray(blk["scale"], np.float32).reshape(-1)
        bias = np.asarray(blk["bias"], np.float32).reshape(-1)
        cin, cout, wsp, s = chans[i], chans[i + 1], widths[i], strides[i]
        l_in = wsp * s
        ws = w * scale[None, None, None, :]             # fold BN scale into W
        a = np.zeros((3, l_in, wsp * cout), np.float32)
        for dy in range(3):
            for dx in range(3):
                for wo in range(wsp):
                    wi = wo + dx - 1
                    if 0 <= wi < wsp:
                        for ci in range(cin):
                            a[dy, wi * s + ci,
                              wo * cout:(wo + 1) * cout] += ws[dy, dx, ci]
        # K-concatenate over dy: (3*L_in, W*Cout), rows ordered dy=0,1,2.
        kp[f"a{i + 1}"] = jnp.asarray(a.reshape(3 * l_in, wsp * cout))
        kp[f"b{i + 1}"] = jnp.asarray(np.tile(bias, wsp)[None, :])

    hf = wf = spatial // 8
    c3 = chans[3]
    lf = widths[2] * c3                                 # lane width of block3 output
    fc1_w = np.asarray(raw["fc1_w"], np.float32)
    fc1_b = np.asarray(raw["fc1_b"], np.float32)
    fc2_w = np.asarray(raw["fc2_w"], np.float32)
    fc2_b = np.asarray(raw["fc2_b"], np.float32)
    dh = fc1_w.shape[1]
    dh_p = _round_up(dh, 128)
    do_p = _round_up(out_dim, 128)

    # 2-D fc1 weights: kernel feature vector is [row0 lanes | row1 | row2] of
    # the strided (h, 2*w*C3 + c) layout; PyTorch flatten index is
    # c*Hf*Wf + h*Wf + w.  Unused (odd-block) lanes map to zero rows.
    f1 = np.zeros((hf * lf, dh_p), np.float32)
    for h in range(hf):
        for w_ in range(wf):
            for c in range(c3):
                f1[h * lf + 2 * w_ * c3 + c, :dh] = fc1_w[c * hf * wf + h * wf + w_]
    f1b = np.zeros((1, dh_p), np.float32)
    f1b[0, :dh] = fc1_b
    f2 = np.zeros((dh_p, do_p), np.float32)
    f2[:dh, :out_dim] = fc2_w
    f2b = np.zeros((1, do_p), np.float32)
    f2b[0, :out_dim] = fc2_b
    kp["f1w"] = jnp.asarray(f1)
    kp["f1b"] = jnp.asarray(f1b)
    kp["f2w"] = jnp.asarray(f2)
    kp["f2b"] = jnp.asarray(f2b)
    return kp


# ----------------------------------------------------------------------------
# Pure-JAX reference.
# ----------------------------------------------------------------------------
def reference_forward(x_nchw, raw):
    x = jnp.transpose(x_nchw, (0, 2, 3, 1))
    for blk in ("block1", "block2", "block3"):
        p = raw[blk]
        y = jax.lax.conv_general_dilated(
            x, p["w"], (1, 1), "SAME",
            dimension_numbers=("NHWC", "HWIO", "NHWC"))
        y = jnp.maximum(y * p["scale"] + p["bias"], 0.0)
        n, hh, ww, c = y.shape
        x = y.reshape(n, hh // 2, 2, ww // 2, 2, c).max(axis=(2, 4))
    x = jnp.transpose(x, (0, 3, 1, 2)).reshape(x.shape[0], -1)
    x = jnp.maximum(x @ raw["fc1_w"] + raw["fc1_b"], 0.0)
    return x @ raw["fc2_w"] + raw["fc2_b"]


if __name__ == "__main__":
    # Three stride-2 pools must reach a 3x3 map (classifier expects
    # hidden*4*3*3 features), so the input is 24x24: 24 -> 12 -> 6 -> 3.
    batch, in_ch, spatial = 16, 1, 24
    hidden_units, output_shape = 8, 47
    batch_tile = 8                       # images per grid step; grid = (2,)

    key = jax.random.PRNGKey(0)
    key, kx = jax.random.split(key)
    x = jax.random.normal(kx, (batch, in_ch, spatial, spatial), jnp.float32)
    raw = init_params(key, in_ch, hidden_units, output_shape)
    kp = pack_params(raw, in_ch, spatial, hidden_units, output_shape)

    fwd = jax.jit(functools.partial(emnist_forward, hidden=hidden_units,
                                    out_dim=output_shape,
                                    batch_tile=batch_tile))
    out = jax.block_until_ready(fwd(x, kp))
    assert out.shape == (batch, output_shape), out.shape

    ref = jax.block_until_ready(reference_forward(x, raw))
    np.testing.assert_allclose(np.asarray(out), np.asarray(ref),
                               rtol=1e-3, atol=1e-3)
    print("KERNEL_OK")
</pallas_src>

<mosaic_0001>
module attributes {stable_mosaic.version = 11 : i64} {
  func.func @fused_forward_kernel(%arg0: i32, %arg1: memref<192x24xf32, #tpu.memory_space<vmem>>, %arg2: memref<72x192xf32, #tpu.memory_space<vmem>>, %arg3: memref<1x192xf32, #tpu.memory_space<vmem>>, %arg4: memref<576x192xf32, #tpu.memory_space<vmem>>, %arg5: memref<1x192xf32, #tpu.memory_space<vmem>>, %arg6: memref<576x192xf32, #tpu.memory_space<vmem>>, %arg7: memref<1x192xf32, #tpu.memory_space<vmem>>, %arg8: memref<576x128xf32, #tpu.memory_space<vmem>>, %arg9: memref<1x128xf32, #tpu.memory_space<vmem>>, %arg10: memref<128x128xf32, #tpu.memory_space<vmem>>, %arg11: memref<1x128xf32, #tpu.memory_space<vmem>>, %arg12: memref<8x128xf32, #tpu.memory_space<vmem>>) attributes {dimension_semantics = [#tpu.dimension_semantics<parallel>], iteration_bounds = array<i64: 2>, scalar_prefetch = 0 : i64, scratch_operands = 0 : i64, tpu.core_type = #tpu.core_type<tc>, window_params = [{transform_indices = @transform_0, window_bounds = array<i64: 192, 24>}, {pipeline_mode = #tpu.pipeline_mode<synchronous>, transform_indices = @transform_1, window_bounds = array<i64: 72, 192>}, {pipeline_mode = #tpu.pipeline_mode<synchronous>, transform_indices = @transform_2, window_bounds = array<i64: 1, 192>}, {pipeline_mode = #tpu.pipeline_mode<synchronous>, transform_indices = @transform_3, window_bounds = array<i64: 576, 192>}, {pipeline_mode = #tpu.pipeline_mode<synchronous>, transform_indices = @transform_4, window_bounds = array<i64: 1, 192>}, {pipeline_mode = #tpu.pipeline_mode<synchronous>, transform_indices = @transform_5, window_bounds = array<i64: 576, 192>}, {pipeline_mode = #tpu.pipeline_mode<synchronous>, transform_indices = @transform_6, window_bounds = array<i64: 1, 192>}, {pipeline_mode = #tpu.pipeline_mode<synchronous>, transform_indices = @transform_7, window_bounds = array<i64: 576, 128>}, {pipeline_mode = #tpu.pipeline_mode<synchronous>, transform_indices = @transform_8, window_bounds = array<i64: 1, 128>}, {pipeline_mode = #tpu.pipeline_mode<synchronous>, transform_indices = @transform_9, window_bounds = array<i64: 128, 128>}, {pipeline_mode = #tpu.pipeline_mode<synchronous>, transform_indices = @transform_10, window_bounds = array<i64: 1, 128>}, {transform_indices = @transform_11, window_bounds = array<i64: 8, 128>}]} {
    %c0 = arith.constant 0 : index
    %c0_0 = arith.constant 0 : index
    %0 = vector.load %arg1[%c0, %c0_0] : memref<192x24xf32, #tpu.memory_space<vmem>>, vector<192x24xf32>
    %cst = arith.constant 0.000000e+00 : f32
    %1 = vector.broadcast %cst : f32 to vector<1x24xf32>
    %2 = tpu.iota {dimensions = array<i32: 0>} : vector<192x1xi32>
    %c24_i32 = arith.constant 24 : i32
    %c0_i32 = arith.constant 0 : i32
    %3 = arith.cmpi eq, %c24_i32, %c0_i32 : i32
    %c1_i32 = arith.constant 1 : i32
    %4 = arith.select %3, %c1_i32, %c24_i32 : i32
    %5 = vector.broadcast %4 : i32 to vector<192x1xi32>
    %6 = arith.remsi %2, %5 : vector<192x1xi32>
    %c0_i32_1 = arith.constant 0 : i32
    %7 = vector.broadcast %c0_i32_1 : i32 to vector<192x1xi32>
    %8 = arith.cmpi ne, %6, %7 : vector<192x1xi32>
    %c0_i32_2 = arith.constant 0 : i32
    %9 = vector.broadcast %c0_i32_2 : i32 to vector<192x1xi32>
    %10 = arith.cmpi slt, %6, %9 : vector<192x1xi32>
    %c0_i32_3 = arith.constant 0 : i32
    %11 = arith.cmpi slt, %4, %c0_i32_3 : i32
    %12 = vector.broadcast %11 : i1 to vector<192x1xi1>
    %13 = vector.broadcast %12 : vector<192x1xi1> to vector<192x1xi1>
    %14 = arith.xori %10, %13 : vector<192x1xi1>
    %15 = arith.andi %14, %8 : vector<192x1xi1>
    %16 = vector.broadcast %4 : i32 to vector<192x1xi32>
    %17 = arith.addi %6, %16 : vector<192x1xi32>
    %18 = arith.select %15, %17, %6 : vector<192x1xi1>, vector<192x1xi32>
    %c0_i32_4 = arith.constant 0 : i32
    %19 = vector.broadcast %c0_i32_4 : i32 to vector<192x1xi32>
    %20 = arith.cmpi ne, %18, %19 : vector<192x1xi32>
    %21 = vector.extract_strided_slice %0 {offsets = [0, 0], sizes = [191, 24], strides = [1, 1]} : vector<192x24xf32> to vector<191x24xf32>
    %22 = tpu.concatenate %1, %21 in 0 : vector<1x24xf32>, vector<191x24xf32> -> vector<192x24xf32>
    %cst_5 = arith.constant 0.000000e+00 : f32
    %23 = vector.shape_cast %20 : vector<192x1xi1> to vector<192x1xi1>
    %24 = vector.broadcast %23 : vector<192x1xi1> to vector<192x24xi1>
    %25 = vector.broadcast %cst_5 : f32 to vector<192x24xf32>
    %26 = arith.select %24, %22, %25 : vector<192x24xi1>, vector<192x24xf32>
    %c23_i32 = arith.constant 23 : i32
    %27 = vector.broadcast %c23_i32 : i32 to vector<192x1xi32>
    %28 = arith.cmpi ne, %18, %27 : vector<192x1xi32>
    %29 = vector.extract_strided_slice %0 {offsets = [1, 0], sizes = [191, 24], strides = [1, 1]} : vector<192x24xf32> to vector<191x24xf32>
    %30 = tpu.concatenate %29, %1 in 0 : vector<191x24xf32>, vector<1x24xf32> -> vector<192x24xf32>
    %cst_6 = arith.constant 0.000000e+00 : f32
    %31 = vector.shape_cast %28 : vector<192x1xi1> to vector<192x1xi1>
    %32 = vector.broadcast %31 : vector<192x1xi1> to vector<192x24xi1>
    %33 = vector.broadcast %cst_6 : f32 to vector<192x24xf32>
    %34 = arith.select %32, %30, %33 : vector<192x24xi1>, vector<192x24xf32>
    %35 = tpu.concatenate %26, %0, %34 in 1 : vector<192x24xf32>, vector<192x24xf32>, vector<192x24xf32> -> vector<192x72xf32>
    %c0_7 = arith.constant 0 : index
    %c0_8 = arith.constant 0 : index
    %36 = vector.load %arg2[%c0_7, %c0_8] : memref<72x192xf32, #tpu.memory_space<vmem>>, vector<72x192xf32>
    %cst_9 = arith.constant dense<0.000000e+00> : vector<192x192xf32>
    %37 = tpu.matmul %35, %36, %cst_9 {dimension_numbers = #tpu.dot_dimension_numbers<[1], [0], [0], [1], [0, 0, 1, 1], [], []>} : vector<192x72xf32>, vector<72x192xf32>, vector<192x192xf32> -> vector<192x192xf32>
    %c0_10 = arith.constant 0 : index
    %c0_11 = arith.constant 0 : index
    %38 = vector.load %arg3[%c0_10, %c0_11] : memref<1x192xf32, #tpu.memory_space<vmem>>, vector<1x192xf32>
    %39 = vector.broadcast %38 : vector<1x192xf32> to vector<192x192xf32>
    %40 = arith.addf %37, %39 : vector<192x192xf32>
    %cst_12 = arith.constant 0.000000e+00 : f32
    %41 = vector.broadcast %cst_12 : f32 to vector<192x192xf32>
    %42 = arith.maximumf %40, %41 : vector<192x192xf32>
    %43 = vector.shape_cast %42 : vector<192x192xf32> to vector<96x2x192xf32>
    %cst_13 = arith.constant dense<0xFF800000> : vector<96x192xf32>
    %44 = vector.multi_reduction <maximumf>, %43, %cst_13 [1] : vector<96x2x192xf32> to vector<96x192xf32>
    %45 = vector.extract_strided_slice %44 {offsets = [0, 8], sizes = [96, 184], strides = [1, 1]} : vector<96x192xf32> to vector<96x184xf32>
    %46 = vector.extract_strided_slice %44 {offsets = [0, 0], sizes = [96, 8], strides = [1, 1]} : vector<96x192xf32> to vector<96x8xf32>
    %47 = tpu.concatenate %45, %46 in 1 : vector<96x184xf32>, vector<96x8xf32> -> vector<96x192xf32>
    %48 = arith.maximumf %44, %47 : vector<96x192xf32>
    %cst_14 = arith.constant 0.000000e+00 : f32
    %49 = vector.broadcast %cst_14 : f32 to vector<1x192xf32>
    %50 = tpu.iota {dimensions = array<i32: 0>} : vector<96x1xi32>
    %c12_i32 = arith.constant 12 : i32
    %c0_i32_15 = arith.constant 0 : i32
    %51 = arith.cmpi eq, %c12_i32, %c0_i32_15 : i32
    %c1_i32_16 = arith.constant 1 : i32
    %52 = arith.select %51, %c1_i32_16, %c12_i32 : i32
    %53 = vector.broadcast %52 : i32 to vector<96x1xi32>
    %54 = arith.remsi %50, %53 : vector<96x1xi32>
    %c0_i32_17 = arith.constant 0 : i32
    %55 = vector.broadcast %c0_i32_17 : i32 to vector<96x1xi32>
    %56 = arith.cmpi ne, %54, %55 : vector<96x1xi32>
    %c0_i32_18 = arith.constant 0 : i32
    %57 = vector.broadcast %c0_i32_18 : i32 to vector<96x1xi32>
    %58 = arith.cmpi slt, %54, %57 : vector<96x1xi32>
    %c0_i32_19 = arith.constant 0 : i32
    %59 = arith.cmpi slt, %52, %c0_i32_19 : i32
    %60 = vector.broadcast %59 : i1 to vector<96x1xi1>
    %61 = vector.broadcast %60 : vector<96x1xi1> to vector<96x1xi1>
    %62 = arith.xori %58, %61 : vector<96x1xi1>
    %63 = arith.andi %62, %56 : vector<96x1xi1>
    %64 = vector.broadcast %52 : i32 to vector<96x1xi32>
    %65 = arith.addi %54, %64 : vector<96x1xi32>
    %66 = arith.select %63, %65, %54 : vector<96x1xi1>, vector<96x1xi32>
    %c0_i32_20 = arith.constant 0 : i32
    %67 = vector.broadcast %c0_i32_20 : i32 to vector<96x1xi32>
    %68 = arith.cmpi ne, %66, %67 : vector<96x1xi32>
    %69 = vector.extract_strided_slice %48 {offsets = [0, 0], sizes = [95, 192], strides = [1, 1]} : vector<96x192xf32> to vector<95x192xf32>
    %70 = tpu.concatenate %49, %69 in 0 : vector<1x192xf32>, vector<95x192xf32> -> vector<96x192xf32>
    %cst_21 = arith.constant 0.000000e+00 : f32
    %71 = vector.shape_cast %68 : vector<96x1xi1> to vector<96x1xi1>
    %72 = vector.broadcast %71 : vector<96x1xi1> to vector<96x192xi1>
    %73 = vector.broadcast %cst_21 : f32 to vector<96x192xf32>
    %74 = arith.select %72, %70, %73 : vector<96x192xi1>, vector<96x192xf32>
    %c11_i32 = arith.constant 11 : i32
    %75 = vector.broadcast %c11_i32 : i32 to vector<96x1xi32>
    %76 = arith.cmpi ne, %66, %75 : vector<96x1xi32>
    %77 = vector.extract_strided_slice %48 {offsets = [1, 0], sizes = [95, 192], strides = [1, 1]} : vector<96x192xf32> to vector<95x192xf32>
    %78 = tpu.concatenate %77, %49 in 0 : vector<95x192xf32>, vector<1x192xf32> -> vector<96x192xf32>
    %cst_22 = arith.constant 0.000000e+00 : f32
    %79 = vector.shape_cast %76 : vector<96x1xi1> to vector<96x1xi1>
    %80 = vector.broadcast %79 : vector<96x1xi1> to vector<96x192xi1>
    %81 = vector.broadcast %cst_22 : f32 to vector<96x192xf32>
    %82 = arith.select %80, %78, %81 : vector<96x192xi1>, vector<96x192xf32>
    %83 = tpu.concatenate %74, %48, %82 in 1 : vector<96x192xf32>, vector<96x192xf32>, vector<96x192xf32> -> vector<96x576xf32>
    %c0_23 = arith.constant 0 : index
    %c0_24 = arith.constant 0 : index
    %84 = vector.load %arg4[%c0_23, %c0_24] : memref<576x192xf32, #tpu.memory_space<vmem>>, vector<576x192xf32>
    %cst_25 = arith.constant dense<0.000000e+00> : vector<96x192xf32>
    %85 = tpu.matmul %83, %84, %cst_25 {dimension_numbers = #tpu.dot_dimension_numbers<[1], [0], [0], [1], [0, 0, 1, 1], [], []>} : vector<96x576xf32>, vector<576x192xf32>, vector<96x192xf32> -> vector<96x192xf32>
    %c0_26 = arith.constant 0 : index
    %c0_27 = arith.constant 0 : index
    %86 = vector.load %arg5[%c0_26, %c0_27] : memref<1x192xf32, #tpu.memory_space<vmem>>, vector<1x192xf32>
    %87 = vector.broadcast %86 : vector<1x192xf32> to vector<96x192xf32>
    %88 = arith.addf %85, %87 : vector<96x192xf32>
    %cst_28 = arith.constant 0.000000e+00 : f32
    %89 = vector.broadcast %cst_28 : f32 to vector<96x192xf32>
    %90 = arith.maximumf %88, %89 : vector<96x192xf32>
    %91 = vector.shape_cast %90 : vector<96x192xf32> to vector<48x2x192xf32>
    %cst_29 = arith.constant dense<0xFF800000> : vector<48x192xf32>
    %92 = vector.multi_reduction <maximumf>, %91, %cst_29 [1] : vector<48x2x192xf32> to vector<48x192xf32>
    %93 = vector.extract_strided_slice %92 {offsets = [0, 16], sizes = [48, 176], strides = [1, 1]} : vector<48x192xf32> to vector<48x176xf32>
    %94 = vector.extract_strided_slice %92 {offsets = [0, 0], sizes = [48, 16], strides = [1, 1]} : vector<48x192xf32> to vector<48x16xf32>
    %95 = tpu.concatenate %93, %94 in 1 : vector<48x176xf32>, vector<48x16xf32> -> vector<48x192xf32>
    %96 = arith.maximumf %92, %95 : vector<48x192xf32>
    %cst_30 = arith.constant 0.000000e+00 : f32
    %97 = vector.broadcast %cst_30 : f32 to vector<1x192xf32>
    %98 = tpu.iota {dimensions = array<i32: 0>} : vector<48x1xi32>
    %c6_i32 = arith.constant 6 : i32
    %c0_i32_31 = arith.constant 0 : i32
    %99 = arith.cmpi eq, %c6_i32, %c0_i32_31 : i32
    %c1_i32_32 = arith.constant 1 : i32
    %100 = arith.select %99, %c1_i32_32, %c6_i32 : i32
    %101 = vector.broadcast %100 : i32 to vector<48x1xi32>
    %102 = arith.remsi %98, %101 : vector<48x1xi32>
    %c0_i32_33 = arith.constant 0 : i32
    %103 = vector.broadcast %c0_i32_33 : i32 to vector<48x1xi32>
    %104 = arith.cmpi ne, %102, %103 : vector<48x1xi32>
    %c0_i32_34 = arith.constant 0 : i32
    %105 = vector.broadcast %c0_i32_34 : i32 to vector<48x1xi32>
    %106 = arith.cmpi slt, %102, %105 : vector<48x1xi32>
    %c0_i32_35 = arith.constant 0 : i32
    %107 = arith.cmpi slt, %100, %c0_i32_35 : i32
    %108 = vector.broadcast %107 : i1 to vector<48x1xi1>
    %109 = vector.broadcast %108 : vector<48x1xi1> to vector<48x1xi1>
    %110 = arith.xori %106, %109 : vector<48x1xi1>
    %111 = arith.andi %110, %104 : vector<48x1xi1>
    %112 = vector.broadcast %100 : i32 to vector<48x1xi32>
    %113 = arith.addi %102, %112 : vector<48x1xi32>
    %114 = arith.select %111, %113, %102 : vector<48x1xi1>, vector<48x1xi32>
    %c0_i32_36 = arith.constant 0 : i32
    %115 = vector.broadcast %c0_i32_36 : i32 to vector<48x1xi32>
    %116 = arith.cmpi ne, %114, %115 : vector<48x1xi32>
    %117 = vector.extract_strided_slice %96 {offsets = [0, 0], sizes = [47, 192], strides = [1, 1]} : vector<48x192xf32> to vector<47x192xf32>
    %118 = tpu.concatenate %97, %117 in 0 : vector<1x192xf32>, vector<47x192xf32> -> vector<48x192xf32>
    %cst_37 = arith.constant 0.000000e+00 : f32
    %119 = vector.shape_cast %116 : vector<48x1xi1> to vector<48x1xi1>
    %120 = vector.broadcast %119 : vector<48x1xi1> to vector<48x192xi1>
    %121 = vector.broadcast %cst_37 : f32 to vector<48x192xf32>
    %122 = arith.select %120, %118, %121 : vector<48x192xi1>, vector<48x192xf32>
    %c5_i32 = arith.constant 5 : i32
    %123 = vector.broadcast %c5_i32 : i32 to vector<48x1xi32>
    %124 = arith.cmpi ne, %114, %123 : vector<48x1xi32>
    %125 = vector.extract_strided_slice %96 {offsets = [1, 0], sizes = [47, 192], strides = [1, 1]} : vector<48x192xf32> to vector<47x192xf32>
    %126 = tpu.concatenate %125, %97 in 0 : vector<47x192xf32>, vector<1x192xf32> -> vector<48x192xf32>
    %cst_38 = arith.constant 0.000000e+00 : f32
    %127 = vector.shape_cast %124 : vector<48x1xi1> to vector<48x1xi1>
    %128 = vector.broadcast %127 : vector<48x1xi1> to vector<48x192xi1>
    %129 = vector.broadcast %cst_38 : f32 to vector<48x192xf32>
    %130 = arith.select %128, %126, %129 : vector<48x192xi1>, vector<48x192xf32>
    %131 = tpu.concatenate %122, %96, %130 in 1 : vector<48x192xf32>, vector<48x192xf32>, vector<48x192xf32> -> vector<48x576xf32>
    %c0_39 = arith.constant 0 : index
    %c0_40 = arith.constant 0 : index
    %132 = vector.load %arg6[%c0_39, %c0_40] : memref<576x192xf32, #tpu.memory_space<vmem>>, vector<576x192xf32>
    %cst_41 = arith.constant dense<0.000000e+00> : vector<48x192xf32>
    %133 = tpu.matmul %131, %132, %cst_41 {dimension_numbers = #tpu.dot_dimension_numbers<[1], [0], [0], [1], [0, 0, 1, 1], [], []>} : vector<48x576xf32>, vector<576x192xf32>, vector<48x192xf32> -> vector<48x192xf32>
    %c0_42 = arith.constant 0 : index
    %c0_43 = arith.constant 0 : index
    %134 = vector.load %arg7[%c0_42, %c0_43] : memref<1x192xf32, #tpu.memory_space<vmem>>, vector<1x192xf32>
    %135 = vector.broadcast %134 : vector<1x192xf32> to vector<48x192xf32>
    %136 = arith.addf %133, %135 : vector<48x192xf32>
    %cst_44 = arith.constant 0.000000e+00 : f32
    %137 = vector.broadcast %cst_44 : f32 to vector<48x192xf32>
    %138 = arith.maximumf %136, %137 : vector<48x192xf32>
    %139 = vector.shape_cast %138 : vector<48x192xf32> to vector<24x2x192xf32>
    %cst_45 = arith.constant dense<0xFF800000> : vector<24x192xf32>
    %140 = vector.multi_reduction <maximumf>, %139, %cst_45 [1] : vector<24x2x192xf32> to vector<24x192xf32>
    %141 = vector.extract_strided_slice %140 {offsets = [0, 32], sizes = [24, 160], strides = [1, 1]} : vector<24x192xf32> to vector<24x160xf32>
    %142 = vector.extract_strided_slice %140 {offsets = [0, 0], sizes = [24, 32], strides = [1, 1]} : vector<24x192xf32> to vector<24x32xf32>
    %143 = tpu.concatenate %141, %142 in 1 : vector<24x160xf32>, vector<24x32xf32> -> vector<24x192xf32>
    %144 = arith.maximumf %140, %143 : vector<24x192xf32>
    %145 = vector.shape_cast %144 : vector<24x192xf32> to vector<8x3x192xf32>
    %146 = vector.extract_strided_slice %145 {offsets = [0, 0, 0], sizes = [8, 1, 192], strides = [1, 1, 1]} : vector<8x3x192xf32> to vector<8x1x192xf32>
    %147 = vector.shape_cast %146 : vector<8x1x192xf32> to vector<8x192xf32>
    %148 = vector.extract_strided_slice %145 {offsets = [0, 1, 0], sizes = [8, 1, 192], strides = [1, 1, 1]} : vector<8x3x192xf32> to vector<8x1x192xf32>
    %149 = vector.shape_cast %148 : vector<8x1x192xf32> to vector<8x192xf32>
    %150 = vector.extract_strided_slice %145 {offsets = [0, 2, 0], sizes = [8, 1, 192], strides = [1, 1, 1]} : vector<8x3x192xf32> to vector<8x1x192xf32>
    %151 = vector.shape_cast %150 : vector<8x1x192xf32> to vector<8x192xf32>
    %152 = tpu.concatenate %147, %149, %151 in 1 : vector<8x192xf32>, vector<8x192xf32>, vector<8x192xf32> -> vector<8x576xf32>
    %c0_46 = arith.constant 0 : index
    %c0_47 = arith.constant 0 : index
    %153 = vector.load %arg8[%c0_46, %c0_47] : memref<576x128xf32, #tpu.memory_space<vmem>>, vector<576x128xf32>
    %cst_48 = arith.constant dense<0.000000e+00> : vector<8x128xf32>
    %154 = tpu.matmul %152, %153, %cst_48 {dimension_numbers = #tpu.dot_dimension_numbers<[1], [0], [0], [1], [0, 0, 1, 1], [], []>} : vector<8x576xf32>, vector<576x128xf32>, vector<8x128xf32> -> vector<8x128xf32>
    %c0_49 = arith.constant 0 : index
    %c0_50 = arith.constant 0 : index
    %155 = vector.load %arg9[%c0_49, %c0_50] : memref<1x128xf32, #tpu.memory_space<vmem>>, vector<1x128xf32>
    %156 = vector.broadcast %155 : vector<1x128xf32> to vector<8x128xf32>
    %157 = arith.addf %154, %156 : vector<8x128xf32>
    %cst_51 = arith.constant 0.000000e+00 : f32
    %158 = vector.broadcast %cst_51 : f32 to vector<8x128xf32>
    %159 = arith.maximumf %157, %158 : vector<8x128xf32>
    %c0_52 = arith.constant 0 : index
    %c0_53 = arith.constant 0 : index
    %160 = vector.load %arg10[%c0_52, %c0_53] : memref<128x128xf32, #tpu.memory_space<vmem>>, vector<128x128xf32>
    %cst_54 = arith.constant dense<0.000000e+00> : vector<8x128xf32>
    %161 = tpu.matmul %159, %160, %cst_54 {dimension_numbers = #tpu.dot_dimension_numbers<[1], [0], [0], [1], [0, 0, 1, 1], [], []>} : vector<8x128xf32>, vector<128x128xf32>, vector<8x128xf32> -> vector<8x128xf32>
    %c0_55 = arith.constant 0 : index
    %c0_56 = arith.constant 0 : index
    %162 = vector.load %arg11[%c0_55, %c0_56] : memref<1x128xf32, #tpu.memory_space<vmem>>, vector<1x128xf32>
    %163 = vector.broadcast %162 : vector<1x128xf32> to vector<8x128xf32>
    %164 = arith.addf %161, %163 : vector<8x128xf32>
    %c0_57 = arith.constant 0 : index
    %c0_58 = arith.constant 0 : index
    %165 = vector.load %arg12[%c0_57, %c0_58] : memref<8x128xf32, #tpu.memory_space<vmem>>, vector<8x128xf32>
    tpu.vector_store %arg12[%c0_57, %c0_58], %164 {strides = array<i32>} : memref<8x128xf32, #tpu.memory_space<vmem>>, vector<8x128xf32>,
    return
  }
  func.func @transform_0(%arg0: i32) -> (i32, i32) {
    %c0_i32 = arith.constant 0 : i32
    %c0_i32_0 = arith.constant 0 : i32
    return %arg0, %c0_i32 : i32, i32
  }
  func.func @transform_1(%arg0: i32) -> (i32, i32) {
    %c0_i32 = arith.constant 0 : i32
    %c0_i32_0 = arith.constant 0 : i32
    %c0_i32_1 = arith.constant 0 : i32
    return %c0_i32, %c0_i32_0 : i32, i32
  }
  func.func @transform_2(%arg0: i32) -> (i32, i32) {
    %c0_i32 = arith.constant 0 : i32
    %c0_i32_0 = arith.constant 0 : i32
    %c0_i32_1 = arith.constant 0 : i32
    return %c0_i32, %c0_i32_0 : i32, i32
  }
  func.func @transform_3(%arg0: i32) -> (i32, i32) {
    %c0_i32 = arith.constant 0 : i32
    %c0_i32_0 = arith.constant 0 : i32
    %c0_i32_1 = arith.constant 0 : i32
    return %c0_i32, %c0_i32_0 : i32, i32
  }
  func.func @transform_4(%arg0: i32) -> (i32, i32) {
    %c0_i32 = arith.constant 0 : i32
    %c0_i32_0 = arith.constant 0 : i32
    %c0_i32_1 = arith.constant 0 : i32
    return %c0_i32, %c0_i32_0 : i32, i32
  }
  func.func @transform_5(%arg0: i32) -> (i32, i32) {
    %c0_i32 = arith.constant 0 : i32
    %c0_i32_0 = arith.constant 0 : i32
    %c0_i32_1 = arith.constant 0 : i32
    return %c0_i32, %c0_i32_0 : i32, i32
  }
  func.func @transform_6(%arg0: i32) -> (i32, i32) {
    %c0_i32 = arith.constant 0 : i32
    %c0_i32_0 = arith.constant 0 : i32
    %c0_i32_1 = arith.constant 0 : i32
    return %c0_i32, %c0_i32_0 : i32, i32
  }
  func.func @transform_7(%arg0: i32) -> (i32, i32) {
    %c0_i32 = arith.constant 0 : i32
    %c0_i32_0 = arith.constant 0 : i32
    %c0_i32_1 = arith.constant 0 : i32
    return %c0_i32, %c0_i32_0 : i32, i32
  }
  func.func @transform_8(%arg0: i32) -> (i32, i32) {
    %c0_i32 = arith.constant 0 : i32
    %c0_i32_0 = arith.constant 0 : i32
    %c0_i32_1 = arith.constant 0 : i32
    return %c0_i32, %c0_i32_0 : i32, i32
  }
  func.func @transform_9(%arg0: i32) -> (i32, i32) {
    %c0_i32 = arith.constant 0 : i32
    %c0_i32_0 = arith.constant 0 : i32
    %c0_i32_1 = arith.constant 0 : i32
    return %c0_i32, %c0_i32_0 : i32, i32
  }
  func.func @transform_10(%arg0: i32) -> (i32, i32) {
    %c0_i32 = arith.constant 0 : i32
    %c0_i32_0 = arith.constant 0 : i32
    %c0_i32_1 = arith.constant 0 : i32
    return %c0_i32, %c0_i32_0 : i32, i32
  }
  func.func @transform_11(%arg0: i32) -> (i32, i32) {
    %c0_i32 = arith.constant 0 : i32
    %c0_i32_0 = arith.constant 0 : i32
    return %arg0, %c0_i32 : i32, i32
  }
}

</mosaic_0001>

<llo_original>
// kernel: emnist_forward.1
$region0: #{emnist_forward.1}
  #allocation0 [shape = 'u32[]', space=smem, size = 0x4, offset = 0x4, fixed_abs, tag = 'smem constant byte address 0x4 - core index']
  #allocation1 [shape = 'u32[144,128]{1,0:T(1,128)}', space=vmem, size = 0x12000, scoped, tag = 'internal scratch']
  %s0 = inlined_call_operand.vmem [shape: f32[384,24], index: 0, kind: input, shape index: {}]
  %s1 = inlined_call_operand.vmem [shape: f32[72,192], index: 1, kind: input, shape index: {}]
  %s2 = inlined_call_operand.vmem [shape: f32[1,192], index: 2, kind: input, shape index: {}]
  %s3 = inlined_call_operand.vmem [shape: f32[576,192], index: 3, kind: input, shape index: {}]
  %s4 = inlined_call_operand.vmem [shape: f32[1,192], index: 4, kind: input, shape index: {}]
  %s5 = inlined_call_operand.vmem [shape: f32[576,192], index: 5, kind: input, shape index: {}]
  %s6 = inlined_call_operand.vmem [shape: f32[1,192], index: 6, kind: input, shape index: {}]
  %s7 = inlined_call_operand.vmem [shape: f32[576,128], index: 7, kind: input, shape index: {}]
  %s8 = inlined_call_operand.vmem [shape: f32[1,128], index: 8, kind: input, shape index: {}]
  %s9 = inlined_call_operand.vmem [shape: f32[128,128], index: 9, kind: input, shape index: {}]
  %s10 = inlined_call_operand.vmem [shape: f32[1,128], index: 10, kind: input, shape index: {}]
  %s11 = inlined_call_operand.hbm [shape: f32[16,128], index: 11, kind: output, shape index: {}]
  %s12 = sld [smem:[#allocation0]]
  $region77: #{emnist_forward.1} parent=0
    _
  %s14 = ssub.s32 1, %s12
  %s15 = scalar_select 0, %s14, %s12
  $region1: #{emnist_forward.1} parent=0
    #allocation2 [shape = 'u8[8192]{0}', space=vmem, size = 0x2000, scoped, tag = 'output window, operand 0']
    #allocation3 [shape = 's32[2]{0}', space=sflag, size = 0x8, scoped, tag = 'scoped memory for emnist_forward.1']
    %16 = vsyncpa [#allocation3], 0
    %s17 = scalar_lea.sflag [#allocation3], 1
    %18 = vsyncpa %s17, 0
    loop: start=0, step=1, limit=4
    $region2: #{emnist_forward.1} parent=1 // loop_pre_header
      _
    $region3: #{emnist_forward.1} parent=1 // loop_header
      %s20 = sphi 0, %s24
      %p21 = scmp.ge.s32.totalorder %s20, 4
      %s30 = sphi 0, %s32
      %s33 = sphi 0, %s30
      %s34 = sphi 0, %s33
      %s50 = sphi 0, %s34
      %s54 = sphi 0, %s54
      %s56 = sphi 0, %s54
      %s57 = sphi 0, %s56
      %s71 = sphi 0, %s57
      %s75 = sphi 0, %s75
      %s77 = sphi 0, %s75
      %s78 = sphi 0, %s77
      %s92 = sphi 0, %s78
      %s96 = sphi 0, %s96
      %s98 = sphi 0, %s96
      %s99 = sphi 0, %s98
      %s113 = sphi 0, %s99
      %s117 = sphi 0, %s117
      %s119 = sphi 0, %s117
      %s120 = sphi 0, %s119
      %s134 = sphi 0, %s120
      %s138 = sphi 0, %s138
      %s140 = sphi 0, %s138
      %s141 = sphi 0, %s140
      %s155 = sphi 0, %s141
      %s159 = sphi 0, %s159
      %s161 = sphi 0, %s159
      %s162 = sphi 0, %s161
      %s176 = sphi 0, %s162
      %s180 = sphi 0, %s180
      %s182 = sphi 0, %s180
      %s183 = sphi 0, %s182
      %s197 = sphi 0, %s183
      %s201 = sphi 0, %s201
      %s203 = sphi 0, %s201
      %s204 = sphi 0, %s203
      %s218 = sphi 0, %s204
      %s222 = sphi 0, %s222
      %s224 = sphi 0, %s222
      %s225 = sphi 0, %s224
      %s239 = sphi 0, %s225
      %s243 = sphi 0, %s243
      %s245 = sphi 0, %s243
      %s246 = sphi 0, %s245
      %s260 = sphi 0, %s246
      %s266 = sphi 0, %s268
      %s269 = sphi 0, %s266
      %s270 = sphi 0, %s269
      %s286 = sphi 0, %s270
    $region4: #{emnist_forward.1} parent=1 // loop_header_branch
      %23 = sbr.rel (%p21) target = $region8
    $region5: #{emnist_forward.1} parent=1 // loop_body
      %s25 = ssub.s32 %s20, 1
      %s26 = ssub.s32 %s20, 2
      %s27 = sadd.s32 %s20, 1
      %s28 = ssub.s32 %s20, %s27
      %p29 = scmp.eq.s32.totalorder %s28, 0
      %s31 = sadd.s32 %s30, 1
      %s32 = scalar_select %p29, %s30, %s31
      %p35 = pneg %p29
      %p36 = scmp.eq.s32.totalorder %s20, 1
      %p37 = por %p35, %p36
      %p38 = scmp.ne.s32.totalorder %s30, %s33
      %p39 = scmp.eq.s32.totalorder %s20, 0
      %p40 = por %p38, %p39
      %p41 = scmp.ne.s32.totalorder %s30, %s33
      %p42 = scmp.eq.s32.totalorder %s25, 1
      %p43 = por %p41, %p42
      %p44 = scmp.ne.s32.totalorder %s33, %s34
      %p45 = scmp.eq.s32.totalorder %s25, 0
      %p46 = por %p44, %p45
      %p47 = scmp.ne.s32.totalorder %s33, %s34
      %p48 = scmp.eq.s32.totalorder %s26, 1
      %p49 = por %p47, %p48
      %p51 = scmp.ne.s32.totalorder %s34, %s50
      %p52 = scmp.eq.s32.totalorder %s26, 0
      %p53 = por %p51, %p52
      %s55 = sadd.s32 %s54, 1
      %p58 = scmp.eq.s32.totalorder %s20, 1
      %p59 = scmp.ne.s32.totalorder %s54, %s56
      %p60 = scmp.eq.s32.totalorder %s20, 0
      %p61 = por %p59, %p60
      %p62 = scmp.ne.s32.totalorder %s54, %s56
      %p63 = scmp.eq.s32.totalorder %s25, 1
      %p64 = por %p62, %p63
      %p65 = scmp.ne.s32.totalorder %s56, %s57
      %p66 = scmp.eq.s32.totalorder %s25, 0
      %p67 = por %p65, %p66
      %p68 = scmp.ne.s32.totalorder %s56, %s57
      %p69 = scmp.eq.s32.totalorder %s26, 1
      %p70 = por %p68, %p69
      %p72 = scmp.ne.s32.totalorder %s57, %s71
      %p73 = scmp.eq.s32.totalorder %s26, 0
      %p74 = por %p72, %p73
      %s76 = sadd.s32 %s75, 1
      %p79 = scmp.eq.s32.totalorder %s20, 1
      %p80 = scmp.ne.s32.totalorder %s75, %s77
      %p81 = scmp.eq.s32.totalorder %s20, 0
      %p82 = por %p80, %p81
      %p83 = scmp.ne.s32.totalorder %s75, %s77
      %p84 = scmp.eq.s32.totalorder %s25, 1
      %p85 = por %p83, %p84
      %p86 = scmp.ne.s32.totalorder %s77, %s78
      %p87 = scmp.eq.s32.totalorder %s25, 0
      %p88 = por %p86, %p87
      %p89 = scmp.ne.s32.totalorder %s77, %s78
      %p90 = scmp.eq.s32.totalorder %s26, 1
      %p91 = por %p89, %p90
      %p93 = scmp.ne.s32.totalorder %s78, %s92
      %p94 = scmp.eq.s32.totalorder %s26, 0
      %p95 = por %p93, %p94
      %s97 = sadd.s32 %s96, 1
      %p100 = scmp.eq.s32.totalorder %s20, 1
      %p101 = scmp.ne.s32.totalorder %s96, %s98
      %p102 = scmp.eq.s32.totalorder %s20, 0
      %p103 = por %p101, %p102
      %p104 = scmp.ne.s32.totalorder %s96, %s98
      %p105 = scmp.eq.s32.totalorder %s25, 1
      %p106 = por %p104, %p105
      %p107 = scmp.ne.s32.totalorder %s98, %s99
      %p108 = scmp.eq.s32.totalorder %s25, 0
      %p109 = por %p107, %p108
      %p110 = scmp.ne.s32.totalorder %s98, %s99
      %p111 = scmp.eq.s32.totalorder %s26, 1
      %p112 = por %p110, %p111
      %p114 = scmp.ne.s32.totalorder %s99, %s113
      %p115 = scmp.eq.s32.totalorder %s26, 0
      %p116 = por %p114, %p115
      %s118 = sadd.s32 %s117, 1
      %p121 = scmp.eq.s32.totalorder %s20, 1
      %p122 = scmp.ne.s32.totalorder %s117, %s119
      %p123 = scmp.eq.s32.totalorder %s20, 0
      %p124 = por %p122, %p123
      %p125 = scmp.ne.s32.totalorder %s117, %s119
      %p126 = scmp.eq.s32.totalorder %s25, 1
      %p127 = por %p125, %p126
      %p128 = scmp.ne.s32.totalorder %s119, %s120
      %p129 = scmp.eq.s32.totalorder %s25, 0
      %p130 = por %p128, %p129
      %p131 = scmp.ne.s32.totalorder %s119, %s120
      %p132 = scmp.eq.s32.totalorder %s26, 1
      %p133 = por %p131, %p132
      %p135 = scmp.ne.s32.totalorder %s120, %s134
      %p136 = scmp.eq.s32.totalorder %s26, 0
      %p137 = por %p135, %p136
      %s139 = sadd.s32 %s138, 1
      %p142 = scmp.eq.s32.totalorder %s20, 1
      %p143 = scmp.ne.s32.totalorder %s138, %s140
      %p144 = scmp.eq.s32.totalorder %s20, 0
      %p145 = por %p143, %p144
      %p146 = scmp.ne.s32.totalorder %s138, %s140
      %p147 = scmp.eq.s32.totalorder %s25, 1
      %p148 = por %p146, %p147
      %p149 = scmp.ne.s32.totalorder %s140, %s141
      %p150 = scmp.eq.s32.totalorder %s25, 0
      %p151 = por %p149, %p150
      %p152 = scmp.ne.s32.totalorder %s140, %s141
      %p153 = scmp.eq.s32.totalorder %s26, 1
      %p154 = por %p152, %p153
      %p156 = scmp.ne.s32.totalorder %s141, %s155
      %p157 = scmp.eq.s32.totalorder %s26, 0
      %p158 = por %p156, %p157
      %s160 = sadd.s32 %s159, 1
      %p163 = scmp.eq.s32.totalorder %s20, 1
      %p164 = scmp.ne.s32.totalorder %s159, %s161
      %p165 = scmp.eq.s32.totalorder %s20, 0
      %p166 = por %p164, %p165
      %p167 = scmp.ne.s32.totalorder %s159, %s161
      %p168 = scmp.eq.s32.totalorder %s25, 1
      %p169 = por %p167, %p168
      %p170 = scmp.ne.s32.totalorder %s161, %s162
      %p171 = scmp.eq.s32.totalorder %s25, 0
      %p172 = por %p170, %p171
      %p173 = scmp.ne.s32.totalorder %s161, %s162
      %p174 = scmp.eq.s32.totalorder %s26, 1
      %p175 = por %p173, %p174
      %p177 = scmp.ne.s32.totalorder %s162, %s176
      %p178 = scmp.eq.s32.totalorder %s26, 0
      %p179 = por %p177, %p178
      %s181 = sadd.s32 %s180, 1
      %p184 = scmp.eq.s32.totalorder %s20, 1
      %p185 = scmp.ne.s32.totalorder %s180, %s182
      %p186 = scmp.eq.s32.totalorder %s20, 0
      %p187 = por %p185, %p186
      %p188 = scmp.ne.s32.totalorder %s180, %s182
      %p189 = scmp.eq.s32.totalorder %s25, 1
      %p190 = por %p188, %p189
      %p191 = scmp.ne.s32.totalorder %s182, %s183
      %p192 = scmp.eq.s32.totalorder %s25, 0
      %p193 = por %p191, %p192
      %p194 = scmp.ne.s32.totalorder %s182, %s183
      %p195 = scmp.eq.s32.totalorder %s26, 1
      %p196 = por %p194, %p195
      %p198 = scmp.ne.s32.totalorder %s183, %s197
      %p199 = scmp.eq.s32.totalorder %s26, 0
      %p200 = por %p198, %p199
      %s202 = sadd.s32 %s201, 1
      %p205 = scmp.eq.s32.totalorder %s20, 1
      %p206 = scmp.ne.s32.totalorder %s201, %s203
      %p207 = scmp.eq.s32.totalorder %s20, 0
      %p208 = por %p206, %p207
      %p209 = scmp.ne.s32.totalorder %s201, %s203
      %p210 = scmp.eq.s32.totalorder %s25, 1
      %p211 = por %p209, %p210
      %p212 = scmp.ne.s32.totalorder %s203, %s204
      %p213 = scmp.eq.s32.totalorder %s25, 0
      %p214 = por %p212, %p213
      %p215 = scmp.ne.s32.totalorder %s203, %s204
      %p216 = scmp.eq.s32.totalorder %s26, 1
      %p217 = por %p215, %p216
      %p219 = scmp.ne.s32.totalorder %s204, %s218
      %p220 = scmp.eq.s32.totalorder %s26, 0
      %p221 = por %p219, %p220
      %s223 = sadd.s32 %s222, 1
      %p226 = scmp.eq.s32.totalorder %s20, 1
      %p227 = scmp.ne.s32.totalorder %s222, %s224
      %p228 = scmp.eq.s32.totalorder %s20, 0
      %p229 = por %p227, %p228
      %p230 = scmp.ne.s32.totalorder %s222, %s224
      %p231 = scmp.eq.s32.totalorder %s25, 1
      %p232 = por %p230, %p231
      %p233 = scmp.ne.s32.totalorder %s224, %s225
      %p234 = scmp.eq.s32.totalorder %s25, 0
      %p235 = por %p233, %p234
      %p236 = scmp.ne.s32.totalorder %s224, %s225
      %p237 = scmp.eq.s32.totalorder %s26, 1
      %p238 = por %p236, %p237
      %p240 = scmp.ne.s32.totalorder %s225, %s239
      %p241 = scmp.eq.s32.totalorder %s26, 0
      %p242 = por %p240, %p241
      %s244 = sadd.s32 %s243, 1
      %p247 = scmp.eq.s32.totalorder %s20, 1
      %p248 = scmp.ne.s32.totalorder %s243, %s245
      %p249 = scmp.eq.s32.totalorder %s20, 0
      %p250 = por %p248, %p249
      %p251 = scmp.ne.s32.totalorder %s243, %s245
      %p252 = scmp.eq.s32.totalorder %s25, 1
      %p253 = por %p251, %p252
      %p254 = scmp.ne.s32.totalorder %s245, %s246
      %p255 = scmp.eq.s32.totalorder %s25, 0
      %p256 = por %p254, %p255
      %p257 = scmp.ne.s32.totalorder %s245, %s246
      %p258 = scmp.eq.s32.totalorder %s26, 1
      %p259 = por %p257, %p258
      %p261 = scmp.ne.s32.totalorder %s246, %s260
      %p262 = scmp.eq.s32.totalorder %s26, 0
      %p263 = por %p261, %p262
      %s264 = ssub.s32 %s20, %s27
      %p265 = scmp.eq.s32.totalorder %s264, 0
      %s267 = sadd.s32 %s266, 1
      %s268 = scalar_select %p265, %s266, %s267
      %p271 = pneg %p265
      %p272 = scmp.eq.s32.totalorder %s20, 1
      %p273 = por %p271, %p272
      %p274 = scmp.ne.s32.totalorder %s266, %s269
      %p275 = scmp.eq.s32.totalorder %s20, 0
      %p276 = por %p274, %p275
      %p277 = scmp.ne.s32.totalorder %s266, %s269
      %p278 = scmp.eq.s32.totalorder %s25, 1
      %p279 = por %p277, %p278
      %p280 = scmp.ne.s32.totalorder %s269, %s270
      %p281 = scmp.eq.s32.totalorder %s25, 0
      %p282 = por %p280, %p281
      %p283 = scmp.ne.s32.totalorder %s269, %s270
      %p284 = scmp.eq.s32.totalorder %s26, 1
      %p285 = por %p283, %p284
      %p287 = scmp.ne.s32.totalorder %s270, %s286
      %p288 = scmp.eq.s32.totalorder %s26, 0
      %p289 = por %p287, %p288
      %p290 = scmp.le.s32.totalorder 1, %s20
      %p291 = scmp.lt.s32.totalorder %s20, 3
      %p292 = pnand %p290, %p291
      %p293 = pneg %p292
      // Predicated region
      $region9: #{emnist_forward.1} parent=5 // pred_check
        _
      $region10: #{emnist_forward.1} parent=5 // pred_check_branch
        %295 = sbr.rel (%p292) target = $region12
      $region11: #{emnist_forward.1} parent=5 // pred_region
        %s296 = ssub.s32 %s20, 1
        // Predicated region
        $region13: #{emnist_forward.1} parent=11 // pred_check
          %p297 = pneg %p67
        $region14: #{emnist_forward.1} parent=11 // pred_check_branch
          %299 = sbr.rel (%p297) target = $region16
        $region15: #{emnist_forward.1} parent=11 // pred_region
          _
        $region16: #{emnist_forward.1} parent=11 // pred_fallthru
          _
        // Predicated region
        $region17: #{emnist_forward.1} parent=11 // pred_check
          %p300 = pneg %p88
        $region18: #{emnist_forward.1} parent=11 // pred_check_branch
          %302 = sbr.rel (%p300) target = $region20
        $region19: #{emnist_forward.1} parent=11 // pred_region
          _
        $region20: #{emnist_forward.1} parent=11 // pred_fallthru
          _
        // Predicated region
        $region21: #{emnist_forward.1} parent=11 // pred_check
          %p303 = pneg %p109
        $region22: #{emnist_forward.1} parent=11 // pred_check_branch
          %305 = sbr.rel (%p303) target = $region24
        $region23: #{emnist_forward.1} parent=11 // pred_region
          _
        $region24: #{emnist_forward.1} parent=11 // pred_fallthru
          _
        // Predicated region
        $region25: #{emnist_forward.1} parent=11 // pred_check
          %p306 = pneg %p130
        $region26: #{emnist_forward.1} parent=11 // pred_check_branch
          %308 = sbr.rel (%p306) target = $region28
        $region27: #{emnist_forward.1} parent=11 // pred_region
          _
        $region28: #{emnist_forward.1} parent=11 // pred_fallthru
          _
        // Predicated region
        $region29: #{emnist_forward.1} parent=11 // pred_check
          %p309 = pneg %p151
        $region30: #{emnist_forward.1} parent=11 // pred_check_branch
          %311 = sbr.rel (%p309) target = $region32
        $region31: #{emnist_forward.1} parent=11 // pred_region
          _
        $region32: #{emnist_forward.1} parent=11 // pred_fallthru
          _
        // Predicated region
        $region33: #{emnist_forward.1} parent=11 // pred_check
          %p312 = pneg %p172
        $region34: #{emnist_forward.1} parent=11 // pred_check_branch
          %314 = sbr.rel (%p312) target = $region36
        $region35: #{emnist_forward.1} parent=11 // pred_region
          _
        $region36: #{emnist_forward.1} parent=11 // pred_fallthru
          _
        // Predicated region
        $region37: #{emnist_forward.1} parent=11 // pred_check
          %p315 = pneg %p193
        $region38: #{emnist_forward.1} parent=11 // pred_check_branch
          %317 = sbr.rel (%p315) target = $region40
        $region39: #{emnist_forward.1} parent=11 // pred_region
          _
        $region40: #{emnist_forward.1} parent=11 // pred_fallthru
          _
        // Predicated region
        $region41: #{emnist_forward.1} parent=11 // pred_check
          %p318 = pneg %p214
        $region42: #{emnist_forward.1} parent=11 // pred_check_branch
          %320 = sbr.rel (%p318) target = $region44
        $region43: #{emnist_forward.1} parent=11 // pred_region
          _
        $region44: #{emnist_forward.1} parent=11 // pred_fallthru
          _
        // Predicated region
        $region45: #{emnist_forward.1} parent=11 // pred_check
          %p321 = pneg %p235
        $region46: #{emnist_forward.1} parent=11 // pred_check_branch
          %323 = sbr.rel (%p321) target = $region48
        $region47: #{emnist_forward.1} parent=11 // pred_region
          _
        $region48: #{emnist_forward.1} parent=11 // pred_fallthru
          _
        // Predicated region
        $region49: #{emnist_forward.1} parent=11 // pred_check
          %p324 = pneg %p256
        $region50: #{emnist_forward.1} parent=11 // pred_check_branch
          %326 = sbr.rel (%p324) target = $region52
        $region51: #{emnist_forward.1} parent=11 // pred_region
          _
        $region52: #{emnist_forward.1} parent=11 // pred_fallthru
          _
      $region12: #{emnist_forward.1} parent=5 // pred_fallthru
        _
      %p327 = scmp.lt.s32.totalorder %s20, 2
      // Predicated region
      $region53: #{emnist_forward.1} parent=5 // pred_check
        %p328 = pneg %p327
      $region54: #{emnist_forward.1} parent=5 // pred_check_branch
        %330 = sbr.rel (%p328) target = $region56
      $region55: #{emnist_forward.1} parent=5 // pred_region
        // Predicated region
        $region57: #{emnist_forward.1} parent=55 // pred_check
          %p331 = pneg %p40
        $region58: #{emnist_forward.1} parent=55 // pred_check_branch
          %333 = sbr.rel (%p331) target = $region60
        $region59: #{emnist_forward.1} parent=55 // pred_region
          %s334 = smul.u32 24, %s20
          %p335 = scmp.lt.s32.totalorder %s334, 47
          %s336 = scalar_select %p335, %s334, 47
          %s337 = smul.addr %s336, 8
          %s338 = scalar_lea.vmem %s0, %s337
          %s339 = smul.u32 24, %s20
        $region60: #{emnist_forward.1} parent=55 // pred_fallthru
          _
      $region56: #{emnist_forward.1} parent=5 // pred_fallthru
        _
      %p340 = scmp.le.s32.totalorder 1, %s20
      %p341 = scmp.lt.s32.totalorder %s20, 3
      %p342 = pnand %p340, %p341
      %p343 = pneg %p342
      // Predicated region
      $region61: #{emnist_forward.1} parent=5 // pred_check
        _
      $region62: #{emnist_forward.1} parent=5 // pred_check_branch
        %345 = sbr.rel (%p342) target = $region64
      $region63: #{emnist_forward.1} parent=5 // pred_region
        %s346 = ssub.s32 %s20, 1
        %s347 = smul.u32 24, %s25
        %p348 = scmp.lt.s32.totalorder %s347, 47
        %s349 = scalar_select %p348, %s347, 47
        %s350 = smul.addr %s349, 8
        %s351 = scalar_lea.vmem %s0, %s350
        %p352 = pneg %p46
        %p353 = pneg %p43
        %p354 = pneg %p67
        %p355 = pneg %p64
        %p356 = pneg %p88
        %p357 = pneg %p85
        %p358 = pneg %p109
        %p359 = pneg %p106
        %p360 = pneg %p130
        %p361 = pneg %p127
        %p362 = pneg %p151
        %p363 = pneg %p148
        %p364 = pneg %p172
        %p365 = pneg %p169
        %p366 = pneg %p193
        %p367 = pneg %p190
        %p368 = pneg %p214
        %p369 = pneg %p211
        %p370 = pneg %p235
        %p371 = pneg %p232
        %p372 = pneg %p256
        %p373 = pneg %p253
        %p374 = pneg %p282
        %p375 = pneg %p279
        %s376 = sand.u32 %s269, 1
        %s377 = scalar_lea.sflag [#allocation3], %s376
        %s378 = sand.u32 %s269, 1
        %s379 = smul.addr %s378, 8
        %s380 = scalar_lea.vmem [#allocation2], %s379
        %s381 = smul.u32 24, %s25
        %p382 = scmp.lt.s32.totalorder %s381, 47
        %s383 = scalar_select %p382, %s381, 47
        %s384 = smul.addr %s383, 8
        %s385 = scalar_lea.vmem %s0, %s384
        %s386 = smul.u32 24, %s25
        %v387 = vld [vmem:[%s385] sm:$0xff]
        %v388 = vld [vmem:[%s385 + $0x8] sm:$0xff]
        %v389 = vld [vmem:[%s385 + $0x10] sm:$0xff]
        %v390 = vld [vmem:[%s385 + $0x18] sm:$0xff]
        %v391 = vld [vmem:[%s385 + $0x20] sm:$0xff]
        %v392 = vld [vmem:[%s385 + $0x28] sm:$0xff]
        %v393 = vld [vmem:[%s385 + $0x30] sm:$0xff]
        %v394 = vld [vmem:[%s385 + $0x38] sm:$0xff]
        %v395 = vld [vmem:[%s385 + $0x40] sm:$0xff]
        %v396 = vld [vmem:[%s385 + $0x48] sm:$0xff]
        %v397 = vld [vmem:[%s385 + $0x50] sm:$0xff]
        %v398 = vld [vmem:[%s385 + $0x58] sm:$0xff]
        %v399 = vld [vmem:[%s385 + $0x60] sm:$0xff]
        %v400 = vld [vmem:[%s385 + $0x68] sm:$0xff]
        %v401 = vld [vmem:[%s385 + $0x70] sm:$0xff]
        %v402 = vld [vmem:[%s385 + $0x78] sm:$0xff]
        %v403 = vld [vmem:[%s385 + $0x80] sm:$0xff]
        %v404 = vld [vmem:[%s385 + $0x88] sm:$0xff]
        %v405 = vld [vmem:[%s385 + $0x90] sm:$0xff]
        %v406 = vld [vmem:[%s385 + $0x98] sm:$0xff]
        %v407 = vld [vmem:[%s385 + $0xa0] sm:$0xff]
        %v408 = vld [vmem:[%s385 + $0xa8] sm:$0xff]
        %v409 = vld [vmem:[%s385 + $0xb0] sm:$0xff]
        %v410 = vld [vmem:[%s385 + $0xb8] sm:$0xff]
        %v411 = vlaneseq
        %v412 = vshrl.u32 %v411, 7
        %v413 = vadd.s32 %v412, 8
        %v414 = vadd.s32 %v412, 16
        %v415 = vadd.s32 %v412, 24
        %v416 = vadd.s32 %v412, 32
        %v417 = vadd.s32 %v412, 40
        %v418 = vadd.s32 %v412, 48
        %v419 = vadd.s32 %v412, 56
        %v420 = vadd.s32 %v412, 64
        %v421 = vadd.s32 %v412, 72
        %v422 = vadd.s32 %v412, 80
        %v423 = vadd.s32 %v412, 88
        %v424 = vadd.s32 %v412, 96
        %v425 = vadd.s32 %v412, 104
        %v426 = vadd.s32 %v412, 112
        %v427 = vadd.s32 %v412, 120
        %v428 = vadd.s32 %v412, 128
        %v429 = vadd.s32 %v412, 136
        %v430 = vadd.s32 %v412, 144
        %v431 = vadd.s32 %v412, 152
        %v432 = vadd.s32 %v412, 160
        %v433 = vadd.s32 %v412, 168
        %v434 = vadd.s32 %v412, 176
        %v435 = vadd.s32 %v412, 184
        %vm436 = vcmp.lt.s32.totalorder %v412, 0
        %v437 = vsub.s32 0, %v412
        %v438 = vsel %vm436, %v437, %v412
        %v439 = vmul.u32.u64.compose %v438, 2863311531
        %v440 = vextract.low.u32 %v439
        %v441 = vextract.high.u32 %v439
        %v442 = vshrl.u32 %v441, 4
        %v443 = vmul.u32 %v442, 24
        %v444 = vsub.s32 %v438, %v443
        %v445 = vsub.s32 0, %v444
        %v446 = vsel %vm436, %v445, %v444
        %vm447 = vcmp.lt.s32.totalorder %v413, 0
        %v448 = vsub.s32 0, %v413
        %v449 = vsel %vm447, %v448, %v413
        %v450 = vmul.u32.u64.compose %v449, 2863311531
        %v451 = vextract.low.u32 %v450
        %v452 = vextract.high.u32 %v450
        %v453 = vshrl.u32 %v452, 4
        %v454 = vmul.u32 %v453, 24
        %v455 = vsub.s32 %v449, %v454
        %v456 = vsub.s32 0, %v455
        %v457 = vsel %vm447, %v456, %v455
        %vm458 = vcmp.lt.s32.totalorder %v414, 0
        %v459 = vsub.s32 0, %v414
        %v460 = vsel %vm458, %v459, %v414
        %v461 = vmul.u32.u64.compose %v460, 2863311531
        %v462 = vextract.low.u32 %v461
        %v463 = vextract.high.u32 %v461
        %v464 = vshrl.u32 %v463, 4
        %v465 = vmul.u32 %v464, 24
        %v466 = vsub.s32 %v460, %v465
        %v467 = vsub.s32 0, %v466
        %v468 = vsel %vm458, %v467, %v466
        %vm469 = vcmp.lt.s32.totalorder %v415, 0
        %v470 = vsub.s32 0, %v415
        %v471 = vsel %vm469, %v470, %v415
        %v472 = vmul.u32.u64.compose %v471, 2863311531
        %v473 = vextract.low.u32 %v472
        %v474 = vextract.high.u32 %v472
        %v475 = vshrl.u32 %v474, 4
        %v476 = vmul.u32 %v475, 24
        %v477 = vsub.s32 %v471, %v476
        %v478 = vsub.s32 0, %v477
        %v479 = vsel %vm469, %v478, %v477
        %vm480 = vcmp.lt.s32.totalorder %v416, 0
        %v481 = vsub.s32 0, %v416
        %v482 = vsel %vm480, %v481, %v416
        %v483 = vmul.u32.u64.compose %v482, 2863311531
        %v484 = vextract.low.u32 %v483
        %v485 = vextract.high.u32 %v483
        %v486 = vshrl.u32 %v485, 4
        %v487 = vmul.u32 %v486, 24
        %v488 = vsub.s32 %v482, %v487
        %v489 = vsub.s32 0, %v488
        %v490 = vsel %vm480, %v489, %v488
        %vm491 = vcmp.lt.s32.totalorder %v417, 0
        %v492 = vsub.s32 0, %v417
        %v493 = vsel %vm491, %v492, %v417
        %v494 = vmul.u32.u64.compose %v493, 2863311531
        %v495 = vextract.low.u32 %v494
        %v496 = vextract.high.u32 %v494
        %v497 = vshrl.u32 %v496, 4
        %v498 = vmul.u32 %v497, 24
        %v499 = vsub.s32 %v493, %v498
        %v500 = vsub.s32 0, %v499
        %v501 = vsel %vm491, %v500, %v499
        %vm502 = vcmp.lt.s32.totalorder %v418, 0
        %v503 = vsub.s32 0, %v418
        %v504 = vsel %vm502, %v503, %v418
        %v505 = vmul.u32.u64.compose %v504, 2863311531
        %v506 = vextract.low.u32 %v505
        %v507 = vextract.high.u32 %v505
        %v508 = vshrl.u32 %v507, 4
        %v509 = vmul.u32 %v508, 24
        %v510 = vsub.s32 %v504, %v509
        %v511 = vsub.s32 0, %v510
        %v512 = vsel %vm502, %v511, %v510
        %vm513 = vcmp.lt.s32.totalorder %v419, 0
        %v514 = vsub.s32 0, %v419
        %v515 = vsel %vm513, %v514, %v419
        %v516 = vmul.u32.u64.compose %v515, 2863311531
        %v517 = vextract.low.u32 %v516
        %v518 = vextract.high.u32 %v516
        %v519 = vshrl.u32 %v518, 4
        %v520 = vmul.u32 %v519, 24
        %v521 = vsub.s32 %v515, %v520
        %v522 = vsub.s32 0, %v521
        %v523 = vsel %vm513, %v522, %v521
        %vm524 = vcmp.lt.s32.totalorder %v420, 0
        %v525 = vsub.s32 0, %v420
        %v526 = vsel %vm524, %v525, %v420
        %v527 = vmul.u32.u64.compose %v526, 2863311531
        %v528 = vextract.low.u32 %v527
        %v529 = vextract.high.u32 %v527
        %v530 = vshrl.u32 %v529, 4
        %v531 = vmul.u32 %v530, 24
        %v532 = vsub.s32 %v526, %v531
        %v533 = vsub.s32 0, %v532
        %v534 = vsel %vm524, %v533, %v532
        %vm535 = vcmp.lt.s32.totalorder %v421, 0
        %v536 = vsub.s32 0, %v421
        %v537 = vsel %vm535, %v536, %v421
        %v538 = vmul.u32.u64.compose %v537, 2863311531
        %v539 = vextract.low.u32 %v538
        %v540 = vextract.high.u32 %v538
        %v541 = vshrl.u32 %v540, 4
        %v542 = vmul.u32 %v541, 24
        %v543 = vsub.s32 %v537, %v542
        %v544 = vsub.s32 0, %v543
        %v545 = vsel %vm535, %v544, %v543
        %vm546 = vcmp.lt.s32.totalorder %v422, 0
        %v547 = vsub.s32 0, %v422
        %v548 = vsel %vm546, %v547, %v422
        %v549 = vmul.u32.u64.compose %v548, 2863311531
        %v550 = vextract.low.u32 %v549
        %v551 = vextract.high.u32 %v549
        %v552 = vshrl.u32 %v551, 4
        %v553 = vmul.u32 %v552, 24
        %v554 = vsub.s32 %v548, %v553
        %v555 = vsub.s32 0, %v554
        %v556 = vsel %vm546, %v555, %v554
        %vm557 = vcmp.lt.s32.totalorder %v423, 0
        %v558 = vsub.s32 0, %v423
        %v559 = vsel %vm557, %v558, %v423
        %v560 = vmul.u32.u64.compose %v559, 2863311531
        %v561 = vextract.low.u32 %v560
        %v562 = vextract.high.u32 %v560
        %v563 = vshrl.u32 %v562, 4
        %v564 = vmul.u32 %v563, 24
        %v565 = vsub.s32 %v559, %v564
        %v566 = vsub.s32 0, %v565
        %v567 = vsel %vm557, %v566, %v565
        %vm568 = vcmp.lt.s32.totalorder %v424, 0
        %v569 = vsub.s32 0, %v424
        %v570 = vsel %vm568, %v569, %v424
        %v571 = vmul.u32.u64.compose %v570, 2863311531
        %v572 = vextract.low.u32 %v571
        %v573 = vextract.high.u32 %v571
        %v574 = vshrl.u32 %v573, 4
        %v575 = vmul.u32 %v574, 24
        %v576 = vsub.s32 %v570, %v575
        %v577 = vsub.s32 0, %v576
        %v578 = vsel %vm568, %v577, %v576
        %vm579 = vcmp.lt.s32.totalorder %v425, 0
        %v580 = vsub.s32 0, %v425
        %v581 = vsel %vm579, %v580, %v425
        %v582 = vmul.u32.u64.compose %v581, 2863311531
        %v583 = vextract.low.u32 %v582
        %v584 = vextract.high.u32 %v582
        %v585 = vshrl.u32 %v584, 4
        %v586 = vmul.u32 %v585, 24
        %v587 = vsub.s32 %v581, %v586
        %v588 = vsub.s32 0, %v587
        %v589 = vsel %vm579, %v588, %v587
        %vm590 = vcmp.lt.s32.totalorder %v426, 0
        %v591 = vsub.s32 0, %v426
        %v592 = vsel %vm590, %v591, %v426
        %v593 = vmul.u32.u64.compose %v592, 2863311531
        %v594 = vextract.low.u32 %v593
        %v595 = vextract.high.u32 %v593
        %v596 = vshrl.u32 %v595, 4
        %v597 = vmul.u32 %v596, 24
        %v598 = vsub.s32 %v592, %v597
        %v599 = vsub.s32 0, %v598
        %v600 = vsel %vm590, %v599, %v598
        %vm601 = vcmp.lt.s32.totalorder %v427, 0
        %v602 = vsub.s32 0, %v427
        %v603 = vsel %vm601, %v602, %v427
        %v604 = vmul.u32.u64.compose %v603, 2863311531
        %v605 = vextract.low.u32 %v604
        %v606 = vextract.high.u32 %v604
        %v607 = vshrl.u32 %v606, 4
        %v608 = vmul.u32 %v607, 24
        %v609 = vsub.s32 %v603, %v608
        %v610 = vsub.s32 0, %v609
        %v611 = vsel %vm601, %v610, %v609
        %vm612 = vcmp.lt.s32.totalorder %v428, 0
        %v613 = vsub.s32 0, %v428
        %v614 = vsel %vm612, %v613, %v428
        %v615 = vmul.u32.u64.compose %v614, 2863311531
        %v616 = vextract.low.u32 %v615
        %v617 = vextract.high.u32 %v615
        %v618 = vshrl.u32 %v617, 4
        %v619 = vmul.u32 %v618, 24
        %v620 = vsub.s32 %v614, %v619
        %v621 = vsub.s32 0, %v620
        %v622 = vsel %vm612, %v621, %v620
        %vm623 = vcmp.lt.s32.totalorder %v429, 0
        %v624 = vsub.s32 0, %v429
        %v625 = vsel %vm623, %v624, %v429
        %v626 = vmul.u32.u64.compose %v625, 2863311531
        %v627 = vextract.low.u32 %v626
        %v628 = vextract.high.u32 %v626
        %v629 = vshrl.u32 %v628, 4
        %v630 = vmul.u32 %v629, 24
        %v631 = vsub.s32 %v625, %v630
        %v632 = vsub.s32 0, %v631
        %v633 = vsel %vm623, %v632, %v631
        %vm634 = vcmp.lt.s32.totalorder %v430, 0
        %v635 = vsub.s32 0, %v430
        %v636 = vsel %vm634, %v635, %v430
        %v637 = vmul.u32.u64.compose %v636, 2863311531
        %v638 = vextract.low.u32 %v637
        %v639 = vextract.high.u32 %v637
        %v640 = vshrl.u32 %v639, 4
        %v641 = vmul.u32 %v640, 24
        %v642 = vsub.s32 %v636, %v641
        %v643 = vsub.s32 0, %v642
        %v644 = vsel %vm634, %v643, %v642
        %vm645 = vcmp.lt.s32.totalorder %v431, 0
        %v646 = vsub.s32 0, %v431
        %v647 = vsel %vm645, %v646, %v431
        %v648 = vmul.u32.u64.compose %v647, 2863311531
        %v649 = vextract.low.u32 %v648
        %v650 = vextract.high.u32 %v648
        %v651 = vshrl.u32 %v650, 4
        %v652 = vmul.u32 %v651, 24
        %v653 = vsub.s32 %v647, %v652
        %v654 = vsub.s32 0, %v653
        %v655 = vsel %vm645, %v654, %v653
        %vm656 = vcmp.lt.s32.totalorder %v432, 0
        %v657 = vsub.s32 0, %v432
        %v658 = vsel %vm656, %v657, %v432
        %v659 = vmul.u32.u64.compose %v658, 2863311531
        %v660 = vextract.low.u32 %v659
        %v661 = vextract.high.u32 %v659
        %v662 = vshrl.u32 %v661, 4
        %v663 = vmul.u32 %v662, 24
        %v664 = vsub.s32 %v658, %v663
        %v665 = vsub.s32 0, %v664
        %v666 = vsel %vm656, %v665, %v664
        %vm667 = vcmp.lt.s32.totalorder %v433, 0
        %v668 = vsub.s32 0, %v433
        %v669 = vsel %vm667, %v668, %v433
        %v670 = vmul.u32.u64.compose %v669, 2863311531
        %v671 = vextract.low.u32 %v670
        %v672 = vextract.high.u32 %v670
        %v673 = vshrl.u32 %v672, 4
        %v674 = vmul.u32 %v673, 24
        %v675 = vsub.s32 %v669, %v674
        %v676 = vsub.s32 0, %v675
        %v677 = vsel %vm667, %v676, %v675
        %vm678 = vcmp.lt.s32.totalorder %v434, 0
        %v679 = vsub.s32 0, %v434
        %v680 = vsel %vm678, %v679, %v434
        %v681 = vmul.u32.u64.compose %v680, 2863311531
        %v682 = vextract.low.u32 %v681
        %v683 = vextract.high.u32 %v681
        %v684 = vshrl.u32 %v683, 4
        %v685 = vmul.u32 %v684, 24
        %v686 = vsub.s32 %v680, %v685
        %v687 = vsub.s32 0, %v686
        %v688 = vsel %vm678, %v687, %v686
        %vm689 = vcmp.lt.s32.totalorder %v435, 0
        %v690 = vsub.s32 0, %v435
        %v691 = vsel %vm689, %v690, %v435
        %v692 = vmul.u32.u64.compose %v691, 2863311531
        %v693 = vextract.low.u32 %v692
        %v694 = vextract.high.u32 %v692
        %v695 = vshrl.u32 %v694, 4
        %v696 = vmul.u32 %v695, 24
        %v697 = vsub.s32 %v691, %v696
        %v698 = vsub.s32 0, %v697
        %v699 = vsel %vm689, %v698, %v697
        %vm700 = vcmp.ne.s32.totalorder %v446, 0
        %vm701 = vcmp.ne.s32.totalorder %v457, 0
        %vm702 = vcmp.ne.s32.totalorder %v468, 0
        %vm703 = vcmp.ne.s32.totalorder %v479, 0
        %vm704 = vcmp.ne.s32.totalorder %v490, 0
        %vm705 = vcmp.ne.s32.totalorder %v501, 0
        %vm706 = vcmp.ne.s32.totalorder %v512, 0
        %vm707 = vcmp.ne.s32.totalorder %v523, 0
        %vm708 = vcmp.ne.s32.totalorder %v534, 0
        %vm709 = vcmp.ne.s32.totalorder %v545, 0
        %vm710 = vcmp.ne.s32.totalorder %v556, 0
        %vm711 = vcmp.ne.s32.totalorder %v567, 0
        %vm712 = vcmp.ne.s32.totalorder %v578, 0
        %vm713 = vcmp.ne.s32.totalorder %v589, 0
        %vm714 = vcmp.ne.s32.totalorder %v600, 0
        %vm715 = vcmp.ne.s32.totalorder %v611, 0
        %vm716 = vcmp.ne.s32.totalorder %v622, 0
        %vm717 = vcmp.ne.s32.totalorder %v633, 0
        %vm718 = vcmp.ne.s32.totalorder %v644, 0
        %vm719 = vcmp.ne.s32.totalorder %v655, 0
        %vm720 = vcmp.ne.s32.totalorder %v666, 0
        %vm721 = vcmp.ne.s32.totalorder %v677, 0
        %vm722 = vcmp.ne.s32.totalorder %v688, 0
        %vm723 = vcmp.ne.s32.totalorder %v699, 0
        %vm724 = vcmp.lt.s32.totalorder %v446, 0
        %vm725 = vcmp.lt.s32.totalorder %v457, 0
        %vm726 = vcmp.lt.s32.totalorder %v468, 0
        %vm727 = vcmp.lt.s32.totalorder %v479, 0
        %vm728 = vcmp.lt.s32.totalorder %v490, 0
        %vm729 = vcmp.lt.s32.totalorder %v501, 0
        %vm730 = vcmp.lt.s32.totalorder %v512, 0
        %vm731 = vcmp.lt.s32.totalorder %v523, 0
        %vm732 = vcmp.lt.s32.totalorder %v534, 0
        %vm733 = vcmp.lt.s32.totalorder %v545, 0
        %vm734 = vcmp.lt.s32.totalorder %v556, 0
        %vm735 = vcmp.lt.s32.totalorder %v567, 0
        %vm736 = vcmp.lt.s32.totalorder %v578, 0
        %vm737 = vcmp.lt.s32.totalorder %v589, 0
        %vm738 = vcmp.lt.s32.totalorder %v600, 0
        %vm739 = vcmp.lt.s32.totalorder %v611, 0
        %vm740 = vcmp.lt.s32.totalorder %v622, 0
        %vm741 = vcmp.lt.s32.totalorder %v633, 0
        %vm742 = vcmp.lt.s32.totalorder %v644, 0
        %vm743 = vcmp.lt.s32.totalorder %v655, 0
        %vm744 = vcmp.lt.s32.totalorder %v666, 0
        %vm745 = vcmp.lt.s32.totalorder %v677, 0
        %vm746 = vcmp.lt.s32.totalorder %v688, 0
        %vm747 = vcmp.lt.s32.totalorder %v699, 0
        %vm748 = vmand %vm724, %vm700
        %vm749 = vmand %vm725, %vm701
        %vm750 = vmand %vm726, %vm702
        %vm751 = vmand %vm727, %vm703
        %vm752 = vmand %vm728, %vm704
        %vm753 = vmand %vm729, %vm705
        %vm754 = vmand %vm730, %vm706
        %vm755 = vmand %vm731, %vm707
        %vm756 = vmand %vm732, %vm708
        %vm757 = vmand %vm733, %vm709
        %vm758 = vmand %vm734, %vm710
        %vm759 = vmand %vm735, %vm711
        %vm760 = vmand %vm736, %vm712
        %vm761 = vmand %vm737, %vm713
        %vm762 = vmand %vm738, %vm714
        %vm763 = vmand %vm739, %vm715
        %vm764 = vmand %vm740, %vm716
        %vm765 = vmand %vm741, %vm717
        %vm766 = vmand %vm742, %vm718
        %vm767 = vmand %vm743, %vm719
        %vm768 = vmand %vm744, %vm720
        %vm769 = vmand %vm745, %vm721
        %vm770 = vmand %vm746, %vm722
        %vm771 = vmand %vm747, %vm723
        %v772 = vadd.s32 %v446, 24
        %v773 = vadd.s32 %v457, 24
        %v774 = vadd.s32 %v468, 24
        %v775 = vadd.s32 %v479, 24
        %v776 = vadd.s32 %v490, 24
        %v777 = vadd.s32 %v501, 24
        %v778 = vadd.s32 %v512, 24
        %v779 = vadd.s32 %v523, 24
        %v780 = vadd.s32 %v534, 24
        %v781 = vadd.s32 %v545, 24
        %v782 = vadd.s32 %v556, 24
        %v783 = vadd.s32 %v567, 24
        %v784 = vadd.s32 %v578, 24
        %v785 = vadd.s32 %v589, 24
        %v786 = vadd.s32 %v600, 24
        %v787 = vadd.s32 %v611, 24
        %v788 = vadd.s32 %v622, 24
        %v789 = vadd.s32 %v633, 24
        %v790 = vadd.s32 %v644, 24
        %v791 = vadd.s32 %v655, 24
        %v792 = vadd.s32 %v666, 24
        %v793 = vadd.s32 %v677, 24
        %v794 = vadd.s32 %v688, 24
        %v795 = vadd.s32 %v699, 24
        %v796 = vsel %vm748, %v772, %v446
        %v797 = vsel %vm749, %v773, %v457
        %v798 = vsel %vm750, %v774, %v468
        %v799 = vsel %vm751, %v775, %v479
        %v800 = vsel %vm752, %v776, %v490
        %v801 = vsel %vm753, %v777, %v501
        %v802 = vsel %vm754, %v778, %v512
        %v803 = vsel %vm755, %v779, %v523
        %v804 = vsel %vm756, %v780, %v534
        %v805 = vsel %vm757, %v781, %v545
        %v806 = vsel %vm758, %v782, %v556
        %v807 = vsel %vm759, %v783, %v567
        %v808 = vsel %vm760, %v784, %v578
        %v809 = vsel %vm761, %v785, %v589
        %v810 = vsel %vm762, %v786, %v600
        %v811 = vsel %vm763, %v787, %v611
        %v812 = vsel %vm764, %v788, %v622
        %v813 = vsel %vm765, %v789, %v633
        %v814 = vsel %vm766, %v790, %v644
        %v815 = vsel %vm767, %v791, %v655
        %v816 = vsel %vm768, %v792, %v666
        %v817 = vsel %vm769, %v793, %v677
        %v818 = vsel %vm770, %v794, %v688
        %v819 = vsel %vm771, %v795, %v699
        %vm820 = vcmp.ne.s32.totalorder %v796, 0
        %vm821 = vcmp.ne.s32.totalorder %v797, 0
        %vm822 = vcmp.ne.s32.totalorder %v798, 0
        %vm823 = vcmp.ne.s32.totalorder %v799, 0
        %vm824 = vcmp.ne.s32.totalorder %v800, 0
        %vm825 = vcmp.ne.s32.totalorder %v801, 0
        %vm826 = vcmp.ne.s32.totalorder %v802, 0
        %vm827 = vcmp.ne.s32.totalorder %v803, 0
        %vm828 = vcmp.ne.s32.totalorder %v804, 0
        %vm829 = vcmp.ne.s32.totalorder %v805, 0
        %vm830 = vcmp.ne.s32.totalorder %v806, 0
        %vm831 = vcmp.ne.s32.totalorder %v807, 0
        %vm832 = vcmp.ne.s32.totalorder %v808, 0
        %vm833 = vcmp.ne.s32.totalorder %v809, 0
        %vm834 = vcmp.ne.s32.totalorder %v810, 0
        %vm835 = vcmp.ne.s32.totalorder %v811, 0
        %vm836 = vcmp.ne.s32.totalorder %v812, 0
        %vm837 = vcmp.ne.s32.totalorder %v813, 0
        %vm838 = vcmp.ne.s32.totalorder %v814, 0
        %vm839 = vcmp.ne.s32.totalorder %v815, 0
        %vm840 = vcmp.ne.s32.totalorder %v816, 0
        %vm841 = vcmp.ne.s32.totalorder %v817, 0
        %vm842 = vcmp.ne.s32.totalorder %v818, 0
        %vm843 = vcmp.ne.s32.totalorder %v819, 0
        %vm868 = vcmask 1040384
        %v869 = vrot.slane %v387, 7
        %v870 = vrot.slane %v388, 7
        %v871 = vsel %vm868, %v869, %v870
        %v872 = vrot.slane %v389, 7
        %v873 = vsel %vm868, %v870, %v872
        %v874 = vrot.slane %v390, 7
        %v875 = vsel %vm868, %v872, %v874
        %v876 = vrot.slane %v391, 7
        %v877 = vsel %vm868, %v874, %v876
        %v878 = vrot.slane %v392, 7
        %v879 = vsel %vm868, %v876, %v878
        %v880 = vrot.slane %v393, 7
        %v881 = vsel %vm868, %v878, %v880
        %v882 = vrot.slane %v394, 7
        %v883 = vsel %vm868, %v880, %v882
        %v884 = vrot.slane %v395, 7
        %v885 = vsel %vm868, %v882, %v884
        %v886 = vrot.slane %v396, 7
        %v887 = vsel %vm868, %v884, %v886
        %v888 = vrot.slane %v397, 7
        %v889 = vsel %vm868, %v886, %v888
        %v890 = vrot.slane %v398, 7
        %v891 = vsel %vm868, %v888, %v890
        %v892 = vrot.slane %v399, 7
        %v893 = vsel %vm868, %v890, %v892
        %v894 = vrot.slane %v400, 7
        %v895 = vsel %vm868, %v892, %v894
        %v896 = vrot.slane %v401, 7
        %v897 = vsel %vm868, %v894, %v896
        %v898 = vrot.slane %v402, 7
        %v899 = vsel %vm868, %v896, %v898
        %v900 = vrot.slane %v403, 7
        %v901 = vsel %vm868, %v898, %v900
        %v902 = vrot.slane %v404, 7
        %v903 = vsel %vm868, %v900, %v902
        %v904 = vrot.slane %v405, 7
        %v905 = vsel %vm868, %v902, %v904
        %v906 = vrot.slane %v406, 7
        %v907 = vsel %vm868, %v904, %v906
        %v908 = vrot.slane %v407, 7
        %v909 = vsel %vm868, %v906, %v908
        %v910 = vrot.slane %v408, 7
        %v911 = vsel %vm868, %v908, %v910
        %v912 = vrot.slane %v409, 7
        %v913 = vsel %vm868, %v910, %v912
        %v914 = vrot.slane %v410, 7
        %v915 = vsel %vm868, %v912, %v914
        %v940 = vsel %vm868, 0.0, %v869
        %v941 = vsel %vm820, 1, 0
        %v942 = vsel %vm821, 1, 0
        %v943 = vsel %vm822, 1, 0
        %v944 = vsel %vm823, 1, 0
        %v945 = vsel %vm824, 1, 0
        %v946 = vsel %vm825, 1, 0
        %v947 = vsel %vm826, 1, 0
        %v948 = vsel %vm827, 1, 0
        %v949 = vsel %vm828, 1, 0
        %v950 = vsel %vm829, 1, 0
        %v951 = vsel %vm830, 1, 0
        %v952 = vsel %vm831, 1, 0
        %v953 = vsel %vm832, 1, 0
        %v954 = vsel %vm833, 1, 0
        %v955 = vsel %vm834, 1, 0
        %v956 = vsel %vm835, 1, 0
        %v957 = vsel %vm836, 1, 0
        %v958 = vsel %vm837, 1, 0
        %v959 = vsel %vm838, 1, 0
        %v960 = vsel %vm839, 1, 0
        %v961 = vsel %vm840, 1, 0
        %v962 = vsel %vm841, 1, 0
        %v963 = vsel %vm842, 1, 0
        %v964 = vsel %vm843, 1, 0
        %vm965 = vcmp.eq.s32.totalorder %v941, 1
        %vm966 = vcmp.eq.s32.totalorder %v942, 1
        %vm967 = vcmp.eq.s32.totalorder %v943, 1
        %vm968 = vcmp.eq.s32.totalorder %v944, 1
        %vm969 = vcmp.eq.s32.totalorder %v945, 1
        %vm970 = vcmp.eq.s32.totalorder %v946, 1
        %vm971 = vcmp.eq.s32.totalorder %v947, 1
        %vm972 = vcmp.eq.s32.totalorder %v948, 1
        %vm973 = vcmp.eq.s32.totalorder %v949, 1
        %vm974 = vcmp.eq.s32.totalorder %v950, 1
        %vm975 = vcmp.eq.s32.totalorder %v951, 1
        %vm976 = vcmp.eq.s32.totalorder %v952, 1
        %vm977 = vcmp.eq.s32.totalorder %v953, 1
        %vm978 = vcmp.eq.s32.totalorder %v954, 1
        %vm979 = vcmp.eq.s32.totalorder %v955, 1
        %vm980 = vcmp.eq.s32.totalorder %v956, 1
        %vm981 = vcmp.eq.s32.totalorder %v957, 1
        %vm982 = vcmp.eq.s32.totalorder %v958, 1
        %vm983 = vcmp.eq.s32.totalorder %v959, 1
        %vm984 = vcmp.eq.s32.totalorder %v960, 1
        %vm985 = vcmp.eq.s32.totalorder %v961, 1
        %vm986 = vcmp.eq.s32.totalorder %v962, 1
        %vm987 = vcmp.eq.s32.totalorder %v963, 1
        %vm988 = vcmp.eq.s32.totalorder %v964, 1
        %v989 = vsel %vm965, %v940, 0.0
        %v990 = vsel %vm966, %v871, 0.0
        %v991 = vsel %vm967, %v873, 0.0
        %v992 = vsel %vm968, %v875, 0.0
        %v993 = vsel %vm969, %v877, 0.0
        %v994 = vsel %vm970, %v879, 0.0
        %v995 = vsel %vm971, %v881, 0.0
        %v996 = vsel %vm972, %v883, 0.0
        %v997 = vsel %vm973, %v885, 0.0
        %v998 = vsel %vm974, %v887, 0.0
        %v999 = vsel %vm975, %v889, 0.0
        %v1000 = vsel %vm976, %v891, 0.0
        %v1001 = vsel %vm977, %v893, 0.0
        %v1002 = vsel %vm978, %v895, 0.0
        %v1003 = vsel %vm979, %v897, 0.0
        %v1004 = vsel %vm980, %v899, 0.0
        %v1005 = vsel %vm981, %v901, 0.0
        %v1006 = vsel %vm982, %v903, 0.0
        %v1007 = vsel %vm983, %v905, 0.0
        %v1008 = vsel %vm984, %v907, 0.0
        %v1009 = vsel %vm985, %v909, 0.0
        %v1010 = vsel %vm986, %v911, 0.0
        %v1011 = vsel %vm987, %v913, 0.0
        %v1012 = vsel %vm988, %v915, 0.0
        %vm1013 = vcmp.ne.s32.totalorder %v796, 23
        %vm1014 = vcmp.ne.s32.totalorder %v797, 23
        %vm1015 = vcmp.ne.s32.totalorder %v798, 23
        %vm1016 = vcmp.ne.s32.totalorder %v799, 23
        %vm1017 = vcmp.ne.s32.totalorder %v800, 23
        %vm1018 = vcmp.ne.s32.totalorder %v801, 23
        %vm1019 = vcmp.ne.s32.totalorder %v802, 23
        %vm1020 = vcmp.ne.s32.totalorder %v803, 23
        %vm1021 = vcmp.ne.s32.totalorder %v804, 23
        %vm1022 = vcmp.ne.s32.totalorder %v805, 23
        %vm1023 = vcmp.ne.s32.totalorder %v806, 23
        %vm1024 = vcmp.ne.s32.totalorder %v807, 23
        %vm1025 = vcmp.ne.s32.totalorder %v808, 23
        %vm1026 = vcmp.ne.s32.totalorder %v809, 23
        %vm1027 = vcmp.ne.s32.totalorder %v810, 23
        %vm1028 = vcmp.ne.s32.totalorder %v811, 23
        %vm1029 = vcmp.ne.s32.totalorder %v812, 23
        %vm1030 = vcmp.ne.s32.totalorder %v813, 23
        %vm1031 = vcmp.ne.s32.totalorder %v814, 23
        %vm1032 = vcmp.ne.s32.totalorder %v815, 23
        %vm1033 = vcmp.ne.s32.totalorder %v816, 23
        %vm1034 = vcmp.ne.s32.totalorder %v817, 23
        %vm1035 = vcmp.ne.s32.totalorder %v818, 23
        %vm1036 = vcmp.ne.s32.totalorder %v819, 23
        %vm1037 = vcmask 1046528
        %v1038 = vrot.slane %v387, 1
        %v1039 = vrot.slane %v388, 1
        %v1040 = vsel %vm1037, %v1038, %v1039
        %v1041 = vrot.slane %v389, 1
        %v1042 = vsel %vm1037, %v1039, %v1041
        %v1043 = vrot.slane %v390, 1
        %v1044 = vsel %vm1037, %v1041, %v1043
        %v1045 = vrot.slane %v391, 1
        %v1046 = vsel %vm1037, %v1043, %v1045
        %v1047 = vrot.slane %v392, 1
        %v1048 = vsel %vm1037, %v1045, %v1047
        %v1049 = vrot.slane %v393, 1
        %v1050 = vsel %vm1037, %v1047, %v1049
        %v1051 = vrot.slane %v394, 1
        %v1052 = vsel %vm1037, %v1049, %v1051
        %v1053 = vrot.slane %v395, 1
        %v1054 = vsel %vm1037, %v1051, %v1053
        %v1055 = vrot.slane %v396, 1
        %v1056 = vsel %vm1037, %v1053, %v1055
        %v1057 = vrot.slane %v397, 1
        %v1058 = vsel %vm1037, %v1055, %v1057
        %v1059 = vrot.slane %v398, 1
        %v1060 = vsel %vm1037, %v1057, %v1059
        %v1061 = vrot.slane %v399, 1
        %v1062 = vsel %vm1037, %v1059, %v1061
        %v1063 = vrot.slane %v400, 1
        %v1064 = vsel %vm1037, %v1061, %v1063
        %v1065 = vrot.slane %v401, 1
        %v1066 = vsel %vm1037, %v1063, %v1065
        %v1067 = vrot.slane %v402, 1
        %v1068 = vsel %vm1037, %v1065, %v1067
        %v1069 = vrot.slane %v403, 1
        %v1070 = vsel %vm1037, %v1067, %v1069
        %v1071 = vrot.slane %v404, 1
        %v1072 = vsel %vm1037, %v1069, %v1071
        %v1073 = vrot.slane %v405, 1
        %v1074 = vsel %vm1037, %v1071, %v1073
        %v1075 = vrot.slane %v406, 1
        %v1076 = vsel %vm1037, %v1073, %v1075
        %v1077 = vrot.slane %v407, 1
        %v1078 = vsel %vm1037, %v1075, %v1077
        %v1079 = vrot.slane %v408, 1
        %v1080 = vsel %vm1037, %v1077, %v1079
        %v1081 = vrot.slane %v409, 1
        %v1082 = vsel %vm1037, %v1079, %v1081
        %v1083 = vrot.slane %v410, 1
        %v1084 = vsel %vm1037, %v1081, %v1083
        %v1109 = vsel %vm1037, %v1083, 0.0
        %v1110 = vsel %vm1013, 1, 0
        %v1111 = vsel %vm1014, 1, 0
        %v1112 = vsel %vm1015, 1, 0
        %v1113 = vsel %vm1016, 1, 0
        %v1114 = vsel %vm1017, 1, 0
        %v1115 = vsel %vm1018, 1, 0
        %v1116 = vsel %vm1019, 1, 0
        %v1117 = vsel %vm1020, 1, 0
        %v1118 = vsel %vm1021, 1, 0
        %v1119 = vsel %vm1022, 1, 0
        %v1120 = vsel %vm1023, 1, 0
        %v1121 = vsel %vm1024, 1, 0
        %v1122 = vsel %vm1025, 1, 0
        %v1123 = vsel %vm1026, 1, 0
        %v1124 = vsel %vm1027, 1, 0
        %v1125 = vsel %vm1028, 1, 0
        %v1126 = vsel %vm1029, 1, 0
        %v1127 = vsel %vm1030, 1, 0
        %v1128 = vsel %vm1031, 1, 0
        %v1129 = vsel %vm1032, 1, 0
        %v1130 = vsel %vm1033, 1, 0
        %v1131 = vsel %vm1034, 1, 0
        %v1132 = vsel %vm1035, 1, 0
        %v1133 = vsel %vm1036, 1, 0
        %vm1134 = vcmp.eq.s32.totalorder %v1110, 1
        %vm1135 = vcmp.eq.s32.totalorder %v1111, 1
        %vm1136 = vcmp.eq.s32.totalorder %v1112, 1
        %vm1137 = vcmp.eq.s32.totalorder %v1113, 1
        %vm1138 = vcmp.eq.s32.totalorder %v1114, 1
        %vm1139 = vcmp.eq.s32.totalorder %v1115, 1
        %vm1140 = vcmp.eq.s32.totalorder %v1116, 1
        %vm1141 = vcmp.eq.s32.totalorder %v1117, 1
        %vm1142 = vcmp.eq.s32.totalorder %v1118, 1
        %vm1143 = vcmp.eq.s32.totalorder %v1119, 1
        %vm1144 = vcmp.eq.s32.totalorder %v1120, 1
        %vm1145 = vcmp.eq.s32.totalorder %v1121, 1
        %vm1146 = vcmp.eq.s32.totalorder %v1122, 1
        %vm1147 = vcmp.eq.s32.totalorder %v1123, 1
        %vm1148 = vcmp.eq.s32.totalorder %v1124, 1
        %vm1149 = vcmp.eq.s32.totalorder %v1125, 1
        %vm1150 = vcmp.eq.s32.totalorder %v1126, 1
        %vm1151 = vcmp.eq.s32.totalorder %v1127, 1
        %vm1152 = vcmp.eq.s32.totalorder %v1128, 1
        %vm1153 = vcmp.eq.s32.totalorder %v1129, 1
        %vm1154 = vcmp.eq.s32.totalorder %v1130, 1
        %vm1155 = vcmp.eq.s32.totalorder %v1131, 1
        %vm1156 = vcmp.eq.s32.totalorder %v1132, 1
        %vm1157 = vcmp.eq.s32.totalorder %v1133, 1
        %v1158 = vsel %vm1134, %v1040, 0.0
        %v1159 = vsel %vm1135, %v1042, 0.0
        %v1160 = vsel %vm1136, %v1044, 0.0
        %v1161 = vsel %vm1137, %v1046, 0.0
        %v1162 = vsel %vm1138, %v1048, 0.0
        %v1163 = vsel %vm1139, %v1050, 0.0
        %v1164 = vsel %vm1140, %v1052, 0.0
        %v1165 = vsel %vm1141, %v1054, 0.0
        %v1166 = vsel %vm1142, %v1056, 0.0
        %v1167 = vsel %vm1143, %v1058, 0.0
        %v1168 = vsel %vm1144, %v1060, 0.0
        %v1169 = vsel %vm1145, %v1062, 0.0
        %v1170 = vsel %vm1146, %v1064, 0.0
        %v1171 = vsel %vm1147, %v1066, 0.0
        %v1172 = vsel %vm1148, %v1068, 0.0
        %v1173 = vsel %vm1149, %v1070, 0.0
        %v1174 = vsel %vm1150, %v1072, 0.0
        %v1175 = vsel %vm1151, %v1074, 0.0
        %v1176 = vsel %vm1152, %v1076, 0.0
        %v1177 = vsel %vm1153, %v1078, 0.0
        %v1178 = vsel %vm1154, %v1080, 0.0
        %v1179 = vsel %vm1155, %v1082, 0.0
        %v1180 = vsel %vm1156, %v1084, 0.0
        %v1181 = vsel %vm1157, %v1109, 0.0
        %1182 = vrot.lane.b32.xlu0 %v387, 24
        %v1183 = vpop.permute.xlu0 %1182
        %1184 = vrot.lane.b32.xlu0 %v388, 24
        %v1185 = vpop.permute.xlu0 %1184
        %1186 = vrot.lane.b32.xlu0 %v389, 24
        %v1187 = vpop.permute.xlu0 %1186
        %1188 = vrot.lane.b32.xlu0 %v390, 24
        %v1189 = vpop.permute.xlu0 %1188
        %1190 = vrot.lane.b32.xlu0 %v391, 24
        %v1191 = vpop.permute.xlu0 %1190
        %1192 = vrot.lane.b32.xlu0 %v392, 24
        %v1193 = vpop.permute.xlu0 %1192
        %1194 = vrot.lane.b32.xlu0 %v393, 24
        %v1195 = vpop.permute.xlu0 %1194
        %1196 = vrot.lane.b32.xlu0 %v394, 24
        %v1197 = vpop.permute.xlu0 %1196
        %1198 = vrot.lane.b32.xlu0 %v395, 24
        %v1199 = vpop.permute.xlu0 %1198
        %1200 = vrot.lane.b32.xlu0 %v396, 24
        %v1201 = vpop.permute.xlu0 %1200
        %1202 = vrot.lane.b32.xlu0 %v397, 24
        %v1203 = vpop.permute.xlu0 %1202
        %1204 = vrot.lane.b32.xlu0 %v398, 24
        %v1205 = vpop.permute.xlu0 %1204
        %1206 = vrot.lane.b32.xlu0 %v399, 24
        %v1207 = vpop.permute.xlu0 %1206
        %1208 = vrot.lane.b32.xlu0 %v400, 24
        %v1209 = vpop.permute.xlu0 %1208
        %1210 = vrot.lane.b32.xlu0 %v401, 24
        %v1211 = vpop.permute.xlu0 %1210
        %1212 = vrot.lane.b32.xlu0 %v402, 24
        %v1213 = vpop.permute.xlu0 %1212
        %1214 = vrot.lane.b32.xlu0 %v403, 24
        %v1215 = vpop.permute.xlu0 %1214
        %1216 = vrot.lane.b32.xlu0 %v404, 24
        %v1217 = vpop.permute.xlu0 %1216
        %1218 = vrot.lane.b32.xlu0 %v405, 24
        %v1219 = vpop.permute.xlu0 %1218
        %1220 = vrot.lane.b32.xlu0 %v406, 24
        %v1221 = vpop.permute.xlu0 %1220
        %1222 = vrot.lane.b32.xlu0 %v407, 24
        %v1223 = vpop.permute.xlu0 %1222
        %1224 = vrot.lane.b32.xlu0 %v408, 24
        %v1225 = vpop.permute.xlu0 %1224
        %1226 = vrot.lane.b32.xlu0 %v409, 24
        %v1227 = vpop.permute.xlu0 %1226
        %1228 = vrot.lane.b32.xlu0 %v410, 24
        %v1229 = vpop.permute.xlu0 %1228
        %1278 = vrot.lane.b32.xlu0 %v1158, 48
        %v1279 = vpop.permute.xlu0 %1278
        %1280 = vrot.lane.b32.xlu0 %v1159, 48
        %v1281 = vpop.permute.xlu0 %1280
        %1282 = vrot.lane.b32.xlu0 %v1160, 48
        %v1283 = vpop.permute.xlu0 %1282
        %1284 = vrot.lane.b32.xlu0 %v1161, 48
        %v1285 = vpop.permute.xlu0 %1284
        %1286 = vrot.lane.b32.xlu0 %v1162, 48
        %v1287 = vpop.permute.xlu0 %1286
        %1288 = vrot.lane.b32.xlu0 %v1163, 48
        %v1289 = vpop.permute.xlu0 %1288
        %1290 = vrot.lane.b32.xlu0 %v1164, 48
        %v1291 = vpop.permute.xlu0 %1290
        %1292 = vrot.lane.b32.xlu0 %v1165, 48
        %v1293 = vpop.permute.xlu0 %1292
        %1294 = vrot.lane.b32.xlu0 %v1166, 48
        %v1295 = vpop.permute.xlu0 %1294
        %1296 = vrot.lane.b32.xlu0 %v1167, 48
        %v1297 = vpop.permute.xlu0 %1296
        %1298 = vrot.lane.b32.xlu0 %v1168, 48
        %v1299 = vpop.permute.xlu0 %1298
        %1300 = vrot.lane.b32.xlu0 %v1169, 48
        %v1301 = vpop.permute.xlu0 %1300
        %1302 = vrot.lane.b32.xlu0 %v1170, 48
        %v1303 = vpop.permute.xlu0 %1302
        %1304 = vrot.lane.b32.xlu0 %v1171, 48
        %v1305 = vpop.permute.xlu0 %1304
        %1306 = vrot.lane.b32.xlu0 %v1172, 48
        %v1307 = vpop.permute.xlu0 %1306
        %1308 = vrot.lane.b32.xlu0 %v1173, 48
        %v1309 = vpop.permute.xlu0 %1308
        %1310 = vrot.lane.b32.xlu0 %v1174, 48
        %v1311 = vpop.permute.xlu0 %1310
        %1312 = vrot.lane.b32.xlu0 %v1175, 48
        %v1313 = vpop.permute.xlu0 %1312
        %1314 = vrot.lane.b32.xlu0 %v1176, 48
        %v1315 = vpop.permute.xlu0 %1314
        %1316 = vrot.lane.b32.xlu0 %v1177, 48
        %v1317 = vpop.permute.xlu0 %1316
        %1318 = vrot.lane.b32.xlu0 %v1178, 48
        %v1319 = vpop.permute.xlu0 %1318
        %1320 = vrot.lane.b32.xlu0 %v1179, 48
        %v1321 = vpop.permute.xlu0 %1320
        %1322 = vrot.lane.b32.xlu0 %v1180, 48
        %v1323 = vpop.permute.xlu0 %1322
        %1324 = vrot.lane.b32.xlu0 %v1181, 48
        %v1325 = vpop.permute.xlu0 %1324
        %vm1350 = vcmask 195584
        %v1351 = vsel %vm1350, %v989, %v1183
        %v1352 = vsel %vm1350, %v990, %v1185
        %v1353 = vsel %vm1350, %v991, %v1187
        %v1354 = vsel %vm1350, %v992, %v1189
        %v1355 = vsel %vm1350, %v993, %v1191
        %v1356 = vsel %vm1350, %v994, %v1193
        %v1357 = vsel %vm1350, %v995, %v1195
        %v1358 = vsel %vm1350, %v996, %v1197
        %v1359 = vsel %vm1350, %v997, %v1199
        %v1360 = vsel %vm1350, %v998, %v1201
        %v1361 = vsel %vm1350, %v999, %v1203
        %v1362 = vsel %vm1350, %v1000, %v1205
        %v1363 = vsel %vm1350, %v1001, %v1207
        %v1364 = vsel %vm1350, %v1002, %v1209
        %v1365 = vsel %vm1350, %v1003, %v1211
        %v1366 = vsel %vm1350, %v1004, %v1213
        %v1367 = vsel %vm1350, %v1005, %v1215
        %v1368 = vsel %vm1350, %v1006, %v1217
        %v1369 = vsel %vm1350, %v1007, %v1219
        %v1370 = vsel %vm1350, %v1008, %v1221
        %v1371 = vsel %vm1350, %v1009, %v1223
        %v1372 = vsel %vm1350, %v1010, %v1225
        %v1373 = vsel %vm1350, %v1011, %v1227
        %v1374 = vsel %vm1350, %v1012, %v1229
        %vm1375 = vcmask 392192
        %v1376 = vsel %vm1375, %v1351, %v1279
        %v1377 = vsel %vm1375, %v1352, %v1281
        %v1378 = vsel %vm1375, %v1353, %v1283
        %v1379 = vsel %vm1375, %v1354, %v1285
        %v1380 = vsel %vm1375, %v1355, %v1287
        %v1381 = vsel %vm1375, %v1356, %v1289
        %v1382 = vsel %vm1375, %v1357, %v1291
        %v1383 = vsel %vm1375, %v1358, %v1293
        %v1384 = vsel %vm1375, %v1359, %v1295
        %v1385 = vsel %vm1375, %v1360, %v1297
        %v1386 = vsel %vm1375, %v1361, %v1299
        %v1387 = vsel %vm1375, %v1362, %v1301
        %v1388 = vsel %vm1375, %v1363, %v1303
        %v1389 = vsel %vm1375, %v1364, %v1305
        %v1390 = vsel %vm1375, %v1365, %v1307
        %v1391 = vsel %vm1375, %v1366, %v1309
        %v1392 = vsel %vm1375, %v1367, %v1311
        %v1393 = vsel %vm1375, %v1368, %v1313
        %v1394 = vsel %vm1375, %v1369, %v1315
        %v1395 = vsel %vm1375, %v1370, %v1317
        %v1396 = vsel %vm1375, %v1371, %v1319
        %v1397 = vsel %vm1375, %v1372, %v1321
        %v1398 = vsel %vm1375, %v1373, %v1323
        %v1399 = vsel %vm1375, %v1374, %v1325
        %v1400 = vld [vmem:[%s1] sm:$0xff]
        %v1401 = vld [vmem:[%s1 + $0x8] sm:$0xff]
        %v1402 = vld [vmem:[%s1 + $0x10] sm:$0xff]
        %v1403 = vld [vmem:[%s1 + $0x18] sm:$0xff]
        %v1404 = vld [vmem:[%s1 + $0x20] sm:$0xff]
        %v1405 = vld [vmem:[%s1 + $0x28] sm:$0xff]
        %v1406 = vld [vmem:[%s1 + $0x30] sm:$0xff]
        %v1407 = vld [vmem:[%s1 + $0x38] sm:$0xff]
        %v1408 = vld [vmem:[%s1 + $0x40] sm:$0xff]
        %v1409 = vld [vmem:[%s1 + $0x48] sm:$0xff]
        %v1410 = vld [vmem:[%s1 + $0x50] sm:$0xff]
        %v1411 = vld [vmem:[%s1 + $0x58] sm:$0xff]
        %v1412 = vld [vmem:[%s1 + $0x60] sm:$0xff]
        %v1413 = vld [vmem:[%s1 + $0x68] sm:$0xff]
        %v1414 = vld [vmem:[%s1 + $0x70] sm:$0xff]
        %v1415 = vld [vmem:[%s1 + $0x78] sm:$0xff]
        %v1416 = vld [vmem:[%s1 + $0x80] sm:$0xff]
        %v1417 = vld [vmem:[%s1 + $0x88] sm:$0xff]
        %v1418 = vld [vmem:[%s2] sm:$0x3]
        %v1420 = vlaneseq
        %v1421 = vshrl.u32 %v1420, 7
        %v1422 = vsub.s32 0, %v1421
        %v1423 = vrot.slane %v1418, %v1422
        %v1424 = vlaneseq
        %v1425 = vshrl.u32 %v1424, 7
        %v1426 = vsub.s32 1, %v1425
        %v1427 = vrot.slane %v1418, %v1426
        %vm1430 = vcmask 588800
        %v1432 = vsel %vm1430, %v1376, 0
        %v1435 = vsel %vm1430, %v1377, 0
        %v1438 = vsel %vm1430, %v1378, 0
        %v1441 = vsel %vm1430, %v1379, 0
        %v1444 = vsel %vm1430, %v1380, 0
        %v1447 = vsel %vm1430, %v1381, 0
        %v1450 = vsel %vm1430, %v1382, 0
        %v1453 = vsel %vm1430, %v1383, 0
        %v1456 = vsel %vm1430, %v1384, 0
        %v1459 = vsel %vm1430, %v1385, 0
        %v1462 = vsel %vm1430, %v1386, 0
        %v1465 = vsel %vm1430, %v1387, 0
        %v1468 = vsel %vm1430, %v1388, 0
        %v1471 = vsel %vm1430, %v1389, 0
        %v1474 = vsel %vm1430, %v1390, 0
        %v1477 = vsel %vm1430, %v1391, 0
        %v1480 = vsel %vm1430, %v1392, 0
        %v1483 = vsel %vm1430, %v1393, 0
        %v1486 = vsel %vm1430, %v1394, 0
        %v1489 = vsel %vm1430, %v1395, 0
        %v1492 = vsel %vm1430, %v1396, 0
        %v1495 = vsel %vm1430, %v1397, 0
        %v1498 = vsel %vm1430, %v1398, 0
        %v1501 = vsel %vm1430, %v1399, 0
        %1503 = vmatprep.subr.mxu0 %v1401
        %1504 = vmatpush1.msra.mxu0 %v1400
        %1505 = vmatprep.subr.mxu0 %v1403
        %1506 = vmatpush1.msra.mxu0 %v1402
        %1507 = vmatprep.subr.mxu0 %v1405
        %1508 = vmatpush1.msra.mxu0 %v1404
        %1509 = vmatprep.subr.mxu0 %v1407
        %1510 = vmatpush1.msra.mxu0 %v1406
        %1511 = vmatprep.subr.mxu0 %v1409
        %1512 = vmatpush1.msra.mxu0 %v1408
        %1513 = vmatprep.subr.mxu0 %v1411
        %1514 = vmatpush1.msra.mxu0 %v1410
        %1515 = vmatprep.subr.mxu0 %v1413
        %1516 = vmatpush1.msra.mxu0 %v1412
        %1517 = vmatprep.subr.mxu0 %v1415
        %1518 = vmatpush1.msra.mxu0 %v1414
        %1519 = vmatprep.subr.mxu0 %v1417
        %1520 = vmatpush1.msra.mxu0 %v1416
        %1521 = vmatprep.subr.mxu0 0.0
        %1522 = vmatpush1.msra.mxu0 0.0
        %1523 = vmatprep.subr.mxu0 0.0
        %1524 = vmatpush1.msra.mxu0 0.0
        %1525 = vmatprep.subr.mxu0 0.0
        %1526 = vmatpush1.msra.mxu0 0.0
        %1527 = vmatprep.subr.mxu0 0.0
        %1528 = vmatpush1.msra.mxu0 0.0
        %1529 = vmatprep.subr.mxu0 0.0
        %1530 = vmatpush1.msra.mxu0 0.0
        %1531 = vmatprep.subr.mxu0 0.0
        %1532 = vmatpush1.msra.mxu0 0.0
        %1533 = vmatprep.subr.mxu0 0.0
        %1534 = vmatpush1.msra.mxu0 0.0
        %1535 = vmatprep.subr.mxu0 0.0
        %1536 = vmatpush1.msra.mxu0 0.0
        %1537 = vmatprep.subr.mxu0 0.0
        %1538 = vmatpush1.msra.mxu0 0.0
        %1539 = vmatprep.subr.mxu0 0.0
        %1540 = vmatpush1.msra.mxu0 0.0
        %1541 = vmatprep.subr.mxu0 0.0
        %1542 = vmatpush1.msra.mxu0 0.0
        %1543 = vmatprep.subr.mxu0 0.0
        %1544 = vmatpush1.msra.mxu0 0.0
        %1545 = vmatprep.subr.mxu0 0.0
        %1546 = vmatpush1.msra.mxu0 0.0
        %1547 = vmatprep.subr.mxu0 0.0
        %1548 = vmatpush1.msra.mxu0 0.0
        %1549 = vmatprep.subr.mxu0 0.0
        %1550 = vmatpush1.msra.mxu0 0.0
        %1551 = vmatprep.subr.mxu0 0.0
        %1552 = vmatpush1.msra.mxu0 0.0
        %1553 = vmatprep.subr.mxu0 0.0
        %1554 = vmatpush1.msra.mxu0 0.0
        %1555 = vmatprep.subr.mxu0 0.0
        %1556 = vmatpush1.msra.mxu0 0.0
        %1557 = vmatprep.subr.mxu0 0.0
        %1558 = vmatpush1.msra.mxu0 0.0
        %1559 = vmatprep.subr.mxu0 0.0
        %1560 = vmatpush1.msra.mxu0 0.0
        %1561 = vmatprep.subr.mxu0 0.0
        %1562 = vmatpush1.msra.mxu0 0.0
        %1563 = vmatprep.subr.mxu0 0.0
        %1564 = vmatpush1.msra.mxu0 0.0
        %1565 = vmatprep.subr.mxu0 0.0
        %1566 = vmatpush1.msra.mxu0 0.0
        %1567 = vmatprep.mubr.f32.mxu0 0.0
        %1568 = vmatmul.mubr.f32.gmra.mrb[0].mxu0 %v1432
        %v1569 = vpop.f32.mrb[0].mxu0
        %v1570 = vadd.f32 %v1423, %v1569
        %v1571 = vpop.f32.mrb[0].mxu0
        %v1572 = vadd.f32 %v1427, %v1571
        %1573 = vmatprep.mubr.f32.mxu0 0.0
        %1574 = vmatmul.mubr.f32.gmra.mrb[0].mxu0 %v1435
        %v1575 = vpop.f32.mrb[0].mxu0
        %v1576 = vadd.f32 %v1423, %v1575
        %v1577 = vpop.f32.mrb[0].mxu0
        %v1578 = vadd.f32 %v1427, %v1577
        %1579 = vmatprep.mubr.f32.mxu0 0.0
        %1580 = vmatmul.mubr.f32.gmra.mrb[0].mxu0 %v1438
        %v1581 = vpop.f32.mrb[0].mxu0
        %v1582 = vadd.f32 %v1423, %v1581
        %v1583 = vpop.f32.mrb[0].mxu0
        %v1584 = vadd.f32 %v1427, %v1583
        %1585 = vmatprep.mubr.f32.mxu0 0.0
        %1586 = vmatmul.mubr.f32.gmra.mrb[0].mxu0 %v1441
        %v1587 = vpop.f32.mrb[0].mxu0
        %v1588 = vadd.f32 %v1423, %v1587
        %v1589 = vpop.f32.mrb[0].mxu0
        %v1590 = vadd.f32 %v1427, %v1589
        %1591 = vmatprep.mubr.f32.mxu0 0.0
        %1592 = vmatmul.mubr.f32.gmra.mrb[0].mxu0 %v1444
        %v1593 = vpop.f32.mrb[0].mxu0
        %v1594 = vadd.f32 %v1423, %v1593
        %v1595 = vpop.f32.mrb[0].mxu0
        %v1596 = vadd.f32 %v1427, %v1595
        %1597 = vmatprep.mubr.f32.mxu0 0.0
        %1598 = vmatmul.mubr.f32.gmra.mrb[0].mxu0 %v1447
        %v1599 = vpop.f32.mrb[0].mxu0
        %v1600 = vadd.f32 %v1423, %v1599
        %v1601 = vpop.f32.mrb[0].mxu0
        %v1602 = vadd.f32 %v1427, %v1601
        %1603 = vmatprep.mubr.f32.mxu0 0.0
        %1604 = vmatmul.mubr.f32.gmra.mrb[0].mxu0 %v1450
        %v1605 = vpop.f32.mrb[0].mxu0
        %v1606 = vadd.f32 %v1423, %v1605
        %v1607 = vpop.f32.mrb[0].mxu0
        %v1608 = vadd.f32 %v1427, %v1607
        %1609 = vmatprep.mubr.f32.mxu0 0.0
        %1610 = vmatmul.mubr.f32.gmra.mrb[0].mxu0 %v1453
        %v1611 = vpop.f32.mrb[0].mxu0
        %v1612 = vadd.f32 %v1423, %v1611
        %v1613 = vpop.f32.mrb[0].mxu0
        %v1614 = vadd.f32 %v1427, %v1613
        %1615 = vmatprep.mubr.f32.mxu0 0.0
        %1616 = vmatmul.mubr.f32.gmra.mrb[0].mxu0 %v1456
        %v1617 = vpop.f32.mrb[0].mxu0
        %v1618 = vadd.f32 %v1423, %v1617
        %v1619 = vpop.f32.mrb[0].mxu0
        %v1620 = vadd.f32 %v1427, %v1619
        %1621 = vmatprep.mubr.f32.mxu0 0.0
        %1622 = vmatmul.mubr.f32.gmra.mrb[0].mxu0 %v1459
        %v1623 = vpop.f32.mrb[0].mxu0
        %v1624 = vadd.f32 %v1423, %v1623
        %v1625 = vpop.f32.mrb[0].mxu0
        %v1626 = vadd.f32 %v1427, %v1625
        %1627 = vmatprep.mubr.f32.mxu0 0.0
        %1628 = vmatmul.mubr.f32.gmra.mrb[0].mxu0 %v1462
        %v1629 = vpop.f32.mrb[0].mxu0
        %v1630 = vadd.f32 %v1423, %v1629
        %v1631 = vpop.f32.mrb[0].mxu0
        %v1632 = vadd.f32 %v1427, %v1631
        %1633 = vmatprep.mubr.f32.mxu0 0.0
        %1634 = vmatmul.mubr.f32.gmra.mrb[0].mxu0 %v1465
        %v1635 = vpop.f32.mrb[0].mxu0
        %v1636 = vadd.f32 %v1423, %v1635
        %v1637 = vpop.f32.mrb[0].mxu0
        %v1638 = vadd.f32 %v1427, %v1637
        %1639 = vmatprep.mubr.f32.mxu0 0.0
        %1640 = vmatmul.mubr.f32.gmra.mrb[0].mxu0 %v1468
        %v1641 = vpop.f32.mrb[0].mxu0
        %v1642 = vadd.f32 %v1423, %v1641
        %v1643 = vpop.f32.mrb[0].mxu0
        %v1644 = vadd.f32 %v1427, %v1643
        %1645 = vmatprep.mubr.f32.mxu0 0.0
        %1646 = vmatmul.mubr.f32.gmra.mrb[0].mxu0 %v1471
        %v1647 = vpop.f32.mrb[0].mxu0
        %v1648 = vadd.f32 %v1423, %v1647
        %v1649 = vpop.f32.mrb[0].mxu0
        %v1650 = vadd.f32 %v1427, %v1649
        %1651 = vmatprep.mubr.f32.mxu0 0.0
        %1652 = vmatmul.mubr.f32.gmra.mrb[0].mxu0 %v1474
        %v1653 = vpop.f32.mrb[0].mxu0
        %v1654 = vadd.f32 %v1423, %v1653
        %v1655 = vpop.f32.mrb[0].mxu0
        %v1656 = vadd.f32 %v1427, %v1655
        %1657 = vmatprep.mubr.f32.mxu0 0.0
        %1658 = vmatmul.mubr.f32.gmra.mrb[0].mxu0 %v1477
        %v1659 = vpop.f32.mrb[0].mxu0
        %v1660 = vadd.f32 %v1423, %v1659
        %v1661 = vpop.f32.mrb[0].mxu0
        %v1662 = vadd.f32 %v1427, %v1661
        %1663 = vmatprep.mubr.f32.mxu0 0.0
        %1664 = vmatmul.mubr.f32.gmra.mrb[0].mxu0 %v1480
        %v1665 = vpop.f32.mrb[0].mxu0
        %v1666 = vadd.f32 %v1423, %v1665
        %v1667 = vpop.f32.mrb[0].mxu0
        %v1668 = vadd.f32 %v1427, %v1667
        %1669 = vmatprep.mubr.f32.mxu0 0.0
        %1670 = vmatmul.mubr.f32.gmra.mrb[0].mxu0 %v1483
        %v1671 = vpop.f32.mrb[0].mxu0
        %v1672 = vadd.f32 %v1423, %v1671
        %v1673 = vpop.f32.mrb[0].mxu0
        %v1674 = vadd.f32 %v1427, %v1673
        %1675 = vmatprep.mubr.f32.mxu0 0.0
        %1676 = vmatmul.mubr.f32.gmra.mrb[0].mxu0 %v1486
        %v1677 = vpop.f32.mrb[0].mxu0
        %v1678 = vadd.f32 %v1423, %v1677
        %v1679 = vpop.f32.mrb[0].mxu0
        %v1680 = vadd.f32 %v1427, %v1679
        %1681 = vmatprep.mubr.f32.mxu0 0.0
        %1682 = vmatmul.mubr.f32.gmra.mrb[0].mxu0 %v1489
        %v1683 = vpop.f32.mrb[0].mxu0
        %v1684 = vadd.f32 %v1423, %v1683
        %v1685 = vpop.f32.mrb[0].mxu0
        %v1686 = vadd.f32 %v1427, %v1685
        %1687 = vmatprep.mubr.f32.mxu0 0.0
        %1688 = vmatmul.mubr.f32.gmra.mrb[0].mxu0 %v1492
        %v1689 = vpop.f32.mrb[0].mxu0
        %v1690 = vadd.f32 %v1423, %v1689
        %v1691 = vpop.f32.mrb[0].mxu0
        %v1692 = vadd.f32 %v1427, %v1691
        %1693 = vmatprep.mubr.f32.mxu0 0.0
        %1694 = vmatmul.mubr.f32.gmra.mrb[0].mxu0 %v1495
        %v1695 = vpop.f32.mrb[0].mxu0
        %v1696 = vadd.f32 %v1423, %v1695
        %v1697 = vpop.f32.mrb[0].mxu0
        %v1698 = vadd.f32 %v1427, %v1697
        %1699 = vmatprep.mubr.f32.mxu0 0.0
        %1700 = vmatmul.mubr.f32.gmra.mrb[0].mxu0 %v1498
        %v1701 = vpop.f32.mrb[0].mxu0
        %v1702 = vadd.f32 %v1423, %v1701
        %v1703 = vpop.f32.mrb[0].mxu0
        %v1704 = vadd.f32 %v1427, %v1703
        %1705 = vmatprep.mubr.f32.mxu0 0.0
        %1706 = vmatmul.mubr.f32.gmra.mrb[0].mxu0 %v1501
        %v1707 = vpop.f32.mrb[0].mxu0
        %v1708 = vadd.f32 %v1423, %v1707
        %v1709 = vpop.f32.mrb[0].mxu0
        %v1710 = vadd.f32 %v1427, %v1709
        %1711 = vdwg.mxu0
        %v1712 = vmax.f32 %v1570, 0.0
        %v1713 = vmax.f32 %v1572, 0.0
        %v1714 = vmax.f32 %v1576, 0.0
        %v1715 = vmax.f32 %v1578, 0.0
        %v1716 = vmax.f32 %v1582, 0.0
        %v1717 = vmax.f32 %v1584, 0.0
        %v1718 = vmax.f32 %v1588, 0.0
        %v1719 = vmax.f32 %v1590, 0.0
        %v1720 = vmax.f32 %v1594, 0.0
        %v1721 = vmax.f32 %v1596, 0.0
        %v1722 = vmax.f32 %v1600, 0.0
        %v1723 = vmax.f32 %v1602, 0.0
        %v1724 = vmax.f32 %v1606, 0.0
        %v1725 = vmax.f32 %v1608, 0.0
        %v1726 = vmax.f32 %v1612, 0.0
        %v1727 = vmax.f32 %v1614, 0.0
        %v1728 = vmax.f32 %v1618, 0.0
        %v1729 = vmax.f32 %v1620, 0.0
        %v1730 = vmax.f32 %v1624, 0.0
        %v1731 = vmax.f32 %v1626, 0.0
        %v1732 = vmax.f32 %v1630, 0.0
        %v1733 = vmax.f32 %v1632, 0.0
        %v1734 = vmax.f32 %v1636, 0.0
        %v1735 = vmax.f32 %v1638, 0.0
        %v1736 = vmax.f32 %v1642, 0.0
        %v1737 = vmax.f32 %v1644, 0.0
        %v1738 = vmax.f32 %v1648, 0.0
        %v1739 = vmax.f32 %v1650, 0.0
        %v1740 = vmax.f32 %v1654, 0.0
        %v1741 = vmax.f32 %v1656, 0.0
        %v1742 = vmax.f32 %v1660, 0.0
        %v1743 = vmax.f32 %v1662, 0.0
        %v1744 = vmax.f32 %v1666, 0.0
        %v1745 = vmax.f32 %v1668, 0.0
        %v1746 = vmax.f32 %v1672, 0.0
        %v1747 = vmax.f32 %v1674, 0.0
        %v1748 = vmax.f32 %v1678, 0.0
        %v1749 = vmax.f32 %v1680, 0.0
        %v1750 = vmax.f32 %v1684, 0.0
        %v1751 = vmax.f32 %v1686, 0.0
        %v1752 = vmax.f32 %v1690, 0.0
        %v1753 = vmax.f32 %v1692, 0.0
        %v1754 = vmax.f32 %v1696, 0.0
        %v1755 = vmax.f32 %v1698, 0.0
        %v1756 = vmax.f32 %v1702, 0.0
        %v1757 = vmax.f32 %v1704, 0.0
        %v1758 = vmax.f32 %v1708, 0.0
        %v1759 = vmax.f32 %v1710, 0.0
        %v1808 = vcombine.low %v1712, %v1713
        %v1809 = vcombine.high %v1712, %v1713
        %v1811 = vunpack.c.l.s4 1983009808
        %v1812 = vunpack.c.0.s8 %v1811
        %v1813 = vlaneseq
        %v1814 = vshrl.u32 %v1813, 7
        %v1815 = vsub.s32 %v1812, %v1814
        %v1816 = vrot.slane %v1808, %v1815
        %v1818 = vunpack.c.l.s4 1983009808
        %v1819 = vunpack.c.0.s8 %v1818
        %v1820 = vlaneseq
        %v1821 = vshrl.u32 %v1820, 7
        %v1822 = vsub.s32 %v1819, %v1821
        %v1823 = vrot.slane %v1809, %v1822
        %v1824 = vcombine.high %v1816, %v1816
        %v1825 = vcombine.high %v1823, %v1823
        %v1826 = vcombine.low %v1714, %v1715
        %v1827 = vcombine.high %v1714, %v1715
        %v1829 = vunpack.c.l.s4 1983009808
        %v1830 = vunpack.c.0.s8 %v1829
        %v1831 = vlaneseq
        %v1832 = vshrl.u32 %v1831, 7
        %v1833 = vsub.s32 %v1830, %v1832
        %v1834 = vrot.slane %v1826, %v1833
        %v1836 = vunpack.c.l.s4 1983009808
        %v1837 = vunpack.c.0.s8 %v1836
        %v1838 = vlaneseq
        %v1839 = vshrl.u32 %v1838, 7
        %v1840 = vsub.s32 %v1837, %v1839
        %v1841 = vrot.slane %v1827, %v1840
        %v1842 = vcombine.high %v1834, %v1834
        %v1843 = vcombine.high %v1841, %v1841
        %v1844 = vcombine.low %v1716, %v1717
        %v1845 = vcombine.high %v1716, %v1717
        %v1847 = vunpack.c.l.s4 1983009808
        %v1848 = vunpack.c.0.s8 %v1847
        %v1849 = vlaneseq
        %v1850 = vshrl.u32 %v1849, 7
        %v1851 = vsub.s32 %v1848, %v1850
        %v1852 = vrot.slane %v1844, %v1851
        %v1854 = vunpack.c.l.s4 1983009808
        %v1855 = vunpack.c.0.s8 %v1854
        %v1856 = vlaneseq
        %v1857 = vshrl.u32 %v1856, 7
        %v1858 = vsub.s32 %v1855, %v1857
        %v1859 = vrot.slane %v1845, %v1858
        %v1860 = vcombine.high %v1852, %v1852
        %v1861 = vcombine.high %v1859, %v1859
        %v1862 = vcombine.low %v1718, %v1719
        %v1863 = vcombine.high %v1718, %v1719
        %v1865 = vunpack.c.l.s4 1983009808
        %v1866 = vunpack.c.0.s8 %v1865
        %v1867 = vlaneseq
        %v1868 = vshrl.u32 %v1867, 7
        %v1869 = vsub.s32 %v1866, %v1868
        %v1870 = vrot.slane %v1862, %v1869
        %v1872 = vunpack.c.l.s4 1983009808
        %v1873 = vunpack.c.0.s8 %v1872
        %v1874 = vlaneseq
        %v1875 = vshrl.u32 %v1874, 7
        %v1876 = vsub.s32 %v1873, %v1875
        %v1877 = vrot.slane %v1863, %v1876
        %v1878 = vcombine.high %v1870, %v1870
        %v1879 = vcombine.high %v1877, %v1877
        %v1880 = vcombine.low %v1720, %v1721
        %v1881 = vcombine.high %v1720, %v1721
        %v1883 = vunpack.c.l.s4 1983009808
        %v1884 = vunpack.c.0.s8 %v1883
        %v1885 = vlaneseq
        %v1886 = vshrl.u32 %v1885, 7
        %v1887 = vsub.s32 %v1884, %v1886
        %v1888 = vrot.slane %v1880, %v1887
        %v1890 = vunpack.c.l.s4 1983009808
        %v1891 = vunpack.c.0.s8 %v1890
        %v1892 = vlaneseq
        %v1893 = vshrl.u32 %v1892, 7
        %v1894 = vsub.s32 %v1891, %v1893
        %v1895 = vrot.slane %v1881, %v1894
        %v1896 = vcombine.high %v1888, %v1888
        %v1897 = vcombine.high %v1895, %v1895
        %v1898 = vcombine.low %v1722, %v1723
        %v1899 = vcombine.high %v1722, %v1723
        %v1901 = vunpack.c.l.s4 1983009808
        %v1902 = vunpack.c.0.s8 %v1901
        %v1903 = vlaneseq
        %v1904 = vshrl.u32 %v1903, 7
        %v1905 = vsub.s32 %v1902, %v1904
        %v1906 = vrot.slane %v1898, %v1905
        %v1908 = vunpack.c.l.s4 1983009808
        %v1909 = vunpack.c.0.s8 %v1908
        %v1910 = vlaneseq
        %v1911 = vshrl.u32 %v1910, 7
        %v1912 = vsub.s32 %v1909, %v1911
        %v1913 = vrot.slane %v1899, %v1912
        %v1914 = vcombine.high %v1906, %v1906
        %v1915 = vcombine.high %v1913, %v1913
        %v1916 = vcombine.low %v1724, %v1725
        %v1917 = vcombine.high %v1724, %v1725
        %v1919 = vunpack.c.l.s4 1983009808
        %v1920 = vunpack.c.0.s8 %v1919
        %v1921 = vlaneseq
        %v1922 = vshrl.u32 %v1921, 7
        %v1923 = vsub.s32 %v1920, %v1922
        %v1924 = vrot.slane %v1916, %v1923
        %v1926 = vunpack.c.l.s4 1983009808
        %v1927 = vunpack.c.0.s8 %v1926
        %v1928 = vlaneseq
        %v1929 = vshrl.u32 %v1928, 7
        %v1930 = vsub.s32 %v1927, %v1929
        %v1931 = vrot.slane %v1917, %v1930
        %v1932 = vcombine.high %v1924, %v1924
        %v1933 = vcombine.high %v1931, %v1931
        %v1934 = vcombine.low %v1726, %v1727
        %v1935 = vcombine.high %v1726, %v1727
        %v1937 = vunpack.c.l.s4 1983009808
        %v1938 = vunpack.c.0.s8 %v1937
        %v1939 = vlaneseq
        %v1940 = vshrl.u32 %v1939, 7
        %v1941 = vsub.s32 %v1938, %v1940
        %v1942 = vrot.slane %v1934, %v1941
        %v1944 = vunpack.c.l.s4 1983009808
        %v1945 = vunpack.c.0.s8 %v1944
        %v1946 = vlaneseq
        %v1947 = vshrl.u32 %v1946, 7
        %v1948 = vsub.s32 %v1945, %v1947
        %v1949 = vrot.slane %v1935, %v1948
        %v1950 = vcombine.high %v1942, %v1942
        %v1951 = vcombine.high %v1949, %v1949
        %v1952 = vcombine.low %v1728, %v1729
        %v1953 = vcombine.high %v1728, %v1729
        %v1955 = vunpack.c.l.s4 1983009808
        %v1956 = vunpack.c.0.s8 %v1955
        %v1957 = vlaneseq
        %v1958 = vshrl.u32 %v1957, 7
        %v1959 = vsub.s32 %v1956, %v1958
        %v1960 = vrot.slane %v1952, %v1959
        %v1962 = vunpack.c.l.s4 1983009808
        %v1963 = vunpack.c.0.s8 %v1962
        %v1964 = vlaneseq
        %v1965 = vshrl.u32 %v1964, 7
        %v1966 = vsub.s32 %v1963, %v1965
        %v1967 = vrot.slane %v1953, %v1966
        %v1968 = vcombine.high %v1960, %v1960
        %v1969 = vcombine.high %v1967, %v1967
        %v1970 = vcombine.low %v1730, %v1731
        %v1971 = vcombine.high %v1730, %v1731
        %v1973 = vunpack.c.l.s4 1983009808
        %v1974 = vunpack.c.0.s8 %v1973
        %v1975 = vlaneseq
        %v1976 = vshrl.u32 %v1975, 7
        %v1977 = vsub.s32 %v1974, %v1976
        %v1978 = vrot.slane %v1970, %v1977
        %v1980 = vunpack.c.l.s4 1983009808
        %v1981 = vunpack.c.0.s8 %v1980
        %v1982 = vlaneseq
        %v1983 = vshrl.u32 %v1982, 7
        %v1984 = vsub.s32 %v1981, %v1983
        %v1985 = vrot.slane %v1971, %v1984
        %v1986 = vcombine.high %v1978, %v1978
        %v1987 = vcombine.high %v1985, %v1985
        %v1988 = vcombine.low %v1732, %v1733
        %v1989 = vcombine.high %v1732, %v1733
        %v1991 = vunpack.c.l.s4 1983009808
        %v1992 = vunpack.c.0.s8 %v1991
        %v1993 = vlaneseq
        %v1994 = vshrl.u32 %v1993, 7
        %v1995 = vsub.s32 %v1992, %v1994
        %v1996 = vrot.slane %v1988, %v1995
        %v1998 = vunpack.c.l.s4 1983009808
        %v1999 = vunpack.c.0.s8 %v1998
        %v2000 = vlaneseq
        %v2001 = vshrl.u32 %v2000, 7
        %v2002 = vsub.s32 %v1999, %v2001
        %v2003 = vrot.slane %v1989, %v2002
        %v2004 = vcombine.high %v1996, %v1996
        %v2005 = vcombine.high %v2003, %v2003
        %v2006 = vcombine.low %v1734, %v1735
        %v2007 = vcombine.high %v1734, %v1735
        %v2009 = vunpack.c.l.s4 1983009808
        %v2010 = vunpack.c.0.s8 %v2009
        %v2011 = vlaneseq
        %v2012 = vshrl.u32 %v2011, 7
        %v2013 = vsub.s32 %v2010, %v2012
        %v2014 = vrot.slane %v2006, %v2013
        %v2016 = vunpack.c.l.s4 1983009808
        %v2017 = vunpack.c.0.s8 %v2016
        %v2018 = vlaneseq
        %v2019 = vshrl.u32 %v2018, 7
        %v2020 = vsub.s32 %v2017, %v2019
        %v2021 = vrot.slane %v2007, %v2020
        %v2022 = vcombine.high %v2014, %v2014
        %v2023 = vcombine.high %v2021, %v2021
        %v2024 = vcombine.low %v1736, %v1737
        %v2025 = vcombine.high %v1736, %v1737
        %v2027 = vunpack.c.l.s4 1983009808
        %v2028 = vunpack.c.0.s8 %v2027
        %v2029 = vlaneseq
        %v2030 = vshrl.u32 %v2029, 7
        %v2031 = vsub.s32 %v2028, %v2030
        %v2032 = vrot.slane %v2024, %v2031
        %v2034 = vunpack.c.l.s4 1983009808
        %v2035 = vunpack.c.0.s8 %v2034
        %v2036 = vlaneseq
        %v2037 = vshrl.u32 %v2036, 7
        %v2038 = vsub.s32 %v2035, %v2037
        %v2039 = vrot.slane %v2025, %v2038
        %v2040 = vcombine.high %v2032, %v2032
        %v2041 = vcombine.high %v2039, %v2039
        %v2042 = vcombine.low %v1738, %v1739
        %v2043 = vcombine.high %v1738, %v1739
        %v2045 = vunpack.c.l.s4 1983009808
        %v2046 = vunpack.c.0.s8 %v2045
        %v2047 = vlaneseq
        %v2048 = vshrl.u32 %v2047, 7
        %v2049 = vsub.s32 %v2046, %v2048
        %v2050 = vrot.slane %v2042, %v2049
        %v2052 = vunpack.c.l.s4 1983009808
        %v2053 = vunpack.c.0.s8 %v2052
        %v2054 = vlaneseq
        %v2055 = vshrl.u32 %v2054, 7
        %v2056 = vsub.s32 %v2053, %v2055
        %v2057 = vrot.slane %v2043, %v2056
        %v2058 = vcombine.high %v2050, %v2050
        %v2059 = vcombine.high %v2057, %v2057
        %v2060 = vcombine.low %v1740, %v1741
        %v2061 = vcombine.high %v1740, %v1741
        %v2063 = vunpack.c.l.s4 1983009808
        %v2064 = vunpack.c.0.s8 %v2063
        %v2065 = vlaneseq
        %v2066 = vshrl.u32 %v2065, 7
        %v2067 = vsub.s32 %v2064, %v2066
        %v2068 = vrot.slane %v2060, %v2067
        %v2070 = vunpack.c.l.s4 1983009808
        %v2071 = vunpack.c.0.s8 %v2070
        %v2072 = vlaneseq
        %v2073 = vshrl.u32 %v2072, 7
        %v2074 = vsub.s32 %v2071, %v2073
        %v2075 = vrot.slane %v2061, %v2074
        %v2076 = vcombine.high %v2068, %v2068
        %v2077 = vcombine.high %v2075, %v2075
        %v2078 = vcombine.low %v1742, %v1743
        %v2079 = vcombine.high %v1742, %v1743
        %v2081 = vunpack.c.l.s4 1983009808
        %v2082 = vunpack.c.0.s8 %v2081
        %v2083 = vlaneseq
        %v2084 = vshrl.u32 %v2083, 7
        %v2085 = vsub.s32 %v2082, %v2084
        %v2086 = vrot.slane %v2078, %v2085
        %v2088 = vunpack.c.l.s4 1983009808
        %v2089 = vunpack.c.0.s8 %v2088
        %v2090 = vlaneseq
        %v2091 = vshrl.u32 %v2090, 7
        %v2092 = vsub.s32 %v2089, %v2091
        %v2093 = vrot.slane %v2079, %v2092
        %v2094 = vcombine.high %v2086, %v2086
        %v2095 = vcombine.high %v2093, %v2093
        %v2096 = vcombine.low %v1744, %v1745
        %v2097 = vcombine.high %v1744, %v1745
        %v2099 = vunpack.c.l.s4 1983009808
        %v2100 = vunpack.c.0.s8 %v2099
        %v2101 = vlaneseq
        %v2102 = vshrl.u32 %v2101, 7
        %v2103 = vsub.s32 %v2100, %v2102
        %v2104 = vrot.slane %v2096, %v2103
        %v2106 = vunpack.c.l.s4 1983009808
        %v2107 = vunpack.c.0.s8 %v2106
        %v2108 = vlaneseq
        %v2109 = vshrl.u32 %v2108, 7
        %v2110 = vsub.s32 %v2107, %v2109
        %v2111 = vrot.slane %v2097, %v2110
        %v2112 = vcombine.high %v2104, %v2104
        %v2113 = vcombine.high %v2111, %v2111
        %v2114 = vcombine.low %v1746, %v1747
        %v2115 = vcombine.high %v1746, %v1747
        %v2117 = vunpack.c.l.s4 1983009808
        %v2118 = vunpack.c.0.s8 %v2117
        %v2119 = vlaneseq
        %v2120 = vshrl.u32 %v2119, 7
        %v2121 = vsub.s32 %v2118, %v2120
        %v2122 = vrot.slane %v2114, %v2121
        %v2124 = vunpack.c.l.s4 1983009808
        %v2125 = vunpack.c.0.s8 %v2124
        %v2126 = vlaneseq
        %v2127 = vshrl.u32 %v2126, 7
        %v2128 = vsub.s32 %v2125, %v2127
        %v2129 = vrot.slane %v2115, %v2128
        %v2130 = vcombine.high %v2122, %v2122
        %v2131 = vcombine.high %v2129, %v2129
        %v2132 = vcombine.low %v1748, %v1749
        %v2133 = vcombine.high %v1748, %v1749
        %v2135 = vunpack.c.l.s4 1983009808
        %v2136 = vunpack.c.0.s8 %v2135
        %v2137 = vlaneseq
        %v2138 = vshrl.u32 %v2137, 7
        %v2139 = vsub.s32 %v2136, %v2138
        %v2140 = vrot.slane %v2132, %v2139
        %v2142 = vunpack.c.l.s4 1983009808
        %v2143 = vunpack.c.0.s8 %v2142
        %v2144 = vlaneseq
        %v2145 = vshrl.u32 %v2144, 7
        %v2146 = vsub.s32 %v2143, %v2145
        %v2147 = vrot.slane %v2133, %v2146
        %v2148 = vcombine.high %v2140, %v2140
        %v2149 = vcombine.high %v2147, %v2147
        %v2150 = vcombine.low %v1750, %v1751
        %v2151 = vcombine.high %v1750, %v1751
        %v2153 = vunpack.c.l.s4 1983009808
        %v2154 = vunpack.c.0.s8 %v2153
        %v2155 = vlaneseq
        %v2156 = vshrl.u32 %v2155, 7
        %v2157 = vsub.s32 %v2154, %v2156
        %v2158 = vrot.slane %v2150, %v2157
        %v2160 = vunpack.c.l.s4 1983009808
        %v2161 = vunpack.c.0.s8 %v2160
        %v2162 = vlaneseq
        %v2163 = vshrl.u32 %v2162, 7
        %v2164 = vsub.s32 %v2161, %v2163
        %v2165 = vrot.slane %v2151, %v2164
        %v2166 = vcombine.high %v2158, %v2158
        %v2167 = vcombine.high %v2165, %v2165
        %v2168 = vcombine.low %v1752, %v1753
        %v2169 = vcombine.high %v1752, %v1753
        %v2171 = vunpack.c.l.s4 1983009808
        %v2172 = vunpack.c.0.s8 %v2171
        %v2173 = vlaneseq
        %v2174 = vshrl.u32 %v2173, 7
        %v2175 = vsub.s32 %v2172, %v2174
        %v2176 = vrot.slane %v2168, %v2175
        %v2178 = vunpack.c.l.s4 1983009808
        %v2179 = vunpack.c.0.s8 %v2178
        %v2180 = vlaneseq
        %v2181 = vshrl.u32 %v2180, 7
        %v2182 = vsub.s32 %v2179, %v2181
        %v2183 = vrot.slane %v2169, %v2182
        %v2184 = vcombine.high %v2176, %v2176
        %v2185 = vcombine.high %v2183, %v2183
        %v2186 = vcombine.low %v1754, %v1755
        %v2187 = vcombine.high %v1754, %v1755
        %v2189 = vunpack.c.l.s4 1983009808
        %v2190 = vunpack.c.0.s8 %v2189
        %v2191 = vlaneseq
        %v2192 = vshrl.u32 %v2191, 7
        %v2193 = vsub.s32 %v2190, %v2192
        %v2194 = vrot.slane %v2186, %v2193
        %v2196 = vunpack.c.l.s4 1983009808
        %v2197 = vunpack.c.0.s8 %v2196
        %v2198 = vlaneseq
        %v2199 = vshrl.u32 %v2198, 7
        %v2200 = vsub.s32 %v2197, %v2199
        %v2201 = vrot.slane %v2187, %v2200
        %v2202 = vcombine.high %v2194, %v2194
        %v2203 = vcombine.high %v2201, %v2201
        %v2204 = vcombine.low %v1756, %v1757
        %v2205 = vcombine.high %v1756, %v1757
        %v2207 = vunpack.c.l.s4 1983009808
        %v2208 = vunpack.c.0.s8 %v2207
        %v2209 = vlaneseq
        %v2210 = vshrl.u32 %v2209, 7
        %v2211 = vsub.s32 %v2208, %v2210
        %v2212 = vrot.slane %v2204, %v2211
        %v2214 = vunpack.c.l.s4 1983009808
        %v2215 = vunpack.c.0.s8 %v2214
        %v2216 = vlaneseq
        %v2217 = vshrl.u32 %v2216, 7
        %v2218 = vsub.s32 %v2215, %v2217
        %v2219 = vrot.slane %v2205, %v2218
        %v2220 = vcombine.high %v2212, %v2212
        %v2221 = vcombine.high %v2219, %v2219
        %v2222 = vcombine.low %v1758, %v1759
        %v2223 = vcombine.high %v1758, %v1759
        %v2225 = vunpack.c.l.s4 1983009808
        %v2226 = vunpack.c.0.s8 %v2225
        %v2227 = vlaneseq
        %v2228 = vshrl.u32 %v2227, 7
        %v2229 = vsub.s32 %v2226, %v2228
        %v2230 = vrot.slane %v2222, %v2229
        %v2232 = vunpack.c.l.s4 1983009808
        %v2233 = vunpack.c.0.s8 %v2232
        %v2234 = vlaneseq
        %v2235 = vshrl.u32 %v2234, 7
        %v2236 = vsub.s32 %v2233, %v2235
        %v2237 = vrot.slane %v2223, %v2236
        %v2238 = vcombine.high %v2230, %v2230
        %v2239 = vcombine.high %v2237, %v2237
        %v2241 = vunpack.c.l.s4 1983009808
        %v2242 = vunpack.c.0.s8 %v2241
        %v2243 = vlaneseq
        %v2244 = vshrl.u32 %v2243, 7
        %v2245 = vsub.s32 %v2242, %v2244
        %v2246 = vrot.slane %v1816, %v2245
        %v2247 = vcombine.high %v2246, %v2246
        %v2249 = vunpack.c.l.s4 1983009808
        %v2250 = vunpack.c.0.s8 %v2249
        %v2251 = vlaneseq
        %v2252 = vshrl.u32 %v2251, 7
        %v2253 = vsub.s32 %v2250, %v2252
        %v2254 = vrot.slane %v1824, %v2253
        %v2255 = vcombine.high %v2254, %v2254
        %v2257 = vunpack.c.l.s4 1983009808
        %v2258 = vunpack.c.0.s8 %v2257
        %v2259 = vlaneseq
        %v2260 = vshrl.u32 %v2259, 7
        %v2261 = vsub.s32 %v2258, %v2260
        %v2262 = vrot.slane %v1823, %v2261
        %v2263 = vcombine.high %v2262, %v2262
        %v2265 = vunpack.c.l.s4 1983009808
        %v2266 = vunpack.c.0.s8 %v2265
        %v2267 = vlaneseq
        %v2268 = vshrl.u32 %v2267, 7
        %v2269 = vsub.s32 %v2266, %v2268
        %v2270 = vrot.slane %v1825, %v2269
        %v2271 = vcombine.high %v2270, %v2270
        %v2273 = vunpack.c.l.s4 1983009808
        %v2274 = vunpack.c.0.s8 %v2273
        %v2275 = vlaneseq
        %v2276 = vshrl.u32 %v2275, 7
        %v2277 = vsub.s32 %v2274, %v2276
        %v2278 = vrot.slane %v1834, %v2277
        %v2279 = vcombine.high %v2278, %v2278
        %v2281 = vunpack.c.l.s4 1983009808
        %v2282 = vunpack.c.0.s8 %v2281
        %v2283 = vlaneseq
        %v2284 = vshrl.u32 %v2283, 7
        %v2285 = vsub.s32 %v2282, %v2284
        %v2286 = vrot.slane %v1842, %v2285
        %v2287 = vcombine.high %v2286, %v2286
        %v2289 = vunpack.c.l.s4 1983009808
        %v2290 = vunpack.c.0.s8 %v2289
        %v2291 = vlaneseq
        %v2292 = vshrl.u32 %v2291, 7
        %v2293 = vsub.s32 %v2290, %v2292
        %v2294 = vrot.slane %v1841, %v2293
        %v2295 = vcombine.high %v2294, %v2294
        %v2297 = vunpack.c.l.s4 1983009808
        %v2298 = vunpack.c.0.s8 %v2297
        %v2299 = vlaneseq
        %v2300 = vshrl.u32 %v2299, 7
        %v2301 = vsub.s32 %v2298, %v2300
        %v2302 = vrot.slane %v1843, %v2301
        %v2303 = vcombine.high %v2302, %v2302
        %v2305 = vunpack.c.l.s4 1983009808
        %v2306 = vunpack.c.0.s8 %v2305
        %v2307 = vlaneseq
        %v2308 = vshrl.u32 %v2307, 7
        %v2309 = vsub.s32 %v2306, %v2308
        %v2310 = vrot.slane %v1852, %v2309
        %v2311 = vcombine.high %v2310, %v2310
        %v2313 = vunpack.c.l.s4 1983009808
        %v2314 = vunpack.c.0.s8 %v2313
        %v2315 = vlaneseq
        %v2316 = vshrl.u32 %v2315, 7
        %v2317 = vsub.s32 %v2314, %v2316
        %v2318 = vrot.slane %v1860, %v2317
        %v2319 = vcombine.high %v2318, %v2318
        %v2321 = vunpack.c.l.s4 1983009808
        %v2322 = vunpack.c.0.s8 %v2321
        %v2323 = vlaneseq
        %v2324 = vshrl.u32 %v2323, 7
        %v2325 = vsub.s32 %v2322, %v2324
        %v2326 = vrot.slane %v1859, %v2325
        %v2327 = vcombine.high %v2326, %v2326
        %v2329 = vunpack.c.l.s4 1983009808
        %v2330 = vunpack.c.0.s8 %v2329
        %v2331 = vlaneseq
        %v2332 = vshrl.u32 %v2331, 7
        %v2333 = vsub.s32 %v2330, %v2332
        %v2334 = vrot.slane %v1861, %v2333
        %v2335 = vcombine.high %v2334, %v2334
        %v2337 = vunpack.c.l.s4 1983009808
        %v2338 = vunpack.c.0.s8 %v2337
        %v2339 = vlaneseq
        %v2340 = vshrl.u32 %v2339, 7
        %v2341 = vsub.s32 %v2338, %v2340
        %v2342 = vrot.slane %v1870, %v2341
        %v2343 = vcombine.high %v2342, %v2342
        %v2345 = vunpack.c.l.s4 1983009808
        %v2346 = vunpack.c.0.s8 %v2345
        %v2347 = vlaneseq
        %v2348 = vshrl.u32 %v2347, 7
        %v2349 = vsub.s32 %v2346, %v2348
        %v2350 = vrot.slane %v1878, %v2349
        %v2351 = vcombine.high %v2350, %v2350
        %v2353 = vunpack.c.l.s4 1983009808
        %v2354 = vunpack.c.0.s8 %v2353
        %v2355 = vlaneseq
        %v2356 = vshrl.u32 %v2355, 7
        %v2357 = vsub.s32 %v2354, %v2356
        %v2358 = vrot.slane %v1877, %v2357
        %v2359 = vcombine.high %v2358, %v2358
        %v2361 = vunpack.c.l.s4 1983009808
        %v2362 = vunpack.c.0.s8 %v2361
        %v2363 = vlaneseq
        %v2364 = vshrl.u32 %v2363, 7
        %v2365 = vsub.s32 %v2362, %v2364
        %v2366 = vrot.slane %v1879, %v2365
        %v2367 = vcombine.high %v2366, %v2366
        %v2369 = vunpack.c.l.s4 1983009808
        %v2370 = vunpack.c.0.s8 %v2369
        %v2371 = vlaneseq
        %v2372 = vshrl.u32 %v2371, 7
        %v2373 = vsub.s32 %v2370, %v2372
        %v2374 = vrot.slane %v1888, %v2373
        %v2375 = vcombine.high %v2374, %v2374
        %v2377 = vunpack.c.l.s4 1983009808
        %v2378 = vunpack.c.0.s8 %v2377
        %v2379 = vlaneseq
        %v2380 = vshrl.u32 %v2379, 7
        %v2381 = vsub.s32 %v2378, %v2380
        %v2382 = vrot.slane %v1896, %v2381
        %v2383 = vcombine.high %v2382, %v2382
        %v2385 = vunpack.c.l.s4 1983009808
        %v2386 = vunpack.c.0.s8 %v2385
        %v2387 = vlaneseq
        %v2388 = vshrl.u32 %v2387, 7
        %v2389 = vsub.s32 %v2386, %v2388
        %v2390 = vrot.slane %v1895, %v2389
        %v2391 = vcombine.high %v2390, %v2390
        %v2393 = vunpack.c.l.s4 1983009808
        %v2394 = vunpack.c.0.s8 %v2393
        %v2395 = vlaneseq
        %v2396 = vshrl.u32 %v2395, 7
        %v2397 = vsub.s32 %v2394, %v2396
        %v2398 = vrot.slane %v1897, %v2397
        %v2399 = vcombine.high %v2398, %v2398
        %v2401 = vunpack.c.l.s4 1983009808
        %v2402 = vunpack.c.0.s8 %v2401
        %v2403 = vlaneseq
        %v2404 = vshrl.u32 %v2403, 7
        %v2405 = vsub.s32 %v2402, %v2404
        %v2406 = vrot.slane %v1906, %v2405
        %v2407 = vcombine.high %v2406, %v2406
        %v2409 = vunpack.c.l.s4 1983009808
        %v2410 = vunpack.c.0.s8 %v2409
        %v2411 = vlaneseq
        %v2412 = vshrl.u32 %v2411, 7
        %v2413 = vsub.s32 %v2410, %v2412
        %v2414 = vrot.slane %v1914, %v2413
        %v2415 = vcombine.high %v2414, %v2414
        %v2417 = vunpack.c.l.s4 1983009808
        %v2418 = vunpack.c.0.s8 %v2417
        %v2419 = vlaneseq
        %v2420 = vshrl.u32 %v2419, 7
        %v2421 = vsub.s32 %v2418, %v2420
        %v2422 = vrot.slane %v1913, %v2421
        %v2423 = vcombine.high %v2422, %v2422
        %v2425 = vunpack.c.l.s4 1983009808
        %v2426 = vunpack.c.0.s8 %v2425
        %v2427 = vlaneseq
        %v2428 = vshrl.u32 %v2427, 7
        %v2429 = vsub.s32 %v2426, %v2428
        %v2430 = vrot.slane %v1915, %v2429
        %v2431 = vcombine.high %v2430, %v2430
        %v2433 = vunpack.c.l.s4 1983009808
        %v2434 = vunpack.c.0.s8 %v2433
        %v2435 = vlaneseq
        %v2436 = vshrl.u32 %v2435, 7
        %v2437 = vsub.s32 %v2434, %v2436
        %v2438 = vrot.slane %v1924, %v2437
        %v2439 = vcombine.high %v2438, %v2438
        %v2441 = vunpack.c.l.s4 1983009808
        %v2442 = vunpack.c.0.s8 %v2441
        %v2443 = vlaneseq
        %v2444 = vshrl.u32 %v2443, 7
        %v2445 = vsub.s32 %v2442, %v2444
        %v2446 = vrot.slane %v1932, %v2445
        %v2447 = vcombine.high %v2446, %v2446
        %v2449 = vunpack.c.l.s4 1983009808
        %v2450 = vunpack.c.0.s8 %v2449
        %v2451 = vlaneseq
        %v2452 = vshrl.u32 %v2451, 7
        %v2453 = vsub.s32 %v2450, %v2452
        %v2454 = vrot.slane %v1931, %v2453
        %v2455 = vcombine.high %v2454, %v2454
        %v2457 = vunpack.c.l.s4 1983009808
        %v2458 = vunpack.c.0.s8 %v2457
        %v2459 = vlaneseq
        %v2460 = vshrl.u32 %v2459, 7
        %v2461 = vsub.s32 %v2458, %v2460
        %v2462 = vrot.slane %v1933, %v2461
        %v2463 = vcombine.high %v2462, %v2462
        %v2465 = vunpack.c.l.s4 1983009808
        %v2466 = vunpack.c.0.s8 %v2465
        %v2467 = vlaneseq
        %v2468 = vshrl.u32 %v2467, 7
        %v2469 = vsub.s32 %v2466, %v2468
        %v2470 = vrot.slane %v1942, %v2469
        %v2471 = vcombine.high %v2470, %v2470
        %v2473 = vunpack.c.l.s4 1983009808
        %v2474 = vunpack.c.0.s8 %v2473
        %v2475 = vlaneseq
        %v2476 = vshrl.u32 %v2475, 7
        %v2477 = vsub.s32 %v2474, %v2476
        %v2478 = vrot.slane %v1950, %v2477
        %v2479 = vcombine.high %v2478, %v2478
        %v2481 = vunpack.c.l.s4 1983009808
        %v2482 = vunpack.c.0.s8 %v2481
        %v2483 = vlaneseq
        %v2484 = vshrl.u32 %v2483, 7
        %v2485 = vsub.s32 %v2482, %v2484
        %v2486 = vrot.slane %v1949, %v2485
        %v2487 = vcombine.high %v2486, %v2486
        %v2489 = vunpack.c.l.s4 1983009808
        %v2490 = vunpack.c.0.s8 %v2489
        %v2491 = vlaneseq
        %v2492 = vshrl.u32 %v2491, 7
        %v2493 = vsub.s32 %v2490, %v2492
        %v2494 = vrot.slane %v1951, %v2493
        %v2495 = vcombine.high %v2494, %v2494
        %v2497 = vunpack.c.l.s4 1983009808
        %v2498 = vunpack.c.0.s8 %v2497
        %v2499 = vlaneseq
        %v2500 = vshrl.u32 %v2499, 7
        %v2501 = vsub.s32 %v2498, %v2500
        %v2502 = vrot.slane %v1960, %v2501
        %v2503 = vcombine.high %v2502, %v2502
        %v2505 = vunpack.c.l.s4 1983009808
        %v2506 = vunpack.c.0.s8 %v2505
        %v2507 = vlaneseq
        %v2508 = vshrl.u32 %v2507, 7
        %v2509 = vsub.s32 %v2506, %v2508
        %v2510 = vrot.slane %v1968, %v2509
        %v2511 = vcombine.high %v2510, %v2510
        %v2513 = vunpack.c.l.s4 1983009808
        %v2514 = vunpack.c.0.s8 %v2513
        %v2515 = vlaneseq
        %v2516 = vshrl.u32 %v2515, 7
        %v2517 = vsub.s32 %v2514, %v2516
        %v2518 = vrot.slane %v1967, %v2517
        %v2519 = vcombine.high %v2518, %v2518
        %v2521 = vunpack.c.l.s4 1983009808
        %v2522 = vunpack.c.0.s8 %v2521
        %v2523 = vlaneseq
        %v2524 = vshrl.u32 %v2523, 7
        %v2525 = vsub.s32 %v2522, %v2524
        %v2526 = vrot.slane %v1969, %v2525
        %v2527 = vcombine.high %v2526, %v2526
        %v2529 = vunpack.c.l.s4 1983009808
        %v2530 = vunpack.c.0.s8 %v2529
        %v2531 = vlaneseq
        %v2532 = vshrl.u32 %v2531, 7
        %v2533 = vsub.s32 %v2530, %v2532
        %v2534 = vrot.slane %v1978, %v2533
        %v2535 = vcombine.high %v2534, %v2534
        %v2537 = vunpack.c.l.s4 1983009808
        %v2538 = vunpack.c.0.s8 %v2537
        %v2539 = vlaneseq
        %v2540 = vshrl.u32 %v2539, 7
        %v2541 = vsub.s32 %v2538, %v2540
        %v2542 = vrot.slane %v1986, %v2541
        %v2543 = vcombine.high %v2542, %v2542
        %v2545 = vunpack.c.l.s4 1983009808
        %v2546 = vunpack.c.0.s8 %v2545
        %v2547 = vlaneseq
        %v2548 = vshrl.u32 %v2547, 7
        %v2549 = vsub.s32 %v2546, %v2548
        %v2550 = vrot.slane %v1985, %v2549
        %v2551 = vcombine.high %v2550, %v2550
        %v2553 = vunpack.c.l.s4 1983009808
        %v2554 = vunpack.c.0.s8 %v2553
        %v2555 = vlaneseq
        %v2556 = vshrl.u32 %v2555, 7
        %v2557 = vsub.s32 %v2554, %v2556
        %v2558 = vrot.slane %v1987, %v2557
        %v2559 = vcombine.high %v2558, %v2558
        %v2561 = vunpack.c.l.s4 1983009808
        %v2562 = vunpack.c.0.s8 %v2561
        %v2563 = vlaneseq
        %v2564 = vshrl.u32 %v2563, 7
        %v2565 = vsub.s32 %v2562, %v2564
        %v2566 = vrot.slane %v1996, %v2565
        %v2567 = vcombine.high %v2566, %v2566
        %v2569 = vunpack.c.l.s4 1983009808
        %v2570 = vunpack.c.0.s8 %v2569
        %v2571 = vlaneseq
        %v2572 = vshrl.u32 %v2571, 7
        %v2573 = vsub.s32 %v2570, %v2572
        %v2574 = vrot.slane %v2004, %v2573
        %v2575 = vcombine.high %v2574, %v2574
        %v2577 = vunpack.c.l.s4 1983009808
        %v2578 = vunpack.c.0.s8 %v2577
        %v2579 = vlaneseq
        %v2580 = vshrl.u32 %v2579, 7
        %v2581 = vsub.s32 %v2578, %v2580
        %v2582 = vrot.slane %v2003, %v2581
        %v2583 = vcombine.high %v2582, %v2582
        %v2585 = vunpack.c.l.s4 1983009808
        %v2586 = vunpack.c.0.s8 %v2585
        %v2587 = vlaneseq
        %v2588 = vshrl.u32 %v2587, 7
        %v2589 = vsub.s32 %v2586, %v2588
        %v2590 = vrot.slane %v2005, %v2589
        %v2591 = vcombine.high %v2590, %v2590
        %v2593 = vunpack.c.l.s4 1983009808
        %v2594 = vunpack.c.0.s8 %v2593
        %v2595 = vlaneseq
        %v2596 = vshrl.u32 %v2595, 7
        %v2597 = vsub.s32 %v2594, %v2596
        %v2598 = vrot.slane %v2014, %v2597
        %v2599 = vcombine.high %v2598, %v2598
        %v2601 = vunpack.c.l.s4 1983009808
        %v2602 = vunpack.c.0.s8 %v2601
        %v2603 = vlaneseq
        %v2604 = vshrl.u32 %v2603, 7
        %v2605 = vsub.s32 %v2602, %v2604
        %v2606 = vrot.slane %v2022, %v2605
        %v2607 = vcombine.high %v2606, %v2606
        %v2609 = vunpack.c.l.s4 1983009808
        %v2610 = vunpack.c.0.s8 %v2609
        %v2611 = vlaneseq
        %v2612 = vshrl.u32 %v2611, 7
        %v2613 = vsub.s32 %v2610, %v2612
        %v2614 = vrot.slane %v2021, %v2613
        %v2615 = vcombine.high %v2614, %v2614
        %v2617 = vunpack.c.l.s4 1983009808
        %v2618 = vunpack.c.0.s8 %v2617
        %v2619 = vlaneseq
        %v2620 = vshrl.u32 %v2619, 7
        %v2621 = vsub.s32 %v2618, %v2620
        %v2622 = vrot.slane %v2023, %v2621
        %v2623 = vcombine.high %v2622, %v2622
        %v2625 = vunpack.c.l.s4 1983009808
        %v2626 = vunpack.c.0.s8 %v2625
        %v2627 = vlaneseq
        %v2628 = vshrl.u32 %v2627, 7
        %v2629 = vsub.s32 %v2626, %v2628
        %v2630 = vrot.slane %v2032, %v2629
        %v2631 = vcombine.high %v2630, %v2630
        %v2633 = vunpack.c.l.s4 1983009808
        %v2634 = vunpack.c.0.s8 %v2633
        %v2635 = vlaneseq
        %v2636 = vshrl.u32 %v2635, 7
        %v2637 = vsub.s32 %v2634, %v2636
        %v2638 = vrot.slane %v2040, %v2637
        %v2639 = vcombine.high %v2638, %v2638
        %v2641 = vunpack.c.l.s4 1983009808
        %v2642 = vunpack.c.0.s8 %v2641
        %v2643 = vlaneseq
        %v2644 = vshrl.u32 %v2643, 7
        %v2645 = vsub.s32 %v2642, %v2644
        %v2646 = vrot.slane %v2039, %v2645
        %v2647 = vcombine.high %v2646, %v2646
        %v2649 = vunpack.c.l.s4 1983009808
        %v2650 = vunpack.c.0.s8 %v2649
        %v2651 = vlaneseq
        %v2652 = vshrl.u32 %v2651, 7
        %v2653 = vsub.s32 %v2650, %v2652
        %v2654 = vrot.slane %v2041, %v2653
        %v2655 = vcombine.high %v2654, %v2654
        %v2657 = vunpack.c.l.s4 1983009808
        %v2658 = vunpack.c.0.s8 %v2657
        %v2659 = vlaneseq
        %v2660 = vshrl.u32 %v2659, 7
        %v2661 = vsub.s32 %v2658, %v2660
        %v2662 = vrot.slane %v2050, %v2661
        %v2663 = vcombine.high %v2662, %v2662
        %v2665 = vunpack.c.l.s4 1983009808
        %v2666 = vunpack.c.0.s8 %v2665
        %v2667 = vlaneseq
        %v2668 = vshrl.u32 %v2667, 7
        %v2669 = vsub.s32 %v2666, %v2668
        %v2670 = vrot.slane %v2058, %v2669
        %v2671 = vcombine.high %v2670, %v2670
        %v2673 = vunpack.c.l.s4 1983009808
        %v2674 = vunpack.c.0.s8 %v2673
        %v2675 = vlaneseq
        %v2676 = vshrl.u32 %v2675, 7
        %v2677 = vsub.s32 %v2674, %v2676
        %v2678 = vrot.slane %v2057, %v2677
        %v2679 = vcombine.high %v2678, %v2678
        %v2681 = vunpack.c.l.s4 1983009808
        %v2682 = vunpack.c.0.s8 %v2681
        %v2683 = vlaneseq
        %v2684 = vshrl.u32 %v2683, 7
        %v2685 = vsub.s32 %v2682, %v2684
        %v2686 = vrot.slane %v2059, %v2685
        %v2687 = vcombine.high %v2686, %v2686
        %v2689 = vunpack.c.l.s4 1983009808
        %v2690 = vunpack.c.0.s8 %v2689
        %v2691 = vlaneseq
        %v2692 = vshrl.u32 %v2691, 7
        %v2693 = vsub.s32 %v2690, %v2692
        %v2694 = vrot.slane %v2068, %v2693
        %v2695 = vcombine.high %v2694, %v2694
        %v2697 = vunpack.c.l.s4 1983009808
        %v2698 = vunpack.c.0.s8 %v2697
        %v2699 = vlaneseq
        %v2700 = vshrl.u32 %v2699, 7
        %v2701 = vsub.s32 %v2698, %v2700
        %v2702 = vrot.slane %v2076, %v2701
        %v2703 = vcombine.high %v2702, %v2702
        %v2705 = vunpack.c.l.s4 1983009808
        %v2706 = vunpack.c.0.s8 %v2705
        %v2707 = vlaneseq
        %v2708 = vshrl.u32 %v2707, 7
        %v2709 = vsub.s32 %v2706, %v2708
        %v2710 = vrot.slane %v2075, %v2709
        %v2711 = vcombine.high %v2710, %v2710
        %v2713 = vunpack.c.l.s4 1983009808
        %v2714 = vunpack.c.0.s8 %v2713
        %v2715 = vlaneseq
        %v2716 = vshrl.u32 %v2715, 7
        %v2717 = vsub.s32 %v2714, %v2716
        %v2718 = vrot.slane %v2077, %v2717
        %v2719 = vcombine.high %v2718, %v2718
        %v2721 = vunpack.c.l.s4 1983009808
        %v2722 = vunpack.c.0.s8 %v2721
        %v2723 = vlaneseq
        %v2724 = vshrl.u32 %v2723, 7
        %v2725 = vsub.s32 %v2722, %v2724
        %v2726 = vrot.slane %v2086, %v2725
        %v2727 = vcombine.high %v2726, %v2726
        %v2729 = vunpack.c.l.s4 1983009808
        %v2730 = vunpack.c.0.s8 %v2729
        %v2731 = vlaneseq
        %v2732 = vshrl.u32 %v2731, 7
        %v2733 = vsub.s32 %v2730, %v2732
        %v2734 = vrot.slane %v2094, %v2733
        %v2735 = vcombine.high %v2734, %v2734
        %v2737 = vunpack.c.l.s4 1983009808
        %v2738 = vunpack.c.0.s8 %v2737
        %v2739 = vlaneseq
        %v2740 = vshrl.u32 %v2739, 7
        %v2741 = vsub.s32 %v2738, %v2740
        %v2742 = vrot.slane %v2093, %v2741
        %v2743 = vcombine.high %v2742, %v2742
        %v2745 = vunpack.c.l.s4 1983009808
        %v2746 = vunpack.c.0.s8 %v2745
        %v2747 = vlaneseq
        %v2748 = vshrl.u32 %v2747, 7
        %v2749 = vsub.s32 %v2746, %v2748
        %v2750 = vrot.slane %v2095, %v2749
        %v2751 = vcombine.high %v2750, %v2750
        %v2753 = vunpack.c.l.s4 1983009808
        %v2754 = vunpack.c.0.s8 %v2753
        %v2755 = vlaneseq
        %v2756 = vshrl.u32 %v2755, 7
        %v2757 = vsub.s32 %v2754, %v2756
        %v2758 = vrot.slane %v2104, %v2757
        %v2759 = vcombine.high %v2758, %v2758
        %v2761 = vunpack.c.l.s4 1983009808
        %v2762 = vunpack.c.0.s8 %v2761
        %v2763 = vlaneseq
        %v2764 = vshrl.u32 %v2763, 7
        %v2765 = vsub.s32 %v2762, %v2764
        %v2766 = vrot.slane %v2112, %v2765
        %v2767 = vcombine.high %v2766, %v2766
        %v2769 = vunpack.c.l.s4 1983009808
        %v2770 = vunpack.c.0.s8 %v2769
        %v2771 = vlaneseq
        %v2772 = vshrl.u32 %v2771, 7
        %v2773 = vsub.s32 %v2770, %v2772
        %v2774 = vrot.slane %v2111, %v2773
        %v2775 = vcombine.high %v2774, %v2774
        %v2777 = vunpack.c.l.s4 1983009808
        %v2778 = vunpack.c.0.s8 %v2777
        %v2779 = vlaneseq
        %v2780 = vshrl.u32 %v2779, 7
        %v2781 = vsub.s32 %v2778, %v2780
        %v2782 = vrot.slane %v2113, %v2781
        %v2783 = vcombine.high %v2782, %v2782
        %v2785 = vunpack.c.l.s4 1983009808
        %v2786 = vunpack.c.0.s8 %v2785
        %v2787 = vlaneseq
        %v2788 = vshrl.u32 %v2787, 7
        %v2789 = vsub.s32 %v2786, %v2788
        %v2790 = vrot.slane %v2122, %v2789
        %v2791 = vcombine.high %v2790, %v2790
        %v2793 = vunpack.c.l.s4 1983009808
        %v2794 = vunpack.c.0.s8 %v2793
        %v2795 = vlaneseq
        %v2796 = vshrl.u32 %v2795, 7
        %v2797 = vsub.s32 %v2794, %v2796
        %v2798 = vrot.slane %v2130, %v2797
        %v2799 = vcombine.high %v2798, %v2798
        %v2801 = vunpack.c.l.s4 1983009808
        %v2802 = vunpack.c.0.s8 %v2801
        %v2803 = vlaneseq
        %v2804 = vshrl.u32 %v2803, 7
        %v2805 = vsub.s32 %v2802, %v2804
        %v2806 = vrot.slane %v2129, %v2805
        %v2807 = vcombine.high %v2806, %v2806
        %v2809 = vunpack.c.l.s4 1983009808
        %v2810 = vunpack.c.0.s8 %v2809
        %v2811 = vlaneseq
        %v2812 = vshrl.u32 %v2811, 7
        %v2813 = vsub.s32 %v2810, %v2812
        %v2814 = vrot.slane %v2131, %v2813
        %v2815 = vcombine.high %v2814, %v2814
        %v2817 = vunpack.c.l.s4 1983009808
        %v2818 = vunpack.c.0.s8 %v2817
        %v2819 = vlaneseq
        %v2820 = vshrl.u32 %v2819, 7
        %v2821 = vsub.s32 %v2818, %v2820
        %v2822 = vrot.slane %v2140, %v2821
        %v2823 = vcombine.high %v2822, %v2822
        %v2825 = vunpack.c.l.s4 1983009808
        %v2826 = vunpack.c.0.s8 %v2825
        %v2827 = vlaneseq
        %v2828 = vshrl.u32 %v2827, 7
        %v2829 = vsub.s32 %v2826, %v2828
        %v2830 = vrot.slane %v2148, %v2829
        %v2831 = vcombine.high %v2830, %v2830
        %v2833 = vunpack.c.l.s4 1983009808
        %v2834 = vunpack.c.0.s8 %v2833
        %v2835 = vlaneseq
        %v2836 = vshrl.u32 %v2835, 7
        %v2837 = vsub.s32 %v2834, %v2836
        %v2838 = vrot.slane %v2147, %v2837
        %v2839 = vcombine.high %v2838, %v2838
        %v2841 = vunpack.c.l.s4 1983009808
        %v2842 = vunpack.c.0.s8 %v2841
        %v2843 = vlaneseq
        %v2844 = vshrl.u32 %v2843, 7
        %v2845 = vsub.s32 %v2842, %v2844
        %v2846 = vrot.slane %v2149, %v2845
        %v2847 = vcombine.high %v2846, %v2846
        %v2849 = vunpack.c.l.s4 1983009808
        %v2850 = vunpack.c.0.s8 %v2849
        %v2851 = vlaneseq
        %v2852 = vshrl.u32 %v2851, 7
        %v2853 = vsub.s32 %v2850, %v2852
        %v2854 = vrot.slane %v2158, %v2853
        %v2855 = vcombine.high %v2854, %v2854
        %v2857 = vunpack.c.l.s4 1983009808
        %v2858 = vunpack.c.0.s8 %v2857
        %v2859 = vlaneseq
        %v2860 = vshrl.u32 %v2859, 7
        %v2861 = vsub.s32 %v2858, %v2860
        %v2862 = vrot.slane %v2166, %v2861
        %v2863 = vcombine.high %v2862, %v2862
        %v2865 = vunpack.c.l.s4 1983009808
        %v2866 = vunpack.c.0.s8 %v2865
        %v2867 = vlaneseq
        %v2868 = vshrl.u32 %v2867, 7
        %v2869 = vsub.s32 %v2866, %v2868
        %v2870 = vrot.slane %v2165, %v2869
        %v2871 = vcombine.high %v2870, %v2870
        %v2873 = vunpack.c.l.s4 1983009808
        %v2874 = vunpack.c.0.s8 %v2873
        %v2875 = vlaneseq
        %v2876 = vshrl.u32 %v2875, 7
        %v2877 = vsub.s32 %v2874, %v2876
        %v2878 = vrot.slane %v2167, %v2877
        %v2879 = vcombine.high %v2878, %v2878
        %v2881 = vunpack.c.l.s4 1983009808
        %v2882 = vunpack.c.0.s8 %v2881
        %v2883 = vlaneseq
        %v2884 = vshrl.u32 %v2883, 7
        %v2885 = vsub.s32 %v2882, %v2884
        %v2886 = vrot.slane %v2176, %v2885
        %v2887 = vcombine.high %v2886, %v2886
        %v2889 = vunpack.c.l.s4 1983009808
        %v2890 = vunpack.c.0.s8 %v2889
        %v2891 = vlaneseq
        %v2892 = vshrl.u32 %v2891, 7
        %v2893 = vsub.s32 %v2890, %v2892
        %v2894 = vrot.slane %v2184, %v2893
        %v2895 = vcombine.high %v2894, %v2894
        %v2897 = vunpack.c.l.s4 1983009808
        %v2898 = vunpack.c.0.s8 %v2897
        %v2899 = vlaneseq
        %v2900 = vshrl.u32 %v2899, 7
        %v2901 = vsub.s32 %v2898, %v2900
        %v2902 = vrot.slane %v2183, %v2901
        %v2903 = vcombine.high %v2902, %v2902
        %v2905 = vunpack.c.l.s4 1983009808
        %v2906 = vunpack.c.0.s8 %v2905
        %v2907 = vlaneseq
        %v2908 = vshrl.u32 %v2907, 7
        %v2909 = vsub.s32 %v2906, %v2908
        %v2910 = vrot.slane %v2185, %v2909
        %v2911 = vcombine.high %v2910, %v2910
        %v2913 = vunpack.c.l.s4 1983009808
        %v2914 = vunpack.c.0.s8 %v2913
        %v2915 = vlaneseq
        %v2916 = vshrl.u32 %v2915, 7
        %v2917 = vsub.s32 %v2914, %v2916
        %v2918 = vrot.slane %v2194, %v2917
        %v2919 = vcombine.high %v2918, %v2918
        %v2921 = vunpack.c.l.s4 1983009808
        %v2922 = vunpack.c.0.s8 %v2921
        %v2923 = vlaneseq
        %v2924 = vshrl.u32 %v2923, 7
        %v2925 = vsub.s32 %v2922, %v2924
        %v2926 = vrot.slane %v2202, %v2925
        %v2927 = vcombine.high %v2926, %v2926
        %v2929 = vunpack.c.l.s4 1983009808
        %v2930 = vunpack.c.0.s8 %v2929
        %v2931 = vlaneseq
        %v2932 = vshrl.u32 %v2931, 7
        %v2933 = vsub.s32 %v2930, %v2932
        %v2934 = vrot.slane %v2201, %v2933
        %v2935 = vcombine.high %v2934, %v2934
        %v2937 = vunpack.c.l.s4 1983009808
        %v2938 = vunpack.c.0.s8 %v2937
        %v2939 = vlaneseq
        %v2940 = vshrl.u32 %v2939, 7
        %v2941 = vsub.s32 %v2938, %v2940
        %v2942 = vrot.slane %v2203, %v2941
        %v2943 = vcombine.high %v2942, %v2942
        %v2945 = vunpack.c.l.s4 1983009808
        %v2946 = vunpack.c.0.s8 %v2945
        %v2947 = vlaneseq
        %v2948 = vshrl.u32 %v2947, 7
        %v2949 = vsub.s32 %v2946, %v2948
        %v2950 = vrot.slane %v2212, %v2949
        %v2951 = vcombine.high %v2950, %v2950
        %v2953 = vunpack.c.l.s4 1983009808
        %v2954 = vunpack.c.0.s8 %v2953
        %v2955 = vlaneseq
        %v2956 = vshrl.u32 %v2955, 7
        %v2957 = vsub.s32 %v2954, %v2956
        %v2958 = vrot.slane %v2220, %v2957
        %v2959 = vcombine.high %v2958, %v2958
        %v2961 = vunpack.c.l.s4 1983009808
        %v2962 = vunpack.c.0.s8 %v2961
        %v2963 = vlaneseq
        %v2964 = vshrl.u32 %v2963, 7
        %v2965 = vsub.s32 %v2962, %v2964
        %v2966 = vrot.slane %v2219, %v2965
        %v2967 = vcombine.high %v2966, %v2966
        %v2969 = vunpack.c.l.s4 1983009808
        %v2970 = vunpack.c.0.s8 %v2969
        %v2971 = vlaneseq
        %v2972 = vshrl.u32 %v2971, 7
        %v2973 = vsub.s32 %v2970, %v2972
        %v2974 = vrot.slane %v2221, %v2973
        %v2975 = vcombine.high %v2974, %v2974
        %v2977 = vunpack.c.l.s4 1983009808
        %v2978 = vunpack.c.0.s8 %v2977
        %v2979 = vlaneseq
        %v2980 = vshrl.u32 %v2979, 7
        %v2981 = vsub.s32 %v2978, %v2980
        %v2982 = vrot.slane %v2230, %v2981
        %v2983 = vcombine.high %v2982, %v2982
        %v2985 = vunpack.c.l.s4 1983009808
        %v2986 = vunpack.c.0.s8 %v2985
        %v2987 = vlaneseq
        %v2988 = vshrl.u32 %v2987, 7
        %v2989 = vsub.s32 %v2986, %v2988
        %v2990 = vrot.slane %v2238, %v2989
        %v2991 = vcombine.high %v2990, %v2990
        %v2993 = vunpack.c.l.s4 1983009808
        %v2994 = vunpack.c.0.s8 %v2993
        %v2995 = vlaneseq
        %v2996 = vshrl.u32 %v2995, 7
        %v2997 = vsub.s32 %v2994, %v2996
        %v2998 = vrot.slane %v2237, %v2997
        %v2999 = vcombine.high %v2998, %v2998
        %v3001 = vunpack.c.l.s4 1983009808
        %v3002 = vunpack.c.0.s8 %v3001
        %v3003 = vlaneseq
        %v3004 = vshrl.u32 %v3003, 7
        %v3005 = vsub.s32 %v3002, %v3004
        %v3006 = vrot.slane %v2239, %v3005
        %v3007 = vcombine.high %v3006, %v3006
        %vm3200 = vcmask 1041408
        %v3201 = vsel %vm3200, %v2246, -inf
        %v3202 = vrot.slane %v3201, 4
        %v3203 = vmax.f32 %v3201, %v3202
        %v3204 = vrot.slane %v3203, 2
        %v3205 = vmax.f32 %v3203, %v3204
        %v3206 = vrot.slane %v3205, 1
        %v3207 = vmax.f32 %v3205, %v3206
        %vm3208 = vcmask 517120
        %v3209 = vsel %vm3208, %v2247, -inf
        %v3210 = vrot.slane %v3209, 4
        %v3211 = vmax.f32 %v3209, %v3210
        %v3212 = vrot.slane %v3211, 2
        %v3213 = vmax.f32 %v3211, %v3212
        %v3214 = vrot.slane %v3213, 1
        %v3215 = vmax.f32 %v3213, %v3214
        %v3216 = vsel %vm3200, %v2254, -inf
        %v3217 = vrot.slane %v3216, 4
        %v3218 = vmax.f32 %v3216, %v3217
        %v3219 = vrot.slane %v3218, 2
        %v3220 = vmax.f32 %v3218, %v3219
        %v3221 = vrot.slane %v3220, 1
        %v3222 = vmax.f32 %v3220, %v3221
        %v3223 = vsel %vm3208, %v2255, -inf
        %v3224 = vrot.slane %v3223, 4
        %v3225 = vmax.f32 %v3223, %v3224
        %v3226 = vrot.slane %v3225, 2
        %v3227 = vmax.f32 %v3225, %v3226
        %v3228 = vrot.slane %v3227, 1
        %v3229 = vmax.f32 %v3227, %v3228
        %v3230 = vsel %vm3200, %v2262, -inf
        %v3231 = vrot.slane %v3230, 4
        %v3232 = vmax.f32 %v3230, %v3231
        %v3233 = vrot.slane %v3232, 2
        %v3234 = vmax.f32 %v3232, %v3233
        %v3235 = vrot.slane %v3234, 1
        %v3236 = vmax.f32 %v3234, %v3235
        %v3237 = vsel %vm3208, %v2263, -inf
        %v3238 = vrot.slane %v3237, 4
        %v3239 = vmax.f32 %v3237, %v3238
        %v3240 = vrot.slane %v3239, 2
        %v3241 = vmax.f32 %v3239, %v3240
        %v3242 = vrot.slane %v3241, 1
        %v3243 = vmax.f32 %v3241, %v3242
        %v3244 = vsel %vm3200, %v2270, -inf
        %v3245 = vrot.slane %v3244, 4
        %v3246 = vmax.f32 %v3244, %v3245
        %v3247 = vrot.slane %v3246, 2
        %v3248 = vmax.f32 %v3246, %v3247
        %v3249 = vrot.slane %v3248, 1
        %v3250 = vmax.f32 %v3248, %v3249
        %v3251 = vsel %vm3208, %v2271, -inf
        %v3252 = vrot.slane %v3251, 4
        %v3253 = vmax.f32 %v3251, %v3252
        %v3254 = vrot.slane %v3253, 2
        %v3255 = vmax.f32 %v3253, %v3254
        %v3256 = vrot.slane %v3255, 1
        %v3257 = vmax.f32 %v3255, %v3256
        %v3258 = vsel %vm3200, %v2278, -inf
        %v3259 = vrot.slane %v3258, 4
        %v3260 = vmax.f32 %v3258, %v3259
        %v3261 = vrot.slane %v3260, 2
        %v3262 = vmax.f32 %v3260, %v3261
        %v3263 = vrot.slane %v3262, 1
        %v3264 = vmax.f32 %v3262, %v3263
        %v3265 = vsel %vm3208, %v2279, -inf
        %v3266 = vrot.slane %v3265, 4
        %v3267 = vmax.f32 %v3265, %v3266
        %v3268 = vrot.slane %v3267, 2
        %v3269 = vmax.f32 %v3267, %v3268
        %v3270 = vrot.slane %v3269, 1
        %v3271 = vmax.f32 %v3269, %v3270
        %v3272 = vsel %vm3200, %v2286, -inf
        %v3273 = vrot.slane %v3272, 4
        %v3274 = vmax.f32 %v3272, %v3273
        %v3275 = vrot.slane %v3274, 2
        %v3276 = vmax.f32 %v3274, %v3275
        %v3277 = vrot.slane %v3276, 1
        %v3278 = vmax.f32 %v3276, %v3277
        %v3279 = vsel %vm3208, %v2287, -inf
        %v3280 = vrot.slane %v3279, 4
        %v3281 = vmax.f32 %v3279, %v3280
        %v3282 = vrot.slane %v3281, 2
        %v3283 = vmax.f32 %v3281, %v3282
        %v3284 = vrot.slane %v3283, 1
        %v3285 = vmax.f32 %v3283, %v3284
        %v3286 = vsel %vm3200, %v2294, -inf
        %v3287 = vrot.slane %v3286, 4
        %v3288 = vmax.f32 %v3286, %v3287
        %v3289 = vrot.slane %v3288, 2
        %v3290 = vmax.f32 %v3288, %v3289
        %v3291 = vrot.slane %v3290, 1
        %v3292 = vmax.f32 %v3290, %v3291
        %v3293 = vsel %vm3208, %v2295, -inf
        %v3294 = vrot.slane %v3293, 4
        %v3295 = vmax.f32 %v3293, %v3294
        %v3296 = vrot.slane %v3295, 2
        %v3297 = vmax.f32 %v3295, %v3296
        %v3298 = vrot.slane %v3297, 1
        %v3299 = vmax.f32 %v3297, %v3298
        %v3300 = vsel %vm3200, %v2302, -inf
        %v3301 = vrot.slane %v3300, 4
        %v3302 = vmax.f32 %v3300, %v3301
        %v3303 = vrot.slane %v3302, 2
        %v3304 = vmax.f32 %v3302, %v3303
        %v3305 = vrot.slane %v3304, 1
        %v3306 = vmax.f32 %v3304, %v3305
        %v3307 = vsel %vm3208, %v2303, -inf
        %v3308 = vrot.slane %v3307, 4
        %v3309 = vmax.f32 %v3307, %v3308
        %v3310 = vrot.slane %v3309, 2
        %v3311 = vmax.f32 %v3309, %v3310
        %v3312 = vrot.slane %v3311, 1
        %v3313 = vmax.f32 %v3311, %v3312
        %v3314 = vsel %vm3200, %v2310, -inf
        %v3315 = vrot.slane %v3314, 4
        %v3316 = vmax.f32 %v3314, %v3315
        %v3317 = vrot.slane %v3316, 2
        %v3318 = vmax.f32 %v3316, %v3317
        %v3319 = vrot.slane %v3318, 1
        %v3320 = vmax.f32 %v3318, %v3319
        %v3321 = vsel %vm3208, %v2311, -inf
        %v3322 = vrot.slane %v3321, 4
        %v3323 = vmax.f32 %v3321, %v3322
        %v3324 = vrot.slane %v3323, 2
        %v3325 = vmax.f32 %v3323, %v3324
        %v3326 = vrot.slane %v3325, 1
        %v3327 = vmax.f32 %v3325, %v3326
        %v3328 = vsel %vm3200, %v2318, -inf
        %v3329 = vrot.slane %v3328, 4
        %v3330 = vmax.f32 %v3328, %v3329
        %v3331 = vrot.slane %v3330, 2
        %v3332 = vmax.f32 %v3330, %v3331
        %v3333 = vrot.slane %v3332, 1
        %v3334 = vmax.f32 %v3332, %v3333
        %v3335 = vsel %vm3208, %v2319, -inf
        %v3336 = vrot.slane %v3335, 4
        %v3337 = vmax.f32 %v3335, %v3336
        %v3338 = vrot.slane %v3337, 2
        %v3339 = vmax.f32 %v3337, %v3338
        %v3340 = vrot.slane %v3339, 1
        %v3341 = vmax.f32 %v3339, %v3340
        %v3342 = vsel %vm3200, %v2326, -inf
        %v3343 = vrot.slane %v3342, 4
        %v3344 = vmax.f32 %v3342, %v3343
        %v3345 = vrot.slane %v3344, 2
        %v3346 = vmax.f32 %v3344, %v3345
        %v3347 = vrot.slane %v3346, 1
        %v3348 = vmax.f32 %v3346, %v3347
        %v3349 = vsel %vm3208, %v2327, -inf
        %v3350 = vrot.slane %v3349, 4
        %v3351 = vmax.f32 %v3349, %v3350
        %v3352 = vrot.slane %v3351, 2
        %v3353 = vmax.f32 %v3351, %v3352
        %v3354 = vrot.slane %v3353, 1
        %v3355 = vmax.f32 %v3353, %v3354
        %v3356 = vsel %vm3200, %v2334, -inf
        %v3357 = vrot.slane %v3356, 4
        %v3358 = vmax.f32 %v3356, %v3357
        %v3359 = vrot.slane %v3358, 2
        %v3360 = vmax.f32 %v3358, %v3359
        %v3361 = vrot.slane %v3360, 1
        %v3362 = vmax.f32 %v3360, %v3361
        %v3363 = vsel %vm3208, %v2335, -inf
        %v3364 = vrot.slane %v3363, 4
        %v3365 = vmax.f32 %v3363, %v3364
        %v3366 = vrot.slane %v3365, 2
        %v3367 = vmax.f32 %v3365, %v3366
        %v3368 = vrot.slane %v3367, 1
        %v3369 = vmax.f32 %v3367, %v3368
        %v3370 = vsel %vm3200, %v2342, -inf
        %v3371 = vrot.slane %v3370, 4
        %v3372 = vmax.f32 %v3370, %v3371
        %v3373 = vrot.slane %v3372, 2
        %v3374 = vmax.f32 %v3372, %v3373
        %v3375 = vrot.slane %v3374, 1
        %v3376 = vmax.f32 %v3374, %v3375
        %v3377 = vsel %vm3208, %v2343, -inf
        %v3378 = vrot.slane %v3377, 4
        %v3379 = vmax.f32 %v3377, %v3378
        %v3380 = vrot.slane %v3379, 2
        %v3381 = vmax.f32 %v3379, %v3380
        %v3382 = vrot.slane %v3381, 1
        %v3383 = vmax.f32 %v3381, %v3382
        %v3384 = vsel %vm3200, %v2350, -inf
        %v3385 = vrot.slane %v3384, 4
        %v3386 = vmax.f32 %v3384, %v3385
        %v3387 = vrot.slane %v3386, 2
        %v3388 = vmax.f32 %v3386, %v3387
        %v3389 = vrot.slane %v3388, 1
        %v3390 = vmax.f32 %v3388, %v3389
        %v3391 = vsel %vm3208, %v2351, -inf
        %v3392 = vrot.slane %v3391, 4
        %v3393 = vmax.f32 %v3391, %v3392
        %v3394 = vrot.slane %v3393, 2
        %v3395 = vmax.f32 %v3393, %v3394
        %v3396 = vrot.slane %v3395, 1
        %v3397 = vmax.f32 %v3395, %v3396
        %v3398 = vsel %vm3200, %v2358, -inf
        %v3399 = vrot.slane %v3398, 4
        %v3400 = vmax.f32 %v3398, %v3399
        %v3401 = vrot.slane %v3400, 2
        %v3402 = vmax.f32 %v3400, %v3401
        %v3403 = vrot.slane %v3402, 1
        %v3404 = vmax.f32 %v3402, %v3403
        %v3405 = vsel %vm3208, %v2359, -inf
        %v3406 = vrot.slane %v3405, 4
        %v3407 = vmax.f32 %v3405, %v3406
        %v3408 = vrot.slane %v3407, 2
        %v3409 = vmax.f32 %v3407, %v3408
        %v3410 = vrot.slane %v3409, 1
        %v3411 = vmax.f32 %v3409, %v3410
        %v3412 = vsel %vm3200, %v2366, -inf
        %v3413 = vrot.slane %v3412, 4
        %v3414 = vmax.f32 %v3412, %v3413
        %v3415 = vrot.slane %v3414, 2
        %v3416 = vmax.f32 %v3414, %v3415
        %v3417 = vrot.slane %v3416, 1
        %v3418 = vmax.f32 %v3416, %v3417
        %v3419 = vsel %vm3208, %v2367, -inf
        %v3420 = vrot.slane %v3419, 4
        %v3421 = vmax.f32 %v3419, %v3420
        %v3422 = vrot.slane %v3421, 2
        %v3423 = vmax.f32 %v3421, %v3422
        %v3424 = vrot.slane %v3423, 1
        %v3425 = vmax.f32 %v3423, %v3424
        %v3426 = vsel %vm3200, %v2374, -inf
        %v3427 = vrot.slane %v3426, 4
        %v3428 = vmax.f32 %v3426, %v3427
        %v3429 = vrot.slane %v3428, 2
        %v3430 = vmax.f32 %v3428, %v3429
        %v3431 = vrot.slane %v3430, 1
        %v3432 = vmax.f32 %v3430, %v3431
        %v3433 = vsel %vm3208, %v2375, -inf
        %v3434 = vrot.slane %v3433, 4
        %v3435 = vmax.f32 %v3433, %v3434
        %v3436 = vrot.slane %v3435, 2
        %v3437 = vmax.f32 %v3435, %v3436
        %v3438 = vrot.slane %v3437, 1
        %v3439 = vmax.f32 %v3437, %v3438
        %v3440 = vsel %vm3200, %v2382, -inf
        %v3441 = vrot.slane %v3440, 4
        %v3442 = vmax.f32 %v3440, %v3441
        %v3443 = vrot.slane %v3442, 2
        %v3444 = vmax.f32 %v3442, %v3443
        %v3445 = vrot.slane %v3444, 1
        %v3446 = vmax.f32 %v3444, %v3445
        %v3447 = vsel %vm3208, %v2383, -inf
        %v3448 = vrot.slane %v3447, 4
        %v3449 = vmax.f32 %v3447, %v3448
        %v3450 = vrot.slane %v3449, 2
        %v3451 = vmax.f32 %v3449, %v3450
        %v3452 = vrot.slane %v3451, 1
        %v3453 = vmax.f32 %v3451, %v3452
        %v3454 = vsel %vm3200, %v2390, -inf
        %v3455 = vrot.slane %v3454, 4
        %v3456 = vmax.f32 %v3454, %v3455
        %v3457 = vrot.slane %v3456, 2
        %v3458 = vmax.f32 %v3456, %v3457
        %v3459 = vrot.slane %v3458, 1
        %v3460 = vmax.f32 %v3458, %v3459
        %v3461 = vsel %vm3208, %v2391, -inf
        %v3462 = vrot.slane %v3461, 4
        %v3463 = vmax.f32 %v3461, %v3462
        %v3464 = vrot.slane %v3463, 2
        %v3465 = vmax.f32 %v3463, %v3464
        %v3466 = vrot.slane %v3465, 1
        %v3467 = vmax.f32 %v3465, %v3466
        %v3468 = vsel %vm3200, %v2398, -inf
        %v3469 = vrot.slane %v3468, 4
        %v3470 = vmax.f32 %v3468, %v3469
        %v3471 = vrot.slane %v3470, 2
        %v3472 = vmax.f32 %v3470, %v3471
        %v3473 = vrot.slane %v3472, 1
        %v3474 = vmax.f32 %v3472, %v3473
        %v3475 = vsel %vm3208, %v2399, -inf
        %v3476 = vrot.slane %v3475, 4
        %v3477 = vmax.f32 %v3475, %v3476
        %v3478 = vrot.slane %v3477, 2
        %v3479 = vmax.f32 %v3477, %v3478
        %v3480 = vrot.slane %v3479, 1
        %v3481 = vmax.f32 %v3479, %v3480
        %v3482 = vsel %vm3200, %v2406, -inf
        %v3483 = vrot.slane %v3482, 4
        %v3484 = vmax.f32 %v3482, %v3483
        %v3485 = vrot.slane %v3484, 2
        %v3486 = vmax.f32 %v3484, %v3485
        %v3487 = vrot.slane %v3486, 1
        %v3488 = vmax.f32 %v3486, %v3487
        %v3489 = vsel %vm3208, %v2407, -inf
        %v3490 = vrot.slane %v3489, 4
        %v3491 = vmax.f32 %v3489, %v3490
        %v3492 = vrot.slane %v3491, 2
        %v3493 = vmax.f32 %v3491, %v3492
        %v3494 = vrot.slane %v3493, 1
        %v3495 = vmax.f32 %v3493, %v3494
        %v3496 = vsel %vm3200, %v2414, -inf
        %v3497 = vrot.slane %v3496, 4
        %v3498 = vmax.f32 %v3496, %v3497
        %v3499 = vrot.slane %v3498, 2
        %v3500 = vmax.f32 %v3498, %v3499
        %v3501 = vrot.slane %v3500, 1
        %v3502 = vmax.f32 %v3500, %v3501
        %v3503 = vsel %vm3208, %v2415, -inf
        %v3504 = vrot.slane %v3503, 4
        %v3505 = vmax.f32 %v3503, %v3504
        %v3506 = vrot.slane %v3505, 2
        %v3507 = vmax.f32 %v3505, %v3506
        %v3508 = vrot.slane %v3507, 1
        %v3509 = vmax.f32 %v3507, %v3508
        %v3510 = vsel %vm3200, %v2422, -inf
        %v3511 = vrot.slane %v3510, 4
        %v3512 = vmax.f32 %v3510, %v3511
        %v3513 = vrot.slane %v3512, 2
        %v3514 = vmax.f32 %v3512, %v3513
        %v3515 = vrot.slane %v3514, 1
        %v3516 = vmax.f32 %v3514, %v3515
        %v3517 = vsel %vm3208, %v2423, -inf
        %v3518 = vrot.slane %v3517, 4
        %v3519 = vmax.f32 %v3517, %v3518
        %v3520 = vrot.slane %v3519, 2
        %v3521 = vmax.f32 %v3519, %v3520
        %v3522 = vrot.slane %v3521, 1
        %v3523 = vmax.f32 %v3521, %v3522
        %v3524 = vsel %vm3200, %v2430, -inf
        %v3525 = vrot.slane %v3524, 4
        %v3526 = vmax.f32 %v3524, %v3525
        %v3527 = vrot.slane %v3526, 2
        %v3528 = vmax.f32 %v3526, %v3527
        %v3529 = vrot.slane %v3528, 1
        %v3530 = vmax.f32 %v3528, %v3529
        %v3531 = vsel %vm3208, %v2431, -inf
        %v3532 = vrot.slane %v3531, 4
        %v3533 = vmax.f32 %v3531, %v3532
        %v3534 = vrot.slane %v3533, 2
        %v3535 = vmax.f32 %v3533, %v3534
        %v3536 = vrot.slane %v3535, 1
        %v3537 = vmax.f32 %v3535, %v3536
        %v3538 = vsel %vm3200, %v2438, -inf
        %v3539 = vrot.slane %v3538, 4
        %v3540 = vmax.f32 %v3538, %v3539
        %v3541 = vrot.slane %v3540, 2
        %v3542 = vmax.f32 %v3540, %v3541
        %v3543 = vrot.slane %v3542, 1
        %v3544 = vmax.f32 %v3542, %v3543
        %v3545 = vsel %vm3208, %v2439, -inf
        %v3546 = vrot.slane %v3545, 4
        %v3547 = vmax.f32 %v3545, %v3546
        %v3548 = vrot.slane %v3547, 2
        %v3549 = vmax.f32 %v3547, %v3548
        %v3550 = vrot.slane %v3549, 1
        %v3551 = vmax.f32 %v3549, %v3550
        %v3552 = vsel %vm3200, %v2446, -inf
        %v3553 = vrot.slane %v3552, 4
        %v3554 = vmax.f32 %v3552, %v3553
        %v3555 = vrot.slane %v3554, 2
        %v3556 = vmax.f32 %v3554, %v3555
        %v3557 = vrot.slane %v3556, 1
        %v3558 = vmax.f32 %v3556, %v3557
        %v3559 = vsel %vm3208, %v2447, -inf
        %v3560 = vrot.slane %v3559, 4
        %v3561 = vmax.f32 %v3559, %v3560
        %v3562 = vrot.slane %v3561, 2
        %v3563 = vmax.f32 %v3561, %v3562
        %v3564 = vrot.slane %v3563, 1
        %v3565 = vmax.f32 %v3563, %v3564
        %v3566 = vsel %vm3200, %v2454, -inf
        %v3567 = vrot.slane %v3566, 4
        %v3568 = vmax.f32 %v3566, %v3567
        %v3569 = vrot.slane %v3568, 2
        %v3570 = vmax.f32 %v3568, %v3569
        %v3571 = vrot.slane %v3570, 1
        %v3572 = vmax.f32 %v3570, %v3571
        %v3573 = vsel %vm3208, %v2455, -inf
        %v3574 = vrot.slane %v3573, 4
        %v3575 = vmax.f32 %v3573, %v3574
        %v3576 = vrot.slane %v3575, 2
        %v3577 = vmax.f32 %v3575, %v3576
        %v3578 = vrot.slane %v3577, 1
        %v3579 = vmax.f32 %v3577, %v3578
        %v3580 = vsel %vm3200, %v2462, -inf
        %v3581 = vrot.slane %v3580, 4
        %v3582 = vmax.f32 %v3580, %v3581
        %v3583 = vrot.slane %v3582, 2
        %v3584 = vmax.f32 %v3582, %v3583
        %v3585 = vrot.slane %v3584, 1
        %v3586 = vmax.f32 %v3584, %v3585
        %v3587 = vsel %vm3208, %v2463, -inf
        %v3588 = vrot.slane %v3587, 4
        %v3589 = vmax.f32 %v3587, %v3588
        %v3590 = vrot.slane %v3589, 2
        %v3591 = vmax.f32 %v3589, %v3590
        %v3592 = vrot.slane %v3591, 1
        %v3593 = vmax.f32 %v3591, %v3592
        %v3594 = vsel %vm3200, %v2470, -inf
        %v3595 = vrot.slane %v3594, 4
        %v3596 = vmax.f32 %v3594, %v3595
        %v3597 = vrot.slane %v3596, 2
        %v3598 = vmax.f32 %v3596, %v3597
        %v3599 = vrot.slane %v3598, 1
        %v3600 = vmax.f32 %v3598, %v3599
        %v3601 = vsel %vm3208, %v2471, -inf
        %v3602 = vrot.slane %v3601, 4
        %v3603 = vmax.f32 %v3601, %v3602
        %v3604 = vrot.slane %v3603, 2
        %v3605 = vmax.f32 %v3603, %v3604
        %v3606 = vrot.slane %v3605, 1
        %v3607 = vmax.f32 %v3605, %v3606
        %v3608 = vsel %vm3200, %v2478, -inf
        %v3609 = vrot.slane %v3608, 4
        %v3610 = vmax.f32 %v3608, %v3609
        %v3611 = vrot.slane %v3610, 2
        %v3612 = vmax.f32 %v3610, %v3611
        %v3613 = vrot.slane %v3612, 1
        %v3614 = vmax.f32 %v3612, %v3613
        %v3615 = vsel %vm3208, %v2479, -inf
        %v3616 = vrot.slane %v3615, 4
        %v3617 = vmax.f32 %v3615, %v3616
        %v3618 = vrot.slane %v3617, 2
        %v3619 = vmax.f32 %v3617, %v3618
        %v3620 = vrot.slane %v3619, 1
        %v3621 = vmax.f32 %v3619, %v3620
        %v3622 = vsel %vm3200, %v2486, -inf
        %v3623 = vrot.slane %v3622, 4
        %v3624 = vmax.f32 %v3622, %v3623
        %v3625 = vrot.slane %v3624, 2
        %v3626 = vmax.f32 %v3624, %v3625
        %v3627 = vrot.slane %v3626, 1
        %v3628 = vmax.f32 %v3626, %v3627
        %v3629 = vsel %vm3208, %v2487, -inf
        %v3630 = vrot.slane %v3629, 4
        %v3631 = vmax.f32 %v3629, %v3630
        %v3632 = vrot.slane %v3631, 2
        %v3633 = vmax.f32 %v3631, %v3632
        %v3634 = vrot.slane %v3633, 1
        %v3635 = vmax.f32 %v3633, %v3634
        %v3636 = vsel %vm3200, %v2494, -inf
        %v3637 = vrot.slane %v3636, 4
        %v3638 = vmax.f32 %v3636, %v3637
        %v3639 = vrot.slane %v3638, 2
        %v3640 = vmax.f32 %v3638, %v3639
        %v3641 = vrot.slane %v3640, 1
        %v3642 = vmax.f32 %v3640, %v3641
        %v3643 = vsel %vm3208, %v2495, -inf
        %v3644 = vrot.slane %v3643, 4
        %v3645 = vmax.f32 %v3643, %v3644
        %v3646 = vrot.slane %v3645, 2
        %v3647 = vmax.f32 %v3645, %v3646
        %v3648 = vrot.slane %v3647, 1
        %v3649 = vmax.f32 %v3647, %v3648
        %v3650 = vsel %vm3200, %v2502, -inf
        %v3651 = vrot.slane %v3650, 4
        %v3652 = vmax.f32 %v3650, %v3651
        %v3653 = vrot.slane %v3652, 2
        %v3654 = vmax.f32 %v3652, %v3653
        %v3655 = vrot.slane %v3654, 1
        %v3656 = vmax.f32 %v3654, %v3655
        %v3657 = vsel %vm3208, %v2503, -inf
        %v3658 = vrot.slane %v3657, 4
        %v3659 = vmax.f32 %v3657, %v3658
        %v3660 = vrot.slane %v3659, 2
        %v3661 = vmax.f32 %v3659, %v3660
        %v3662 = vrot.slane %v3661, 1
        %v3663 = vmax.f32 %v3661, %v3662
        %v3664 = vsel %vm3200, %v2510, -inf
        %v3665 = vrot.slane %v3664, 4
        %v3666 = vmax.f32 %v3664, %v3665
        %v3667 = vrot.slane %v3666, 2
        %v3668 = vmax.f32 %v3666, %v3667
        %v3669 = vrot.slane %v3668, 1
        %v3670 = vmax.f32 %v3668, %v3669
        %v3671 = vsel %vm3208, %v2511, -inf
        %v3672 = vrot.slane %v3671, 4
        %v3673 = vmax.f32 %v3671, %v3672
        %v3674 = vrot.slane %v3673, 2
        %v3675 = vmax.f32 %v3673, %v3674
        %v3676 = vrot.slane %v3675, 1
        %v3677 = vmax.f32 %v3675, %v3676
        %v3678 = vsel %vm3200, %v2518, -inf
        %v3679 = vrot.slane %v3678, 4
        %v3680 = vmax.f32 %v3678, %v3679
        %v3681 = vrot.slane %v3680, 2
        %v3682 = vmax.f32 %v3680, %v3681
        %v3683 = vrot.slane %v3682, 1
        %v3684 = vmax.f32 %v3682, %v3683
        %v3685 = vsel %vm3208, %v2519, -inf
        %v3686 = vrot.slane %v3685, 4
        %v3687 = vmax.f32 %v3685, %v3686
        %v3688 = vrot.slane %v3687, 2
        %v3689 = vmax.f32 %v3687, %v3688
        %v3690 = vrot.slane %v3689, 1
        %v3691 = vmax.f32 %v3689, %v3690
        %v3692 = vsel %vm3200, %v2526, -inf
        %v3693 = vrot.slane %v3692, 4
        %v3694 = vmax.f32 %v3692, %v3693
        %v3695 = vrot.slane %v3694, 2
        %v3696 = vmax.f32 %v3694, %v3695
        %v3697 = vrot.slane %v3696, 1
        %v3698 = vmax.f32 %v3696, %v3697
        %v3699 = vsel %vm3208, %v2527, -inf
        %v3700 = vrot.slane %v3699, 4
        %v3701 = vmax.f32 %v3699, %v3700
        %v3702 = vrot.slane %v3701, 2
        %v3703 = vmax.f32 %v3701, %v3702
        %v3704 = vrot.slane %v3703, 1
        %v3705 = vmax.f32 %v3703, %v3704
        %v3706 = vsel %vm3200, %v2534, -inf
        %v3707 = vrot.slane %v3706, 4
        %v3708 = vmax.f32 %v3706, %v3707
        %v3709 = vrot.slane %v3708, 2
        %v3710 = vmax.f32 %v3708, %v3709
        %v3711 = vrot.slane %v3710, 1
        %v3712 = vmax.f32 %v3710, %v3711
        %v3713 = vsel %vm3208, %v2535, -inf
        %v3714 = vrot.slane %v3713, 4
        %v3715 = vmax.f32 %v3713, %v3714
        %v3716 = vrot.slane %v3715, 2
        %v3717 = vmax.f32 %v3715, %v3716
        %v3718 = vrot.slane %v3717, 1
        %v3719 = vmax.f32 %v3717, %v3718
        %v3720 = vsel %vm3200, %v2542, -inf
        %v3721 = vrot.slane %v3720, 4
        %v3722 = vmax.f32 %v3720, %v3721
        %v3723 = vrot.slane %v3722, 2
        %v3724 = vmax.f32 %v3722, %v3723
        %v3725 = vrot.slane %v3724, 1
        %v3726 = vmax.f32 %v3724, %v3725
        %v3727 = vsel %vm3208, %v2543, -inf
        %v3728 = vrot.slane %v3727, 4
        %v3729 = vmax.f32 %v3727, %v3728
        %v3730 = vrot.slane %v3729, 2
        %v3731 = vmax.f32 %v3729, %v3730
        %v3732 = vrot.slane %v3731, 1
        %v3733 = vmax.f32 %v3731, %v3732
        %v3734 = vsel %vm3200, %v2550, -inf
        %v3735 = vrot.slane %v3734, 4
        %v3736 = vmax.f32 %v3734, %v3735
        %v3737 = vrot.slane %v3736, 2
        %v3738 = vmax.f32 %v3736, %v3737
        %v3739 = vrot.slane %v3738, 1
        %v3740 = vmax.f32 %v3738, %v3739
        %v3741 = vsel %vm3208, %v2551, -inf
        %v3742 = vrot.slane %v3741, 4
        %v3743 = vmax.f32 %v3741, %v3742
        %v3744 = vrot.slane %v3743, 2
        %v3745 = vmax.f32 %v3743, %v3744
        %v3746 = vrot.slane %v3745, 1
        %v3747 = vmax.f32 %v3745, %v3746
        %v3748 = vsel %vm3200, %v2558, -inf
        %v3749 = vrot.slane %v3748, 4
        %v3750 = vmax.f32 %v3748, %v3749
        %v3751 = vrot.slane %v3750, 2
        %v3752 = vmax.f32 %v3750, %v3751
        %v3753 = vrot.slane %v3752, 1
        %v3754 = vmax.f32 %v3752, %v3753
        %v3755 = vsel %vm3208, %v2559, -inf
        %v3756 = vrot.slane %v3755, 4
        %v3757 = vmax.f32 %v3755, %v3756
        %v3758 = vrot.slane %v3757, 2
        %v3759 = vmax.f32 %v3757, %v3758
        %v3760 = vrot.slane %v3759, 1
        %v3761 = vmax.f32 %v3759, %v3760
        %v3762 = vsel %vm3200, %v2566, -inf
        %v3763 = vrot.slane %v3762, 4
        %v3764 = vmax.f32 %v3762, %v3763
        %v3765 = vrot.slane %v3764, 2
        %v3766 = vmax.f32 %v3764, %v3765
        %v3767 = vrot.slane %v3766, 1
        %v3768 = vmax.f32 %v3766, %v3767
        %v3769 = vsel %vm3208, %v2567, -inf
        %v3770 = vrot.slane %v3769, 4
        %v3771 = vmax.f32 %v3769, %v3770
        %v3772 = vrot.slane %v3771, 2
        %v3773 = vmax.f32 %v3771, %v3772
        %v3774 = vrot.slane %v3773, 1
        %v3775 = vmax.f32 %v3773, %v3774
        %v3776 = vsel %vm3200, %v2574, -inf
        %v3777 = vrot.slane %v3776, 4
        %v3778 = vmax.f32 %v3776, %v3777
        %v3779 = vrot.slane %v3778, 2
        %v3780 = vmax.f32 %v3778, %v3779
        %v3781 = vrot.slane %v3780, 1
        %v3782 = vmax.f32 %v3780, %v3781
        %v3783 = vsel %vm3208, %v2575, -inf
        %v3784 = vrot.slane %v3783, 4
        %v3785 = vmax.f32 %v3783, %v3784
        %v3786 = vrot.slane %v3785, 2
        %v3787 = vmax.f32 %v3785, %v3786
        %v3788 = vrot.slane %v3787, 1
        %v3789 = vmax.f32 %v3787, %v3788
        %v3790 = vsel %vm3200, %v2582, -inf
        %v3791 = vrot.slane %v3790, 4
        %v3792 = vmax.f32 %v3790, %v3791
        %v3793 = vrot.slane %v3792, 2
        %v3794 = vmax.f32 %v3792, %v3793
        %v3795 = vrot.slane %v3794, 1
        %v3796 = vmax.f32 %v3794, %v3795
        %v3797 = vsel %vm3208, %v2583, -inf
        %v3798 = vrot.slane %v3797, 4
        %v3799 = vmax.f32 %v3797, %v3798
        %v3800 = vrot.slane %v3799, 2
        %v3801 = vmax.f32 %v3799, %v3800
        %v3802 = vrot.slane %v3801, 1
        %v3803 = vmax.f32 %v3801, %v3802
        %v3804 = vsel %vm3200, %v2590, -inf
        %v3805 = vrot.slane %v3804, 4
        %v3806 = vmax.f32 %v3804, %v3805
        %v3807 = vrot.slane %v3806, 2
        %v3808 = vmax.f32 %v3806, %v3807
        %v3809 = vrot.slane %v3808, 1
        %v3810 = vmax.f32 %v3808, %v3809
        %v3811 = vsel %vm3208, %v2591, -inf
        %v3812 = vrot.slane %v3811, 4
        %v3813 = vmax.f32 %v3811, %v3812
        %v3814 = vrot.slane %v3813, 2
        %v3815 = vmax.f32 %v3813, %v3814
        %v3816 = vrot.slane %v3815, 1
        %v3817 = vmax.f32 %v3815, %v3816
        %v3818 = vsel %vm3200, %v2598, -inf
        %v3819 = vrot.slane %v3818, 4
        %v3820 = vmax.f32 %v3818, %v3819
        %v3821 = vrot.slane %v3820, 2
        %v3822 = vmax.f32 %v3820, %v3821
        %v3823 = vrot.slane %v3822, 1
        %v3824 = vmax.f32 %v3822, %v3823
        %v3825 = vsel %vm3208, %v2599, -inf
        %v3826 = vrot.slane %v3825, 4
        %v3827 = vmax.f32 %v3825, %v3826
        %v3828 = vrot.slane %v3827, 2
        %v3829 = vmax.f32 %v3827, %v3828
        %v3830 = vrot.slane %v3829, 1
        %v3831 = vmax.f32 %v3829, %v3830
        %v3832 = vsel %vm3200, %v2606, -inf
        %v3833 = vrot.slane %v3832, 4
        %v3834 = vmax.f32 %v3832, %v3833
        %v3835 = vrot.slane %v3834, 2
        %v3836 = vmax.f32 %v3834, %v3835
        %v3837 = vrot.slane %v3836, 1
        %v3838 = vmax.f32 %v3836, %v3837
        %v3839 = vsel %vm3208, %v2607, -inf
        %v3840 = vrot.slane %v3839, 4
        %v3841 = vmax.f32 %v3839, %v3840
        %v3842 = vrot.slane %v3841, 2
        %v3843 = vmax.f32 %v3841, %v3842
        %v3844 = vrot.slane %v3843, 1
        %v3845 = vmax.f32 %v3843, %v3844
        %v3846 = vsel %vm3200, %v2614, -inf
        %v3847 = vrot.slane %v3846, 4
        %v3848 = vmax.f32 %v3846, %v3847
        %v3849 = vrot.slane %v3848, 2
        %v3850 = vmax.f32 %v3848, %v3849
        %v3851 = vrot.slane %v3850, 1
        %v3852 = vmax.f32 %v3850, %v3851
        %v3853 = vsel %vm3208, %v2615, -inf
        %v3854 = vrot.slane %v3853, 4
        %v3855 = vmax.f32 %v3853, %v3854
        %v3856 = vrot.slane %v3855, 2
        %v3857 = vmax.f32 %v3855, %v3856
        %v3858 = vrot.slane %v3857, 1
        %v3859 = vmax.f32 %v3857, %v3858
        %v3860 = vsel %vm3200, %v2622, -inf
        %v3861 = vrot.slane %v3860, 4
        %v3862 = vmax.f32 %v3860, %v3861
        %v3863 = vrot.slane %v3862, 2
        %v3864 = vmax.f32 %v3862, %v3863
        %v3865 = vrot.slane %v3864, 1
        %v3866 = vmax.f32 %v3864, %v3865
        %v3867 = vsel %vm3208, %v2623, -inf
        %v3868 = vrot.slane %v3867, 4
        %v3869 = vmax.f32 %v3867, %v3868
        %v3870 = vrot.slane %v3869, 2
        %v3871 = vmax.f32 %v3869, %v3870
        %v3872 = vrot.slane %v3871, 1
        %v3873 = vmax.f32 %v3871, %v3872
        %v3874 = vsel %vm3200, %v2630, -inf
        %v3875 = vrot.slane %v3874, 4
        %v3876 = vmax.f32 %v3874, %v3875
        %v3877 = vrot.slane %v3876, 2
        %v3878 = vmax.f32 %v3876, %v3877
        %v3879 = vrot.slane %v3878, 1
        %v3880 = vmax.f32 %v3878, %v3879
        %v3881 = vsel %vm3208, %v2631, -inf
        %v3882 = vrot.slane %v3881, 4
        %v3883 = vmax.f32 %v3881, %v3882
        %v3884 = vrot.slane %v3883, 2
        %v3885 = vmax.f32 %v3883, %v3884
        %v3886 = vrot.slane %v3885, 1
        %v3887 = vmax.f32 %v3885, %v3886
        %v3888 = vsel %vm3200, %v2638, -inf
        %v3889 = vrot.slane %v3888, 4
        %v3890 = vmax.f32 %v3888, %v3889
        %v3891 = vrot.slane %v3890, 2
        %v3892 = vmax.f32 %v3890, %v3891
        %v3893 = vrot.slane %v3892, 1
        %v3894 = vmax.f32 %v3892, %v3893
        %v3895 = vsel %vm3208, %v2639, -inf
        %v3896 = vrot.slane %v3895, 4
        %v3897 = vmax.f32 %v3895, %v3896
        %v3898 = vrot.slane %v3897, 2
        %v3899 = vmax.f32 %v3897, %v3898
        %v3900 = vrot.slane %v3899, 1
        %v3901 = vmax.f32 %v3899, %v3900
        %v3902 = vsel %vm3200, %v2646, -inf
        %v3903 = vrot.slane %v3902, 4
        %v3904 = vmax.f32 %v3902, %v3903
        %v3905 = vrot.slane %v3904, 2
        %v3906 = vmax.f32 %v3904, %v3905
        %v3907 = vrot.slane %v3906, 1
        %v3908 = vmax.f32 %v3906, %v3907
        %v3909 = vsel %vm3208, %v2647, -inf
        %v3910 = vrot.slane %v3909, 4
        %v3911 = vmax.f32 %v3909, %v3910
        %v3912 = vrot.slane %v3911, 2
        %v3913 = vmax.f32 %v3911, %v3912
        %v3914 = vrot.slane %v3913, 1
        %v3915 = vmax.f32 %v3913, %v3914
        %v3916 = vsel %vm3200, %v2654, -inf
        %v3917 = vrot.slane %v3916, 4
        %v3918 = vmax.f32 %v3916, %v3917
        %v3919 = vrot.slane %v3918, 2
        %v3920 = vmax.f32 %v3918, %v3919
        %v3921 = vrot.slane %v3920, 1
        %v3922 = vmax.f32 %v3920, %v3921
        %v3923 = vsel %vm3208, %v2655, -inf
        %v3924 = vrot.slane %v3923, 4
        %v3925 = vmax.f32 %v3923, %v3924
        %v3926 = vrot.slane %v3925, 2
        %v3927 = vmax.f32 %v3925, %v3926
        %v3928 = vrot.slane %v3927, 1
        %v3929 = vmax.f32 %v3927, %v3928
        %v3930 = vsel %vm3200, %v2662, -inf
        %v3931 = vrot.slane %v3930, 4
        %v3932 = vmax.f32 %v3930, %v3931
        %v3933 = vrot.slane %v3932, 2
        %v3934 = vmax.f32 %v3932, %v3933
        %v3935 = vrot.slane %v3934, 1
        %v3936 = vmax.f32 %v3934, %v3935
        %v3937 = vsel %vm3208, %v2663, -inf
        %v3938 = vrot.slane %v3937, 4
        %v3939 = vmax.f32 %v3937, %v3938
        %v3940 = vrot.slane %v3939, 2
        %v3941 = vmax.f32 %v3939, %v3940
        %v3942 = vrot.slane %v3941, 1
        %v3943 = vmax.f32 %v3941, %v3942
        %v3944 = vsel %vm3200, %v2670, -inf
        %v3945 = vrot.slane %v3944, 4
        %v3946 = vmax.f32 %v3944, %v3945
        %v3947 = vrot.slane %v3946, 2
        %v3948 = vmax.f32 %v3946, %v3947
        %v3949 = vrot.slane %v3948, 1
        %v3950 = vmax.f32 %v3948, %v3949
        %v3951 = vsel %vm3208, %v2671, -inf
        %v3952 = vrot.slane %v3951, 4
        %v3953 = vmax.f32 %v3951, %v3952
        %v3954 = vrot.slane %v3953, 2
        %v3955 = vmax.f32 %v3953, %v3954
        %v3956 = vrot.slane %v3955, 1
        %v3957 = vmax.f32 %v3955, %v3956
        %v3958 = vsel %vm3200, %v2678, -inf
        %v3959 = vrot.slane %v3958, 4
        %v3960 = vmax.f32 %v3958, %v3959
        %v3961 = vrot.slane %v3960, 2
        %v3962 = vmax.f32 %v3960, %v3961
        %v3963 = vrot.slane %v3962, 1
        %v3964 = vmax.f32 %v3962, %v3963
        %v3965 = vsel %vm3208, %v2679, -inf
        %v3966 = vrot.slane %v3965, 4
        %v3967 = vmax.f32 %v3965, %v3966
        %v3968 = vrot.slane %v3967, 2
        %v3969 = vmax.f32 %v3967, %v3968
        %v3970 = vrot.slane %v3969, 1
        %v3971 = vmax.f32 %v3969, %v3970
        %v3972 = vsel %vm3200, %v2686, -inf
        %v3973 = vrot.slane %v3972, 4
        %v3974 = vmax.f32 %v3972, %v3973
        %v3975 = vrot.slane %v3974, 2
        %v3976 = vmax.f32 %v3974, %v3975
        %v3977 = vrot.slane %v3976, 1
        %v3978 = vmax.f32 %v3976, %v3977
        %v3979 = vsel %vm3208, %v2687, -inf
        %v3980 = vrot.slane %v3979, 4
        %v3981 = vmax.f32 %v3979, %v3980
        %v3982 = vrot.slane %v3981, 2
        %v3983 = vmax.f32 %v3981, %v3982
        %v3984 = vrot.slane %v3983, 1
        %v3985 = vmax.f32 %v3983, %v3984
        %v3986 = vsel %vm3200, %v2694, -inf
        %v3987 = vrot.slane %v3986, 4
        %v3988 = vmax.f32 %v3986, %v3987
        %v3989 = vrot.slane %v3988, 2
        %v3990 = vmax.f32 %v3988, %v3989
        %v3991 = vrot.slane %v3990, 1
        %v3992 = vmax.f32 %v3990, %v3991
        %v3993 = vsel %vm3208, %v2695, -inf
        %v3994 = vrot.slane %v3993, 4
        %v3995 = vmax.f32 %v3993, %v3994
        %v3996 = vrot.slane %v3995, 2
        %v3997 = vmax.f32 %v3995, %v3996
        %v3998 = vrot.slane %v3997, 1
        %v3999 = vmax.f32 %v3997, %v3998
        %v4000 = vsel %vm3200, %v2702, -inf
        %v4001 = vrot.slane %v4000, 4
        %v4002 = vmax.f32 %v4000, %v4001
        %v4003 = vrot.slane %v4002, 2
        %v4004 = vmax.f32 %v4002, %v4003
        %v4005 = vrot.slane %v4004, 1
        %v4006 = vmax.f32 %v4004, %v4005
        %v4007 = vsel %vm3208, %v2703, -inf
        %v4008 = vrot.slane %v4007, 4
        %v4009 = vmax.f32 %v4007, %v4008
        %v4010 = vrot.slane %v4009, 2
        %v4011 = vmax.f32 %v4009, %v4010
        %v4012 = vrot.slane %v4011, 1
        %v4013 = vmax.f32 %v4011, %v4012
        %v4014 = vsel %vm3200, %v2710, -inf
        %v4015 = vrot.slane %v4014, 4
        %v4016 = vmax.f32 %v4014, %v4015
        %v4017 = vrot.slane %v4016, 2
        %v4018 = vmax.f32 %v4016, %v4017
        %v4019 = vrot.slane %v4018, 1
        %v4020 = vmax.f32 %v4018, %v4019
        %v4021 = vsel %vm3208, %v2711, -inf
        %v4022 = vrot.slane %v4021, 4
        %v4023 = vmax.f32 %v4021, %v4022
        %v4024 = vrot.slane %v4023, 2
        %v4025 = vmax.f32 %v4023, %v4024
        %v4026 = vrot.slane %v4025, 1
        %v4027 = vmax.f32 %v4025, %v4026
        %v4028 = vsel %vm3200, %v2718, -inf
        %v4029 = vrot.slane %v4028, 4
        %v4030 = vmax.f32 %v4028, %v4029
        %v4031 = vrot.slane %v4030, 2
        %v4032 = vmax.f32 %v4030, %v4031
        %v4033 = vrot.slane %v4032, 1
        %v4034 = vmax.f32 %v4032, %v4033
        %v4035 = vsel %vm3208, %v2719, -inf
        %v4036 = vrot.slane %v4035, 4
        %v4037 = vmax.f32 %v4035, %v4036
        %v4038 = vrot.slane %v4037, 2
        %v4039 = vmax.f32 %v4037, %v4038
        %v4040 = vrot.slane %v4039, 1
        %v4041 = vmax.f32 %v4039, %v4040
        %v4042 = vsel %vm3200, %v2726, -inf
        %v4043 = vrot.slane %v4042, 4
        %v4044 = vmax.f32 %v4042, %v4043
        %v4045 = vrot.slane %v4044, 2
        %v4046 = vmax.f32 %v4044, %v4045
        %v4047 = vrot.slane %v4046, 1
        %v4048 = vmax.f32 %v4046, %v4047
        %v4049 = vsel %vm3208, %v2727, -inf
        %v4050 = vrot.slane %v4049, 4
        %v4051 = vmax.f32 %v4049, %v4050
        %v4052 = vrot.slane %v4051, 2
        %v4053 = vmax.f32 %v4051, %v4052
        %v4054 = vrot.slane %v4053, 1
        %v4055 = vmax.f32 %v4053, %v4054
        %v4056 = vsel %vm3200, %v2734, -inf
        %v4057 = vrot.slane %v4056, 4
        %v4058 = vmax.f32 %v4056, %v4057
        %v4059 = vrot.slane %v4058, 2
        %v4060 = vmax.f32 %v4058, %v4059
        %v4061 = vrot.slane %v4060, 1
        %v4062 = vmax.f32 %v4060, %v4061
        %v4063 = vsel %vm3208, %v2735, -inf
        %v4064 = vrot.slane %v4063, 4
        %v4065 = vmax.f32 %v4063, %v4064
        %v4066 = vrot.slane %v4065, 2
        %v4067 = vmax.f32 %v4065, %v4066
        %v4068 = vrot.slane %v4067, 1
        %v4069 = vmax.f32 %v4067, %v4068
        %v4070 = vsel %vm3200, %v2742, -inf
        %v4071 = vrot.slane %v4070, 4
        %v4072 = vmax.f32 %v4070, %v4071
        %v4073 = vrot.slane %v4072, 2
        %v4074 = vmax.f32 %v4072, %v4073
        %v4075 = vrot.slane %v4074, 1
        %v4076 = vmax.f32 %v4074, %v4075
        %v4077 = vsel %vm3208, %v2743, -inf
        %v4078 = vrot.slane %v4077, 4
        %v4079 = vmax.f32 %v4077, %v4078
        %v4080 = vrot.slane %v4079, 2
        %v4081 = vmax.f32 %v4079, %v4080
        %v4082 = vrot.slane %v4081, 1
        %v4083 = vmax.f32 %v4081, %v4082
        %v4084 = vsel %vm3200, %v2750, -inf
        %v4085 = vrot.slane %v4084, 4
        %v4086 = vmax.f32 %v4084, %v4085
        %v4087 = vrot.slane %v4086, 2
        %v4088 = vmax.f32 %v4086, %v4087
        %v4089 = vrot.slane %v4088, 1
        %v4090 = vmax.f32 %v4088, %v4089
        %v4091 = vsel %vm3208, %v2751, -inf
        %v4092 = vrot.slane %v4091, 4
        %v4093 = vmax.f32 %v4091, %v4092
        %v4094 = vrot.slane %v4093, 2
        %v4095 = vmax.f32 %v4093, %v4094
        %v4096 = vrot.slane %v4095, 1
        %v4097 = vmax.f32 %v4095, %v4096
        %v4098 = vsel %vm3200, %v2758, -inf
        %v4099 = vrot.slane %v4098, 4
        %v4100 = vmax.f32 %v4098, %v4099
        %v4101 = vrot.slane %v4100, 2
        %v4102 = vmax.f32 %v4100, %v4101
        %v4103 = vrot.slane %v4102, 1
        %v4104 = vmax.f32 %v4102, %v4103
        %v4105 = vsel %vm3208, %v2759, -inf
        %v4106 = vrot.slane %v4105, 4
        %v4107 = vmax.f32 %v4105, %v4106
        %v4108 = vrot.slane %v4107, 2
        %v4109 = vmax.f32 %v4107, %v4108
        %v4110 = vrot.slane %v4109, 1
        %v4111 = vmax.f32 %v4109, %v4110
        %v4112 = vsel %vm3200, %v2766, -inf
        %v4113 = vrot.slane %v4112, 4
        %v4114 = vmax.f32 %v4112, %v4113
        %v4115 = vrot.slane %v4114, 2
        %v4116 = vmax.f32 %v4114, %v4115
        %v4117 = vrot.slane %v4116, 1
        %v4118 = vmax.f32 %v4116, %v4117
        %v4119 = vsel %vm3208, %v2767, -inf
        %v4120 = vrot.slane %v4119, 4
        %v4121 = vmax.f32 %v4119, %v4120
        %v4122 = vrot.slane %v4121, 2
        %v4123 = vmax.f32 %v4121, %v4122
        %v4124 = vrot.slane %v4123, 1
        %v4125 = vmax.f32 %v4123, %v4124
        %v4126 = vsel %vm3200, %v2774, -inf
        %v4127 = vrot.slane %v4126, 4
        %v4128 = vmax.f32 %v4126, %v4127
        %v4129 = vrot.slane %v4128, 2
        %v4130 = vmax.f32 %v4128, %v4129
        %v4131 = vrot.slane %v4130, 1
        %v4132 = vmax.f32 %v4130, %v4131
        %v4133 = vsel %vm3208, %v2775, -inf
        %v4134 = vrot.slane %v4133, 4
        %v4135 = vmax.f32 %v4133, %v4134
        %v4136 = vrot.slane %v4135, 2
        %v4137 = vmax.f32 %v4135, %v4136
        %v4138 = vrot.slane %v4137, 1
        %v4139 = vmax.f32 %v4137, %v4138
        %v4140 = vsel %vm3200, %v2782, -inf
        %v4141 = vrot.slane %v4140, 4
        %v4142 = vmax.f32 %v4140, %v4141
        %v4143 = vrot.slane %v4142, 2
        %v4144 = vmax.f32 %v4142, %v4143
        %v4145 = vrot.slane %v4144, 1
        %v4146 = vmax.f32 %v4144, %v4145
        %v4147 = vsel %vm3208, %v2783, -inf
        %v4148 = vrot.slane %v4147, 4
        %v4149 = vmax.f32 %v4147, %v4148
        %v4150 = vrot.slane %v4149, 2
        %v4151 = vmax.f32 %v4149, %v4150
        %v4152 = vrot.slane %v4151, 1
        %v4153 = vmax.f32 %v4151, %v4152
        %v4154 = vsel %vm3200, %v2790, -inf
        %v4155 = vrot.slane %v4154, 4
        %v4156 = vmax.f32 %v4154, %v4155
        %v4157 = vrot.slane %v4156, 2
        %v4158 = vmax.f32 %v4156, %v4157
        %v4159 = vrot.slane %v4158, 1
        %v4160 = vmax.f32 %v4158, %v4159
        %v4161 = vsel %vm3208, %v2791, -inf
        %v4162 = vrot.slane %v4161, 4
        %v4163 = vmax.f32 %v4161, %v4162
        %v4164 = vrot.slane %v4163, 2
        %v4165 = vmax.f32 %v4163, %v4164
        %v4166 = vrot.slane %v4165, 1
        %v4167 = vmax.f32 %v4165, %v4166
        %v4168 = vsel %vm3200, %v2798, -inf
        %v4169 = vrot.slane %v4168, 4
        %v4170 = vmax.f32 %v4168, %v4169
        %v4171 = vrot.slane %v4170, 2
        %v4172 = vmax.f32 %v4170, %v4171
        %v4173 = vrot.slane %v4172, 1
        %v4174 = vmax.f32 %v4172, %v4173
        %v4175 = vsel %vm3208, %v2799, -inf
        %v4176 = vrot.slane %v4175, 4
        %v4177 = vmax.f32 %v4175, %v4176
        %v4178 = vrot.slane %v4177, 2
        %v4179 = vmax.f32 %v4177, %v4178
        %v4180 = vrot.slane %v4179, 1
        %v4181 = vmax.f32 %v4179, %v4180
        %v4182 = vsel %vm3200, %v2806, -inf
        %v4183 = vrot.slane %v4182, 4
        %v4184 = vmax.f32 %v4182, %v4183
        %v4185 = vrot.slane %v4184, 2
        %v4186 = vmax.f32 %v4184, %v4185
        %v4187 = vrot.slane %v4186, 1
        %v4188 = vmax.f32 %v4186, %v4187
        %v4189 = vsel %vm3208, %v2807, -inf
        %v4190 = vrot.slane %v4189, 4
        %v4191 = vmax.f32 %v4189, %v4190
        %v4192 = vrot.slane %v4191, 2
        %v4193 = vmax.f32 %v4191, %v4192
        %v4194 = vrot.slane %v4193, 1
        %v4195 = vmax.f32 %v4193, %v4194
        %v4196 = vsel %vm3200, %v2814, -inf
        %v4197 = vrot.slane %v4196, 4
        %v4198 = vmax.f32 %v4196, %v4197
        %v4199 = vrot.slane %v4198, 2
        %v4200 = vmax.f32 %v4198, %v4199
        %v4201 = vrot.slane %v4200, 1
        %v4202 = vmax.f32 %v4200, %v4201
        %v4203 = vsel %vm3208, %v2815, -inf
        %v4204 = vrot.slane %v4203, 4
        %v4205 = vmax.f32 %v4203, %v4204
        %v4206 = vrot.slane %v4205, 2
        %v4207 = vmax.f32 %v4205, %v4206
        %v4208 = vrot.slane %v4207, 1
        %v4209 = vmax.f32 %v4207, %v4208
        %v4210 = vsel %vm3200, %v2822, -inf
        %v4211 = vrot.slane %v4210, 4
        %v4212 = vmax.f32 %v4210, %v4211
        %v4213 = vrot.slane %v4212, 2
        %v4214 = vmax.f32 %v4212, %v4213
        %v4215 = vrot.slane %v4214, 1
        %v4216 = vmax.f32 %v4214, %v4215
        %v4217 = vsel %vm3208, %v2823, -inf
        %v4218 = vrot.slane %v4217, 4
        %v4219 = vmax.f32 %v4217, %v4218
        %v4220 = vrot.slane %v4219, 2
        %v4221 = vmax.f32 %v4219, %v4220
        %v4222 = vrot.slane %v4221, 1
        %v4223 = vmax.f32 %v4221, %v4222
        %v4224 = vsel %vm3200, %v2830, -inf
        %v4225 = vrot.slane %v4224, 4
        %v4226 = vmax.f32 %v4224, %v4225
        %v4227 = vrot.slane %v4226, 2
        %v4228 = vmax.f32 %v4226, %v4227
        %v4229 = vrot.slane %v4228, 1
        %v4230 = vmax.f32 %v4228, %v4229
        %v4231 = vsel %vm3208, %v2831, -inf
        %v4232 = vrot.slane %v4231, 4
        %v4233 = vmax.f32 %v4231, %v4232
        %v4234 = vrot.slane %v4233, 2
        %v4235 = vmax.f32 %v4233, %v4234
        %v4236 = vrot.slane %v4235, 1
        %v4237 = vmax.f32 %v4235, %v4236
        %v4238 = vsel %vm3200, %v2838, -inf
        %v4239 = vrot.slane %v4238, 4
        %v4240 = vmax.f32 %v4238, %v4239
        %v4241 = vrot.slane %v4240, 2
        %v4242 = vmax.f32 %v4240, %v4241
        %v4243 = vrot.slane %v4242, 1
        %v4244 = vmax.f32 %v4242, %v4243
        %v4245 = vsel %vm3208, %v2839, -inf
        %v4246 = vrot.slane %v4245, 4
        %v4247 = vmax.f32 %v4245, %v4246
        %v4248 = vrot.slane %v4247, 2
        %v4249 = vmax.f32 %v4247, %v4248
        %v4250 = vrot.slane %v4249, 1
        %v4251 = vmax.f32 %v4249, %v4250
        %v4252 = vsel %vm3200, %v2846, -inf
        %v4253 = vrot.slane %v4252, 4
        %v4254 = vmax.f32 %v4252, %v4253
        %v4255 = vrot.slane %v4254, 2
        %v4256 = vmax.f32 %v4254, %v4255
        %v4257 = vrot.slane %v4256, 1
        %v4258 = vmax.f32 %v4256, %v4257
        %v4259 = vsel %vm3208, %v2847, -inf
        %v4260 = vrot.slane %v4259, 4
        %v4261 = vmax.f32 %v4259, %v4260
        %v4262 = vrot.slane %v4261, 2
        %v4263 = vmax.f32 %v4261, %v4262
        %v4264 = vrot.slane %v4263, 1
        %v4265 = vmax.f32 %v4263, %v4264
        %v4266 = vsel %vm3200, %v2854, -inf
        %v4267 = vrot.slane %v4266, 4
        %v4268 = vmax.f32 %v4266, %v4267
        %v4269 = vrot.slane %v4268, 2
        %v4270 = vmax.f32 %v4268, %v4269
        %v4271 = vrot.slane %v4270, 1
        %v4272 = vmax.f32 %v4270, %v4271
        %v4273 = vsel %vm3208, %v2855, -inf
        %v4274 = vrot.slane %v4273, 4
        %v4275 = vmax.f32 %v4273, %v4274
        %v4276 = vrot.slane %v4275, 2
        %v4277 = vmax.f32 %v4275, %v4276
        %v4278 = vrot.slane %v4277, 1
        %v4279 = vmax.f32 %v4277, %v4278
        %v4280 = vsel %vm3200, %v2862, -inf
        %v4281 = vrot.slane %v4280, 4
        %v4282 = vmax.f32 %v4280, %v4281
        %v4283 = vrot.slane %v4282, 2
        %v4284 = vmax.f32 %v4282, %v4283
        %v4285 = vrot.slane %v4284, 1
        %v4286 = vmax.f32 %v4284, %v4285
        %v4287 = vsel %vm3208, %v2863, -inf
        %v4288 = vrot.slane %v4287, 4
        %v4289 = vmax.f32 %v4287, %v4288
        %v4290 = vrot.slane %v4289, 2
        %v4291 = vmax.f32 %v4289, %v4290
        %v4292 = vrot.slane %v4291, 1
        %v4293 = vmax.f32 %v4291, %v4292
        %v4294 = vsel %vm3200, %v2870, -inf
        %v4295 = vrot.slane %v4294, 4
        %v4296 = vmax.f32 %v4294, %v4295
        %v4297 = vrot.slane %v4296, 2
        %v4298 = vmax.f32 %v4296, %v4297
        %v4299 = vrot.slane %v4298, 1
        %v4300 = vmax.f32 %v4298, %v4299
        %v4301 = vsel %vm3208, %v2871, -inf
        %v4302 = vrot.slane %v4301, 4
        %v4303 = vmax.f32 %v4301, %v4302
        %v4304 = vrot.slane %v4303, 2
        %v4305 = vmax.f32 %v4303, %v4304
        %v4306 = vrot.slane %v4305, 1
        %v4307 = vmax.f32 %v4305, %v4306
        %v4308 = vsel %vm3200, %v2878, -inf
        %v4309 = vrot.slane %v4308, 4
        %v4310 = vmax.f32 %v4308, %v4309
        %v4311 = vrot.slane %v4310, 2
        %v4312 = vmax.f32 %v4310, %v4311
        %v4313 = vrot.slane %v4312, 1
        %v4314 = vmax.f32 %v4312, %v4313
        %v4315 = vsel %vm3208, %v2879, -inf
        %v4316 = vrot.slane %v4315, 4
        %v4317 = vmax.f32 %v4315, %v4316
        %v4318 = vrot.slane %v4317, 2
        %v4319 = vmax.f32 %v4317, %v4318
        %v4320 = vrot.slane %v4319, 1
        %v4321 = vmax.f32 %v4319, %v4320
        %v4322 = vsel %vm3200, %v2886, -inf
        %v4323 = vrot.slane %v4322, 4
        %v4324 = vmax.f32 %v4322, %v4323
        %v4325 = vrot.slane %v4324, 2
        %v4326 = vmax.f32 %v4324, %v4325
        %v4327 = vrot.slane %v4326, 1
        %v4328 = vmax.f32 %v4326, %v4327
        %v4329 = vsel %vm3208, %v2887, -inf
        %v4330 = vrot.slane %v4329, 4
        %v4331 = vmax.f32 %v4329, %v4330
        %v4332 = vrot.slane %v4331, 2
        %v4333 = vmax.f32 %v4331, %v4332
        %v4334 = vrot.slane %v4333, 1
        %v4335 = vmax.f32 %v4333, %v4334
        %v4336 = vsel %vm3200, %v2894, -inf
        %v4337 = vrot.slane %v4336, 4
        %v4338 = vmax.f32 %v4336, %v4337
        %v4339 = vrot.slane %v4338, 2
        %v4340 = vmax.f32 %v4338, %v4339
        %v4341 = vrot.slane %v4340, 1
        %v4342 = vmax.f32 %v4340, %v4341
        %v4343 = vsel %vm3208, %v2895, -inf
        %v4344 = vrot.slane %v4343, 4
        %v4345 = vmax.f32 %v4343, %v4344
        %v4346 = vrot.slane %v4345, 2
        %v4347 = vmax.f32 %v4345, %v4346
        %v4348 = vrot.slane %v4347, 1
        %v4349 = vmax.f32 %v4347, %v4348
        %v4350 = vsel %vm3200, %v2902, -inf
        %v4351 = vrot.slane %v4350, 4
        %v4352 = vmax.f32 %v4350, %v4351
        %v4353 = vrot.slane %v4352, 2
        %v4354 = vmax.f32 %v4352, %v4353
        %v4355 = vrot.slane %v4354, 1
        %v4356 = vmax.f32 %v4354, %v4355
        %v4357 = vsel %vm3208, %v2903, -inf
        %v4358 = vrot.slane %v4357, 4
        %v4359 = vmax.f32 %v4357, %v4358
        %v4360 = vrot.slane %v4359, 2
        %v4361 = vmax.f32 %v4359, %v4360
        %v4362 = vrot.slane %v4361, 1
        %v4363 = vmax.f32 %v4361, %v4362
        %v4364 = vsel %vm3200, %v2910, -inf
        %v4365 = vrot.slane %v4364, 4
        %v4366 = vmax.f32 %v4364, %v4365
        %v4367 = vrot.slane %v4366, 2
        %v4368 = vmax.f32 %v4366, %v4367
        %v4369 = vrot.slane %v4368, 1
        %v4370 = vmax.f32 %v4368, %v4369
        %v4371 = vsel %vm3208, %v2911, -inf
        %v4372 = vrot.slane %v4371, 4
        %v4373 = vmax.f32 %v4371, %v4372
        %v4374 = vrot.slane %v4373, 2
        %v4375 = vmax.f32 %v4373, %v4374
        %v4376 = vrot.slane %v4375, 1
        %v4377 = vmax.f32 %v4375, %v4376
        %v4378 = vsel %vm3200, %v2918, -inf
        %v4379 = vrot.slane %v4378, 4
        %v4380 = vmax.f32 %v4378, %v4379
        %v4381 = vrot.slane %v4380, 2
        %v4382 = vmax.f32 %v4380, %v4381
        %v4383 = vrot.slane %v4382, 1
        %v4384 = vmax.f32 %v4382, %v4383
        %v4385 = vsel %vm3208, %v2919, -inf
        %v4386 = vrot.slane %v4385, 4
        %v4387 = vmax.f32 %v4385, %v4386
        %v4388 = vrot.slane %v4387, 2
        %v4389 = vmax.f32 %v4387, %v4388
        %v4390 = vrot.slane %v4389, 1
        %v4391 = vmax.f32 %v4389, %v4390
        %v4392 = vsel %vm3200, %v2926, -inf
        %v4393 = vrot.slane %v4392, 4
        %v4394 = vmax.f32 %v4392, %v4393
        %v4395 = vrot.slane %v4394, 2
        %v4396 = vmax.f32 %v4394, %v4395
        %v4397 = vrot.slane %v4396, 1
        %v4398 = vmax.f32 %v4396, %v4397
        %v4399 = vsel %vm3208, %v2927, -inf
        %v4400 = vrot.slane %v4399, 4
        %v4401 = vmax.f32 %v4399, %v4400
        %v4402 = vrot.slane %v4401, 2
        %v4403 = vmax.f32 %v4401, %v4402
        %v4404 = vrot.slane %v4403, 1
        %v4405 = vmax.f32 %v4403, %v4404
        %v4406 = vsel %vm3200, %v2934, -inf
        %v4407 = vrot.slane %v4406, 4
        %v4408 = vmax.f32 %v4406, %v4407
        %v4409 = vrot.slane %v4408, 2
        %v4410 = vmax.f32 %v4408, %v4409
        %v4411 = vrot.slane %v4410, 1
        %v4412 = vmax.f32 %v4410, %v4411
        %v4413 = vsel %vm3208, %v2935, -inf
        %v4414 = vrot.slane %v4413, 4
        %v4415 = vmax.f32 %v4413, %v4414
        %v4416 = vrot.slane %v4415, 2
        %v4417 = vmax.f32 %v4415, %v4416
        %v4418 = vrot.slane %v4417, 1
        %v4419 = vmax.f32 %v4417, %v4418
        %v4420 = vsel %vm3200, %v2942, -inf
        %v4421 = vrot.slane %v4420, 4
        %v4422 = vmax.f32 %v4420, %v4421
        %v4423 = vrot.slane %v4422, 2
        %v4424 = vmax.f32 %v4422, %v4423
        %v4425 = vrot.slane %v4424, 1
        %v4426 = vmax.f32 %v4424, %v4425
        %v4427 = vsel %vm3208, %v2943, -inf
        %v4428 = vrot.slane %v4427, 4
        %v4429 = vmax.f32 %v4427, %v4428
        %v4430 = vrot.slane %v4429, 2
        %v4431 = vmax.f32 %v4429, %v4430
        %v4432 = vrot.slane %v4431, 1
        %v4433 = vmax.f32 %v4431, %v4432
        %v4434 = vsel %vm3200, %v2950, -inf
        %v4435 = vrot.slane %v4434, 4
        %v4436 = vmax.f32 %v4434, %v4435
        %v4437 = vrot.slane %v4436, 2
        %v4438 = vmax.f32 %v4436, %v4437
        %v4439 = vrot.slane %v4438, 1
        %v4440 = vmax.f32 %v4438, %v4439
        %v4441 = vsel %vm3208, %v2951, -inf
        %v4442 = vrot.slane %v4441, 4
        %v4443 = vmax.f32 %v4441, %v4442
        %v4444 = vrot.slane %v4443, 2
        %v4445 = vmax.f32 %v4443, %v4444
        %v4446 = vrot.slane %v4445, 1
        %v4447 = vmax.f32 %v4445, %v4446
        %v4448 = vsel %vm3200, %v2958, -inf
        %v4449 = vrot.slane %v4448, 4
        %v4450 = vmax.f32 %v4448, %v4449
        %v4451 = vrot.slane %v4450, 2
        %v4452 = vmax.f32 %v4450, %v4451
        %v4453 = vrot.slane %v4452, 1
        %v4454 = vmax.f32 %v4452, %v4453
        %v4455 = vsel %vm3208, %v2959, -inf
        %v4456 = vrot.slane %v4455, 4
        %v4457 = vmax.f32 %v4455, %v4456
        %v4458 = vrot.slane %v4457, 2
        %v4459 = vmax.f32 %v4457, %v4458
        %v4460 = vrot.slane %v4459, 1
        %v4461 = vmax.f32 %v4459, %v4460
        %v4462 = vsel %vm3200, %v2966, -inf
        %v4463 = vrot.slane %v4462, 4
        %v4464 = vmax.f32 %v4462, %v4463
        %v4465 = vrot.slane %v4464, 2
        %v4466 = vmax.f32 %v4464, %v4465
        %v4467 = vrot.slane %v4466, 1
        %v4468 = vmax.f32 %v4466, %v4467
        %v4469 = vsel %vm3208, %v2967, -inf
        %v4470 = vrot.slane %v4469, 4
        %v4471 = vmax.f32 %v4469, %v4470
        %v4472 = vrot.slane %v4471, 2
        %v4473 = vmax.f32 %v4471, %v4472
        %v4474 = vrot.slane %v4473, 1
        %v4475 = vmax.f32 %v4473, %v4474
        %v4476 = vsel %vm3200, %v2974, -inf
        %v4477 = vrot.slane %v4476, 4
        %v4478 = vmax.f32 %v4476, %v4477
        %v4479 = vrot.slane %v4478, 2
        %v4480 = vmax.f32 %v4478, %v4479
        %v4481 = vrot.slane %v4480, 1
        %v4482 = vmax.f32 %v4480, %v4481
        %v4483 = vsel %vm3208, %v2975, -inf
        %v4484 = vrot.slane %v4483, 4
        %v4485 = vmax.f32 %v4483, %v4484
        %v4486 = vrot.slane %v4485, 2
        %v4487 = vmax.f32 %v4485, %v4486
        %v4488 = vrot.slane %v4487, 1
        %v4489 = vmax.f32 %v4487, %v4488
        %v4490 = vsel %vm3200, %v2982, -inf
        %v4491 = vrot.slane %v4490, 4
        %v4492 = vmax.f32 %v4490, %v4491
        %v4493 = vrot.slane %v4492, 2
        %v4494 = vmax.f32 %v4492, %v4493
        %v4495 = vrot.slane %v4494, 1
        %v4496 = vmax.f32 %v4494, %v4495
        %v4497 = vsel %vm3208, %v2983, -inf
        %v4498 = vrot.slane %v4497, 4
        %v4499 = vmax.f32 %v4497, %v4498
        %v4500 = vrot.slane %v4499, 2
        %v4501 = vmax.f32 %v4499, %v4500
        %v4502 = vrot.slane %v4501, 1
        %v4503 = vmax.f32 %v4501, %v4502
        %v4504 = vsel %vm3200, %v2990, -inf
        %v4505 = vrot.slane %v4504, 4
        %v4506 = vmax.f32 %v4504, %v4505
        %v4507 = vrot.slane %v4506, 2
        %v4508 = vmax.f32 %v4506, %v4507
        %v4509 = vrot.slane %v4508, 1
        %v4510 = vmax.f32 %v4508, %v4509
        %v4511 = vsel %vm3208, %v2991, -inf
        %v4512 = vrot.slane %v4511, 4
        %v4513 = vmax.f32 %v4511, %v4512
        %v4514 = vrot.slane %v4513, 2
        %v4515 = vmax.f32 %v4513, %v4514
        %v4516 = vrot.slane %v4515, 1
        %v4517 = vmax.f32 %v4515, %v4516
        %v4518 = vsel %vm3200, %v2998, -inf
        %v4519 = vrot.slane %v4518, 4
        %v4520 = vmax.f32 %v4518, %v4519
        %v4521 = vrot.slane %v4520, 2
        %v4522 = vmax.f32 %v4520, %v4521
        %v4523 = vrot.slane %v4522, 1
        %v4524 = vmax.f32 %v4522, %v4523
        %v4525 = vsel %vm3208, %v2999, -inf
        %v4526 = vrot.slane %v4525, 4
        %v4527 = vmax.f32 %v4525, %v4526
        %v4528 = vrot.slane %v4527, 2
        %v4529 = vmax.f32 %v4527, %v4528
        %v4530 = vrot.slane %v4529, 1
        %v4531 = vmax.f32 %v4529, %v4530
        %v4532 = vsel %vm3200, %v3006, -inf
        %v4533 = vrot.slane %v4532, 4
        %v4534 = vmax.f32 %v4532, %v4533
        %v4535 = vrot.slane %v4534, 2
        %v4536 = vmax.f32 %v4534, %v4535
        %v4537 = vrot.slane %v4536, 1
        %v4538 = vmax.f32 %v4536, %v4537
        %v4539 = vsel %vm3208, %v3007, -inf
        %v4540 = vrot.slane %v4539, 4
        %v4541 = vmax.f32 %v4539, %v4540
        %v4542 = vrot.slane %v4541, 2
        %v4543 = vmax.f32 %v4541, %v4542
        %v4544 = vrot.slane %v4543, 1
        %v4545 = vmax.f32 %v4543, %v4544
        %vm4738 = vcmask 1041409
        %v4739 = vsel %vm4738, %v3222, %v3207
        %vm4740 = vcmask 1042434
        %v4741 = vsel %vm4740, %v3236, %v4739
        %vm4742 = vcmask 1043459
        %v4743 = vsel %vm4742, %v3250, %v4741
        %vm4744 = vcmask 1044484
        %v4745 = vsel %vm4744, %v3264, %v4743
        %vm4746 = vcmask 1045509
        %v4747 = vsel %vm4746, %v3278, %v4745
        %vm4748 = vcmask 1046534
        %v4749 = vsel %vm4748, %v3292, %v4747
        %vm4750 = vcmask 1047559
        %v4751 = vsel %vm4750, %v3306, %v4749
        %v4752 = vsel %vm4738, %v3229, %v3215
        %v4753 = vsel %vm4740, %v3243, %v4752
        %v4754 = vsel %vm4742, %v3257, %v4753
        %v4755 = vsel %vm4744, %v3271, %v4754
        %v4756 = vsel %vm4746, %v3285, %v4755
        %v4757 = vsel %vm4748, %v3299, %v4756
        %v4758 = vsel %vm4750, %v3313, %v4757
        %v4759 = vsel %vm4738, %v3334, %v3320
        %v4760 = vsel %vm4740, %v3348, %v4759
        %v4761 = vsel %vm4742, %v3362, %v4760
        %v4762 = vsel %vm4744, %v3376, %v4761
        %v4763 = vsel %vm4746, %v3390, %v4762
        %v4764 = vsel %vm4748, %v3404, %v4763
        %v4765 = vsel %vm4750, %v3418, %v4764
        %v4766 = vsel %vm4738, %v3341, %v3327
        %v4767 = vsel %vm4740, %v3355, %v4766
        %v4768 = vsel %vm4742, %v3369, %v4767
        %v4769 = vsel %vm4744, %v3383, %v4768
        %v4770 = vsel %vm4746, %v3397, %v4769
        %v4771 = vsel %vm4748, %v3411, %v4770
        %v4772 = vsel %vm4750, %v3425, %v4771
        %v4773 = vsel %vm4738, %v3446, %v3432
        %v4774 = vsel %vm4740, %v3460, %v4773
        %v4775 = vsel %vm4742, %v3474, %v4774
        %v4776 = vsel %vm4744, %v3488, %v4775
        %v4777 = vsel %vm4746, %v3502, %v4776
        %v4778 = vsel %vm4748, %v3516, %v4777
        %v4779 = vsel %vm4750, %v3530, %v4778
        %v4780 = vsel %vm4738, %v3453, %v3439
        %v4781 = vsel %vm4740, %v3467, %v4780
        %v4782 = vsel %vm4742, %v3481, %v4781
        %v4783 = vsel %vm4744, %v3495, %v4782
        %v4784 = vsel %vm4746, %v3509, %v4783
        %v4785 = vsel %vm4748, %v3523, %v4784
        %v4786 = vsel %vm4750, %v3537, %v4785
        %v4787 = vsel %vm4738, %v3558, %v3544
        %v4788 = vsel %vm4740, %v3572, %v4787
        %v4789 = vsel %vm4742, %v3586, %v4788
        %v4790 = vsel %vm4744, %v3600, %v4789
        %v4791 = vsel %vm4746, %v3614, %v4790
        %v4792 = vsel %vm4748, %v3628, %v4791
        %v4793 = vsel %vm4750, %v3642, %v4792
        %v4794 = vsel %vm4738, %v3565, %v3551
        %v4795 = vsel %vm4740, %v3579, %v4794
        %v4796 = vsel %vm4742, %v3593, %v4795
        %v4797 = vsel %vm4744, %v3607, %v4796
        %v4798 = vsel %vm4746, %v3621, %v4797
        %v4799 = vsel %vm4748, %v3635, %v4798
        %v4800 = vsel %vm4750, %v3649, %v4799
        %v4801 = vsel %vm4738, %v3670, %v3656
        %v4802 = vsel %vm4740, %v3684, %v4801
        %v4803 = vsel %vm4742, %v3698, %v4802
        %v4804 = vsel %vm4744, %v3712, %v4803
        %v4805 = vsel %vm4746, %v3726, %v4804
        %v4806 = vsel %vm4748, %v3740, %v4805
        %v4807 = vsel %vm4750, %v3754, %v4806
        %v4808 = vsel %vm4738, %v3677, %v3663
        %v4809 = vsel %vm4740, %v3691, %v4808
        %v4810 = vsel %vm4742, %v3705, %v4809
        %v4811 = vsel %vm4744, %v3719, %v4810
        %v4812 = vsel %vm4746, %v3733, %v4811
        %v4813 = vsel %vm4748, %v3747, %v4812
        %v4814 = vsel %vm4750, %v3761, %v4813
        %v4815 = vsel %vm4738, %v3782, %v3768
        %v4816 = vsel %vm4740, %v3796, %v4815
        %v4817 = vsel %vm4742, %v3810, %v4816
        %v4818 = vsel %vm4744, %v3824, %v4817
        %v4819 = vsel %vm4746, %v3838, %v4818
        %v4820 = vsel %vm4748, %v3852, %v4819
        %v4821 = vsel %vm4750, %v3866, %v4820
        %v4822 = vsel %vm4738, %v3789, %v3775
        %v4823 = vsel %vm4740, %v3803, %v4822
        %v4824 = vsel %vm4742, %v3817, %v4823
        %v4825 = vsel %vm4744, %v3831, %v4824
        %v4826 = vsel %vm4746, %v3845, %v4825
        %v4827 = vsel %vm4748, %v3859, %v4826
        %v4828 = vsel %vm4750, %v3873, %v4827
        %v4829 = vsel %vm4738, %v3894, %v3880
        %v4830 = vsel %vm4740, %v3908, %v4829
        %v4831 = vsel %vm4742, %v3922, %v4830
        %v4832 = vsel %vm4744, %v3936, %v4831
        %v4833 = vsel %vm4746, %v3950, %v4832
        %v4834 = vsel %vm4748, %v3964, %v4833
        %v4835 = vsel %vm4750, %v3978, %v4834
        %v4836 = vsel %vm4738, %v3901, %v3887
        %v4837 = vsel %vm4740, %v3915, %v4836
        %v4838 = vsel %vm4742, %v3929, %v4837
        %v4839 = vsel %vm4744, %v3943, %v4838
        %v4840 = vsel %vm4746, %v3957, %v4839
        %v4841 = vsel %vm4748, %v3971, %v4840
        %v4842 = vsel %vm4750, %v3985, %v4841
        %v4843 = vsel %vm4738, %v4006, %v3992
        %v4844 = vsel %vm4740, %v4020, %v4843
        %v4845 = vsel %vm4742, %v4034, %v4844
        %v4846 = vsel %vm4744, %v4048, %v4845
        %v4847 = vsel %vm4746, %v4062, %v4846
        %v4848 = vsel %vm4748, %v4076, %v4847
        %v4849 = vsel %vm4750, %v4090, %v4848
        %v4850 = vsel %vm4738, %v4013, %v3999
        %v4851 = vsel %vm4740, %v4027, %v4850
        %v4852 = vsel %vm4742, %v4041, %v4851
        %v4853 = vsel %vm4744, %v4055, %v4852
        %v4854 = vsel %vm4746, %v4069, %v4853
        %v4855 = vsel %vm4748, %v4083, %v4854
        %v4856 = vsel %vm4750, %v4097, %v4855
        %v4857 = vsel %vm4738, %v4118, %v4104
        %v4858 = vsel %vm4740, %v4132, %v4857
        %v4859 = vsel %vm4742, %v4146, %v4858
        %v4860 = vsel %vm4744, %v4160, %v4859
        %v4861 = vsel %vm4746, %v4174, %v4860
        %v4862 = vsel %vm4748, %v4188, %v4861
        %v4863 = vsel %vm4750, %v4202, %v4862
        %v4864 = vsel %vm4738, %v4125, %v4111
        %v4865 = vsel %vm4740, %v4139, %v4864
        %v4866 = vsel %vm4742, %v4153, %v4865
        %v4867 = vsel %vm4744, %v4167, %v4866
        %v4868 = vsel %vm4746, %v4181, %v4867
        %v4869 = vsel %vm4748, %v4195, %v4868
        %v4870 = vsel %vm4750, %v4209, %v4869
        %v4871 = vsel %vm4738, %v4230, %v4216
        %v4872 = vsel %vm4740, %v4244, %v4871
        %v4873 = vsel %vm4742, %v4258, %v4872
        %v4874 = vsel %vm4744, %v4272, %v4873
        %v4875 = vsel %vm4746, %v4286, %v4874
        %v4876 = vsel %vm4748, %v4300, %v4875
        %v4877 = vsel %vm4750, %v4314, %v4876
        %v4878 = vsel %vm4738, %v4237, %v4223
        %v4879 = vsel %vm4740, %v4251, %v4878
        %v4880 = vsel %vm4742, %v4265, %v4879
        %v4881 = vsel %vm4744, %v4279, %v4880
        %v4882 = vsel %vm4746, %v4293, %v4881
        %v4883 = vsel %vm4748, %v4307, %v4882
        %v4884 = vsel %vm4750, %v4321, %v4883
        %v4885 = vsel %vm4738, %v4342, %v4328
        %v4886 = vsel %vm4740, %v4356, %v4885
        %v4887 = vsel %vm4742, %v4370, %v4886
        %v4888 = vsel %vm4744, %v4384, %v4887
        %v4889 = vsel %vm4746, %v4398, %v4888
        %v4890 = vsel %vm4748, %v4412, %v4889
        %v4891 = vsel %vm4750, %v4426, %v4890
        %v4892 = vsel %vm4738, %v4349, %v4335
        %v4893 = vsel %vm4740, %v4363, %v4892
        %v4894 = vsel %vm4742, %v4377, %v4893
        %v4895 = vsel %vm4744, %v4391, %v4894
        %v4896 = vsel %vm4746, %v4405, %v4895
        %v4897 = vsel %vm4748, %v4419, %v4896
        %v4898 = vsel %vm4750, %v4433, %v4897
        %v4899 = vsel %vm4738, %v4454, %v4440
        %v4900 = vsel %vm4740, %v4468, %v4899
        %v4901 = vsel %vm4742, %v4482, %v4900
        %v4902 = vsel %vm4744, %v4496, %v4901
        %v4903 = vsel %vm4746, %v4510, %v4902
        %v4904 = vsel %vm4748, %v4524, %v4903
        %v4905 = vsel %vm4750, %v4538, %v4904
        %v4906 = vsel %vm4738, %v4461, %v4447
        %v4907 = vsel %vm4740, %v4475, %v4906
        %v4908 = vsel %vm4742, %v4489, %v4907
        %v4909 = vsel %vm4744, %v4503, %v4908
        %v4910 = vsel %vm4746, %v4517, %v4909
        %v4911 = vsel %vm4748, %v4531, %v4910
        %v4912 = vsel %vm4750, %v4545, %v4911
        %4913 = vrot.lane.b32.xlu0 %v4751, 120
        %v4914 = vpop.permute.xlu0 %4913
        %4915 = vrot.lane.b32.xlu0 %v4758, 120
        %v4916 = vpop.permute.xlu0 %4915
        %4917 = vrot.lane.b32.xlu0 %v4765, 120
        %v4918 = vpop.permute.xlu0 %4917
        %4919 = vrot.lane.b32.xlu0 %v4772, 120
        %v4920 = vpop.permute.xlu0 %4919
        %4921 = vrot.lane.b32.xlu0 %v4779, 120
        %v4922 = vpop.permute.xlu0 %4921
        %4923 = vrot.lane.b32.xlu0 %v4786, 120
        %v4924 = vpop.permute.xlu0 %4923
        %4925 = vrot.lane.b32.xlu0 %v4793, 120
        %v4926 = vpop.permute.xlu0 %4925
        %4927 = vrot.lane.b32.xlu0 %v4800, 120
        %v4928 = vpop.permute.xlu0 %4927
        %4929 = vrot.lane.b32.xlu0 %v4807, 120
        %v4930 = vpop.permute.xlu0 %4929
        %4931 = vrot.lane.b32.xlu0 %v4814, 120
        %v4932 = vpop.permute.xlu0 %4931
        %4933 = vrot.lane.b32.xlu0 %v4821, 120
        %v4934 = vpop.permute.xlu0 %4933
        %4935 = vrot.lane.b32.xlu0 %v4828, 120
        %v4936 = vpop.permute.xlu0 %4935
        %4937 = vrot.lane.b32.xlu0 %v4835, 120
        %v4938 = vpop.permute.xlu0 %4937
        %4939 = vrot.lane.b32.xlu0 %v4842, 120
        %v4940 = vpop.permute.xlu0 %4939
        %4941 = vrot.lane.b32.xlu0 %v4849, 120
        %v4942 = vpop.permute.xlu0 %4941
        %4943 = vrot.lane.b32.xlu0 %v4856, 120
        %v4944 = vpop.permute.xlu0 %4943
        %4945 = vrot.lane.b32.xlu0 %v4863, 120
        %v4946 = vpop.permute.xlu0 %4945
        %4947 = vrot.lane.b32.xlu0 %v4870, 120
        %v4948 = vpop.permute.xlu0 %4947
        %4949 = vrot.lane.b32.xlu0 %v4877, 120
        %v4950 = vpop.permute.xlu0 %4949
        %4951 = vrot.lane.b32.xlu0 %v4884, 120
        %v4952 = vpop.permute.xlu0 %4951
        %4953 = vrot.lane.b32.xlu0 %v4891, 120
        %v4954 = vpop.permute.xlu0 %4953
        %4955 = vrot.lane.b32.xlu0 %v4898, 120
        %v4956 = vpop.permute.xlu0 %4955
        %4957 = vrot.lane.b32.xlu0 %v4905, 120
        %v4958 = vpop.permute.xlu0 %4957
        %4959 = vrot.lane.b32.xlu0 %v4912, 120
        %v4960 = vpop.permute.xlu0 %4959
        %vm4961 = vcmask 982016
        %v4962 = vsel %vm4961, %v4914, %v4916
        %v4963 = vsel %vm4961, %v4918, %v4920
        %v4964 = vsel %vm4961, %v4922, %v4924
        %v4965 = vsel %vm4961, %v4926, %v4928
        %v4966 = vsel %vm4961, %v4930, %v4932
        %v4967 = vsel %vm4961, %v4934, %v4936
        %v4968 = vsel %vm4961, %v4938, %v4940
        %v4969 = vsel %vm4961, %v4942, %v4944
        %v4970 = vsel %vm4961, %v4946, %v4948
        %v4971 = vsel %vm4961, %v4950, %v4952
        %v4972 = vsel %vm4961, %v4954, %v4956
        %v4973 = vsel %vm4961, %v4958, %v4960
        %4986 = vrot.lane.b32.xlu0 %v4751, 56
        %v4987 = vpop.permute.xlu0 %4986
        %4988 = vrot.lane.b32.xlu0 %v4765, 56
        %v4989 = vpop.permute.xlu0 %4988
        %4990 = vrot.lane.b32.xlu0 %v4779, 56
        %v4991 = vpop.permute.xlu0 %4990
        %4992 = vrot.lane.b32.xlu0 %v4793, 56
        %v4993 = vpop.permute.xlu0 %4992
        %4994 = vrot.lane.b32.xlu0 %v4807, 56
        %v4995 = vpop.permute.xlu0 %4994
        %4996 = vrot.lane.b32.xlu0 %v4821, 56
        %v4997 = vpop.permute.xlu0 %4996
        %4998 = vrot.lane.b32.xlu0 %v4835, 56
        %v4999 = vpop.permute.xlu0 %4998
        %5000 = vrot.lane.b32.xlu0 %v4849, 56
        %v5001 = vpop.permute.xlu0 %5000
        %5002 = vrot.lane.b32.xlu0 %v4863, 56
        %v5003 = vpop.permute.xlu0 %5002
        %5004 = vrot.lane.b32.xlu0 %v4877, 56
        %v5005 = vpop.permute.xlu0 %5004
        %5006 = vrot.lane.b32.xlu0 %v4891, 56
        %v5007 = vpop.permute.xlu0 %5006
        %5008 = vrot.lane.b32.xlu0 %v4905, 56
        %v5009 = vpop.permute.xlu0 %5008
        %vm5022 = vcmask 457728
        %v5023 = vsel %vm5022, %v4916, %v4987
        %v5024 = vsel %vm5022, %v4920, %v4989
        %v5025 = vsel %vm5022, %v4924, %v4991
        %v5026 = vsel %vm5022, %v4928, %v4993
        %v5027 = vsel %vm5022, %v4932, %v4995
        %v5028 = vsel %vm5022, %v4936, %v4997
        %v5029 = vsel %vm5022, %v4940, %v4999
        %v5030 = vsel %vm5022, %v4944, %v5001
        %v5031 = vsel %vm5022, %v4948, %v5003
        %v5032 = vsel %vm5022, %v4952, %v5005
        %v5033 = vsel %vm5022, %v4956, %v5007
        %v5034 = vsel %vm5022, %v4960, %v5009
        %v5047 = vrot.slane %v4962, 1
        %v5048 = vrot.slane %v5023, 1
        %v5049 = vrot.slane %v4962, 2
        %v5050 = vrot.slane %v5023, 2
        %v5051 = vrot.slane %v4962, 3
        %v5052 = vrot.slane %v5023, 3
        %v5053 = vrot.slane %v4962, 4
        %v5054 = vrot.slane %v5023, 4
        %v5055 = vrot.slane %v4962, 5
        %v5056 = vrot.slane %v5023, 5
        %v5057 = vrot.slane %v4962, 6
        %v5058 = vrot.slane %v5023, 6
        %v5059 = vrot.slane %v4962, 7
        %v5060 = vrot.slane %v5023, 7
        %v5061 = vrot.slane %v4963, 1
        %v5062 = vrot.slane %v5024, 1
        %v5063 = vrot.slane %v4963, 2
        %v5064 = vrot.slane %v5024, 2
        %v5065 = vrot.slane %v4963, 3
        %v5066 = vrot.slane %v5024, 3
        %v5067 = vrot.slane %v4963, 4
        %v5068 = vrot.slane %v5024, 4
        %v5069 = vrot.slane %v4963, 5
        %v5070 = vrot.slane %v5024, 5
        %v5071 = vrot.slane %v4963, 6
        %v5072 = vrot.slane %v5024, 6
        %v5073 = vrot.slane %v4963, 7
        %v5074 = vrot.slane %v5024, 7
        %v5075 = vrot.slane %v4964, 1
        %v5076 = vrot.slane %v5025, 1
        %v5077 = vrot.slane %v4964, 2
        %v5078 = vrot.slane %v5025, 2
        %v5079 = vrot.slane %v4964, 3
        %v5080 = vrot.slane %v5025, 3
        %v5081 = vrot.slane %v4964, 4
        %v5082 = vrot.slane %v5025, 4
        %v5083 = vrot.slane %v4964, 5
        %v5084 = vrot.slane %v5025, 5
        %v5085 = vrot.slane %v4964, 6
        %v5086 = vrot.slane %v5025, 6
        %v5087 = vrot.slane %v4964, 7
        %v5088 = vrot.slane %v5025, 7
        %v5089 = vrot.slane %v4965, 1
        %v5090 = vrot.slane %v5026, 1
        %v5091 = vrot.slane %v4965, 2
        %v5092 = vrot.slane %v5026, 2
        %v5093 = vrot.slane %v4965, 3
        %v5094 = vrot.slane %v5026, 3
        %v5095 = vrot.slane %v4965, 4
        %v5096 = vrot.slane %v5026, 4
        %v5097 = vrot.slane %v4965, 5
        %v5098 = vrot.slane %v5026, 5
        %v5099 = vrot.slane %v4965, 6
        %v5100 = vrot.slane %v5026, 6
        %v5101 = vrot.slane %v4965, 7
        %v5102 = vrot.slane %v5026, 7
        %v5103 = vrot.slane %v4966, 1
        %v5104 = vrot.slane %v5027, 1
        %v5105 = vrot.slane %v4966, 2
        %v5106 = vrot.slane %v5027, 2
        %v5107 = vrot.slane %v4966, 3
        %v5108 = vrot.slane %v5027, 3
        %v5109 = vrot.slane %v4966, 4
        %v5110 = vrot.slane %v5027, 4
        %v5111 = vrot.slane %v4966, 5
        %v5112 = vrot.slane %v5027, 5
        %v5113 = vrot.slane %v4966, 6
        %v5114 = vrot.slane %v5027, 6
        %v5115 = vrot.slane %v4966, 7
        %v5116 = vrot.slane %v5027, 7
        %v5117 = vrot.slane %v4967, 1
        %v5118 = vrot.slane %v5028, 1
        %v5119 = vrot.slane %v4967, 2
        %v5120 = vrot.slane %v5028, 2
        %v5121 = vrot.slane %v4967, 3
        %v5122 = vrot.slane %v5028, 3
        %v5123 = vrot.slane %v4967, 4
        %v5124 = vrot.slane %v5028, 4
        %v5125 = vrot.slane %v4967, 5
        %v5126 = vrot.slane %v5028, 5
        %v5127 = vrot.slane %v4967, 6
        %v5128 = vrot.slane %v5028, 6
        %v5129 = vrot.slane %v4967, 7
        %v5130 = vrot.slane %v5028, 7
        %v5131 = vrot.slane %v4968, 1
        %v5132 = vrot.slane %v5029, 1
        %v5133 = vrot.slane %v4968, 2
        %v5134 = vrot.slane %v5029, 2
        %v5135 = vrot.slane %v4968, 3
        %v5136 = vrot.slane %v5029, 3
        %v5137 = vrot.slane %v4968, 4
        %v5138 = vrot.slane %v5029, 4
        %v5139 = vrot.slane %v4968, 5
        %v5140 = vrot.slane %v5029, 5
        %v5141 = vrot.slane %v4968, 6
        %v5142 = vrot.slane %v5029, 6
        %v5143 = vrot.slane %v4968, 7
        %v5144 = vrot.slane %v5029, 7
        %v5145 = vrot.slane %v4969, 1
        %v5146 = vrot.slane %v5030, 1
        %v5147 = vrot.slane %v4969, 2
        %v5148 = vrot.slane %v5030, 2
        %v5149 = vrot.slane %v4969, 3
        %v5150 = vrot.slane %v5030, 3
        %v5151 = vrot.slane %v4969, 4
        %v5152 = vrot.slane %v5030, 4
        %v5153 = vrot.slane %v4969, 5
        %v5154 = vrot.slane %v5030, 5
        %v5155 = vrot.slane %v4969, 6
        %v5156 = vrot.slane %v5030, 6
        %v5157 = vrot.slane %v4969, 7
        %v5158 = vrot.slane %v5030, 7
        %v5159 = vrot.slane %v4970, 1
        %v5160 = vrot.slane %v5031, 1
        %v5161 = vrot.slane %v4970, 2
        %v5162 = vrot.slane %v5031, 2
        %v5163 = vrot.slane %v4970, 3
        %v5164 = vrot.slane %v5031, 3
        %v5165 = vrot.slane %v4970, 4
        %v5166 = vrot.slane %v5031, 4
        %v5167 = vrot.slane %v4970, 5
        %v5168 = vrot.slane %v5031, 5
        %v5169 = vrot.slane %v4970, 6
        %v5170 = vrot.slane %v5031, 6
        %v5171 = vrot.slane %v4970, 7
        %v5172 = vrot.slane %v5031, 7
        %v5173 = vrot.slane %v4971, 1
        %v5174 = vrot.slane %v5032, 1
        %v5175 = vrot.slane %v4971, 2
        %v5176 = vrot.slane %v5032, 2
        %v5177 = vrot.slane %v4971, 3
        %v5178 = vrot.slane %v5032, 3
        %v5179 = vrot.slane %v4971, 4
        %v5180 = vrot.slane %v5032, 4
        %v5181 = vrot.slane %v4971, 5
        %v5182 = vrot.slane %v5032, 5
        %v5183 = vrot.slane %v4971, 6
        %v5184 = vrot.slane %v5032, 6
        %v5185 = vrot.slane %v4971, 7
        %v5186 = vrot.slane %v5032, 7
        %v5187 = vrot.slane %v4972, 1
        %v5188 = vrot.slane %v5033, 1
        %v5189 = vrot.slane %v4972, 2
        %v5190 = vrot.slane %v5033, 2
        %v5191 = vrot.slane %v4972, 3
        %v5192 = vrot.slane %v5033, 3
        %v5193 = vrot.slane %v4972, 4
        %v5194 = vrot.slane %v5033, 4
        %v5195 = vrot.slane %v4972, 5
        %v5196 = vrot.slane %v5033, 5
        %v5197 = vrot.slane %v4972, 6
        %v5198 = vrot.slane %v5033, 6
        %v5199 = vrot.slane %v4972, 7
        %v5200 = vrot.slane %v5033, 7
        %v5201 = vrot.slane %v4973, 1
        %v5202 = vrot.slane %v5034, 1
        %v5203 = vrot.slane %v4973, 2
        %v5204 = vrot.slane %v5034, 2
        %v5205 = vrot.slane %v4973, 3
        %v5206 = vrot.slane %v5034, 3
        %v5207 = vrot.slane %v4973, 4
        %v5208 = vrot.slane %v5034, 4
        %v5209 = vrot.slane %v4973, 5
        %v5210 = vrot.slane %v5034, 5
        %v5211 = vrot.slane %v4973, 6
        %v5212 = vrot.slane %v5034, 6
        %v5213 = vrot.slane %v4973, 7
        %v5214 = vrot.slane %v5034, 7
        %v5407 = vmax.f32 %v3207, %v4962
        %v5408 = vmax.f32 %v3215, %v5023
        %v5409 = vmax.f32 %v3222, %v5047
        %v5410 = vmax.f32 %v3229, %v5048
        %v5411 = vmax.f32 %v3236, %v5049
        %v5412 = vmax.f32 %v3243, %v5050
        %v5413 = vmax.f32 %v3250, %v5051
        %v5414 = vmax.f32 %v3257, %v5052
        %v5415 = vmax.f32 %v3264, %v5053
        %v5416 = vmax.f32 %v3271, %v5054
        %v5417 = vmax.f32 %v3278, %v5055
        %v5418 = vmax.f32 %v3285, %v5056
        %v5419 = vmax.f32 %v3292, %v5057
        %v5420 = vmax.f32 %v3299, %v5058
        %v5421 = vmax.f32 %v3306, %v5059
        %v5422 = vmax.f32 %v3313, %v5060
        %v5423 = vmax.f32 %v3320, %v4963
        %v5424 = vmax.f32 %v3327, %v5024
        %v5425 = vmax.f32 %v3334, %v5061
        %v5426 = vmax.f32 %v3341, %v5062
        %v5427 = vmax.f32 %v3348, %v5063
        %v5428 = vmax.f32 %v3355, %v5064
        %v5429 = vmax.f32 %v3362, %v5065
        %v5430 = vmax.f32 %v3369, %v5066
        %v5431 = vmax.f32 %v3376, %v5067
        %v5432 = vmax.f32 %v3383, %v5068
        %v5433 = vmax.f32 %v3390, %v5069
        %v5434 = vmax.f32 %v3397, %v5070
        %v5435 = vmax.f32 %v3404, %v5071
        %v5436 = vmax.f32 %v3411, %v5072
        %v5437 = vmax.f32 %v3418, %v5073
        %v5438 = vmax.f32 %v3425, %v5074
        %v5439 = vmax.f32 %v3432, %v4964
        %v5440 = vmax.f32 %v3439, %v5025
        %v5441 = vmax.f32 %v3446, %v5075
        %v5442 = vmax.f32 %v3453, %v5076
        %v5443 = vmax.f32 %v3460, %v5077
        %v5444 = vmax.f32 %v3467, %v5078
        %v5445 = vmax.f32 %v3474, %v5079
        %v5446 = vmax.f32 %v3481, %v5080
        %v5447 = vmax.f32 %v3488, %v5081
        %v5448 = vmax.f32 %v3495, %v5082
        %v5449 = vmax.f32 %v3502, %v5083
        %v5450 = vmax.f32 %v3509, %v5084
        %v5451 = vmax.f32 %v3516, %v5085
        %v5452 = vmax.f32 %v3523, %v5086
        %v5453 = vmax.f32 %v3530, %v5087
        %v5454 = vmax.f32 %v3537, %v5088
        %v5455 = vmax.f32 %v3544, %v4965
        %v5456 = vmax.f32 %v3551, %v5026
        %v5457 = vmax.f32 %v3558, %v5089
        %v5458 = vmax.f32 %v3565, %v5090
        %v5459 = vmax.f32 %v3572, %v5091
        %v5460 = vmax.f32 %v3579, %v5092
        %v5461 = vmax.f32 %v3586, %v5093
        %v5462 = vmax.f32 %v3593, %v5094
        %v5463 = vmax.f32 %v3600, %v5095
        %v5464 = vmax.f32 %v3607, %v5096
        %v5465 = vmax.f32 %v3614, %v5097
        %v5466 = vmax.f32 %v3621, %v5098
        %v5467 = vmax.f32 %v3628, %v5099
        %v5468 = vmax.f32 %v3635, %v5100
        %v5469 = vmax.f32 %v3642, %v5101
        %v5470 = vmax.f32 %v3649, %v5102
        %v5471 = vmax.f32 %v3656, %v4966
        %v5472 = vmax.f32 %v3663, %v5027
        %v5473 = vmax.f32 %v3670, %v5103
        %v5474 = vmax.f32 %v3677, %v5104
        %v5475 = vmax.f32 %v3684, %v5105
        %v5476 = vmax.f32 %v3691, %v5106
        %v5477 = vmax.f32 %v3698, %v5107
        %v5478 = vmax.f32 %v3705, %v5108
        %v5479 = vmax.f32 %v3712, %v5109
        %v5480 = vmax.f32 %v3719, %v5110
        %v5481 = vmax.f32 %v3726, %v5111
        %v5482 = vmax.f32 %v3733, %v5112
        %v5483 = vmax.f32 %v3740, %v5113
        %v5484 = vmax.f32 %v3747, %v5114
        %v5485 = vmax.f32 %v3754, %v5115
        %v5486 = vmax.f32 %v3761, %v5116
        %v5487 = vmax.f32 %v3768, %v4967
        %v5488 = vmax.f32 %v3775, %v5028
        %v5489 = vmax.f32 %v3782, %v5117
        %v5490 = vmax.f32 %v3789, %v5118
        %v5491 = vmax.f32 %v3796, %v5119
        %v5492 = vmax.f32 %v3803, %v5120
        %v5493 = vmax.f32 %v3810, %v5121
        %v5494 = vmax.f32 %v3817, %v5122
        %v5495 = vmax.f32 %v3824, %v5123
        %v5496 = vmax.f32 %v3831, %v5124
        %v5497 = vmax.f32 %v3838, %v5125
        %v5498 = vmax.f32 %v3845, %v5126
        %v5499 = vmax.f32 %v3852, %v5127
        %v5500 = vmax.f32 %v3859, %v5128
        %v5501 = vmax.f32 %v3866, %v5129
        %v5502 = vmax.f32 %v3873, %v5130
        %v5503 = vmax.f32 %v3880, %v4968
        %v5504 = vmax.f32 %v3887, %v5029
        %v5505 = vmax.f32 %v3894, %v5131
        %v5506 = vmax.f32 %v3901, %v5132
        %v5507 = vmax.f32 %v3908, %v5133
        %v5508 = vmax.f32 %v3915, %v5134
        %v5509 = vmax.f32 %v3922, %v5135
        %v5510 = vmax.f32 %v3929, %v5136
        %v5511 = vmax.f32 %v3936, %v5137
        %v5512 = vmax.f32 %v3943, %v5138
        %v5513 = vmax.f32 %v3950, %v5139
        %v5514 = vmax.f32 %v3957, %v5140
        %v5515 = vmax.f32 %v3964, %v5141
        %v5516 = vmax.f32 %v3971, %v5142
        %v5517 = vmax.f32 %v3978, %v5143
        %v5518 = vmax.f32 %v3985, %v5144
        %v5519 = vmax.f32 %v3992, %v4969
        %v5520 = vmax.f32 %v3999, %v5030
        %v5521 = vmax.f32 %v4006, %v5145
        %v5522 = vmax.f32 %v4013, %v5146
        %v5523 = vmax.f32 %v4020, %v5147
        %v5524 = vmax.f32 %v4027, %v5148
        %v5525 = vmax.f32 %v4034, %v5149
        %v5526 = vmax.f32 %v4041, %v5150
        %v5527 = vmax.f32 %v4048, %v5151
        %v5528 = vmax.f32 %v4055, %v5152
        %v5529 = vmax.f32 %v4062, %v5153
        %v5530 = vmax.f32 %v4069, %v5154
        %v5531 = vmax.f32 %v4076, %v5155
        %v5532 = vmax.f32 %v4083, %v5156
        %v5533 = vmax.f32 %v4090, %v5157
        %v5534 = vmax.f32 %v4097, %v5158
        %v5535 = vmax.f32 %v4104, %v4970
        %v5536 = vmax.f32 %v4111, %v5031
        %v5537 = vmax.f32 %v4118, %v5159
        %v5538 = vmax.f32 %v4125, %v5160
        %v5539 = vmax.f32 %v4132, %v5161
        %v5540 = vmax.f32 %v4139, %v5162
        %v5541 = vmax.f32 %v4146, %v5163
        %v5542 = vmax.f32 %v4153, %v5164
        %v5543 = vmax.f32 %v4160, %v5165
        %v5544 = vmax.f32 %v4167, %v5166
        %v5545 = vmax.f32 %v4174, %v5167
        %v5546 = vmax.f32 %v4181, %v5168
        %v5547 = vmax.f32 %v4188, %v5169
        %v5548 = vmax.f32 %v4195, %v5170
        %v5549 = vmax.f32 %v4202, %v5171
        %v5550 = vmax.f32 %v4209, %v5172
        %v5551 = vmax.f32 %v4216, %v4971
        %v5552 = vmax.f32 %v4223, %v5032
        %v5553 = vmax.f32 %v4230, %v5173
        %v5554 = vmax.f32 %v4237, %v5174
        %v5555 = vmax.f32 %v4244, %v5175
        %v5556 = vmax.f32 %v4251, %v5176
        %v5557 = vmax.f32 %v4258, %v5177
        %v5558 = vmax.f32 %v4265, %v5178
        %v5559 = vmax.f32 %v4272, %v5179
        %v5560 = vmax.f32 %v4279, %v5180
        %v5561 = vmax.f32 %v4286, %v5181
        %v5562 = vmax.f32 %v4293, %v5182
        %v5563 = vmax.f32 %v4300, %v5183
        %v5564 = vmax.f32 %v4307, %v5184
        %v5565 = vmax.f32 %v4314, %v5185
        %v5566 = vmax.f32 %v4321, %v5186
        %v5567 = vmax.f32 %v4328, %v4972
        %v5568 = vmax.f32 %v4335, %v5033
        %v5569 = vmax.f32 %v4342, %v5187
        %v5570 = vmax.f32 %v4349, %v5188
        %v5571 = vmax.f32 %v4356, %v5189
        %v5572 = vmax.f32 %v4363, %v5190
        %v5573 = vmax.f32 %v4370, %v5191
        %v5574 = vmax.f32 %v4377, %v5192
        %v5575 = vmax.f32 %v4384, %v5193
        %v5576 = vmax.f32 %v4391, %v5194
        %v5577 = vmax.f32 %v4398, %v5195
        %v5578 = vmax.f32 %v4405, %v5196
        %v5579 = vmax.f32 %v4412, %v5197
        %v5580 = vmax.f32 %v4419, %v5198
        %v5581 = vmax.f32 %v4426, %v5199
        %v5582 = vmax.f32 %v4433, %v5200
        %v5583 = vmax.f32 %v4440, %v4973
        %v5584 = vmax.f32 %v4447, %v5034
        %v5585 = vmax.f32 %v4454, %v5201
        %v5586 = vmax.f32 %v4461, %v5202
        %v5587 = vmax.f32 %v4468, %v5203
        %v5588 = vmax.f32 %v4475, %v5204
        %v5589 = vmax.f32 %v4482, %v5205
        %v5590 = vmax.f32 %v4489, %v5206
        %v5591 = vmax.f32 %v4496, %v5207
        %v5592 = vmax.f32 %v4503, %v5208
        %v5593 = vmax.f32 %v4510, %v5209
        %v5594 = vmax.f32 %v4517, %v5210
        %v5595 = vmax.f32 %v4524, %v5211
        %v5596 = vmax.f32 %v4531, %v5212
        %v5597 = vmax.f32 %v4538, %v5213
        %v5598 = vmax.f32 %v4545, %v5214
        %vm5599 = vcmp.lt.s32.totalorder %v412, 0
        %v5600 = vsub.s32 0, %v412
        %v5601 = vsel %vm5599, %v5600, %v412
        %v5602 = vmul.u32.u64.compose %v5601, 2863311531
        %v5603 = vextract.low.u32 %v5602
        %v5604 = vextract.high.u32 %v5602
        %v5605 = vshrl.u32 %v5604, 3
        %v5606 = vmul.u32 %v5605, 12
        %v5607 = vsub.s32 %v5601, %v5606
        %v5608 = vsub.s32 0, %v5607
        %v5609 = vsel %vm5599, %v5608, %v5607
        %vm5610 = vcmp.lt.s32.totalorder %v413, 0
        %v5611 = vsub.s32 0, %v413
        %v5612 = vsel %vm5610, %v5611, %v413
        %v5613 = vmul.u32.u64.compose %v5612, 2863311531
        %v5614 = vextract.low.u32 %v5613
        %v5615 = vextract.high.u32 %v5613
        %v5616 = vshrl.u32 %v5615, 3
        %v5617 = vmul.u32 %v5616, 12
        %v5618 = vsub.s32 %v5612, %v5617
        %v5619 = vsub.s32 0, %v5618
        %v5620 = vsel %vm5610, %v5619, %v5618
        %vm5621 = vcmp.lt.s32.totalorder %v414, 0
        %v5622 = vsub.s32 0, %v414
        %v5623 = vsel %vm5621, %v5622, %v414
        %v5624 = vmul.u32.u64.compose %v5623, 2863311531
        %v5625 = vextract.low.u32 %v5624
        %v5626 = vextract.high.u32 %v5624
        %v5627 = vshrl.u32 %v5626, 3
        %v5628 = vmul.u32 %v5627, 12
        %v5629 = vsub.s32 %v5623, %v5628
        %v5630 = vsub.s32 0, %v5629
        %v5631 = vsel %vm5621, %v5630, %v5629
        %vm5632 = vcmp.lt.s32.totalorder %v415, 0
        %v5633 = vsub.s32 0, %v415
        %v5634 = vsel %vm5632, %v5633, %v415
        %v5635 = vmul.u32.u64.compose %v5634, 2863311531
        %v5636 = vextract.low.u32 %v5635
        %v5637 = vextract.high.u32 %v5635
        %v5638 = vshrl.u32 %v5637, 3
        %v5639 = vmul.u32 %v5638, 12
        %v5640 = vsub.s32 %v5634, %v5639
        %v5641 = vsub.s32 0, %v5640
        %v5642 = vsel %vm5632, %v5641, %v5640
        %vm5643 = vcmp.lt.s32.totalorder %v416, 0
        %v5644 = vsub.s32 0, %v416
        %v5645 = vsel %vm5643, %v5644, %v416
        %v5646 = vmul.u32.u64.compose %v5645, 2863311531
        %v5647 = vextract.low.u32 %v5646
        %v5648 = vextract.high.u32 %v5646
        %v5649 = vshrl.u32 %v5648, 3
        %v5650 = vmul.u32 %v5649, 12
        %v5651 = vsub.s32 %v5645, %v5650
        %v5652 = vsub.s32 0, %v5651
        %v5653 = vsel %vm5643, %v5652, %v5651
        %vm5654 = vcmp.lt.s32.totalorder %v417, 0
        %v5655 = vsub.s32 0, %v417
        %v5656 = vsel %vm5654, %v5655, %v417
        %v5657 = vmul.u32.u64.compose %v5656, 2863311531
        %v5658 = vextract.low.u32 %v5657
        %v5659 = vextract.high.u32 %v5657
        %v5660 = vshrl.u32 %v5659, 3
        %v5661 = vmul.u32 %v5660, 12
        %v5662 = vsub.s32 %v5656, %v5661
        %v5663 = vsub.s32 0, %v5662
        %v5664 = vsel %vm5654, %v5663, %v5662
        %vm5665 = vcmp.lt.s32.totalorder %v418, 0
        %v5666 = vsub.s32 0, %v418
        %v5667 = vsel %vm5665, %v5666, %v418
        %v5668 = vmul.u32.u64.compose %v5667, 2863311531
        %v5669 = vextract.low.u32 %v5668
        %v5670 = vextract.high.u32 %v5668
        %v5671 = vshrl.u32 %v5670, 3
        %v5672 = vmul.u32 %v5671, 12
        %v5673 = vsub.s32 %v5667, %v5672
        %v5674 = vsub.s32 0, %v5673
        %v5675 = vsel %vm5665, %v5674, %v5673
        %vm5676 = vcmp.lt.s32.totalorder %v419, 0
        %v5677 = vsub.s32 0, %v419
        %v5678 = vsel %vm5676, %v5677, %v419
        %v5679 = vmul.u32.u64.compose %v5678, 2863311531
        %v5680 = vextract.low.u32 %v5679
        %v5681 = vextract.high.u32 %v5679
        %v5682 = vshrl.u32 %v5681, 3
        %v5683 = vmul.u32 %v5682, 12
        %v5684 = vsub.s32 %v5678, %v5683
        %v5685 = vsub.s32 0, %v5684
        %v5686 = vsel %vm5676, %v5685, %v5684
        %vm5687 = vcmp.lt.s32.totalorder %v420, 0
        %v5688 = vsub.s32 0, %v420
        %v5689 = vsel %vm5687, %v5688, %v420
        %v5690 = vmul.u32.u64.compose %v5689, 2863311531
        %v5691 = vextract.low.u32 %v5690
        %v5692 = vextract.high.u32 %v5690
        %v5693 = vshrl.u32 %v5692, 3
        %v5694 = vmul.u32 %v5693, 12
        %v5695 = vsub.s32 %v5689, %v5694
        %v5696 = vsub.s32 0, %v5695
        %v5697 = vsel %vm5687, %v5696, %v5695
        %vm5698 = vcmp.lt.s32.totalorder %v421, 0
        %v5699 = vsub.s32 0, %v421
        %v5700 = vsel %vm5698, %v5699, %v421
        %v5701 = vmul.u32.u64.compose %v5700, 2863311531
        %v5702 = vextract.low.u32 %v5701
        %v5703 = vextract.high.u32 %v5701
        %v5704 = vshrl.u32 %v5703, 3
        %v5705 = vmul.u32 %v5704, 12
        %v5706 = vsub.s32 %v5700, %v5705
        %v5707 = vsub.s32 0, %v5706
        %v5708 = vsel %vm5698, %v5707, %v5706
        %vm5709 = vcmp.lt.s32.totalorder %v422, 0
        %v5710 = vsub.s32 0, %v422
        %v5711 = vsel %vm5709, %v5710, %v422
        %v5712 = vmul.u32.u64.compose %v5711, 2863311531
        %v5713 = vextract.low.u32 %v5712
        %v5714 = vextract.high.u32 %v5712
        %v5715 = vshrl.u32 %v5714, 3
        %v5716 = vmul.u32 %v5715, 12
        %v5717 = vsub.s32 %v5711, %v5716
        %v5718 = vsub.s32 0, %v5717
        %v5719 = vsel %vm5709, %v5718, %v5717
        %vm5720 = vcmp.lt.s32.totalorder %v423, 0
        %v5721 = vsub.s32 0, %v423
        %v5722 = vsel %vm5720, %v5721, %v423
        %v5723 = vmul.u32.u64.compose %v5722, 2863311531
        %v5724 = vextract.low.u32 %v5723
        %v5725 = vextract.high.u32 %v5723
        %v5726 = vshrl.u32 %v5725, 3
        %v5727 = vmul.u32 %v5726, 12
        %v5728 = vsub.s32 %v5722, %v5727
        %v5729 = vsub.s32 0, %v5728
        %v5730 = vsel %vm5720, %v5729, %v5728
        %vm5731 = vcmp.ne.s32.totalorder %v5609, 0
        %vm5732 = vcmp.ne.s32.totalorder %v5620, 0
        %vm5733 = vcmp.ne.s32.totalorder %v5631, 0
        %vm5734 = vcmp.ne.s32.totalorder %v5642, 0
        %vm5735 = vcmp.ne.s32.totalorder %v5653, 0
        %vm5736 = vcmp.ne.s32.totalorder %v5664, 0
        %vm5737 = vcmp.ne.s32.totalorder %v5675, 0
        %vm5738 = vcmp.ne.s32.totalorder %v5686, 0
        %vm5739 = vcmp.ne.s32.totalorder %v5697, 0
        %vm5740 = vcmp.ne.s32.totalorder %v5708, 0
        %vm5741 = vcmp.ne.s32.totalorder %v5719, 0
        %vm5742 = vcmp.ne.s32.totalorder %v5730, 0
        %vm5743 = vcmp.lt.s32.totalorder %v5609, 0
        %vm5744 = vcmp.lt.s32.totalorder %v5620, 0
        %vm5745 = vcmp.lt.s32.totalorder %v5631, 0
        %vm5746 = vcmp.lt.s32.totalorder %v5642, 0
        %vm5747 = vcmp.lt.s32.totalorder %v5653, 0
        %vm5748 = vcmp.lt.s32.totalorder %v5664, 0
        %vm5749 = vcmp.lt.s32.totalorder %v5675, 0
        %vm5750 = vcmp.lt.s32.totalorder %v5686, 0
        %vm5751 = vcmp.lt.s32.totalorder %v5697, 0
        %vm5752 = vcmp.lt.s32.totalorder %v5708, 0
        %vm5753 = vcmp.lt.s32.totalorder %v5719, 0
        %vm5754 = vcmp.lt.s32.totalorder %v5730, 0
        %vm5755 = vmand %vm5743, %vm5731
        %vm5756 = vmand %vm5744, %vm5732
        %vm5757 = vmand %vm5745, %vm5733
        %vm5758 = vmand %vm5746, %vm5734
        %vm5759 = vmand %vm5747, %vm5735
        %vm5760 = vmand %vm5748, %vm5736
        %vm5761 = vmand %vm5749, %vm5737
        %vm5762 = vmand %vm5750, %vm5738
        %vm5763 = vmand %vm5751, %vm5739
        %vm5764 = vmand %vm5752, %vm5740
        %vm5765 = vmand %vm5753, %vm5741
        %vm5766 = vmand %vm5754, %vm5742
        %v5767 = vadd.s32 %v5609, 12
        %v5768 = vadd.s32 %v5620, 12
        %v5769 = vadd.s32 %v5631, 12
        %v5770 = vadd.s32 %v5642, 12
        %v5771 = vadd.s32 %v5653, 12
        %v5772 = vadd.s32 %v5664, 12
        %v5773 = vadd.s32 %v5675, 12
        %v5774 = vadd.s32 %v5686, 12
        %v5775 = vadd.s32 %v5697, 12
        %v5776 = vadd.s32 %v5708, 12
        %v5777 = vadd.s32 %v5719, 12
        %v5778 = vadd.s32 %v5730, 12
        %v5779 = vsel %vm5755, %v5767, %v5609
        %v5780 = vsel %vm5756, %v5768, %v5620
        %v5781 = vsel %vm5757, %v5769, %v5631
        %v5782 = vsel %vm5758, %v5770, %v5642
        %v5783 = vsel %vm5759, %v5771, %v5653
        %v5784 = vsel %vm5760, %v5772, %v5664
        %v5785 = vsel %vm5761, %v5773, %v5675
        %v5786 = vsel %vm5762, %v5774, %v5686
        %v5787 = vsel %vm5763, %v5775, %v5697
        %v5788 = vsel %vm5764, %v5776, %v5708
        %v5789 = vsel %vm5765, %v5777, %v5719
        %v5790 = vsel %vm5766, %v5778, %v5730
        %vm5791 = vcmp.ne.s32.totalorder %v5779, 0
        %vm5792 = vcmp.ne.s32.totalorder %v5780, 0
        %vm5793 = vcmp.ne.s32.totalorder %v5781, 0
        %vm5794 = vcmp.ne.s32.totalorder %v5782, 0
        %vm5795 = vcmp.ne.s32.totalorder %v5783, 0
        %vm5796 = vcmp.ne.s32.totalorder %v5784, 0
        %vm5797 = vcmp.ne.s32.totalorder %v5785, 0
        %vm5798 = vcmp.ne.s32.totalorder %v5786, 0
        %vm5799 = vcmp.ne.s32.totalorder %v5787, 0
        %vm5800 = vcmp.ne.s32.totalorder %v5788, 0
        %vm5801 = vcmp.ne.s32.totalorder %v5789, 0
        %vm5802 = vcmp.ne.s32.totalorder %v5790, 0
        %v5993 = vrot.slane %v5407, 7
        %v5994 = vrot.slane %v5409, 6
        %v5995 = vsel %vm4740, %v5994, %v5993
        %v5996 = vrot.slane %v5411, 5
        %v5997 = vsel %vm4742, %v5996, %v5995
        %v5998 = vrot.slane %v5413, 4
        %v5999 = vsel %vm4744, %v5998, %v5997
        %v6000 = vrot.slane %v5415, 3
        %v6001 = vsel %vm4746, %v6000, %v5999
        %v6002 = vrot.slane %v5417, 2
        %v6003 = vsel %vm4748, %v6002, %v6001
        %v6004 = vrot.slane %v5419, 1
        %v6005 = vsel %vm4750, %v6004, %v6003
        %v6006 = vrot.slane %v5408, 7
        %v6007 = vrot.slane %v5410, 6
        %v6008 = vsel %vm4740, %v6007, %v6006
        %v6009 = vrot.slane %v5412, 5
        %v6010 = vsel %vm4742, %v6009, %v6008
        %v6011 = vrot.slane %v5414, 4
        %v6012 = vsel %vm4744, %v6011, %v6010
        %v6013 = vrot.slane %v5416, 3
        %v6014 = vsel %vm4746, %v6013, %v6012
        %v6015 = vrot.slane %v5418, 2
        %v6016 = vsel %vm4748, %v6015, %v6014
        %v6017 = vrot.slane %v5420, 1
        %v6018 = vsel %vm4750, %v6017, %v6016
        %v6019 = vrot.slane %v5423, 7
        %v6020 = vsel %vm4738, %v6019, %v5421
        %v6021 = vrot.slane %v5425, 6
        %v6022 = vsel %vm4740, %v6021, %v6020
        %v6023 = vrot.slane %v5427, 5
        %v6024 = vsel %vm4742, %v6023, %v6022
        %v6025 = vrot.slane %v5429, 4
        %v6026 = vsel %vm4744, %v6025, %v6024
        %v6027 = vrot.slane %v5431, 3
        %v6028 = vsel %vm4746, %v6027, %v6026
        %v6029 = vrot.slane %v5433, 2
        %v6030 = vsel %vm4748, %v6029, %v6028
        %v6031 = vrot.slane %v5435, 1
        %v6032 = vsel %vm4750, %v6031, %v6030
        %v6033 = vrot.slane %v5424, 7
        %v6034 = vsel %vm4738, %v6033, %v5422
        %v6035 = vrot.slane %v5426, 6
        %v6036 = vsel %vm4740, %v6035, %v6034
        %v6037 = vrot.slane %v5428, 5
        %v6038 = vsel %vm4742, %v6037, %v6036
        %v6039 = vrot.slane %v5430, 4
        %v6040 = vsel %vm4744, %v6039, %v6038
        %v6041 = vrot.slane %v5432, 3
        %v6042 = vsel %vm4746, %v6041, %v6040
        %v6043 = vrot.slane %v5434, 2
        %v6044 = vsel %vm4748, %v6043, %v6042
        %v6045 = vrot.slane %v5436, 1
        %v6046 = vsel %vm4750, %v6045, %v6044
        %v6047 = vrot.slane %v5439, 7
        %v6048 = vsel %vm4738, %v6047, %v5437
        %v6049 = vrot.slane %v5441, 6
        %v6050 = vsel %vm4740, %v6049, %v6048
        %v6051 = vrot.slane %v5443, 5
        %v6052 = vsel %vm4742, %v6051, %v6050
        %v6053 = vrot.slane %v5445, 4
        %v6054 = vsel %vm4744, %v6053, %v6052
        %v6055 = vrot.slane %v5447, 3
        %v6056 = vsel %vm4746, %v6055, %v6054
        %v6057 = vrot.slane %v5449, 2
        %v6058 = vsel %vm4748, %v6057, %v6056
        %v6059 = vrot.slane %v5451, 1
        %v6060 = vsel %vm4750, %v6059, %v6058
        %v6061 = vrot.slane %v5440, 7
        %v6062 = vsel %vm4738, %v6061, %v5438
        %v6063 = vrot.slane %v5442, 6
        %v6064 = vsel %vm4740, %v6063, %v6062
        %v6065 = vrot.slane %v5444, 5
        %v6066 = vsel %vm4742, %v6065, %v6064
        %v6067 = vrot.slane %v5446, 4
        %v6068 = vsel %vm4744, %v6067, %v6066
        %v6069 = vrot.slane %v5448, 3
        %v6070 = vsel %vm4746, %v6069, %v6068
        %v6071 = vrot.slane %v5450, 2
        %v6072 = vsel %vm4748, %v6071, %v6070
        %v6073 = vrot.slane %v5452, 1
        %v6074 = vsel %vm4750, %v6073, %v6072
        %v6075 = vrot.slane %v5455, 7
        %v6076 = vsel %vm4738, %v6075, %v5453
        %v6077 = vrot.slane %v5457, 6
        %v6078 = vsel %vm4740, %v6077, %v6076
        %v6079 = vrot.slane %v5459, 5
        %v6080 = vsel %vm4742, %v6079, %v6078
        %v6081 = vrot.slane %v5461, 4
        %v6082 = vsel %vm4744, %v6081, %v6080
        %v6083 = vrot.slane %v5463, 3
        %v6084 = vsel %vm4746, %v6083, %v6082
        %v6085 = vrot.slane %v5465, 2
        %v6086 = vsel %vm4748, %v6085, %v6084
        %v6087 = vrot.slane %v5467, 1
        %v6088 = vsel %vm4750, %v6087, %v6086
        %v6089 = vrot.slane %v5456, 7
        %v6090 = vsel %vm4738, %v6089, %v5454
        %v6091 = vrot.slane %v5458, 6
        %v6092 = vsel %vm4740, %v6091, %v6090
        %v6093 = vrot.slane %v5460, 5
        %v6094 = vsel %vm4742, %v6093, %v6092
        %v6095 = vrot.slane %v5462, 4
        %v6096 = vsel %vm4744, %v6095, %v6094
        %v6097 = vrot.slane %v5464, 3
        %v6098 = vsel %vm4746, %v6097, %v6096
        %v6099 = vrot.slane %v5466, 2
        %v6100 = vsel %vm4748, %v6099, %v6098
        %v6101 = vrot.slane %v5468, 1
        %v6102 = vsel %vm4750, %v6101, %v6100
        %v6103 = vrot.slane %v5471, 7
        %v6104 = vsel %vm4738, %v6103, %v5469
        %v6105 = vrot.slane %v5473, 6
        %v6106 = vsel %vm4740, %v6105, %v6104
        %v6107 = vrot.slane %v5475, 5
        %v6108 = vsel %vm4742, %v6107, %v6106
        %v6109 = vrot.slane %v5477, 4
        %v6110 = vsel %vm4744, %v6109, %v6108
        %v6111 = vrot.slane %v5479, 3
        %v6112 = vsel %vm4746, %v6111, %v6110
        %v6113 = vrot.slane %v5481, 2
        %v6114 = vsel %vm4748, %v6113, %v6112
        %v6115 = vrot.slane %v5483, 1
        %v6116 = vsel %vm4750, %v6115, %v6114
        %v6117 = vrot.slane %v5472, 7
        %v6118 = vsel %vm4738, %v6117, %v5470
        %v6119 = vrot.slane %v5474, 6
        %v6120 = vsel %vm4740, %v6119, %v6118
        %v6121 = vrot.slane %v5476, 5
        %v6122 = vsel %vm4742, %v6121, %v6120
        %v6123 = vrot.slane %v5478, 4
        %v6124 = vsel %vm4744, %v6123, %v6122
        %v6125 = vrot.slane %v5480, 3
        %v6126 = vsel %vm4746, %v6125, %v6124
        %v6127 = vrot.slane %v5482, 2
        %v6128 = vsel %vm4748, %v6127, %v6126
        %v6129 = vrot.slane %v5484, 1
        %v6130 = vsel %vm4750, %v6129, %v6128
        %v6131 = vrot.slane %v5487, 7
        %v6132 = vsel %vm4738, %v6131, %v5485
        %v6133 = vrot.slane %v5489, 6
        %v6134 = vsel %vm4740, %v6133, %v6132
        %v6135 = vrot.slane %v5491, 5
        %v6136 = vsel %vm4742, %v6135, %v6134
        %v6137 = vrot.slane %v5493, 4
        %v6138 = vsel %vm4744, %v6137, %v6136
        %v6139 = vrot.slane %v5495, 3
        %v6140 = vsel %vm4746, %v6139, %v6138
        %v6141 = vrot.slane %v5497, 2
        %v6142 = vsel %vm4748, %v6141, %v6140
        %v6143 = vrot.slane %v5499, 1
        %v6144 = vsel %vm4750, %v6143, %v6142
        %v6145 = vrot.slane %v5488, 7
        %v6146 = vsel %vm4738, %v6145, %v5486
        %v6147 = vrot.slane %v5490, 6
        %v6148 = vsel %vm4740, %v6147, %v6146
        %v6149 = vrot.slane %v5492, 5
        %v6150 = vsel %vm4742, %v6149, %v6148
        %v6151 = vrot.slane %v5494, 4
        %v6152 = vsel %vm4744, %v6151, %v6150
        %v6153 = vrot.slane %v5496, 3
        %v6154 = vsel %vm4746, %v6153, %v6152
        %v6155 = vrot.slane %v5498, 2
        %v6156 = vsel %vm4748, %v6155, %v6154
        %v6157 = vrot.slane %v5500, 1
        %v6158 = vsel %vm4750, %v6157, %v6156
        %v6159 = vrot.slane %v5503, 7
        %v6160 = vsel %vm4738, %v6159, %v5501
        %v6161 = vrot.slane %v5505, 6
        %v6162 = vsel %vm4740, %v6161, %v6160
        %v6163 = vrot.slane %v5507, 5
        %v6164 = vsel %vm4742, %v6163, %v6162
        %v6165 = vrot.slane %v5509, 4
        %v6166 = vsel %vm4744, %v6165, %v6164
        %v6167 = vrot.slane %v5511, 3
        %v6168 = vsel %vm4746, %v6167, %v6166
        %v6169 = vrot.slane %v5513, 2
        %v6170 = vsel %vm4748, %v6169, %v6168
        %v6171 = vrot.slane %v5515, 1
        %v6172 = vsel %vm4750, %v6171, %v6170
        %v6173 = vrot.slane %v5504, 7
        %v6174 = vsel %vm4738, %v6173, %v5502
        %v6175 = vrot.slane %v5506, 6
        %v6176 = vsel %vm4740, %v6175, %v6174
        %v6177 = vrot.slane %v5508, 5
        %v6178 = vsel %vm4742, %v6177, %v6176
        %v6179 = vrot.slane %v5510, 4
        %v6180 = vsel %vm4744, %v6179, %v6178
        %v6181 = vrot.slane %v5512, 3
        %v6182 = vsel %vm4746, %v6181, %v6180
        %v6183 = vrot.slane %v5514, 2
        %v6184 = vsel %vm4748, %v6183, %v6182
        %v6185 = vrot.slane %v5516, 1
        %v6186 = vsel %vm4750, %v6185, %v6184
        %v6187 = vrot.slane %v5519, 7
        %v6188 = vsel %vm4738, %v6187, %v5517
        %v6189 = vrot.slane %v5521, 6
        %v6190 = vsel %vm4740, %v6189, %v6188
        %v6191 = vrot.slane %v5523, 5
        %v6192 = vsel %vm4742, %v6191, %v6190
        %v6193 = vrot.slane %v5525, 4
        %v6194 = vsel %vm4744, %v6193, %v6192
        %v6195 = vrot.slane %v5527, 3
        %v6196 = vsel %vm4746, %v6195, %v6194
        %v6197 = vrot.slane %v5529, 2
        %v6198 = vsel %vm4748, %v6197, %v6196
        %v6199 = vrot.slane %v5531, 1
        %v6200 = vsel %vm4750, %v6199, %v6198
        %v6201 = vrot.slane %v5520, 7
        %v6202 = vsel %vm4738, %v6201, %v5518
        %v6203 = vrot.slane %v5522, 6
        %v6204 = vsel %vm4740, %v6203, %v6202
        %v6205 = vrot.slane %v5524, 5
        %v6206 = vsel %vm4742, %v6205, %v6204
        %v6207 = vrot.slane %v5526, 4
        %v6208 = vsel %vm4744, %v6207, %v6206
        %v6209 = vrot.slane %v5528, 3
        %v6210 = vsel %vm4746, %v6209, %v6208
        %v6211 = vrot.slane %v5530, 2
        %v6212 = vsel %vm4748, %v6211, %v6210
        %v6213 = vrot.slane %v5532, 1
        %v6214 = vsel %vm4750, %v6213, %v6212
        %v6215 = vrot.slane %v5535, 7
        %v6216 = vsel %vm4738, %v6215, %v5533
        %v6217 = vrot.slane %v5537, 6
        %v6218 = vsel %vm4740, %v6217, %v6216
        %v6219 = vrot.slane %v5539, 5
        %v6220 = vsel %vm4742, %v6219, %v6218
        %v6221 = vrot.slane %v5541, 4
        %v6222 = vsel %vm4744, %v6221, %v6220
        %v6223 = vrot.slane %v5543, 3
        %v6224 = vsel %vm4746, %v6223, %v6222
        %v6225 = vrot.slane %v5545, 2
        %v6226 = vsel %vm4748, %v6225, %v6224
        %v6227 = vrot.slane %v5547, 1
        %v6228 = vsel %vm4750, %v6227, %v6226
        %v6229 = vrot.slane %v5536, 7
        %v6230 = vsel %vm4738, %v6229, %v5534
        %v6231 = vrot.slane %v5538, 6
        %v6232 = vsel %vm4740, %v6231, %v6230
        %v6233 = vrot.slane %v5540, 5
        %v6234 = vsel %vm4742, %v6233, %v6232
        %v6235 = vrot.slane %v5542, 4
        %v6236 = vsel %vm4744, %v6235, %v6234
        %v6237 = vrot.slane %v5544, 3
        %v6238 = vsel %vm4746, %v6237, %v6236
        %v6239 = vrot.slane %v5546, 2
        %v6240 = vsel %vm4748, %v6239, %v6238
        %v6241 = vrot.slane %v5548, 1
        %v6242 = vsel %vm4750, %v6241, %v6240
        %v6243 = vrot.slane %v5551, 7
        %v6244 = vsel %vm4738, %v6243, %v5549
        %v6245 = vrot.slane %v5553, 6
        %v6246 = vsel %vm4740, %v6245, %v6244
        %v6247 = vrot.slane %v5555, 5
        %v6248 = vsel %vm4742, %v6247, %v6246
        %v6249 = vrot.slane %v5557, 4
        %v6250 = vsel %vm4744, %v6249, %v6248
        %v6251 = vrot.slane %v5559, 3
        %v6252 = vsel %vm4746, %v6251, %v6250
        %v6253 = vrot.slane %v5561, 2
        %v6254 = vsel %vm4748, %v6253, %v6252
        %v6255 = vrot.slane %v5563, 1
        %v6256 = vsel %vm4750, %v6255, %v6254
        %v6257 = vrot.slane %v5552, 7
        %v6258 = vsel %vm4738, %v6257, %v5550
        %v6259 = vrot.slane %v5554, 6
        %v6260 = vsel %vm4740, %v6259, %v6258
        %v6261 = vrot.slane %v5556, 5
        %v6262 = vsel %vm4742, %v6261, %v6260
        %v6263 = vrot.slane %v5558, 4
        %v6264 = vsel %vm4744, %v6263, %v6262
        %v6265 = vrot.slane %v5560, 3
        %v6266 = vsel %vm4746, %v6265, %v6264
        %v6267 = vrot.slane %v5562, 2
        %v6268 = vsel %vm4748, %v6267, %v6266
        %v6269 = vrot.slane %v5564, 1
        %v6270 = vsel %vm4750, %v6269, %v6268
        %v6271 = vrot.slane %v5567, 7
        %v6272 = vsel %vm4738, %v6271, %v5565
        %v6273 = vrot.slane %v5569, 6
        %v6274 = vsel %vm4740, %v6273, %v6272
        %v6275 = vrot.slane %v5571, 5
        %v6276 = vsel %vm4742, %v6275, %v6274
        %v6277 = vrot.slane %v5573, 4
        %v6278 = vsel %vm4744, %v6277, %v6276
        %v6279 = vrot.slane %v5575, 3
        %v6280 = vsel %vm4746, %v6279, %v6278
        %v6281 = vrot.slane %v5577, 2
        %v6282 = vsel %vm4748, %v6281, %v6280
        %v6283 = vrot.slane %v5579, 1
        %v6284 = vsel %vm4750, %v6283, %v6282
        %v6285 = vrot.slane %v5568, 7
        %v6286 = vsel %vm4738, %v6285, %v5566
        %v6287 = vrot.slane %v5570, 6
        %v6288 = vsel %vm4740, %v6287, %v6286
        %v6289 = vrot.slane %v5572, 5
        %v6290 = vsel %vm4742, %v6289, %v6288
        %v6291 = vrot.slane %v5574, 4
        %v6292 = vsel %vm4744, %v6291, %v6290
        %v6293 = vrot.slane %v5576, 3
        %v6294 = vsel %vm4746, %v6293, %v6292
        %v6295 = vrot.slane %v5578, 2
        %v6296 = vsel %vm4748, %v6295, %v6294
        %v6297 = vrot.slane %v5580, 1
        %v6298 = vsel %vm4750, %v6297, %v6296
        %v6299 = vrot.slane %v5583, 7
        %v6300 = vsel %vm4738, %v6299, %v5581
        %v6301 = vrot.slane %v5585, 6
        %v6302 = vsel %vm4740, %v6301, %v6300
        %v6303 = vrot.slane %v5587, 5
        %v6304 = vsel %vm4742, %v6303, %v6302
        %v6305 = vrot.slane %v5589, 4
        %v6306 = vsel %vm4744, %v6305, %v6304
        %v6307 = vrot.slane %v5591, 3
        %v6308 = vsel %vm4746, %v6307, %v6306
        %v6309 = vrot.slane %v5593, 2
        %v6310 = vsel %vm4748, %v6309, %v6308
        %v6311 = vrot.slane %v5595, 1
        %v6312 = vsel %vm4750, %v6311, %v6310
        %v6313 = vrot.slane %v5584, 7
        %v6314 = vsel %vm4738, %v6313, %v5582
        %v6315 = vrot.slane %v5586, 6
        %v6316 = vsel %vm4740, %v6315, %v6314
        %v6317 = vrot.slane %v5588, 5
        %v6318 = vsel %vm4742, %v6317, %v6316
        %v6319 = vrot.slane %v5590, 4
        %v6320 = vsel %vm4744, %v6319, %v6318
        %v6321 = vrot.slane %v5592, 3
        %v6322 = vsel %vm4746, %v6321, %v6320
        %v6323 = vrot.slane %v5594, 2
        %v6324 = vsel %vm4748, %v6323, %v6322
        %v6325 = vrot.slane %v5596, 1
        %v6326 = vsel %vm4750, %v6325, %v6324
        %v6351 = vsel %vm868, 0.0, %v6005
        %v6352 = vsel %vm868, 0.0, %v6018
        %v6353 = vsel %vm5791, 1, 0
        %v6354 = vsel %vm5792, 1, 0
        %v6355 = vsel %vm5793, 1, 0
        %v6356 = vsel %vm5794, 1, 0
        %v6357 = vsel %vm5795, 1, 0
        %v6358 = vsel %vm5796, 1, 0
        %v6359 = vsel %vm5797, 1, 0
        %v6360 = vsel %vm5798, 1, 0
        %v6361 = vsel %vm5799, 1, 0
        %v6362 = vsel %vm5800, 1, 0
        %v6363 = vsel %vm5801, 1, 0
        %v6364 = vsel %vm5802, 1, 0
        %vm6365 = vcmp.eq.s32.totalorder %v6353, 1
        %vm6366 = vcmp.eq.s32.totalorder %v6354, 1
        %vm6367 = vcmp.eq.s32.totalorder %v6355, 1
        %vm6368 = vcmp.eq.s32.totalorder %v6356, 1
        %vm6369 = vcmp.eq.s32.totalorder %v6357, 1
        %vm6370 = vcmp.eq.s32.totalorder %v6358, 1
        %vm6371 = vcmp.eq.s32.totalorder %v6359, 1
        %vm6372 = vcmp.eq.s32.totalorder %v6360, 1
        %vm6373 = vcmp.eq.s32.totalorder %v6361, 1
        %vm6374 = vcmp.eq.s32.totalorder %v6362, 1
        %vm6375 = vcmp.eq.s32.totalorder %v6363, 1
        %vm6376 = vcmp.eq.s32.totalorder %v6364, 1
        %v6377 = vsel %vm6365, %v6351, 0.0
        %v6378 = vsel %vm6365, %v6352, 0.0
        %v6379 = vsel %vm6366, %v6032, 0.0
        %v6380 = vsel %vm6366, %v6046, 0.0
        %v6381 = vsel %vm6367, %v6060, 0.0
        %v6382 = vsel %vm6367, %v6074, 0.0
        %v6383 = vsel %vm6368, %v6088, 0.0
        %v6384 = vsel %vm6368, %v6102, 0.0
        %v6385 = vsel %vm6369, %v6116, 0.0
        %v6386 = vsel %vm6369, %v6130, 0.0
        %v6387 = vsel %vm6370, %v6144, 0.0
        %v6388 = vsel %vm6370, %v6158, 0.0
        %v6389 = vsel %vm6371, %v6172, 0.0
        %v6390 = vsel %vm6371, %v6186, 0.0
        %v6391 = vsel %vm6372, %v6200, 0.0
        %v6392 = vsel %vm6372, %v6214, 0.0
        %v6393 = vsel %vm6373, %v6228, 0.0
        %v6394 = vsel %vm6373, %v6242, 0.0
        %v6395 = vsel %vm6374, %v6256, 0.0
        %v6396 = vsel %vm6374, %v6270, 0.0
        %v6397 = vsel %vm6375, %v6284, 0.0
        %v6398 = vsel %vm6375, %v6298, 0.0
        %v6399 = vsel %vm6376, %v6312, 0.0
        %v6400 = vsel %vm6376, %v6326, 0.0
        %vm6401 = vcmp.ne.s32.totalorder %v5779, 11
        %vm6402 = vcmp.ne.s32.totalorder %v5780, 11
        %vm6403 = vcmp.ne.s32.totalorder %v5781, 11
        %vm6404 = vcmp.ne.s32.totalorder %v5782, 11
        %vm6405 = vcmp.ne.s32.totalorder %v5783, 11
        %vm6406 = vcmp.ne.s32.totalorder %v5784, 11
        %vm6407 = vcmp.ne.s32.totalorder %v5785, 11
        %vm6408 = vcmp.ne.s32.totalorder %v5786, 11
        %vm6409 = vcmp.ne.s32.totalorder %v5787, 11
        %vm6410 = vcmp.ne.s32.totalorder %v5788, 11
        %vm6411 = vcmp.ne.s32.totalorder %v5789, 11
        %vm6412 = vcmp.ne.s32.totalorder %v5790, 11
        %v6415 = vrot.slane %v5411, 7
        %v6416 = vsel %vm4738, %v6415, %v5409
        %v6417 = vrot.slane %v5413, 6
        %v6418 = vsel %vm4740, %v6417, %v6416
        %v6419 = vrot.slane %v5415, 5
        %v6420 = vsel %vm4742, %v6419, %v6418
        %v6421 = vrot.slane %v5417, 4
        %v6422 = vsel %vm4744, %v6421, %v6420
        %v6423 = vrot.slane %v5419, 3
        %v6424 = vsel %vm4746, %v6423, %v6422
        %v6425 = vrot.slane %v5421, 2
        %v6426 = vsel %vm4748, %v6425, %v6424
        %v6427 = vrot.slane %v5423, 1
        %v6428 = vsel %vm4750, %v6427, %v6426
        %v6429 = vrot.slane %v5412, 7
        %v6430 = vsel %vm4738, %v6429, %v5410
        %v6431 = vrot.slane %v5414, 6
        %v6432 = vsel %vm4740, %v6431, %v6430
        %v6433 = vrot.slane %v5416, 5
        %v6434 = vsel %vm4742, %v6433, %v6432
        %v6435 = vrot.slane %v5418, 4
        %v6436 = vsel %vm4744, %v6435, %v6434
        %v6437 = vrot.slane %v5420, 3
        %v6438 = vsel %vm4746, %v6437, %v6436
        %v6439 = vrot.slane %v5422, 2
        %v6440 = vsel %vm4748, %v6439, %v6438
        %v6441 = vrot.slane %v5424, 1
        %v6442 = vsel %vm4750, %v6441, %v6440
        %v6443 = vrot.slane %v5427, 7
        %v6444 = vsel %vm4738, %v6443, %v5425
        %v6445 = vrot.slane %v5429, 6
        %v6446 = vsel %vm4740, %v6445, %v6444
        %v6447 = vrot.slane %v5431, 5
        %v6448 = vsel %vm4742, %v6447, %v6446
        %v6449 = vrot.slane %v5433, 4
        %v6450 = vsel %vm4744, %v6449, %v6448
        %v6451 = vrot.slane %v5435, 3
        %v6452 = vsel %vm4746, %v6451, %v6450
        %v6453 = vrot.slane %v5437, 2
        %v6454 = vsel %vm4748, %v6453, %v6452
        %v6455 = vrot.slane %v5439, 1
        %v6456 = vsel %vm4750, %v6455, %v6454
        %v6457 = vrot.slane %v5428, 7
        %v6458 = vsel %vm4738, %v6457, %v5426
        %v6459 = vrot.slane %v5430, 6
        %v6460 = vsel %vm4740, %v6459, %v6458
        %v6461 = vrot.slane %v5432, 5
        %v6462 = vsel %vm4742, %v6461, %v6460
        %v6463 = vrot.slane %v5434, 4
        %v6464 = vsel %vm4744, %v6463, %v6462
        %v6465 = vrot.slane %v5436, 3
        %v6466 = vsel %vm4746, %v6465, %v6464
        %v6467 = vrot.slane %v5438, 2
        %v6468 = vsel %vm4748, %v6467, %v6466
        %v6469 = vrot.slane %v5440, 1
        %v6470 = vsel %vm4750, %v6469, %v6468
        %v6471 = vrot.slane %v5443, 7
        %v6472 = vsel %vm4738, %v6471, %v5441
        %v6473 = vrot.slane %v5445, 6
        %v6474 = vsel %vm4740, %v6473, %v6472
        %v6475 = vrot.slane %v5447, 5
        %v6476 = vsel %vm4742, %v6475, %v6474
        %v6477 = vrot.slane %v5449, 4
        %v6478 = vsel %vm4744, %v6477, %v6476
        %v6479 = vrot.slane %v5451, 3
        %v6480 = vsel %vm4746, %v6479, %v6478
        %v6481 = vrot.slane %v5453, 2
        %v6482 = vsel %vm4748, %v6481, %v6480
        %v6483 = vrot.slane %v5455, 1
        %v6484 = vsel %vm4750, %v6483, %v6482
        %v6485 = vrot.slane %v5444, 7
        %v6486 = vsel %vm4738, %v6485, %v5442
        %v6487 = vrot.slane %v5446, 6
        %v6488 = vsel %vm4740, %v6487, %v6486
        %v6489 = vrot.slane %v5448, 5
        %v6490 = vsel %vm4742, %v6489, %v6488
        %v6491 = vrot.slane %v5450, 4
        %v6492 = vsel %vm4744, %v6491, %v6490
        %v6493 = vrot.slane %v5452, 3
        %v6494 = vsel %vm4746, %v6493, %v6492
        %v6495 = vrot.slane %v5454, 2
        %v6496 = vsel %vm4748, %v6495, %v6494
        %v6497 = vrot.slane %v5456, 1
        %v6498 = vsel %vm4750, %v6497, %v6496
        %v6499 = vrot.slane %v5459, 7
        %v6500 = vsel %vm4738, %v6499, %v5457
        %v6501 = vrot.slane %v5461, 6
        %v6502 = vsel %vm4740, %v6501, %v6500
        %v6503 = vrot.slane %v5463, 5
        %v6504 = vsel %vm4742, %v6503, %v6502
        %v6505 = vrot.slane %v5465, 4
        %v6506 = vsel %vm4744, %v6505, %v6504
        %v6507 = vrot.slane %v5467, 3
        %v6508 = vsel %vm4746, %v6507, %v6506
        %v6509 = vrot.slane %v5469, 2
        %v6510 = vsel %vm4748, %v6509, %v6508
        %v6511 = vrot.slane %v5471, 1
        %v6512 = vsel %vm4750, %v6511, %v6510
        %v6513 = vrot.slane %v5460, 7
        %v6514 = vsel %vm4738, %v6513, %v5458
        %v6515 = vrot.slane %v5462, 6
        %v6516 = vsel %vm4740, %v6515, %v6514
        %v6517 = vrot.slane %v5464, 5
        %v6518 = vsel %vm4742, %v6517, %v6516
        %v6519 = vrot.slane %v5466, 4
        %v6520 = vsel %vm4744, %v6519, %v6518
        %v6521 = vrot.slane %v5468, 3
        %v6522 = vsel %vm4746, %v6521, %v6520
        %v6523 = vrot.slane %v5470, 2
        %v6524 = vsel %vm4748, %v6523, %v6522
        %v6525 = vrot.slane %v5472, 1
        %v6526 = vsel %vm4750, %v6525, %v6524
        %v6527 = vrot.slane %v5475, 7
        %v6528 = vsel %vm4738, %v6527, %v5473
        %v6529 = vrot.slane %v5477, 6
        %v6530 = vsel %vm4740, %v6529, %v6528
        %v6531 = vrot.slane %v5479, 5
        %v6532 = vsel %vm4742, %v6531, %v6530
        %v6533 = vrot.slane %v5481, 4
        %v6534 = vsel %vm4744, %v6533, %v6532
        %v6535 = vrot.slane %v5483, 3
        %v6536 = vsel %vm4746, %v6535, %v6534
        %v6537 = vrot.slane %v5485, 2
        %v6538 = vsel %vm4748, %v6537, %v6536
        %v6539 = vrot.slane %v5487, 1
        %v6540 = vsel %vm4750, %v6539, %v6538
        %v6541 = vrot.slane %v5476, 7
        %v6542 = vsel %vm4738, %v6541, %v5474
        %v6543 = vrot.slane %v5478, 6
        %v6544 = vsel %vm4740, %v6543, %v6542
        %v6545 = vrot.slane %v5480, 5
        %v6546 = vsel %vm4742, %v6545, %v6544
        %v6547 = vrot.slane %v5482, 4
        %v6548 = vsel %vm4744, %v6547, %v6546
        %v6549 = vrot.slane %v5484, 3
        %v6550 = vsel %vm4746, %v6549, %v6548
        %v6551 = vrot.slane %v5486, 2
        %v6552 = vsel %vm4748, %v6551, %v6550
        %v6553 = vrot.slane %v5488, 1
        %v6554 = vsel %vm4750, %v6553, %v6552
        %v6555 = vrot.slane %v5491, 7
        %v6556 = vsel %vm4738, %v6555, %v5489
        %v6557 = vrot.slane %v5493, 6
        %v6558 = vsel %vm4740, %v6557, %v6556
        %v6559 = vrot.slane %v5495, 5
        %v6560 = vsel %vm4742, %v6559, %v6558
        %v6561 = vrot.slane %v5497, 4
        %v6562 = vsel %vm4744, %v6561, %v6560
        %v6563 = vrot.slane %v5499, 3
        %v6564 = vsel %vm4746, %v6563, %v6562
        %v6565 = vrot.slane %v5501, 2
        %v6566 = vsel %vm4748, %v6565, %v6564
        %v6567 = vrot.slane %v5503, 1
        %v6568 = vsel %vm4750, %v6567, %v6566
        %v6569 = vrot.slane %v5492, 7
        %v6570 = vsel %vm4738, %v6569, %v5490
        %v6571 = vrot.slane %v5494, 6
        %v6572 = vsel %vm4740, %v6571, %v6570
        %v6573 = vrot.slane %v5496, 5
        %v6574 = vsel %vm4742, %v6573, %v6572
        %v6575 = vrot.slane %v5498, 4
        %v6576 = vsel %vm4744, %v6575, %v6574
        %v6577 = vrot.slane %v5500, 3
        %v6578 = vsel %vm4746, %v6577, %v6576
        %v6579 = vrot.slane %v5502, 2
        %v6580 = vsel %vm4748, %v6579, %v6578
        %v6581 = vrot.slane %v5504, 1
        %v6582 = vsel %vm4750, %v6581, %v6580
        %v6583 = vrot.slane %v5507, 7
        %v6584 = vsel %vm4738, %v6583, %v5505
        %v6585 = vrot.slane %v5509, 6
        %v6586 = vsel %vm4740, %v6585, %v6584
        %v6587 = vrot.slane %v5511, 5
        %v6588 = vsel %vm4742, %v6587, %v6586
        %v6589 = vrot.slane %v5513, 4
        %v6590 = vsel %vm4744, %v6589, %v6588
        %v6591 = vrot.slane %v5515, 3
        %v6592 = vsel %vm4746, %v6591, %v6590
        %v6593 = vrot.slane %v5517, 2
        %v6594 = vsel %vm4748, %v6593, %v6592
        %v6595 = vrot.slane %v5519, 1
        %v6596 = vsel %vm4750, %v6595, %v6594
        %v6597 = vrot.slane %v5508, 7
        %v6598 = vsel %vm4738, %v6597, %v5506
        %v6599 = vrot.slane %v5510, 6
        %v6600 = vsel %vm4740, %v6599, %v6598
        %v6601 = vrot.slane %v5512, 5
        %v6602 = vsel %vm4742, %v6601, %v6600
        %v6603 = vrot.slane %v5514, 4
        %v6604 = vsel %vm4744, %v6603, %v6602
        %v6605 = vrot.slane %v5516, 3
        %v6606 = vsel %vm4746, %v6605, %v6604
        %v6607 = vrot.slane %v5518, 2
        %v6608 = vsel %vm4748, %v6607, %v6606
        %v6609 = vrot.slane %v5520, 1
        %v6610 = vsel %vm4750, %v6609, %v6608
        %v6611 = vrot.slane %v5523, 7
        %v6612 = vsel %vm4738, %v6611, %v5521
        %v6613 = vrot.slane %v5525, 6
        %v6614 = vsel %vm4740, %v6613, %v6612
        %v6615 = vrot.slane %v5527, 5
        %v6616 = vsel %vm4742, %v6615, %v6614
        %v6617 = vrot.slane %v5529, 4
        %v6618 = vsel %vm4744, %v6617, %v6616
        %v6619 = vrot.slane %v5531, 3
        %v6620 = vsel %vm4746, %v6619, %v6618
        %v6621 = vrot.slane %v5533, 2
        %v6622 = vsel %vm4748, %v6621, %v6620
        %v6623 = vrot.slane %v5535, 1
        %v6624 = vsel %vm4750, %v6623, %v6622
        %v6625 = vrot.slane %v5524, 7
        %v6626 = vsel %vm4738, %v6625, %v5522
        %v6627 = vrot.slane %v5526, 6
        %v6628 = vsel %vm4740, %v6627, %v6626
        %v6629 = vrot.slane %v5528, 5
        %v6630 = vsel %vm4742, %v6629, %v6628
        %v6631 = vrot.slane %v5530, 4
        %v6632 = vsel %vm4744, %v6631, %v6630
        %v6633 = vrot.slane %v5532, 3
        %v6634 = vsel %vm4746, %v6633, %v6632
        %v6635 = vrot.slane %v5534, 2
        %v6636 = vsel %vm4748, %v6635, %v6634
        %v6637 = vrot.slane %v5536, 1
        %v6638 = vsel %vm4750, %v6637, %v6636
        %v6639 = vrot.slane %v5539, 7
        %v6640 = vsel %vm4738, %v6639, %v5537
        %v6641 = vrot.slane %v5541, 6
        %v6642 = vsel %vm4740, %v6641, %v6640
        %v6643 = vrot.slane %v5543, 5
        %v6644 = vsel %vm4742, %v6643, %v6642
        %v6645 = vrot.slane %v5545, 4
        %v6646 = vsel %vm4744, %v6645, %v6644
        %v6647 = vrot.slane %v5547, 3
        %v6648 = vsel %vm4746, %v6647, %v6646
        %v6649 = vrot.slane %v5549, 2
        %v6650 = vsel %vm4748, %v6649, %v6648
        %v6651 = vrot.slane %v5551, 1
        %v6652 = vsel %vm4750, %v6651, %v6650
        %v6653 = vrot.slane %v5540, 7
        %v6654 = vsel %vm4738, %v6653, %v5538
        %v6655 = vrot.slane %v5542, 6
        %v6656 = vsel %vm4740, %v6655, %v6654
        %v6657 = vrot.slane %v5544, 5
        %v6658 = vsel %vm4742, %v6657, %v6656
        %v6659 = vrot.slane %v5546, 4
        %v6660 = vsel %vm4744, %v6659, %v6658
        %v6661 = vrot.slane %v5548, 3
        %v6662 = vsel %vm4746, %v6661, %v6660
        %v6663 = vrot.slane %v5550, 2
        %v6664 = vsel %vm4748, %v6663, %v6662
        %v6665 = vrot.slane %v5552, 1
        %v6666 = vsel %vm4750, %v6665, %v6664
        %v6667 = vrot.slane %v5555, 7
        %v6668 = vsel %vm4738, %v6667, %v5553
        %v6669 = vrot.slane %v5557, 6
        %v6670 = vsel %vm4740, %v6669, %v6668
        %v6671 = vrot.slane %v5559, 5
        %v6672 = vsel %vm4742, %v6671, %v6670
        %v6673 = vrot.slane %v5561, 4
        %v6674 = vsel %vm4744, %v6673, %v6672
        %v6675 = vrot.slane %v5563, 3
        %v6676 = vsel %vm4746, %v6675, %v6674
        %v6677 = vrot.slane %v5565, 2
        %v6678 = vsel %vm4748, %v6677, %v6676
        %v6679 = vrot.slane %v5567, 1
        %v6680 = vsel %vm4750, %v6679, %v6678
        %v6681 = vrot.slane %v5556, 7
        %v6682 = vsel %vm4738, %v6681, %v5554
        %v6683 = vrot.slane %v5558, 6
        %v6684 = vsel %vm4740, %v6683, %v6682
        %v6685 = vrot.slane %v5560, 5
        %v6686 = vsel %vm4742, %v6685, %v6684
        %v6687 = vrot.slane %v5562, 4
        %v6688 = vsel %vm4744, %v6687, %v6686
        %v6689 = vrot.slane %v5564, 3
        %v6690 = vsel %vm4746, %v6689, %v6688
        %v6691 = vrot.slane %v5566, 2
        %v6692 = vsel %vm4748, %v6691, %v6690
        %v6693 = vrot.slane %v5568, 1
        %v6694 = vsel %vm4750, %v6693, %v6692
        %v6695 = vrot.slane %v5571, 7
        %v6696 = vsel %vm4738, %v6695, %v5569
        %v6697 = vrot.slane %v5573, 6
        %v6698 = vsel %vm4740, %v6697, %v6696
        %v6699 = vrot.slane %v5575, 5
        %v6700 = vsel %vm4742, %v6699, %v6698
        %v6701 = vrot.slane %v5577, 4
        %v6702 = vsel %vm4744, %v6701, %v6700
        %v6703 = vrot.slane %v5579, 3
        %v6704 = vsel %vm4746, %v6703, %v6702
        %v6705 = vrot.slane %v5581, 2
        %v6706 = vsel %vm4748, %v6705, %v6704
        %v6707 = vrot.slane %v5583, 1
        %v6708 = vsel %vm4750, %v6707, %v6706
        %v6709 = vrot.slane %v5572, 7
        %v6710 = vsel %vm4738, %v6709, %v5570
        %v6711 = vrot.slane %v5574, 6
        %v6712 = vsel %vm4740, %v6711, %v6710
        %v6713 = vrot.slane %v5576, 5
        %v6714 = vsel %vm4742, %v6713, %v6712
        %v6715 = vrot.slane %v5578, 4
        %v6716 = vsel %vm4744, %v6715, %v6714
        %v6717 = vrot.slane %v5580, 3
        %v6718 = vsel %vm4746, %v6717, %v6716
        %v6719 = vrot.slane %v5582, 2
        %v6720 = vsel %vm4748, %v6719, %v6718
        %v6721 = vrot.slane %v5584, 1
        %v6722 = vsel %vm4750, %v6721, %v6720
        %v6723 = vrot.slane %v5587, 7
        %v6724 = vsel %vm4738, %v6723, %v5585
        %v6725 = vrot.slane %v5589, 6
        %v6726 = vsel %vm4740, %v6725, %v6724
        %v6727 = vrot.slane %v5591, 5
        %v6728 = vsel %vm4742, %v6727, %v6726
        %v6729 = vrot.slane %v5593, 4
        %v6730 = vsel %vm4744, %v6729, %v6728
        %v6731 = vrot.slane %v5595, 3
        %v6732 = vsel %vm4746, %v6731, %v6730
        %v6733 = vrot.slane %v5597, 2
        %v6734 = vsel %vm4748, %v6733, %v6732
        %v6735 = vrot.slane %v5588, 7
        %v6736 = vsel %vm4738, %v6735, %v5586
        %v6737 = vrot.slane %v5590, 6
        %v6738 = vsel %vm4740, %v6737, %v6736
        %v6739 = vrot.slane %v5592, 5
        %v6740 = vsel %vm4742, %v6739, %v6738
        %v6741 = vrot.slane %v5594, 4
        %v6742 = vsel %vm4744, %v6741, %v6740
        %v6743 = vrot.slane %v5596, 3
        %v6744 = vsel %vm4746, %v6743, %v6742
        %v6745 = vrot.slane %v5598, 2
        %v6746 = vsel %vm4748, %v6745, %v6744
        %v6771 = vsel %vm1037, %v6734, 0.0
        %v6772 = vsel %vm1037, %v6746, 0.0
        %v6773 = vsel %vm6401, 1, 0
        %v6774 = vsel %vm6402, 1, 0
        %v6775 = vsel %vm6403, 1, 0
        %v6776 = vsel %vm6404, 1, 0
        %v6777 = vsel %vm6405, 1, 0
        %v6778 = vsel %vm6406, 1, 0
        %v6779 = vsel %vm6407, 1, 0
        %v6780 = vsel %vm6408, 1, 0
        %v6781 = vsel %vm6409, 1, 0
        %v6782 = vsel %vm6410, 1, 0
        %v6783 = vsel %vm6411, 1, 0
        %v6784 = vsel %vm6412, 1, 0
        %vm6785 = vcmp.eq.s32.totalorder %v6773, 1
        %vm6786 = vcmp.eq.s32.totalorder %v6774, 1
        %vm6787 = vcmp.eq.s32.totalorder %v6775, 1
        %vm6788 = vcmp.eq.s32.totalorder %v6776, 1
        %vm6789 = vcmp.eq.s32.totalorder %v6777, 1
        %vm6790 = vcmp.eq.s32.totalorder %v6778, 1
        %vm6791 = vcmp.eq.s32.totalorder %v6779, 1
        %vm6792 = vcmp.eq.s32.totalorder %v6780, 1
        %vm6793 = vcmp.eq.s32.totalorder %v6781, 1
        %vm6794 = vcmp.eq.s32.totalorder %v6782, 1
        %vm6795 = vcmp.eq.s32.totalorder %v6783, 1
        %vm6796 = vcmp.eq.s32.totalorder %v6784, 1
        %v6797 = vsel %vm6785, %v6428, 0.0
        %v6798 = vsel %vm6785, %v6442, 0.0
        %v6799 = vsel %vm6786, %v6456, 0.0
        %v6800 = vsel %vm6786, %v6470, 0.0
        %v6801 = vsel %vm6787, %v6484, 0.0
        %v6802 = vsel %vm6787, %v6498, 0.0
        %v6803 = vsel %vm6788, %v6512, 0.0
        %v6804 = vsel %vm6788, %v6526, 0.0
        %v6805 = vsel %vm6789, %v6540, 0.0
        %v6806 = vsel %vm6789, %v6554, 0.0
        %v6807 = vsel %vm6790, %v6568, 0.0
        %v6808 = vsel %vm6790, %v6582, 0.0
        %v6809 = vsel %vm6791, %v6596, 0.0
        %v6810 = vsel %vm6791, %v6610, 0.0
        %v6811 = vsel %vm6792, %v6624, 0.0
        %v6812 = vsel %vm6792, %v6638, 0.0
        %v6813 = vsel %vm6793, %v6652, 0.0
        %v6814 = vsel %vm6793, %v6666, 0.0
        %v6815 = vsel %vm6794, %v6680, 0.0
        %v6816 = vsel %vm6794, %v6694, 0.0
        %v6817 = vsel %vm6795, %v6708, 0.0
        %v6818 = vsel %vm6795, %v6722, 0.0
        %v6819 = vsel %vm6796, %v6771, 0.0
        %v6820 = vsel %vm6796, %v6772, 0.0
        %v6821 = vrot.slane %v5409, 7
        %v6822 = vsel %vm4738, %v6821, %v5407
        %v6823 = vrot.slane %v5411, 6
        %v6824 = vsel %vm4740, %v6823, %v6822
        %v6825 = vrot.slane %v5413, 5
        %v6826 = vsel %vm4742, %v6825, %v6824
        %v6827 = vrot.slane %v5415, 4
        %v6828 = vsel %vm4744, %v6827, %v6826
        %v6829 = vrot.slane %v5417, 3
        %v6830 = vsel %vm4746, %v6829, %v6828
        %v6831 = vrot.slane %v5419, 2
        %v6832 = vsel %vm4748, %v6831, %v6830
        %v6833 = vrot.slane %v5421, 1
        %v6834 = vsel %vm4750, %v6833, %v6832
        %v6835 = vrot.slane %v5410, 7
        %v6836 = vsel %vm4738, %v6835, %v5408
        %v6837 = vrot.slane %v5412, 6
        %v6838 = vsel %vm4740, %v6837, %v6836
        %v6839 = vrot.slane %v5414, 5
        %v6840 = vsel %vm4742, %v6839, %v6838
        %v6841 = vrot.slane %v5416, 4
        %v6842 = vsel %vm4744, %v6841, %v6840
        %v6843 = vrot.slane %v5418, 3
        %v6844 = vsel %vm4746, %v6843, %v6842
        %v6845 = vrot.slane %v5420, 2
        %v6846 = vsel %vm4748, %v6845, %v6844
        %v6847 = vrot.slane %v5422, 1
        %v6848 = vsel %vm4750, %v6847, %v6846
        %v6849 = vrot.slane %v5425, 7
        %v6850 = vsel %vm4738, %v6849, %v5423
        %v6851 = vrot.slane %v5427, 6
        %v6852 = vsel %vm4740, %v6851, %v6850
        %v6853 = vrot.slane %v5429, 5
        %v6854 = vsel %vm4742, %v6853, %v6852
        %v6855 = vrot.slane %v5431, 4
        %v6856 = vsel %vm4744, %v6855, %v6854
        %v6857 = vrot.slane %v5433, 3
        %v6858 = vsel %vm4746, %v6857, %v6856
        %v6859 = vrot.slane %v5435, 2
        %v6860 = vsel %vm4748, %v6859, %v6858
        %v6861 = vrot.slane %v5437, 1
        %v6862 = vsel %vm4750, %v6861, %v6860
        %v6863 = vrot.slane %v5426, 7
        %v6864 = vsel %vm4738, %v6863, %v5424
        %v6865 = vrot.slane %v5428, 6
        %v6866 = vsel %vm4740, %v6865, %v6864
        %v6867 = vrot.slane %v5430, 5
        %v6868 = vsel %vm4742, %v6867, %v6866
        %v6869 = vrot.slane %v5432, 4
        %v6870 = vsel %vm4744, %v6869, %v6868
        %v6871 = vrot.slane %v5434, 3
        %v6872 = vsel %vm4746, %v6871, %v6870
        %v6873 = vrot.slane %v5436, 2
        %v6874 = vsel %vm4748, %v6873, %v6872
        %v6875 = vrot.slane %v5438, 1
        %v6876 = vsel %vm4750, %v6875, %v6874
        %v6877 = vrot.slane %v5441, 7
        %v6878 = vsel %vm4738, %v6877, %v5439
        %v6879 = vrot.slane %v5443, 6
        %v6880 = vsel %vm4740, %v6879, %v6878
        %v6881 = vrot.slane %v5445, 5
        %v6882 = vsel %vm4742, %v6881, %v6880
        %v6883 = vrot.slane %v5447, 4
        %v6884 = vsel %vm4744, %v6883, %v6882
        %v6885 = vrot.slane %v5449, 3
        %v6886 = vsel %vm4746, %v6885, %v6884
        %v6887 = vrot.slane %v5451, 2
        %v6888 = vsel %vm4748, %v6887, %v6886
        %v6889 = vrot.slane %v5453, 1
        %v6890 = vsel %vm4750, %v6889, %v6888
        %v6891 = vrot.slane %v5442, 7
        %v6892 = vsel %vm4738, %v6891, %v5440
        %v6893 = vrot.slane %v5444, 6
        %v6894 = vsel %vm4740, %v6893, %v6892
        %v6895 = vrot.slane %v5446, 5
        %v6896 = vsel %vm4742, %v6895, %v6894
        %v6897 = vrot.slane %v5448, 4
        %v6898 = vsel %vm4744, %v6897, %v6896
        %v6899 = vrot.slane %v5450, 3
        %v6900 = vsel %vm4746, %v6899, %v6898
        %v6901 = vrot.slane %v5452, 2
        %v6902 = vsel %vm4748, %v6901, %v6900
        %v6903 = vrot.slane %v5454, 1
        %v6904 = vsel %vm4750, %v6903, %v6902
        %v6905 = vrot.slane %v5457, 7
        %v6906 = vsel %vm4738, %v6905, %v5455
        %v6907 = vrot.slane %v5459, 6
        %v6908 = vsel %vm4740, %v6907, %v6906
        %v6909 = vrot.slane %v5461, 5
        %v6910 = vsel %vm4742, %v6909, %v6908
        %v6911 = vrot.slane %v5463, 4
        %v6912 = vsel %vm4744, %v6911, %v6910
        %v6913 = vrot.slane %v5465, 3
        %v6914 = vsel %vm4746, %v6913, %v6912
        %v6915 = vrot.slane %v5467, 2
        %v6916 = vsel %vm4748, %v6915, %v6914
        %v6917 = vrot.slane %v5469, 1
        %v6918 = vsel %vm4750, %v6917, %v6916
        %v6919 = vrot.slane %v5458, 7
        %v6920 = vsel %vm4738, %v6919, %v5456
        %v6921 = vrot.slane %v5460, 6
        %v6922 = vsel %vm4740, %v6921, %v6920
        %v6923 = vrot.slane %v5462, 5
        %v6924 = vsel %vm4742, %v6923, %v6922
        %v6925 = vrot.slane %v5464, 4
        %v6926 = vsel %vm4744, %v6925, %v6924
        %v6927 = vrot.slane %v5466, 3
        %v6928 = vsel %vm4746, %v6927, %v6926
        %v6929 = vrot.slane %v5468, 2
        %v6930 = vsel %vm4748, %v6929, %v6928
        %v6931 = vrot.slane %v5470, 1
        %v6932 = vsel %vm4750, %v6931, %v6930
        %v6933 = vrot.slane %v5473, 7
        %v6934 = vsel %vm4738, %v6933, %v5471
        %v6935 = vrot.slane %v5475, 6
        %v6936 = vsel %vm4740, %v6935, %v6934
        %v6937 = vrot.slane %v5477, 5
        %v6938 = vsel %vm4742, %v6937, %v6936
        %v6939 = vrot.slane %v5479, 4
        %v6940 = vsel %vm4744, %v6939, %v6938
        %v6941 = vrot.slane %v5481, 3
        %v6942 = vsel %vm4746, %v6941, %v6940
        %v6943 = vrot.slane %v5483, 2
        %v6944 = vsel %vm4748, %v6943, %v6942
        %v6945 = vrot.slane %v5485, 1
        %v6946 = vsel %vm4750, %v6945, %v6944
        %v6947 = vrot.slane %v5474, 7
        %v6948 = vsel %vm4738, %v6947, %v5472
        %v6949 = vrot.slane %v5476, 6
        %v6950 = vsel %vm4740, %v6949, %v6948
        %v6951 = vrot.slane %v5478, 5
        %v6952 = vsel %vm4742, %v6951, %v6950
        %v6953 = vrot.slane %v5480, 4
        %v6954 = vsel %vm4744, %v6953, %v6952
        %v6955 = vrot.slane %v5482, 3
        %v6956 = vsel %vm4746, %v6955, %v6954
        %v6957 = vrot.slane %v5484, 2
        %v6958 = vsel %vm4748, %v6957, %v6956
        %v6959 = vrot.slane %v5486, 1
        %v6960 = vsel %vm4750, %v6959, %v6958
        %v6961 = vrot.slane %v5489, 7
        %v6962 = vsel %vm4738, %v6961, %v5487
        %v6963 = vrot.slane %v5491, 6
        %v6964 = vsel %vm4740, %v6963, %v6962
        %v6965 = vrot.slane %v5493, 5
        %v6966 = vsel %vm4742, %v6965, %v6964
        %v6967 = vrot.slane %v5495, 4
        %v6968 = vsel %vm4744, %v6967, %v6966
        %v6969 = vrot.slane %v5497, 3
        %v6970 = vsel %vm4746, %v6969, %v6968
        %v6971 = vrot.slane %v5499, 2
        %v6972 = vsel %vm4748, %v6971, %v6970
        %v6973 = vrot.slane %v5501, 1
        %v6974 = vsel %vm4750, %v6973, %v6972
        %v6975 = vrot.slane %v5490, 7
        %v6976 = vsel %vm4738, %v6975, %v5488
        %v6977 = vrot.slane %v5492, 6
        %v6978 = vsel %vm4740, %v6977, %v6976
        %v6979 = vrot.slane %v5494, 5
        %v6980 = vsel %vm4742, %v6979, %v6978
        %v6981 = vrot.slane %v5496, 4
        %v6982 = vsel %vm4744, %v6981, %v6980
        %v6983 = vrot.slane %v5498, 3
        %v6984 = vsel %vm4746, %v6983, %v6982
        %v6985 = vrot.slane %v5500, 2
        %v6986 = vsel %vm4748, %v6985, %v6984
        %v6987 = vrot.slane %v5502, 1
        %v6988 = vsel %vm4750, %v6987, %v6986
        %v6989 = vrot.slane %v5505, 7
        %v6990 = vsel %vm4738, %v6989, %v5503
        %v6991 = vrot.slane %v5507, 6
        %v6992 = vsel %vm4740, %v6991, %v6990
        %v6993 = vrot.slane %v5509, 5
        %v6994 = vsel %vm4742, %v6993, %v6992
        %v6995 = vrot.slane %v5511, 4
        %v6996 = vsel %vm4744, %v6995, %v6994
        %v6997 = vrot.slane %v5513, 3
        %v6998 = vsel %vm4746, %v6997, %v6996
        %v6999 = vrot.slane %v5515, 2
        %v7000 = vsel %vm4748, %v6999, %v6998
        %v7001 = vrot.slane %v5517, 1
        %v7002 = vsel %vm4750, %v7001, %v7000
        %v7003 = vrot.slane %v5506, 7
        %v7004 = vsel %vm4738, %v7003, %v5504
        %v7005 = vrot.slane %v5508, 6
        %v7006 = vsel %vm4740, %v7005, %v7004
        %v7007 = vrot.slane %v5510, 5
        %v7008 = vsel %vm4742, %v7007, %v7006
        %v7009 = vrot.slane %v5512, 4
        %v7010 = vsel %vm4744, %v7009, %v7008
        %v7011 = vrot.slane %v5514, 3
        %v7012 = vsel %vm4746, %v7011, %v7010
        %v7013 = vrot.slane %v5516, 2
        %v7014 = vsel %vm4748, %v7013, %v7012
        %v7015 = vrot.slane %v5518, 1
        %v7016 = vsel %vm4750, %v7015, %v7014
        %v7017 = vrot.slane %v5521, 7
        %v7018 = vsel %vm4738, %v7017, %v5519
        %v7019 = vrot.slane %v5523, 6
        %v7020 = vsel %vm4740, %v7019, %v7018
        %v7021 = vrot.slane %v5525, 5
        %v7022 = vsel %vm4742, %v7021, %v7020
        %v7023 = vrot.slane %v5527, 4
        %v7024 = vsel %vm4744, %v7023, %v7022
        %v7025 = vrot.slane %v5529, 3
        %v7026 = vsel %vm4746, %v7025, %v7024
        %v7027 = vrot.slane %v5531, 2
        %v7028 = vsel %vm4748, %v7027, %v7026
        %v7029 = vrot.slane %v5533, 1
        %v7030 = vsel %vm4750, %v7029, %v7028
        %v7031 = vrot.slane %v5522, 7
        %v7032 = vsel %vm4738, %v7031, %v5520
        %v7033 = vrot.slane %v5524, 6
        %v7034 = vsel %vm4740, %v7033, %v7032
        %v7035 = vrot.slane %v5526, 5
        %v7036 = vsel %vm4742, %v7035, %v7034
        %v7037 = vrot.slane %v5528, 4
        %v7038 = vsel %vm4744, %v7037, %v7036
        %v7039 = vrot.slane %v5530, 3
        %v7040 = vsel %vm4746, %v7039, %v7038
        %v7041 = vrot.slane %v5532, 2
        %v7042 = vsel %vm4748, %v7041, %v7040
        %v7043 = vrot.slane %v5534, 1
        %v7044 = vsel %vm4750, %v7043, %v7042
        %v7045 = vrot.slane %v5537, 7
        %v7046 = vsel %vm4738, %v7045, %v5535
        %v7047 = vrot.slane %v5539, 6
        %v7048 = vsel %vm4740, %v7047, %v7046
        %v7049 = vrot.slane %v5541, 5
        %v7050 = vsel %vm4742, %v7049, %v7048
        %v7051 = vrot.slane %v5543, 4
        %v7052 = vsel %vm4744, %v7051, %v7050
        %v7053 = vrot.slane %v5545, 3
        %v7054 = vsel %vm4746, %v7053, %v7052
        %v7055 = vrot.slane %v5547, 2
        %v7056 = vsel %vm4748, %v7055, %v7054
        %v7057 = vrot.slane %v5549, 1
        %v7058 = vsel %vm4750, %v7057, %v7056
        %v7059 = vrot.slane %v5538, 7
        %v7060 = vsel %vm4738, %v7059, %v5536
        %v7061 = vrot.slane %v5540, 6
        %v7062 = vsel %vm4740, %v7061, %v7060
        %v7063 = vrot.slane %v5542, 5
        %v7064 = vsel %vm4742, %v7063, %v7062
        %v7065 = vrot.slane %v5544, 4
        %v7066 = vsel %vm4744, %v7065, %v7064
        %v7067 = vrot.slane %v5546, 3
        %v7068 = vsel %vm4746, %v7067, %v7066
        %v7069 = vrot.slane %v5548, 2
        %v7070 = vsel %vm4748, %v7069, %v7068
        %v7071 = vrot.slane %v5550, 1
        %v7072 = vsel %vm4750, %v7071, %v7070
        %v7073 = vrot.slane %v5553, 7
        %v7074 = vsel %vm4738, %v7073, %v5551
        %v7075 = vrot.slane %v5555, 6
        %v7076 = vsel %vm4740, %v7075, %v7074
        %v7077 = vrot.slane %v5557, 5
        %v7078 = vsel %vm4742, %v7077, %v7076
        %v7079 = vrot.slane %v5559, 4
        %v7080 = vsel %vm4744, %v7079, %v7078
        %v7081 = vrot.slane %v5561, 3
        %v7082 = vsel %vm4746, %v7081, %v7080
        %v7083 = vrot.slane %v5563, 2
        %v7084 = vsel %vm4748, %v7083, %v7082
        %v7085 = vrot.slane %v5565, 1
        %v7086 = vsel %vm4750, %v7085, %v7084
        %v7087 = vrot.slane %v5554, 7
        %v7088 = vsel %vm4738, %v7087, %v5552
        %v7089 = vrot.slane %v5556, 6
        %v7090 = vsel %vm4740, %v7089, %v7088
        %v7091 = vrot.slane %v5558, 5
        %v7092 = vsel %vm4742, %v7091, %v7090
        %v7093 = vrot.slane %v5560, 4
        %v7094 = vsel %vm4744, %v7093, %v7092
        %v7095 = vrot.slane %v5562, 3
        %v7096 = vsel %vm4746, %v7095, %v7094
        %v7097 = vrot.slane %v5564, 2
        %v7098 = vsel %vm4748, %v7097, %v7096
        %v7099 = vrot.slane %v5566, 1
        %v7100 = vsel %vm4750, %v7099, %v7098
        %v7101 = vrot.slane %v5569, 7
        %v7102 = vsel %vm4738, %v7101, %v5567
        %v7103 = vrot.slane %v5571, 6
        %v7104 = vsel %vm4740, %v7103, %v7102
        %v7105 = vrot.slane %v5573, 5
        %v7106 = vsel %vm4742, %v7105, %v7104
        %v7107 = vrot.slane %v5575, 4
        %v7108 = vsel %vm4744, %v7107, %v7106
        %v7109 = vrot.slane %v5577, 3
        %v7110 = vsel %vm4746, %v7109, %v7108
        %v7111 = vrot.slane %v5579, 2
        %v7112 = vsel %vm4748, %v7111, %v7110
        %v7113 = vrot.slane %v5581, 1
        %v7114 = vsel %vm4750, %v7113, %v7112
        %v7115 = vrot.slane %v5570, 7
        %v7116 = vsel %vm4738, %v7115, %v5568
        %v7117 = vrot.slane %v5572, 6
        %v7118 = vsel %vm4740, %v7117, %v7116
        %v7119 = vrot.slane %v5574, 5
        %v7120 = vsel %vm4742, %v7119, %v7118
        %v7121 = vrot.slane %v5576, 4
        %v7122 = vsel %vm4744, %v7121, %v7120
        %v7123 = vrot.slane %v5578, 3
        %v7124 = vsel %vm4746, %v7123, %v7122
        %v7125 = vrot.slane %v5580, 2
        %v7126 = vsel %vm4748, %v7125, %v7124
        %v7127 = vrot.slane %v5582, 1
        %v7128 = vsel %vm4750, %v7127, %v7126
        %v7129 = vrot.slane %v5585, 7
        %v7130 = vsel %vm4738, %v7129, %v5583
        %v7131 = vrot.slane %v5587, 6
        %v7132 = vsel %vm4740, %v7131, %v7130
        %v7133 = vrot.slane %v5589, 5
        %v7134 = vsel %vm4742, %v7133, %v7132
        %v7135 = vrot.slane %v5591, 4
        %v7136 = vsel %vm4744, %v7135, %v7134
        %v7137 = vrot.slane %v5593, 3
        %v7138 = vsel %vm4746, %v7137, %v7136
        %v7139 = vrot.slane %v5595, 2
        %v7140 = vsel %vm4748, %v7139, %v7138
        %v7141 = vrot.slane %v5597, 1
        %v7142 = vsel %vm4750, %v7141, %v7140
        %v7143 = vrot.slane %v5586, 7
        %v7144 = vsel %vm4738, %v7143, %v5584
        %v7145 = vrot.slane %v5588, 6
        %v7146 = vsel %vm4740, %v7145, %v7144
        %v7147 = vrot.slane %v5590, 5
        %v7148 = vsel %vm4742, %v7147, %v7146
        %v7149 = vrot.slane %v5592, 4
        %v7150 = vsel %vm4744, %v7149, %v7148
        %v7151 = vrot.slane %v5594, 3
        %v7152 = vsel %vm4746, %v7151, %v7150
        %v7153 = vrot.slane %v5596, 2
        %v7154 = vsel %vm4748, %v7153, %v7152
        %v7155 = vrot.slane %v5598, 1
        %v7156 = vsel %vm4750, %v7155, %v7154
        %7157 = vrot.lane.b32.xlu0 %v6834, 64
        %v7158 = vpop.permute.xlu0 %7157
        %7159 = vrot.lane.b32.xlu0 %v6848, 64
        %v7160 = vpop.permute.xlu0 %7159
        %7161 = vrot.lane.b32.xlu0 %v6862, 64
        %v7162 = vpop.permute.xlu0 %7161
        %7163 = vrot.lane.b32.xlu0 %v6876, 64
        %v7164 = vpop.permute.xlu0 %7163
        %7165 = vrot.lane.b32.xlu0 %v6890, 64
        %v7166 = vpop.permute.xlu0 %7165
        %7167 = vrot.lane.b32.xlu0 %v6904, 64
        %v7168 = vpop.permute.xlu0 %7167
        %7169 = vrot.lane.b32.xlu0 %v6918, 64
        %v7170 = vpop.permute.xlu0 %7169
        %7171 = vrot.lane.b32.xlu0 %v6932, 64
        %v7172 = vpop.permute.xlu0 %7171
        %7173 = vrot.lane.b32.xlu0 %v6946, 64
        %v7174 = vpop.permute.xlu0 %7173
        %7175 = vrot.lane.b32.xlu0 %v6960, 64
        %v7176 = vpop.permute.xlu0 %7175
        %7177 = vrot.lane.b32.xlu0 %v6974, 64
        %v7178 = vpop.permute.xlu0 %7177
        %7179 = vrot.lane.b32.xlu0 %v6988, 64
        %v7180 = vpop.permute.xlu0 %7179
        %7181 = vrot.lane.b32.xlu0 %v7002, 64
        %v7182 = vpop.permute.xlu0 %7181
        %7183 = vrot.lane.b32.xlu0 %v7016, 64
        %v7184 = vpop.permute.xlu0 %7183
        %7185 = vrot.lane.b32.xlu0 %v7030, 64
        %v7186 = vpop.permute.xlu0 %7185
        %7187 = vrot.lane.b32.xlu0 %v7044, 64
        %v7188 = vpop.permute.xlu0 %7187
        %7189 = vrot.lane.b32.xlu0 %v7058, 64
        %v7190 = vpop.permute.xlu0 %7189
        %7191 = vrot.lane.b32.xlu0 %v7072, 64
        %v7192 = vpop.permute.xlu0 %7191
        %7193 = vrot.lane.b32.xlu0 %v7086, 64
        %v7194 = vpop.permute.xlu0 %7193
        %7195 = vrot.lane.b32.xlu0 %v7100, 64
        %v7196 = vpop.permute.xlu0 %7195
        %7197 = vrot.lane.b32.xlu0 %v7114, 64
        %v7198 = vpop.permute.xlu0 %7197
        %7199 = vrot.lane.b32.xlu0 %v7128, 64
        %v7200 = vpop.permute.xlu0 %7199
        %7201 = vrot.lane.b32.xlu0 %v7142, 64
        %v7202 = vpop.permute.xlu0 %7201
        %7203 = vrot.lane.b32.xlu0 %v7156, 64
        %v7204 = vpop.permute.xlu0 %7203
        %vm7205 = vcmask 523264
        %v7206 = vsel %vm7205, %v7158, %v7160
        %v7207 = vsel %vm7205, %v7162, %v7164
        %v7208 = vsel %vm7205, %v7166, %v7168
        %v7209 = vsel %vm7205, %v7170, %v7172
        %v7210 = vsel %vm7205, %v7174, %v7176
        %v7211 = vsel %vm7205, %v7178, %v7180
        %v7212 = vsel %vm7205, %v7182, %v7184
        %v7213 = vsel %vm7205, %v7186, %v7188
        %v7214 = vsel %vm7205, %v7190, %v7192
        %v7215 = vsel %vm7205, %v7194, %v7196
        %v7216 = vsel %vm7205, %v7198, %v7200
        %v7217 = vsel %vm7205, %v7202, %v7204
        %v7242 = vsel %vm7205, %v6378, %v7158
        %v7243 = vsel %vm7205, %v6380, %v7162
        %v7244 = vsel %vm7205, %v6382, %v7166
        %v7245 = vsel %vm7205, %v6384, %v7170
        %v7246 = vsel %vm7205, %v6386, %v7174
        %v7247 = vsel %vm7205, %v6388, %v7178
        %v7248 = vsel %vm7205, %v6390, %v7182
        %v7249 = vsel %vm7205, %v6392, %v7186
        %v7250 = vsel %vm7205, %v6394, %v7190
        %v7251 = vsel %vm7205, %v6396, %v7194
        %v7252 = vsel %vm7205, %v6398, %v7198
        %v7253 = vsel %vm7205, %v6400, %v7202
        %v7254 = vld [vmem:[%s3] sm:$0xff]
        %v7255 = vld [vmem:[%s3 + $0x8] sm:$0xff]
        %v7256 = vld [vmem:[%s3 + $0x10] sm:$0xff]
        %v7257 = vld [vmem:[%s3 + $0x18] sm:$0xff]
        %v7258 = vld [vmem:[%s3 + $0x20] sm:$0xff]
        %v7259 = vld [vmem:[%s3 + $0x28] sm:$0xff]
        %v7260 = vld [vmem:[%s3 + $0x30] sm:$0xff]
        %v7261 = vld [vmem:[%s3 + $0x38] sm:$0xff]
        %v7262 = vld [vmem:[%s3 + $0x40] sm:$0xff]
        %v7263 = vld [vmem:[%s3 + $0x48] sm:$0xff]
        %v7264 = vld [vmem:[%s3 + $0x50] sm:$0xff]
        %v7265 = vld [vmem:[%s3 + $0x58] sm:$0xff]
        %v7266 = vld [vmem:[%s3 + $0x60] sm:$0xff]
        %v7267 = vld [vmem:[%s3 + $0x68] sm:$0xff]
        %v7268 = vld [vmem:[%s3 + $0x70] sm:$0xff]
        %v7269 = vld [vmem:[%s3 + $0x78] sm:$0xff]
        %v7270 = vld [vmem:[%s3 + $0x80] sm:$0xff]
        %v7271 = vld [vmem:[%s3 + $0x88] sm:$0xff]
        %v7272 = vld [vmem:[%s3 + $0x90] sm:$0xff]
        %v7273 = vld [vmem:[%s3 + $0x98] sm:$0xff]
        %v7274 = vld [vmem:[%s3 + $0xa0] sm:$0xff]
        %v7275 = vld [vmem:[%s3 + $0xa8] sm:$0xff]
        %v7276 = vld [vmem:[%s3 + $0xb0] sm:$0xff]
        %v7277 = vld [vmem:[%s3 + $0xb8] sm:$0xff]
        %v7278 = vld [vmem:[%s3 + $0xc0] sm:$0xff]
        %v7279 = vld [vmem:[%s3 + $0xc8] sm:$0xff]
        %v7280 = vld [vmem:[%s3 + $0xd0] sm:$0xff]
        %v7281 = vld [vmem:[%s3 + $0xd8] sm:$0xff]
        %v7282 = vld [vmem:[%s3 + $0xe0] sm:$0xff]
        %v7283 = vld [vmem:[%s3 + $0xe8] sm:$0xff]
        %v7284 = vld [vmem:[%s3 + $0xf0] sm:$0xff]
        %v7285 = vld [vmem:[%s3 + $0xf8] sm:$0xff]
        %v7286 = vld [vmem:[%s3 + $0x100] sm:$0xff]
        %v7287 = vld [vmem:[%s3 + $0x108] sm:$0xff]
        %v7288 = vld [vmem:[%s3 + $0x110] sm:$0xff]
        %v7289 = vld [vmem:[%s3 + $0x118] sm:$0xff]
        %v7290 = vld [vmem:[%s3 + $0x120] sm:$0xff]
        %v7291 = vld [vmem:[%s3 + $0x128] sm:$0xff]
        %v7292 = vld [vmem:[%s3 + $0x130] sm:$0xff]
        %v7293 = vld [vmem:[%s3 + $0x138] sm:$0xff]
        %v7294 = vld [vmem:[%s3 + $0x140] sm:$0xff]
        %v7295 = vld [vmem:[%s3 + $0x148] sm:$0xff]
        %v7296 = vld [vmem:[%s3 + $0x150] sm:$0xff]
        %v7297 = vld [vmem:[%s3 + $0x158] sm:$0xff]
        %v7298 = vld [vmem:[%s3 + $0x160] sm:$0xff]
        %v7299 = vld [vmem:[%s3 + $0x168] sm:$0xff]
        %v7300 = vld [vmem:[%s3 + $0x170] sm:$0xff]
        %v7301 = vld [vmem:[%s3 + $0x178] sm:$0xff]
        %v7302 = vld [vmem:[%s3 + $0x180] sm:$0xff]
        %v7303 = vld [vmem:[%s3 + $0x188] sm:$0xff]
        %v7304 = vld [vmem:[%s3 + $0x190] sm:$0xff]
        %v7305 = vld [vmem:[%s3 + $0x198] sm:$0xff]
        %v7306 = vld [vmem:[%s3 + $0x1a0] sm:$0xff]
        %v7307 = vld [vmem:[%s3 + $0x1a8] sm:$0xff]
        %v7308 = vld [vmem:[%s3 + $0x1b0] sm:$0xff]
        %v7309 = vld [vmem:[%s3 + $0x1b8] sm:$0xff]
        %v7310 = vld [vmem:[%s3 + $0x1c0] sm:$0xff]
        %v7311 = vld [vmem:[%s3 + $0x1c8] sm:$0xff]
        %v7312 = vld [vmem:[%s3 + $0x1d0] sm:$0xff]
        %v7313 = vld [vmem:[%s3 + $0x1d8] sm:$0xff]
        %v7314 = vld [vmem:[%s3 + $0x1e0] sm:$0xff]
        %v7315 = vld [vmem:[%s3 + $0x1e8] sm:$0xff]
        %v7316 = vld [vmem:[%s3 + $0x1f0] sm:$0xff]
        %v7317 = vld [vmem:[%s3 + $0x1f8] sm:$0xff]
        %v7318 = vld [vmem:[%s3 + $0x200] sm:$0xff]
        %v7319 = vld [vmem:[%s3 + $0x208] sm:$0xff]
        %v7320 = vld [vmem:[%s3 + $0x210] sm:$0xff]
        %v7321 = vld [vmem:[%s3 + $0x218] sm:$0xff]
        %v7322 = vld [vmem:[%s3 + $0x220] sm:$0xff]
        %v7323 = vld [vmem:[%s3 + $0x228] sm:$0xff]
        %v7324 = vld [vmem:[%s3 + $0x230] sm:$0xff]
        %v7325 = vld [vmem:[%s3 + $0x238] sm:$0xff]
        %v7326 = vld [vmem:[%s3 + $0x240] sm:$0xff]
        %v7327 = vld [vmem:[%s3 + $0x248] sm:$0xff]
        %v7328 = vld [vmem:[%s3 + $0x250] sm:$0xff]
        %v7329 = vld [vmem:[%s3 + $0x258] sm:$0xff]
        %v7330 = vld [vmem:[%s3 + $0x260] sm:$0xff]
        %v7331 = vld [vmem:[%s3 + $0x268] sm:$0xff]
        %v7332 = vld [vmem:[%s3 + $0x270] sm:$0xff]
        %v7333 = vld [vmem:[%s3 + $0x278] sm:$0xff]
        %v7334 = vld [vmem:[%s3 + $0x280] sm:$0xff]
        %v7335 = vld [vmem:[%s3 + $0x288] sm:$0xff]
        %v7336 = vld [vmem:[%s3 + $0x290] sm:$0xff]
        %v7337 = vld [vmem:[%s3 + $0x298] sm:$0xff]
        %v7338 = vld [vmem:[%s3 + $0x2a0] sm:$0xff]
        %v7339 = vld [vmem:[%s3 + $0x2a8] sm:$0xff]
        %v7340 = vld [vmem:[%s3 + $0x2b0] sm:$0xff]
        %v7341 = vld [vmem:[%s3 + $0x2b8] sm:$0xff]
        %v7342 = vld [vmem:[%s3 + $0x2c0] sm:$0xff]
        %v7343 = vld [vmem:[%s3 + $0x2c8] sm:$0xff]
        %v7344 = vld [vmem:[%s3 + $0x2d0] sm:$0xff]
        %v7345 = vld [vmem:[%s3 + $0x2d8] sm:$0xff]
        %v7346 = vld [vmem:[%s3 + $0x2e0] sm:$0xff]
        %v7347 = vld [vmem:[%s3 + $0x2e8] sm:$0xff]
        %v7348 = vld [vmem:[%s3 + $0x2f0] sm:$0xff]
        %v7349 = vld [vmem:[%s3 + $0x2f8] sm:$0xff]
        %v7350 = vld [vmem:[%s3 + $0x300] sm:$0xff]
        %v7351 = vld [vmem:[%s3 + $0x308] sm:$0xff]
        %v7352 = vld [vmem:[%s3 + $0x310] sm:$0xff]
        %v7353 = vld [vmem:[%s3 + $0x318] sm:$0xff]
        %v7354 = vld [vmem:[%s3 + $0x320] sm:$0xff]
        %v7355 = vld [vmem:[%s3 + $0x328] sm:$0xff]
        %v7356 = vld [vmem:[%s3 + $0x330] sm:$0xff]
        %v7357 = vld [vmem:[%s3 + $0x338] sm:$0xff]
        %v7358 = vld [vmem:[%s3 + $0x340] sm:$0xff]
        %v7359 = vld [vmem:[%s3 + $0x348] sm:$0xff]
        %v7360 = vld [vmem:[%s3 + $0x350] sm:$0xff]
        %v7361 = vld [vmem:[%s3 + $0x358] sm:$0xff]
        %v7362 = vld [vmem:[%s3 + $0x360] sm:$0xff]
        %v7363 = vld [vmem:[%s3 + $0x368] sm:$0xff]
        %v7364 = vld [vmem:[%s3 + $0x370] sm:$0xff]
        %v7365 = vld [vmem:[%s3 + $0x378] sm:$0xff]
        %v7366 = vld [vmem:[%s3 + $0x380] sm:$0xff]
        %v7367 = vld [vmem:[%s3 + $0x388] sm:$0xff]
        %v7368 = vld [vmem:[%s3 + $0x390] sm:$0xff]
        %v7369 = vld [vmem:[%s3 + $0x398] sm:$0xff]
        %v7370 = vld [vmem:[%s3 + $0x3a0] sm:$0xff]
        %v7371 = vld [vmem:[%s3 + $0x3a8] sm:$0xff]
        %v7372 = vld [vmem:[%s3 + $0x3b0] sm:$0xff]
        %v7373 = vld [vmem:[%s3 + $0x3b8] sm:$0xff]
        %v7374 = vld [vmem:[%s3 + $0x3c0] sm:$0xff]
        %v7375 = vld [vmem:[%s3 + $0x3c8] sm:$0xff]
        %v7376 = vld [vmem:[%s3 + $0x3d0] sm:$0xff]
        %v7377 = vld [vmem:[%s3 + $0x3d8] sm:$0xff]
        %v7378 = vld [vmem:[%s3 + $0x3e0] sm:$0xff]
        %v7379 = vld [vmem:[%s3 + $0x3e8] sm:$0xff]
        %v7380 = vld [vmem:[%s3 + $0x3f0] sm:$0xff]
        %v7381 = vld [vmem:[%s3 + $0x3f8] sm:$0xff]
        %v7382 = vld [vmem:[%s3 + $0x400] sm:$0xff]
        %v7383 = vld [vmem:[%s3 + $0x408] sm:$0xff]
        %v7384 = vld [vmem:[%s3 + $0x410] sm:$0xff]
        %v7385 = vld [vmem:[%s3 + $0x418] sm:$0xff]
        %v7386 = vld [vmem:[%s3 + $0x420] sm:$0xff]
        %v7387 = vld [vmem:[%s3 + $0x428] sm:$0xff]
        %v7388 = vld [vmem:[%s3 + $0x430] sm:$0xff]
        %v7389 = vld [vmem:[%s3 + $0x438] sm:$0xff]
        %v7390 = vld [vmem:[%s3 + $0x440] sm:$0xff]
        %v7391 = vld [vmem:[%s3 + $0x448] sm:$0xff]
        %v7392 = vld [vmem:[%s3 + $0x450] sm:$0xff]
        %v7393 = vld [vmem:[%s3 + $0x458] sm:$0xff]
        %v7394 = vld [vmem:[%s3 + $0x460] sm:$0xff]
        %v7395 = vld [vmem:[%s3 + $0x468] sm:$0xff]
        %v7396 = vld [vmem:[%s3 + $0x470] sm:$0xff]
        %v7397 = vld [vmem:[%s3 + $0x478] sm:$0xff]
        %v7398 = vld [vmem:[%s4] sm:$0x3]
        %v7400 = vlaneseq
        %v7401 = vshrl.u32 %v7400, 7
        %v7402 = vsub.s32 0, %v7401
        %v7403 = vrot.slane %v7398, %v7402
        %v7404 = vlaneseq
        %v7405 = vshrl.u32 %v7404, 7
        %v7406 = vsub.s32 1, %v7405
        %v7407 = vrot.slane %v7398, %v7406
        %v7411 = vsel %vm7205, %v6798, 0
        %v7414 = vsel %vm7205, %v6800, 0
        %v7417 = vsel %vm7205, %v6802, 0
        %v7420 = vsel %vm7205, %v6804, 0
        %v7423 = vsel %vm7205, %v6806, 0
        %v7426 = vsel %vm7205, %v6808, 0
        %v7429 = vsel %vm7205, %v6810, 0
        %v7432 = vsel %vm7205, %v6812, 0
        %v7435 = vsel %vm7205, %v6814, 0
        %v7438 = vsel %vm7205, %v6816, 0
        %v7441 = vsel %vm7205, %v6818, 0
        %v7444 = vsel %vm7205, %v6820, 0
        %7446 = vmatprep.subr.mxu0 %v7255
        %7447 = vmatpush1.msra.mxu0 %v7254
        %7448 = vmatprep.subr.mxu0 %v7257
        %7449 = vmatpush1.msra.mxu0 %v7256
        %7450 = vmatprep.subr.mxu0 %v7259
        %7451 = vmatpush1.msra.mxu0 %v7258
        %7452 = vmatprep.subr.mxu0 %v7261
        %7453 = vmatpush1.msra.mxu0 %v7260
        %7454 = vmatprep.subr.mxu0 %v7263
        %7455 = vmatpush1.msra.mxu0 %v7262
        %7456 = vmatprep.subr.mxu0 %v7265
        %7457 = vmatpush1.msra.mxu0 %v7264
        %7458 = vmatprep.subr.mxu0 %v7267
        %7459 = vmatpush1.msra.mxu0 %v7266
        %7460 = vmatprep.subr.mxu0 %v7269
        %7461 = vmatpush1.msra.mxu0 %v7268
        %7462 = vmatprep.subr.mxu0 %v7271
        %7463 = vmatpush1.msra.mxu0 %v7270
        %7464 = vmatprep.subr.mxu0 %v7273
        %7465 = vmatpush1.msra.mxu0 %v7272
        %7466 = vmatprep.subr.mxu0 %v7275
        %7467 = vmatpush1.msra.mxu0 %v7274
        %7468 = vmatprep.subr.mxu0 %v7277
        %7469 = vmatpush1.msra.mxu0 %v7276
        %7470 = vmatprep.subr.mxu0 %v7279
        %7471 = vmatpush1.msra.mxu0 %v7278
        %7472 = vmatprep.subr.mxu0 %v7281
        %7473 = vmatpush1.msra.mxu0 %v7280
        %7474 = vmatprep.subr.mxu0 %v7283
        %7475 = vmatpush1.msra.mxu0 %v7282
        %7476 = vmatprep.subr.mxu0 %v7285
        %7477 = vmatpush1.msra.mxu0 %v7284
        %7478 = vmatprep.subr.mxu0 %v7287
        %7479 = vmatpush1.msra.mxu0 %v7286
        %7480 = vmatprep.subr.mxu0 %v7289
        %7481 = vmatpush1.msra.mxu0 %v7288
        %7482 = vmatprep.subr.mxu0 %v7291
        %7483 = vmatpush1.msra.mxu0 %v7290
        %7484 = vmatprep.subr.mxu0 %v7293
        %7485 = vmatpush1.msra.mxu0 %v7292
        %7486 = vmatprep.subr.mxu0 %v7295
        %7487 = vmatpush1.msra.mxu0 %v7294
        %7488 = vmatprep.subr.mxu0 %v7297
        %7489 = vmatpush1.msra.mxu0 %v7296
        %7490 = vmatprep.subr.mxu0 %v7299
        %7491 = vmatpush1.msra.mxu0 %v7298
        %7492 = vmatprep.subr.mxu0 %v7301
        %7493 = vmatpush1.msra.mxu0 %v7300
        %7494 = vmatprep.subr.mxu0 %v7303
        %7495 = vmatpush1.msra.mxu0 %v7302
        %7496 = vmatprep.subr.mxu0 %v7305
        %7497 = vmatpush1.msra.mxu0 %v7304
        %7498 = vmatprep.subr.mxu0 %v7307
        %7499 = vmatpush1.msra.mxu0 %v7306
        %7500 = vmatprep.subr.mxu0 %v7309
        %7501 = vmatpush1.msra.mxu0 %v7308
        %7502 = vmatprep.subr.mxu0 %v7311
        %7503 = vmatpush1.msra.mxu0 %v7310
        %7504 = vmatprep.subr.mxu0 %v7313
        %7505 = vmatpush1.msra.mxu0 %v7312
        %7506 = vmatprep.subr.mxu0 %v7315
        %7507 = vmatpush1.msra.mxu0 %v7314
        %7508 = vmatprep.subr.mxu0 %v7317
        %7509 = vmatpush1.msra.mxu0 %v7316
        %7510 = vmatprep.mubr.f32.mxu0 %v7242
        %7511 = vmatmul.mubr.f32.gmra.mrb[0].mxu0 %v6377
        %v7512 = vpop.f32.mrb[0].mxu0
        %v7513 = vadd.f32 %v7403, %v7512
        %v7514 = vpop.f32.mrb[0].mxu0
        %v7515 = vadd.f32 %v7407, %v7514
        %7516 = vmatprep.mubr.f32.mxu0 %v7243
        %7517 = vmatmul.mubr.f32.gmra.mrb[0].mxu0 %v6379
        %v7518 = vpop.f32.mrb[0].mxu0
        %v7519 = vadd.f32 %v7403, %v7518
        %v7520 = vpop.f32.mrb[0].mxu0
        %v7521 = vadd.f32 %v7407, %v7520
        %7522 = vmatprep.mubr.f32.mxu0 %v7244
        %7523 = vmatmul.mubr.f32.gmra.mrb[0].mxu0 %v6381
        %v7524 = vpop.f32.mrb[0].mxu0
        %v7525 = vadd.f32 %v7403, %v7524
        %v7526 = vpop.f32.mrb[0].mxu0
        %v7527 = vadd.f32 %v7407, %v7526
        %7528 = vmatprep.mubr.f32.mxu0 %v7245
        %7529 = vmatmul.mubr.f32.gmra.mrb[0].mxu0 %v6383
        %v7530 = vpop.f32.mrb[0].mxu0
        %v7531 = vadd.f32 %v7403, %v7530
        %v7532 = vpop.f32.mrb[0].mxu0
        %v7533 = vadd.f32 %v7407, %v7532
        %7534 = vmatprep.mubr.f32.mxu0 %v7246
        %7535 = vmatmul.mubr.f32.gmra.mrb[0].mxu0 %v6385
        %v7536 = vpop.f32.mrb[0].mxu0
        %v7537 = vadd.f32 %v7403, %v7536
        %v7538 = vpop.f32.mrb[0].mxu0
        %v7539 = vadd.f32 %v7407, %v7538
        %7540 = vmatprep.mubr.f32.mxu0 %v7247
        %7541 = vmatmul.mubr.f32.gmra.mrb[0].mxu0 %v6387
        %v7542 = vpop.f32.mrb[0].mxu0
        %v7543 = vadd.f32 %v7403, %v7542
        %v7544 = vpop.f32.mrb[0].mxu0
        %v7545 = vadd.f32 %v7407, %v7544
        %7546 = vmatprep.mubr.f32.mxu0 %v7248
        %7547 = vmatmul.mubr.f32.gmra.mrb[0].mxu0 %v6389
        %v7548 = vpop.f32.mrb[0].mxu0
        %v7549 = vadd.f32 %v7403, %v7548
        %v7550 = vpop.f32.mrb[0].mxu0
        %v7551 = vadd.f32 %v7407, %v7550
        %7552 = vmatprep.mubr.f32.mxu0 %v7249
        %7553 = vmatmul.mubr.f32.gmra.mrb[0].mxu0 %v6391
        %v7554 = vpop.f32.mrb[0].mxu0
        %v7555 = vadd.f32 %v7403, %v7554
        %v7556 = vpop.f32.mrb[0].mxu0
        %v7557 = vadd.f32 %v7407, %v7556
        %7558 = vmatprep.mubr.f32.mxu0 %v7250
        %7559 = vmatmul.mubr.f32.gmra.mrb[0].mxu0 %v6393
        %v7560 = vpop.f32.mrb[0].mxu0
        %v7561 = vadd.f32 %v7403, %v7560
        %v7562 = vpop.f32.mrb[0].mxu0
        %v7563 = vadd.f32 %v7407, %v7562
        %7564 = vmatprep.mubr.f32.mxu0 %v7251
        %7565 = vmatmul.mubr.f32.gmra.mrb[0].mxu0 %v6395
        %v7566 = vpop.f32.mrb[0].mxu0
        %v7567 = vadd.f32 %v7403, %v7566
        %v7568 = vpop.f32.mrb[0].mxu0
        %v7569 = vadd.f32 %v7407, %v7568
        %7570 = vmatprep.mubr.f32.mxu0 %v7252
        %7571 = vmatmul.mubr.f32.gmra.mrb[0].mxu0 %v6397
        %v7572 = vpop.f32.mrb[0].mxu0
        %v7573 = vadd.f32 %v7403, %v7572
        %v7574 = vpop.f32.mrb[0].mxu0
        %v7575 = vadd.f32 %v7407, %v7574
        %7576 = vmatprep.mubr.f32.mxu0 %v7253
        %7577 = vmatmul.mubr.f32.gmra.mrb[0].mxu0 %v6399
        %v7578 = vpop.f32.mrb[0].mxu0
        %v7579 = vadd.f32 %v7403, %v7578
        %v7580 = vpop.f32.mrb[0].mxu0
        %v7581 = vadd.f32 %v7407, %v7580
        %7582 = vdwg.mxu0
        %7583 = vmatprep.subr.mxu0 %v7319
        %7584 = vmatpush1.msra.mxu0 %v7318
        %7585 = vmatprep.subr.mxu0 %v7321
        %7586 = vmatpush1.msra.mxu0 %v7320
        %7587 = vmatprep.subr.mxu0 %v7323
        %7588 = vmatpush1.msra.mxu0 %v7322
        %7589 = vmatprep.subr.mxu0 %v7325
        %7590 = vmatpush1.msra.mxu0 %v7324
        %7591 = vmatprep.subr.mxu0 %v7327
        %7592 = vmatpush1.msra.mxu0 %v7326
        %7593 = vmatprep.subr.mxu0 %v7329
        %7594 = vmatpush1.msra.mxu0 %v7328
        %7595 = vmatprep.subr.mxu0 %v7331
        %7596 = vmatpush1.msra.mxu0 %v7330
        %7597 = vmatprep.subr.mxu0 %v7333
        %7598 = vmatpush1.msra.mxu0 %v7332
        %7599 = vmatprep.subr.mxu0 %v7335
        %7600 = vmatpush1.msra.mxu0 %v7334
        %7601 = vmatprep.subr.mxu0 %v7337
        %7602 = vmatpush1.msra.mxu0 %v7336
        %7603 = vmatprep.subr.mxu0 %v7339
        %7604 = vmatpush1.msra.mxu0 %v7338
        %7605 = vmatprep.subr.mxu0 %v7341
        %7606 = vmatpush1.msra.mxu0 %v7340
        %7607 = vmatprep.subr.mxu0 %v7343
        %7608 = vmatpush1.msra.mxu0 %v7342
        %7609 = vmatprep.subr.mxu0 %v7345
        %7610 = vmatpush1.msra.mxu0 %v7344
        %7611 = vmatprep.subr.mxu0 %v7347
        %7612 = vmatpush1.msra.mxu0 %v7346
        %7613 = vmatprep.subr.mxu0 %v7349
        %7614 = vmatpush1.msra.mxu0 %v7348
        %7615 = vmatprep.subr.mxu0 %v7351
        %7616 = vmatpush1.msra.mxu0 %v7350
        %7617 = vmatprep.subr.mxu0 %v7353
        %7618 = vmatpush1.msra.mxu0 %v7352
        %7619 = vmatprep.subr.mxu0 %v7355
        %7620 = vmatpush1.msra.mxu0 %v7354
        %7621 = vmatprep.subr.mxu0 %v7357
        %7622 = vmatpush1.msra.mxu0 %v7356
        %7623 = vmatprep.subr.mxu0 %v7359
        %7624 = vmatpush1.msra.mxu0 %v7358
        %7625 = vmatprep.subr.mxu0 %v7361
        %7626 = vmatpush1.msra.mxu0 %v7360
        %7627 = vmatprep.subr.mxu0 %v7363
        %7628 = vmatpush1.msra.mxu0 %v7362
        %7629 = vmatprep.subr.mxu0 %v7365
        %7630 = vmatpush1.msra.mxu0 %v7364
        %7631 = vmatprep.subr.mxu0 %v7367
        %7632 = vmatpush1.msra.mxu0 %v7366
        %7633 = vmatprep.subr.mxu0 %v7369
        %7634 = vmatpush1.msra.mxu0 %v7368
        %7635 = vmatprep.subr.mxu0 %v7371
        %7636 = vmatpush1.msra.mxu0 %v7370
        %7637 = vmatprep.subr.mxu0 %v7373
        %7638 = vmatpush1.msra.mxu0 %v7372
        %7639 = vmatprep.subr.mxu0 %v7375
        %7640 = vmatpush1.msra.mxu0 %v7374
        %7641 = vmatprep.subr.mxu0 %v7377
        %7642 = vmatpush1.msra.mxu0 %v7376
        %7643 = vmatprep.subr.mxu0 %v7379
        %7644 = vmatpush1.msra.mxu0 %v7378
        %7645 = vmatprep.subr.mxu0 %v7381
        %7646 = vmatpush1.msra.mxu0 %v7380
        %7647 = vmatprep.mubr.f32.mxu0 %v6797
        %7648 = vmatmul.mubr.f32.gmra.mrb[0].mxu0 %v7206
        %v7649 = vpop.f32.mrb[0].mxu0
        %v7650 = vadd.f32 %v7513, %v7649
        %v7651 = vpop.f32.mrb[0].mxu0
        %v7652 = vadd.f32 %v7515, %v7651
        %7653 = vmatprep.mubr.f32.mxu0 %v6799
        %7654 = vmatmul.mubr.f32.gmra.mrb[0].mxu0 %v7207
        %v7655 = vpop.f32.mrb[0].mxu0
        %v7656 = vadd.f32 %v7519, %v7655
        %v7657 = vpop.f32.mrb[0].mxu0
        %v7658 = vadd.f32 %v7521, %v7657
        %7659 = vmatprep.mubr.f32.mxu0 %v6801
        %7660 = vmatmul.mubr.f32.gmra.mrb[0].mxu0 %v7208
        %v7661 = vpop.f32.mrb[0].mxu0
        %v7662 = vadd.f32 %v7525, %v7661
        %v7663 = vpop.f32.mrb[0].mxu0
        %v7664 = vadd.f32 %v7527, %v7663
        %7665 = vmatprep.mubr.f32.mxu0 %v6803
        %7666 = vmatmul.mubr.f32.gmra.mrb[0].mxu0 %v7209
        %v7667 = vpop.f32.mrb[0].mxu0
        %v7668 = vadd.f32 %v7531, %v7667
        %v7669 = vpop.f32.mrb[0].mxu0
        %v7670 = vadd.f32 %v7533, %v7669
        %7671 = vmatprep.mubr.f32.mxu0 %v6805
        %7672 = vmatmul.mubr.f32.gmra.mrb[0].mxu0 %v7210
        %v7673 = vpop.f32.mrb[0].mxu0
        %v7674 = vadd.f32 %v7537, %v7673
        %v7675 = vpop.f32.mrb[0].mxu0
        %v7676 = vadd.f32 %v7539, %v7675
        %7677 = vmatprep.mubr.f32.mxu0 %v6807
        %7678 = vmatmul.mubr.f32.gmra.mrb[0].mxu0 %v7211
        %v7679 = vpop.f32.mrb[0].mxu0
        %v7680 = vadd.f32 %v7543, %v7679
        %v7681 = vpop.f32.mrb[0].mxu0
        %v7682 = vadd.f32 %v7545, %v7681
        %7683 = vmatprep.mubr.f32.mxu0 %v6809
        %7684 = vmatmul.mubr.f32.gmra.mrb[0].mxu0 %v7212
        %v7685 = vpop.f32.mrb[0].mxu0
        %v7686 = vadd.f32 %v7549, %v7685
        %v7687 = vpop.f32.mrb[0].mxu0
        %v7688 = vadd.f32 %v7551, %v7687
        %7689 = vmatprep.mubr.f32.mxu0 %v6811
        %7690 = vmatmul.mubr.f32.gmra.mrb[0].mxu0 %v7213
        %v7691 = vpop.f32.mrb[0].mxu0
        %v7692 = vadd.f32 %v7555, %v7691
        %v7693 = vpop.f32.mrb[0].mxu0
        %v7694 = vadd.f32 %v7557, %v7693
        %7695 = vmatprep.mubr.f32.mxu0 %v6813
        %7696 = vmatmul.mubr.f32.gmra.mrb[0].mxu0 %v7214
        %v7697 = vpop.f32.mrb[0].mxu0
        %v7698 = vadd.f32 %v7561, %v7697
        %v7699 = vpop.f32.mrb[0].mxu0
        %v7700 = vadd.f32 %v7563, %v7699
        %7701 = vmatprep.mubr.f32.mxu0 %v6815
        %7702 = vmatmul.mubr.f32.gmra.mrb[0].mxu0 %v7215
        %v7703 = vpop.f32.mrb[0].mxu0
        %v7704 = vadd.f32 %v7567, %v7703
        %v7705 = vpop.f32.mrb[0].mxu0
        %v7706 = vadd.f32 %v7569, %v7705
        %7707 = vmatprep.mubr.f32.mxu0 %v6817
        %7708 = vmatmul.mubr.f32.gmra.mrb[0].mxu0 %v7216
        %v7709 = vpop.f32.mrb[0].mxu0
        %v7710 = vadd.f32 %v7573, %v7709
        %v7711 = vpop.f32.mrb[0].mxu0
        %v7712 = vadd.f32 %v7575, %v7711
        %7713 = vmatprep.mubr.f32.mxu0 %v6819
        %7714 = vmatmul.mubr.f32.gmra.mrb[0].mxu0 %v7217
        %v7715 = vpop.f32.mrb[0].mxu0
        %v7716 = vadd.f32 %v7579, %v7715
        %v7717 = vpop.f32.mrb[0].mxu0
        %v7718 = vadd.f32 %v7581, %v7717
        %7719 = vdwg.mxu0
        %7720 = vmatprep.subr.mxu0 %v7383
        %7721 = vmatpush1.msra.mxu0 %v7382
        %7722 = vmatprep.subr.mxu0 %v7385
        %7723 = vmatpush1.msra.mxu0 %v7384
        %7724 = vmatprep.subr.mxu0 %v7387
        %7725 = vmatpush1.msra.mxu0 %v7386
        %7726 = vmatprep.subr.mxu0 %v7389
        %7727 = vmatpush1.msra.mxu0 %v7388
        %7728 = vmatprep.subr.mxu0 %v7391
        %7729 = vmatpush1.msra.mxu0 %v7390
        %7730 = vmatprep.subr.mxu0 %v7393
        %7731 = vmatpush1.msra.mxu0 %v7392
        %7732 = vmatprep.subr.mxu0 %v7395
        %7733 = vmatpush1.msra.mxu0 %v7394
        %7734 = vmatprep.subr.mxu0 %v7397
        %7735 = vmatpush1.msra.mxu0 %v7396
        %7736 = vmatprep.subr.mxu0 0.0
        %7737 = vmatpush1.msra.mxu0 0.0
        %7738 = vmatprep.subr.mxu0 0.0
        %7739 = vmatpush1.msra.mxu0 0.0
        %7740 = vmatprep.subr.mxu0 0.0
        %7741 = vmatpush1.msra.mxu0 0.0
        %7742 = vmatprep.subr.mxu0 0.0
        %7743 = vmatpush1.msra.mxu0 0.0
        %7744 = vmatprep.subr.mxu0 0.0
        %7745 = vmatpush1.msra.mxu0 0.0
        %7746 = vmatprep.subr.mxu0 0.0
        %7747 = vmatpush1.msra.mxu0 0.0
        %7748 = vmatprep.subr.mxu0 0.0
        %7749 = vmatpush1.msra.mxu0 0.0
        %7750 = vmatprep.subr.mxu0 0.0
        %7751 = vmatpush1.msra.mxu0 0.0
        %7752 = vmatprep.subr.mxu0 0.0
        %7753 = vmatpush1.msra.mxu0 0.0
        %7754 = vmatprep.subr.mxu0 0.0
        %7755 = vmatpush1.msra.mxu0 0.0
        %7756 = vmatprep.subr.mxu0 0.0
        %7757 = vmatpush1.msra.mxu0 0.0
        %7758 = vmatprep.subr.mxu0 0.0
        %7759 = vmatpush1.msra.mxu0 0.0
        %7760 = vmatprep.subr.mxu0 0.0
        %7761 = vmatpush1.msra.mxu0 0.0
        %7762 = vmatprep.subr.mxu0 0.0
        %7763 = vmatpush1.msra.mxu0 0.0
        %7764 = vmatprep.subr.mxu0 0.0
        %7765 = vmatpush1.msra.mxu0 0.0
        %7766 = vmatprep.subr.mxu0 0.0
        %7767 = vmatpush1.msra.mxu0 0.0
        %7768 = vmatprep.subr.mxu0 0.0
        %7769 = vmatpush1.msra.mxu0 0.0
        %7770 = vmatprep.subr.mxu0 0.0
        %7771 = vmatpush1.msra.mxu0 0.0
        %7772 = vmatprep.subr.mxu0 0.0
        %7773 = vmatpush1.msra.mxu0 0.0
        %7774 = vmatprep.subr.mxu0 0.0
        %7775 = vmatpush1.msra.mxu0 0.0
        %7776 = vmatprep.subr.mxu0 0.0
        %7777 = vmatpush1.msra.mxu0 0.0
        %7778 = vmatprep.subr.mxu0 0.0
        %7779 = vmatpush1.msra.mxu0 0.0
        %7780 = vmatprep.subr.mxu0 0.0
        %7781 = vmatpush1.msra.mxu0 0.0
        %7782 = vmatprep.subr.mxu0 0.0
        %7783 = vmatpush1.msra.mxu0 0.0
        %7784 = vmatprep.mubr.f32.mxu0 0.0
        %7785 = vmatmul.mubr.f32.gmra.mrb[0].mxu0 %v7411
        %v7786 = vpop.f32.mrb[0].mxu0
        %v7787 = vadd.f32 %v7650, %v7786
        %v7788 = vpop.f32.mrb[0].mxu0
        %v7789 = vadd.f32 %v7652, %v7788
        %7790 = vmatprep.mubr.f32.mxu0 0.0
        %7791 = vmatmul.mubr.f32.gmra.mrb[0].mxu0 %v7414
        %v7792 = vpop.f32.mrb[0].mxu0
        %v7793 = vadd.f32 %v7656, %v7792
        %v7794 = vpop.f32.mrb[0].mxu0
        %v7795 = vadd.f32 %v7658, %v7794
        %7796 = vmatprep.mubr.f32.mxu0 0.0
        %7797 = vmatmul.mubr.f32.gmra.mrb[0].mxu0 %v7417
        %v7798 = vpop.f32.mrb[0].mxu0
        %v7799 = vadd.f32 %v7662, %v7798
        %v7800 = vpop.f32.mrb[0].mxu0
        %v7801 = vadd.f32 %v7664, %v7800
        %7802 = vmatprep.mubr.f32.mxu0 0.0
        %7803 = vmatmul.mubr.f32.gmra.mrb[0].mxu0 %v7420
        %v7804 = vpop.f32.mrb[0].mxu0
        %v7805 = vadd.f32 %v7668, %v7804
        %v7806 = vpop.f32.mrb[0].mxu0
        %v7807 = vadd.f32 %v7670, %v7806
        %7808 = vmatprep.mubr.f32.mxu0 0.0
        %7809 = vmatmul.mubr.f32.gmra.mrb[0].mxu0 %v7423
        %v7810 = vpop.f32.mrb[0].mxu0
        %v7811 = vadd.f32 %v7674, %v7810
        %v7812 = vpop.f32.mrb[0].mxu0
        %v7813 = vadd.f32 %v7676, %v7812
        %7814 = vmatprep.mubr.f32.mxu0 0.0
        %7815 = vmatmul.mubr.f32.gmra.mrb[0].mxu0 %v7426
        %v7816 = vpop.f32.mrb[0].mxu0
        %v7817 = vadd.f32 %v7680, %v7816
        %v7818 = vpop.f32.mrb[0].mxu0
        %v7819 = vadd.f32 %v7682, %v7818
        %7820 = vmatprep.mubr.f32.mxu0 0.0
        %7821 = vmatmul.mubr.f32.gmra.mrb[0].mxu0 %v7429
        %v7822 = vpop.f32.mrb[0].mxu0
        %v7823 = vadd.f32 %v7686, %v7822
        %v7824 = vpop.f32.mrb[0].mxu0
        %v7825 = vadd.f32 %v7688, %v7824
        %7826 = vmatprep.mubr.f32.mxu0 0.0
        %7827 = vmatmul.mubr.f32.gmra.mrb[0].mxu0 %v7432
        %v7828 = vpop.f32.mrb[0].mxu0
        %v7829 = vadd.f32 %v7692, %v7828
        %v7830 = vpop.f32.mrb[0].mxu0
        %v7831 = vadd.f32 %v7694, %v7830
        %7832 = vmatprep.mubr.f32.mxu0 0.0
        %7833 = vmatmul.mubr.f32.gmra.mrb[0].mxu0 %v7435
        %v7834 = vpop.f32.mrb[0].mxu0
        %v7835 = vadd.f32 %v7698, %v7834
        %v7836 = vpop.f32.mrb[0].mxu0
        %v7837 = vadd.f32 %v7700, %v7836
        %7838 = vmatprep.mubr.f32.mxu0 0.0
        %7839 = vmatmul.mubr.f32.gmra.mrb[0].mxu0 %v7438
        %v7840 = vpop.f32.mrb[0].mxu0
        %v7841 = vadd.f32 %v7704, %v7840
        %v7842 = vpop.f32.mrb[0].mxu0
        %v7843 = vadd.f32 %v7706, %v7842
        %7844 = vmatprep.mubr.f32.mxu0 0.0
        %7845 = vmatmul.mubr.f32.gmra.mrb[0].mxu0 %v7441
        %v7846 = vpop.f32.mrb[0].mxu0
        %v7847 = vadd.f32 %v7710, %v7846
        %v7848 = vpop.f32.mrb[0].mxu0
        %v7849 = vadd.f32 %v7712, %v7848
        %7850 = vmatprep.mubr.f32.mxu0 0.0
        %7851 = vmatmul.mubr.f32.gmra.mrb[0].mxu0 %v7444
        %v7852 = vpop.f32.mrb[0].mxu0
        %v7853 = vadd.f32 %v7716, %v7852
        %v7854 = vpop.f32.mrb[0].mxu0
        %v7855 = vadd.f32 %v7718, %v7854
        %7856 = vdwg.mxu0
        %v7857 = vmax.f32 %v7787, 0.0
        %v7858 = vmax.f32 %v7789, 0.0
        %v7859 = vmax.f32 %v7793, 0.0
        %v7860 = vmax.f32 %v7795, 0.0
        %v7861 = vmax.f32 %v7799, 0.0
        %v7862 = vmax.f32 %v7801, 0.0
        %v7863 = vmax.f32 %v7805, 0.0
        %v7864 = vmax.f32 %v7807, 0.0
        %v7865 = vmax.f32 %v7811, 0.0
        %v7866 = vmax.f32 %v7813, 0.0
        %v7867 = vmax.f32 %v7817, 0.0
        %v7868 = vmax.f32 %v7819, 0.0
        %v7869 = vmax.f32 %v7823, 0.0
        %v7870 = vmax.f32 %v7825, 0.0
        %v7871 = vmax.f32 %v7829, 0.0
        %v7872 = vmax.f32 %v7831, 0.0
        %v7873 = vmax.f32 %v7835, 0.0
        %v7874 = vmax.f32 %v7837, 0.0
        %v7875 = vmax.f32 %v7841, 0.0
        %v7876 = vmax.f32 %v7843, 0.0
        %v7877 = vmax.f32 %v7847, 0.0
        %v7878 = vmax.f32 %v7849, 0.0
        %v7879 = vmax.f32 %v7853, 0.0
        %v7880 = vmax.f32 %v7855, 0.0
        %v7905 = vcombine.low %v7857, %v7858
        %v7906 = vcombine.high %v7857, %v7858
        %v7908 = vunpack.c.l.s4 1983009808
        %v7909 = vunpack.c.0.s8 %v7908
        %v7910 = vlaneseq
        %v7911 = vshrl.u32 %v7910, 7
        %v7912 = vsub.s32 %v7909, %v7911
        %v7913 = vrot.slane %v7905, %v7912
        %v7915 = vunpack.c.l.s4 1983009808
        %v7916 = vunpack.c.0.s8 %v7915
        %v7917 = vlaneseq
        %v7918 = vshrl.u32 %v7917, 7
        %v7919 = vsub.s32 %v7916, %v7918
        %v7920 = vrot.slane %v7906, %v7919
        %v7921 = vcombine.high %v7913, %v7913
        %v7922 = vcombine.high %v7920, %v7920
        %v7923 = vcombine.low %v7859, %v7860
        %v7924 = vcombine.high %v7859, %v7860
        %v7926 = vunpack.c.l.s4 1983009808
        %v7927 = vunpack.c.0.s8 %v7926
        %v7928 = vlaneseq
        %v7929 = vshrl.u32 %v7928, 7
        %v7930 = vsub.s32 %v7927, %v7929
        %v7931 = vrot.slane %v7923, %v7930
        %v7933 = vunpack.c.l.s4 1983009808
        %v7934 = vunpack.c.0.s8 %v7933
        %v7935 = vlaneseq
        %v7936 = vshrl.u32 %v7935, 7
        %v7937 = vsub.s32 %v7934, %v7936
        %v7938 = vrot.slane %v7924, %v7937
        %v7939 = vcombine.high %v7931, %v7931
        %v7940 = vcombine.high %v7938, %v7938
        %v7941 = vcombine.low %v7861, %v7862
        %v7942 = vcombine.high %v7861, %v7862
        %v7944 = vunpack.c.l.s4 1983009808
        %v7945 = vunpack.c.0.s8 %v7944
        %v7946 = vlaneseq
        %v7947 = vshrl.u32 %v7946, 7
        %v7948 = vsub.s32 %v7945, %v7947
        %v7949 = vrot.slane %v7941, %v7948
        %v7951 = vunpack.c.l.s4 1983009808
        %v7952 = vunpack.c.0.s8 %v7951
        %v7953 = vlaneseq
        %v7954 = vshrl.u32 %v7953, 7
        %v7955 = vsub.s32 %v7952, %v7954
        %v7956 = vrot.slane %v7942, %v7955
        %v7957 = vcombine.high %v7949, %v7949
        %v7958 = vcombine.high %v7956, %v7956
        %v7959 = vcombine.low %v7863, %v7864
        %v7960 = vcombine.high %v7863, %v7864
        %v7962 = vunpack.c.l.s4 1983009808
        %v7963 = vunpack.c.0.s8 %v7962
        %v7964 = vlaneseq
        %v7965 = vshrl.u32 %v7964, 7
        %v7966 = vsub.s32 %v7963, %v7965
        %v7967 = vrot.slane %v7959, %v7966
        %v7969 = vunpack.c.l.s4 1983009808
        %v7970 = vunpack.c.0.s8 %v7969
        %v7971 = vlaneseq
        %v7972 = vshrl.u32 %v7971, 7
        %v7973 = vsub.s32 %v7970, %v7972
        %v7974 = vrot.slane %v7960, %v7973
        %v7975 = vcombine.high %v7967, %v7967
        %v7976 = vcombine.high %v7974, %v7974
        %v7977 = vcombine.low %v7865, %v7866
        %v7978 = vcombine.high %v7865, %v7866
        %v7980 = vunpack.c.l.s4 1983009808
        %v7981 = vunpack.c.0.s8 %v7980
        %v7982 = vlaneseq
        %v7983 = vshrl.u32 %v7982, 7
        %v7984 = vsub.s32 %v7981, %v7983
        %v7985 = vrot.slane %v7977, %v7984
        %v7987 = vunpack.c.l.s4 1983009808
        %v7988 = vunpack.c.0.s8 %v7987
        %v7989 = vlaneseq
        %v7990 = vshrl.u32 %v7989, 7
        %v7991 = vsub.s32 %v7988, %v7990
        %v7992 = vrot.slane %v7978, %v7991
        %v7993 = vcombine.high %v7985, %v7985
        %v7994 = vcombine.high %v7992, %v7992
        %v7995 = vcombine.low %v7867, %v7868
        %v7996 = vcombine.high %v7867, %v7868
        %v7998 = vunpack.c.l.s4 1983009808
        %v7999 = vunpack.c.0.s8 %v7998
        %v8000 = vlaneseq
        %v8001 = vshrl.u32 %v8000, 7
        %v8002 = vsub.s32 %v7999, %v8001
        %v8003 = vrot.slane %v7995, %v8002
        %v8005 = vunpack.c.l.s4 1983009808
        %v8006 = vunpack.c.0.s8 %v8005
        %v8007 = vlaneseq
        %v8008 = vshrl.u32 %v8007, 7
        %v8009 = vsub.s32 %v8006, %v8008
        %v8010 = vrot.slane %v7996, %v8009
        %v8011 = vcombine.high %v8003, %v8003
        %v8012 = vcombine.high %v8010, %v8010
        %v8013 = vcombine.low %v7869, %v7870
        %v8014 = vcombine.high %v7869, %v7870
        %v8016 = vunpack.c.l.s4 1983009808
        %v8017 = vunpack.c.0.s8 %v8016
        %v8018 = vlaneseq
        %v8019 = vshrl.u32 %v8018, 7
        %v8020 = vsub.s32 %v8017, %v8019
        %v8021 = vrot.slane %v8013, %v8020
        %v8023 = vunpack.c.l.s4 1983009808
        %v8024 = vunpack.c.0.s8 %v8023
        %v8025 = vlaneseq
        %v8026 = vshrl.u32 %v8025, 7
        %v8027 = vsub.s32 %v8024, %v8026
        %v8028 = vrot.slane %v8014, %v8027
        %v8029 = vcombine.high %v8021, %v8021
        %v8030 = vcombine.high %v8028, %v8028
        %v8031 = vcombine.low %v7871, %v7872
        %v8032 = vcombine.high %v7871, %v7872
        %v8034 = vunpack.c.l.s4 1983009808
        %v8035 = vunpack.c.0.s8 %v8034
        %v8036 = vlaneseq
        %v8037 = vshrl.u32 %v8036, 7
        %v8038 = vsub.s32 %v8035, %v8037
        %v8039 = vrot.slane %v8031, %v8038
        %v8041 = vunpack.c.l.s4 1983009808
        %v8042 = vunpack.c.0.s8 %v8041
        %v8043 = vlaneseq
        %v8044 = vshrl.u32 %v8043, 7
        %v8045 = vsub.s32 %v8042, %v8044
        %v8046 = vrot.slane %v8032, %v8045
        %v8047 = vcombine.high %v8039, %v8039
        %v8048 = vcombine.high %v8046, %v8046
        %v8049 = vcombine.low %v7873, %v7874
        %v8050 = vcombine.high %v7873, %v7874
        %v8052 = vunpack.c.l.s4 1983009808
        %v8053 = vunpack.c.0.s8 %v8052
        %v8054 = vlaneseq
        %v8055 = vshrl.u32 %v8054, 7
        %v8056 = vsub.s32 %v8053, %v8055
        %v8057 = vrot.slane %v8049, %v8056
        %v8059 = vunpack.c.l.s4 1983009808
        %v8060 = vunpack.c.0.s8 %v8059
        %v8061 = vlaneseq
        %v8062 = vshrl.u32 %v8061, 7
        %v8063 = vsub.s32 %v8060, %v8062
        %v8064 = vrot.slane %v8050, %v8063
        %v8065 = vcombine.high %v8057, %v8057
        %v8066 = vcombine.high %v8064, %v8064
        %v8067 = vcombine.low %v7875, %v7876
        %v8068 = vcombine.high %v7875, %v7876
        %v8070 = vunpack.c.l.s4 1983009808
        %v8071 = vunpack.c.0.s8 %v8070
        %v8072 = vlaneseq
        %v8073 = vshrl.u32 %v8072, 7
        %v8074 = vsub.s32 %v8071, %v8073
        %v8075 = vrot.slane %v8067, %v8074
        %v8077 = vunpack.c.l.s4 1983009808
        %v8078 = vunpack.c.0.s8 %v8077
        %v8079 = vlaneseq
        %v8080 = vshrl.u32 %v8079, 7
        %v8081 = vsub.s32 %v8078, %v8080
        %v8082 = vrot.slane %v8068, %v8081
        %v8083 = vcombine.high %v8075, %v8075
        %v8084 = vcombine.high %v8082, %v8082
        %v8085 = vcombine.low %v7877, %v7878
        %v8086 = vcombine.high %v7877, %v7878
        %v8088 = vunpack.c.l.s4 1983009808
        %v8089 = vunpack.c.0.s8 %v8088
        %v8090 = vlaneseq
        %v8091 = vshrl.u32 %v8090, 7
        %v8092 = vsub.s32 %v8089, %v8091
        %v8093 = vrot.slane %v8085, %v8092
        %v8095 = vunpack.c.l.s4 1983009808
        %v8096 = vunpack.c.0.s8 %v8095
        %v8097 = vlaneseq
        %v8098 = vshrl.u32 %v8097, 7
        %v8099 = vsub.s32 %v8096, %v8098
        %v8100 = vrot.slane %v8086, %v8099
        %v8101 = vcombine.high %v8093, %v8093
        %v8102 = vcombine.high %v8100, %v8100
        %v8103 = vcombine.low %v7879, %v7880
        %v8104 = vcombine.high %v7879, %v7880
        %v8106 = vunpack.c.l.s4 1983009808
        %v8107 = vunpack.c.0.s8 %v8106
        %v8108 = vlaneseq
        %v8109 = vshrl.u32 %v8108, 7
        %v8110 = vsub.s32 %v8107, %v8109
        %v8111 = vrot.slane %v8103, %v8110
        %v8113 = vunpack.c.l.s4 1983009808
        %v8114 = vunpack.c.0.s8 %v8113
        %v8115 = vlaneseq
        %v8116 = vshrl.u32 %v8115, 7
        %v8117 = vsub.s32 %v8114, %v8116
        %v8118 = vrot.slane %v8104, %v8117
        %v8119 = vcombine.high %v8111, %v8111
        %v8120 = vcombine.high %v8118, %v8118
        %v8122 = vunpack.c.l.s4 1983009808
        %v8123 = vunpack.c.0.s8 %v8122
        %v8124 = vlaneseq
        %v8125 = vshrl.u32 %v8124, 7
        %v8126 = vsub.s32 %v8123, %v8125
        %v8127 = vrot.slane %v7913, %v8126
        %v8128 = vcombine.high %v8127, %v8127
        %v8130 = vunpack.c.l.s4 1983009808
        %v8131 = vunpack.c.0.s8 %v8130
        %v8132 = vlaneseq
        %v8133 = vshrl.u32 %v8132, 7
        %v8134 = vsub.s32 %v8131, %v8133
        %v8135 = vrot.slane %v7921, %v8134
        %v8136 = vcombine.high %v8135, %v8135
        %v8138 = vunpack.c.l.s4 1983009808
        %v8139 = vunpack.c.0.s8 %v8138
        %v8140 = vlaneseq
        %v8141 = vshrl.u32 %v8140, 7
        %v8142 = vsub.s32 %v8139, %v8141
        %v8143 = vrot.slane %v7920, %v8142
        %v8144 = vcombine.high %v8143, %v8143
        %v8146 = vunpack.c.l.s4 1983009808
        %v8147 = vunpack.c.0.s8 %v8146
        %v8148 = vlaneseq
        %v8149 = vshrl.u32 %v8148, 7
        %v8150 = vsub.s32 %v8147, %v8149
        %v8151 = vrot.slane %v7922, %v8150
        %v8152 = vcombine.high %v8151, %v8151
        %v8154 = vunpack.c.l.s4 1983009808
        %v8155 = vunpack.c.0.s8 %v8154
        %v8156 = vlaneseq
        %v8157 = vshrl.u32 %v8156, 7
        %v8158 = vsub.s32 %v8155, %v8157
        %v8159 = vrot.slane %v7931, %v8158
        %v8160 = vcombine.high %v8159, %v8159
        %v8162 = vunpack.c.l.s4 1983009808
        %v8163 = vunpack.c.0.s8 %v8162
        %v8164 = vlaneseq
        %v8165 = vshrl.u32 %v8164, 7
        %v8166 = vsub.s32 %v8163, %v8165
        %v8167 = vrot.slane %v7939, %v8166
        %v8168 = vcombine.high %v8167, %v8167
        %v8170 = vunpack.c.l.s4 1983009808
        %v8171 = vunpack.c.0.s8 %v8170
        %v8172 = vlaneseq
        %v8173 = vshrl.u32 %v8172, 7
        %v8174 = vsub.s32 %v8171, %v8173
        %v8175 = vrot.slane %v7938, %v8174
        %v8176 = vcombine.high %v8175, %v8175
        %v8178 = vunpack.c.l.s4 1983009808
        %v8179 = vunpack.c.0.s8 %v8178
        %v8180 = vlaneseq
        %v8181 = vshrl.u32 %v8180, 7
        %v8182 = vsub.s32 %v8179, %v8181
        %v8183 = vrot.slane %v7940, %v8182
        %v8184 = vcombine.high %v8183, %v8183
        %v8186 = vunpack.c.l.s4 1983009808
        %v8187 = vunpack.c.0.s8 %v8186
        %v8188 = vlaneseq
        %v8189 = vshrl.u32 %v8188, 7
        %v8190 = vsub.s32 %v8187, %v8189
        %v8191 = vrot.slane %v7949, %v8190
        %v8192 = vcombine.high %v8191, %v8191
        %v8194 = vunpack.c.l.s4 1983009808
        %v8195 = vunpack.c.0.s8 %v8194
        %v8196 = vlaneseq
        %v8197 = vshrl.u32 %v8196, 7
        %v8198 = vsub.s32 %v8195, %v8197
        %v8199 = vrot.slane %v7957, %v8198
        %v8200 = vcombine.high %v8199, %v8199
        %v8202 = vunpack.c.l.s4 1983009808
        %v8203 = vunpack.c.0.s8 %v8202
        %v8204 = vlaneseq
        %v8205 = vshrl.u32 %v8204, 7
        %v8206 = vsub.s32 %v8203, %v8205
        %v8207 = vrot.slane %v7956, %v8206
        %v8208 = vcombine.high %v8207, %v8207
        %v8210 = vunpack.c.l.s4 1983009808
        %v8211 = vunpack.c.0.s8 %v8210
        %v8212 = vlaneseq
        %v8213 = vshrl.u32 %v8212, 7
        %v8214 = vsub.s32 %v8211, %v8213
        %v8215 = vrot.slane %v7958, %v8214
        %v8216 = vcombine.high %v8215, %v8215
        %v8218 = vunpack.c.l.s4 1983009808
        %v8219 = vunpack.c.0.s8 %v8218
        %v8220 = vlaneseq
        %v8221 = vshrl.u32 %v8220, 7
        %v8222 = vsub.s32 %v8219, %v8221
        %v8223 = vrot.slane %v7967, %v8222
        %v8224 = vcombine.high %v8223, %v8223
        %v8226 = vunpack.c.l.s4 1983009808
        %v8227 = vunpack.c.0.s8 %v8226
        %v8228 = vlaneseq
        %v8229 = vshrl.u32 %v8228, 7
        %v8230 = vsub.s32 %v8227, %v8229
        %v8231 = vrot.slane %v7975, %v8230
        %v8232 = vcombine.high %v8231, %v8231
        %v8234 = vunpack.c.l.s4 1983009808
        %v8235 = vunpack.c.0.s8 %v8234
        %v8236 = vlaneseq
        %v8237 = vshrl.u32 %v8236, 7
        %v8238 = vsub.s32 %v8235, %v8237
        %v8239 = vrot.slane %v7974, %v8238
        %v8240 = vcombine.high %v8239, %v8239
        %v8242 = vunpack.c.l.s4 1983009808
        %v8243 = vunpack.c.0.s8 %v8242
        %v8244 = vlaneseq
        %v8245 = vshrl.u32 %v8244, 7
        %v8246 = vsub.s32 %v8243, %v8245
        %v8247 = vrot.slane %v7976, %v8246
        %v8248 = vcombine.high %v8247, %v8247
        %v8250 = vunpack.c.l.s4 1983009808
        %v8251 = vunpack.c.0.s8 %v8250
        %v8252 = vlaneseq
        %v8253 = vshrl.u32 %v8252, 7
        %v8254 = vsub.s32 %v8251, %v8253
        %v8255 = vrot.slane %v7985, %v8254
        %v8256 = vcombine.high %v8255, %v8255
        %v8258 = vunpack.c.l.s4 1983009808
        %v8259 = vunpack.c.0.s8 %v8258
        %v8260 = vlaneseq
        %v8261 = vshrl.u32 %v8260, 7
        %v8262 = vsub.s32 %v8259, %v8261
        %v8263 = vrot.slane %v7993, %v8262
        %v8264 = vcombine.high %v8263, %v8263
        %v8266 = vunpack.c.l.s4 1983009808
        %v8267 = vunpack.c.0.s8 %v8266
        %v8268 = vlaneseq
        %v8269 = vshrl.u32 %v8268, 7
        %v8270 = vsub.s32 %v8267, %v8269
        %v8271 = vrot.slane %v7992, %v8270
        %v8272 = vcombine.high %v8271, %v8271
        %v8274 = vunpack.c.l.s4 1983009808
        %v8275 = vunpack.c.0.s8 %v8274
        %v8276 = vlaneseq
        %v8277 = vshrl.u32 %v8276, 7
        %v8278 = vsub.s32 %v8275, %v8277
        %v8279 = vrot.slane %v7994, %v8278
        %v8280 = vcombine.high %v8279, %v8279
        %v8282 = vunpack.c.l.s4 1983009808
        %v8283 = vunpack.c.0.s8 %v8282
        %v8284 = vlaneseq
        %v8285 = vshrl.u32 %v8284, 7
        %v8286 = vsub.s32 %v8283, %v8285
        %v8287 = vrot.slane %v8003, %v8286
        %v8288 = vcombine.high %v8287, %v8287
        %v8290 = vunpack.c.l.s4 1983009808
        %v8291 = vunpack.c.0.s8 %v8290
        %v8292 = vlaneseq
        %v8293 = vshrl.u32 %v8292, 7
        %v8294 = vsub.s32 %v8291, %v8293
        %v8295 = vrot.slane %v8011, %v8294
        %v8296 = vcombine.high %v8295, %v8295
        %v8298 = vunpack.c.l.s4 1983009808
        %v8299 = vunpack.c.0.s8 %v8298
        %v8300 = vlaneseq
        %v8301 = vshrl.u32 %v8300, 7
        %v8302 = vsub.s32 %v8299, %v8301
        %v8303 = vrot.slane %v8010, %v8302
        %v8304 = vcombine.high %v8303, %v8303
        %v8306 = vunpack.c.l.s4 1983009808
        %v8307 = vunpack.c.0.s8 %v8306
        %v8308 = vlaneseq
        %v8309 = vshrl.u32 %v8308, 7
        %v8310 = vsub.s32 %v8307, %v8309
        %v8311 = vrot.slane %v8012, %v8310
        %v8312 = vcombine.high %v8311, %v8311
        %v8314 = vunpack.c.l.s4 1983009808
        %v8315 = vunpack.c.0.s8 %v8314
        %v8316 = vlaneseq
        %v8317 = vshrl.u32 %v8316, 7
        %v8318 = vsub.s32 %v8315, %v8317
        %v8319 = vrot.slane %v8021, %v8318
        %v8320 = vcombine.high %v8319, %v8319
        %v8322 = vunpack.c.l.s4 1983009808
        %v8323 = vunpack.c.0.s8 %v8322
        %v8324 = vlaneseq
        %v8325 = vshrl.u32 %v8324, 7
        %v8326 = vsub.s32 %v8323, %v8325
        %v8327 = vrot.slane %v8029, %v8326
        %v8328 = vcombine.high %v8327, %v8327
        %v8330 = vunpack.c.l.s4 1983009808
        %v8331 = vunpack.c.0.s8 %v8330
        %v8332 = vlaneseq
        %v8333 = vshrl.u32 %v8332, 7
        %v8334 = vsub.s32 %v8331, %v8333
        %v8335 = vrot.slane %v8028, %v8334
        %v8336 = vcombine.high %v8335, %v8335
        %v8338 = vunpack.c.l.s4 1983009808
        %v8339 = vunpack.c.0.s8 %v8338
        %v8340 = vlaneseq
        %v8341 = vshrl.u32 %v8340, 7
        %v8342 = vsub.s32 %v8339, %v8341
        %v8343 = vrot.slane %v8030, %v8342
        %v8344 = vcombine.high %v8343, %v8343
        %v8346 = vunpack.c.l.s4 1983009808
        %v8347 = vunpack.c.0.s8 %v8346
        %v8348 = vlaneseq
        %v8349 = vshrl.u32 %v8348, 7
        %v8350 = vsub.s32 %v8347, %v8349
        %v8351 = vrot.slane %v8039, %v8350
        %v8352 = vcombine.high %v8351, %v8351
        %v8354 = vunpack.c.l.s4 1983009808
        %v8355 = vunpack.c.0.s8 %v8354
        %v8356 = vlaneseq
        %v8357 = vshrl.u32 %v8356, 7
        %v8358 = vsub.s32 %v8355, %v8357
        %v8359 = vrot.slane %v8047, %v8358
        %v8360 = vcombine.high %v8359, %v8359
        %v8362 = vunpack.c.l.s4 1983009808
        %v8363 = vunpack.c.0.s8 %v8362
        %v8364 = vlaneseq
        %v8365 = vshrl.u32 %v8364, 7
        %v8366 = vsub.s32 %v8363, %v8365
        %v8367 = vrot.slane %v8046, %v8366
        %v8368 = vcombine.high %v8367, %v8367
        %v8370 = vunpack.c.l.s4 1983009808
        %v8371 = vunpack.c.0.s8 %v8370
        %v8372 = vlaneseq
        %v8373 = vshrl.u32 %v8372, 7
        %v8374 = vsub.s32 %v8371, %v8373
        %v8375 = vrot.slane %v8048, %v8374
        %v8376 = vcombine.high %v8375, %v8375
        %v8378 = vunpack.c.l.s4 1983009808
        %v8379 = vunpack.c.0.s8 %v8378
        %v8380 = vlaneseq
        %v8381 = vshrl.u32 %v8380, 7
        %v8382 = vsub.s32 %v8379, %v8381
        %v8383 = vrot.slane %v8057, %v8382
        %v8384 = vcombine.high %v8383, %v8383
        %v8386 = vunpack.c.l.s4 1983009808
        %v8387 = vunpack.c.0.s8 %v8386
        %v8388 = vlaneseq
        %v8389 = vshrl.u32 %v8388, 7
        %v8390 = vsub.s32 %v8387, %v8389
        %v8391 = vrot.slane %v8065, %v8390
        %v8392 = vcombine.high %v8391, %v8391
        %v8394 = vunpack.c.l.s4 1983009808
        %v8395 = vunpack.c.0.s8 %v8394
        %v8396 = vlaneseq
        %v8397 = vshrl.u32 %v8396, 7
        %v8398 = vsub.s32 %v8395, %v8397
        %v8399 = vrot.slane %v8064, %v8398
        %v8400 = vcombine.high %v8399, %v8399
        %v8402 = vunpack.c.l.s4 1983009808
        %v8403 = vunpack.c.0.s8 %v8402
        %v8404 = vlaneseq
        %v8405 = vshrl.u32 %v8404, 7
        %v8406 = vsub.s32 %v8403, %v8405
        %v8407 = vrot.slane %v8066, %v8406
        %v8408 = vcombine.high %v8407, %v8407
        %v8410 = vunpack.c.l.s4 1983009808
        %v8411 = vunpack.c.0.s8 %v8410
        %v8412 = vlaneseq
        %v8413 = vshrl.u32 %v8412, 7
        %v8414 = vsub.s32 %v8411, %v8413
        %v8415 = vrot.slane %v8075, %v8414
        %v8416 = vcombine.high %v8415, %v8415
        %v8418 = vunpack.c.l.s4 1983009808
        %v8419 = vunpack.c.0.s8 %v8418
        %v8420 = vlaneseq
        %v8421 = vshrl.u32 %v8420, 7
        %v8422 = vsub.s32 %v8419, %v8421
        %v8423 = vrot.slane %v8083, %v8422
        %v8424 = vcombine.high %v8423, %v8423
        %v8426 = vunpack.c.l.s4 1983009808
        %v8427 = vunpack.c.0.s8 %v8426
        %v8428 = vlaneseq
        %v8429 = vshrl.u32 %v8428, 7
        %v8430 = vsub.s32 %v8427, %v8429
        %v8431 = vrot.slane %v8082, %v8430
        %v8432 = vcombine.high %v8431, %v8431
        %v8434 = vunpack.c.l.s4 1983009808
        %v8435 = vunpack.c.0.s8 %v8434
        %v8436 = vlaneseq
        %v8437 = vshrl.u32 %v8436, 7
        %v8438 = vsub.s32 %v8435, %v8437
        %v8439 = vrot.slane %v8084, %v8438
        %v8440 = vcombine.high %v8439, %v8439
        %v8442 = vunpack.c.l.s4 1983009808
        %v8443 = vunpack.c.0.s8 %v8442
        %v8444 = vlaneseq
        %v8445 = vshrl.u32 %v8444, 7
        %v8446 = vsub.s32 %v8443, %v8445
        %v8447 = vrot.slane %v8093, %v8446
        %v8448 = vcombine.high %v8447, %v8447
        %v8450 = vunpack.c.l.s4 1983009808
        %v8451 = vunpack.c.0.s8 %v8450
        %v8452 = vlaneseq
        %v8453 = vshrl.u32 %v8452, 7
        %v8454 = vsub.s32 %v8451, %v8453
        %v8455 = vrot.slane %v8101, %v8454
        %v8456 = vcombine.high %v8455, %v8455
        %v8458 = vunpack.c.l.s4 1983009808
        %v8459 = vunpack.c.0.s8 %v8458
        %v8460 = vlaneseq
        %v8461 = vshrl.u32 %v8460, 7
        %v8462 = vsub.s32 %v8459, %v8461
        %v8463 = vrot.slane %v8100, %v8462
        %v8464 = vcombine.high %v8463, %v8463
        %v8466 = vunpack.c.l.s4 1983009808
        %v8467 = vunpack.c.0.s8 %v8466
        %v8468 = vlaneseq
        %v8469 = vshrl.u32 %v8468, 7
        %v8470 = vsub.s32 %v8467, %v8469
        %v8471 = vrot.slane %v8102, %v8470
        %v8472 = vcombine.high %v8471, %v8471
        %v8474 = vunpack.c.l.s4 1983009808
        %v8475 = vunpack.c.0.s8 %v8474
        %v8476 = vlaneseq
        %v8477 = vshrl.u32 %v8476, 7
        %v8478 = vsub.s32 %v8475, %v8477
        %v8479 = vrot.slane %v8111, %v8478
        %v8480 = vcombine.high %v8479, %v8479
        %v8482 = vunpack.c.l.s4 1983009808
        %v8483 = vunpack.c.0.s8 %v8482
        %v8484 = vlaneseq
        %v8485 = vshrl.u32 %v8484, 7
        %v8486 = vsub.s32 %v8483, %v8485
        %v8487 = vrot.slane %v8119, %v8486
        %v8488 = vcombine.high %v8487, %v8487
        %v8490 = vunpack.c.l.s4 1983009808
        %v8491 = vunpack.c.0.s8 %v8490
        %v8492 = vlaneseq
        %v8493 = vshrl.u32 %v8492, 7
        %v8494 = vsub.s32 %v8491, %v8493
        %v8495 = vrot.slane %v8118, %v8494
        %v8496 = vcombine.high %v8495, %v8495
        %v8498 = vunpack.c.l.s4 1983009808
        %v8499 = vunpack.c.0.s8 %v8498
        %v8500 = vlaneseq
        %v8501 = vshrl.u32 %v8500, 7
        %v8502 = vsub.s32 %v8499, %v8501
        %v8503 = vrot.slane %v8120, %v8502
        %v8504 = vcombine.high %v8503, %v8503
        %v8601 = vsel %vm3200, %v8127, -inf
        %v8602 = vrot.slane %v8601, 4
        %v8603 = vmax.f32 %v8601, %v8602
        %v8604 = vrot.slane %v8603, 2
        %v8605 = vmax.f32 %v8603, %v8604
        %v8606 = vrot.slane %v8605, 1
        %v8607 = vmax.f32 %v8605, %v8606
        %v8608 = vsel %vm3208, %v8128, -inf
        %v8609 = vrot.slane %v8608, 4
        %v8610 = vmax.f32 %v8608, %v8609
        %v8611 = vrot.slane %v8610, 2
        %v8612 = vmax.f32 %v8610, %v8611
        %v8613 = vrot.slane %v8612, 1
        %v8614 = vmax.f32 %v8612, %v8613
        %v8615 = vsel %vm3200, %v8135, -inf
        %v8616 = vrot.slane %v8615, 4
        %v8617 = vmax.f32 %v8615, %v8616
        %v8618 = vrot.slane %v8617, 2
        %v8619 = vmax.f32 %v8617, %v8618
        %v8620 = vrot.slane %v8619, 1
        %v8621 = vmax.f32 %v8619, %v8620
        %v8622 = vsel %vm3208, %v8136, -inf
        %v8623 = vrot.slane %v8622, 4
        %v8624 = vmax.f32 %v8622, %v8623
        %v8625 = vrot.slane %v8624, 2
        %v8626 = vmax.f32 %v8624, %v8625
        %v8627 = vrot.slane %v8626, 1
        %v8628 = vmax.f32 %v8626, %v8627
        %v8629 = vsel %vm3200, %v8143, -inf
        %v8630 = vrot.slane %v8629, 4
        %v8631 = vmax.f32 %v8629, %v8630
        %v8632 = vrot.slane %v8631, 2
        %v8633 = vmax.f32 %v8631, %v8632
        %v8634 = vrot.slane %v8633, 1
        %v8635 = vmax.f32 %v8633, %v8634
        %v8636 = vsel %vm3208, %v8144, -inf
        %v8637 = vrot.slane %v8636, 4
        %v8638 = vmax.f32 %v8636, %v8637
        %v8639 = vrot.slane %v8638, 2
        %v8640 = vmax.f32 %v8638, %v8639
        %v8641 = vrot.slane %v8640, 1
        %v8642 = vmax.f32 %v8640, %v8641
        %v8643 = vsel %vm3200, %v8151, -inf
        %v8644 = vrot.slane %v8643, 4
        %v8645 = vmax.f32 %v8643, %v8644
        %v8646 = vrot.slane %v8645, 2
        %v8647 = vmax.f32 %v8645, %v8646
        %v8648 = vrot.slane %v8647, 1
        %v8649 = vmax.f32 %v8647, %v8648
        %v8650 = vsel %vm3208, %v8152, -inf
        %v8651 = vrot.slane %v8650, 4
        %v8652 = vmax.f32 %v8650, %v8651
        %v8653 = vrot.slane %v8652, 2
        %v8654 = vmax.f32 %v8652, %v8653
        %v8655 = vrot.slane %v8654, 1
        %v8656 = vmax.f32 %v8654, %v8655
        %v8657 = vsel %vm3200, %v8159, -inf
        %v8658 = vrot.slane %v8657, 4
        %v8659 = vmax.f32 %v8657, %v8658
        %v8660 = vrot.slane %v8659, 2
        %v8661 = vmax.f32 %v8659, %v8660
        %v8662 = vrot.slane %v8661, 1
        %v8663 = vmax.f32 %v8661, %v8662
        %v8664 = vsel %vm3208, %v8160, -inf
        %v8665 = vrot.slane %v8664, 4
        %v8666 = vmax.f32 %v8664, %v8665
        %v8667 = vrot.slane %v8666, 2
        %v8668 = vmax.f32 %v8666, %v8667
        %v8669 = vrot.slane %v8668, 1
        %v8670 = vmax.f32 %v8668, %v8669
        %v8671 = vsel %vm3200, %v8167, -inf
        %v8672 = vrot.slane %v8671, 4
        %v8673 = vmax.f32 %v8671, %v8672
        %v8674 = vrot.slane %v8673, 2
        %v8675 = vmax.f32 %v8673, %v8674
        %v8676 = vrot.slane %v8675, 1
        %v8677 = vmax.f32 %v8675, %v8676
        %v8678 = vsel %vm3208, %v8168, -inf
        %v8679 = vrot.slane %v8678, 4
        %v8680 = vmax.f32 %v8678, %v8679
        %v8681 = vrot.slane %v8680, 2
        %v8682 = vmax.f32 %v8680, %v8681
        %v8683 = vrot.slane %v8682, 1
        %v8684 = vmax.f32 %v8682, %v8683
        %v8685 = vsel %vm3200, %v8175, -inf
        %v8686 = vrot.slane %v8685, 4
        %v8687 = vmax.f32 %v8685, %v8686
        %v8688 = vrot.slane %v8687, 2
        %v8689 = vmax.f32 %v8687, %v8688
        %v8690 = vrot.slane %v8689, 1
        %v8691 = vmax.f32 %v8689, %v8690
        %v8692 = vsel %vm3208, %v8176, -inf
        %v8693 = vrot.slane %v8692, 4
        %v8694 = vmax.f32 %v8692, %v8693
        %v8695 = vrot.slane %v8694, 2
        %v8696 = vmax.f32 %v8694, %v8695
        %v8697 = vrot.slane %v8696, 1
        %v8698 = vmax.f32 %v8696, %v8697
        %v8699 = vsel %vm3200, %v8183, -inf
        %v8700 = vrot.slane %v8699, 4
        %v8701 = vmax.f32 %v8699, %v8700
        %v8702 = vrot.slane %v8701, 2
        %v8703 = vmax.f32 %v8701, %v8702
        %v8704 = vrot.slane %v8703, 1
        %v8705 = vmax.f32 %v8703, %v8704
        %v8706 = vsel %vm3208, %v8184, -inf
        %v8707 = vrot.slane %v8706, 4
        %v8708 = vmax.f32 %v8706, %v8707
        %v8709 = vrot.slane %v8708, 2
        %v8710 = vmax.f32 %v8708, %v8709
        %v8711 = vrot.slane %v8710, 1
        %v8712 = vmax.f32 %v8710, %v8711
        %v8713 = vsel %vm3200, %v8191, -inf
        %v8714 = vrot.slane %v8713, 4
        %v8715 = vmax.f32 %v8713, %v8714
        %v8716 = vrot.slane %v8715, 2
        %v8717 = vmax.f32 %v8715, %v8716
        %v8718 = vrot.slane %v8717, 1
        %v8719 = vmax.f32 %v8717, %v8718
        %v8720 = vsel %vm3208, %v8192, -inf
        %v8721 = vrot.slane %v8720, 4
        %v8722 = vmax.f32 %v8720, %v8721
        %v8723 = vrot.slane %v8722, 2
        %v8724 = vmax.f32 %v8722, %v8723
        %v8725 = vrot.slane %v8724, 1
        %v8726 = vmax.f32 %v8724, %v8725
        %v8727 = vsel %vm3200, %v8199, -inf
        %v8728 = vrot.slane %v8727, 4
        %v8729 = vmax.f32 %v8727, %v8728
        %v8730 = vrot.slane %v8729, 2
        %v8731 = vmax.f32 %v8729, %v8730
        %v8732 = vrot.slane %v8731, 1
        %v8733 = vmax.f32 %v8731, %v8732
        %v8734 = vsel %vm3208, %v8200, -inf
        %v8735 = vrot.slane %v8734, 4
        %v8736 = vmax.f32 %v8734, %v8735
        %v8737 = vrot.slane %v8736, 2
        %v8738 = vmax.f32 %v8736, %v8737
        %v8739 = vrot.slane %v8738, 1
        %v8740 = vmax.f32 %v8738, %v8739
        %v8741 = vsel %vm3200, %v8207, -inf
        %v8742 = vrot.slane %v8741, 4
        %v8743 = vmax.f32 %v8741, %v8742
        %v8744 = vrot.slane %v8743, 2
        %v8745 = vmax.f32 %v8743, %v8744
        %v8746 = vrot.slane %v8745, 1
        %v8747 = vmax.f32 %v8745, %v8746
        %v8748 = vsel %vm3208, %v8208, -inf
        %v8749 = vrot.slane %v8748, 4
        %v8750 = vmax.f32 %v8748, %v8749
        %v8751 = vrot.slane %v8750, 2
        %v8752 = vmax.f32 %v8750, %v8751
        %v8753 = vrot.slane %v8752, 1
        %v8754 = vmax.f32 %v8752, %v8753
        %v8755 = vsel %vm3200, %v8215, -inf
        %v8756 = vrot.slane %v8755, 4
        %v8757 = vmax.f32 %v8755, %v8756
        %v8758 = vrot.slane %v8757, 2
        %v8759 = vmax.f32 %v8757, %v8758
        %v8760 = vrot.slane %v8759, 1
        %v8761 = vmax.f32 %v8759, %v8760
        %v8762 = vsel %vm3208, %v8216, -inf
        %v8763 = vrot.slane %v8762, 4
        %v8764 = vmax.f32 %v8762, %v8763
        %v8765 = vrot.slane %v8764, 2
        %v8766 = vmax.f32 %v8764, %v8765
        %v8767 = vrot.slane %v8766, 1
        %v8768 = vmax.f32 %v8766, %v8767
        %v8769 = vsel %vm3200, %v8223, -inf
        %v8770 = vrot.slane %v8769, 4
        %v8771 = vmax.f32 %v8769, %v8770
        %v8772 = vrot.slane %v8771, 2
        %v8773 = vmax.f32 %v8771, %v8772
        %v8774 = vrot.slane %v8773, 1
        %v8775 = vmax.f32 %v8773, %v8774
        %v8776 = vsel %vm3208, %v8224, -inf
        %v8777 = vrot.slane %v8776, 4
        %v8778 = vmax.f32 %v8776, %v8777
        %v8779 = vrot.slane %v8778, 2
        %v8780 = vmax.f32 %v8778, %v8779
        %v8781 = vrot.slane %v8780, 1
        %v8782 = vmax.f32 %v8780, %v8781
        %v8783 = vsel %vm3200, %v8231, -inf
        %v8784 = vrot.slane %v8783, 4
        %v8785 = vmax.f32 %v8783, %v8784
        %v8786 = vrot.slane %v8785, 2
        %v8787 = vmax.f32 %v8785, %v8786
        %v8788 = vrot.slane %v8787, 1
        %v8789 = vmax.f32 %v8787, %v8788
        %v8790 = vsel %vm3208, %v8232, -inf
        %v8791 = vrot.slane %v8790, 4
        %v8792 = vmax.f32 %v8790, %v8791
        %v8793 = vrot.slane %v8792, 2
        %v8794 = vmax.f32 %v8792, %v8793
        %v8795 = vrot.slane %v8794, 1
        %v8796 = vmax.f32 %v8794, %v8795
        %v8797 = vsel %vm3200, %v8239, -inf
        %v8798 = vrot.slane %v8797, 4
        %v8799 = vmax.f32 %v8797, %v8798
        %v8800 = vrot.slane %v8799, 2
        %v8801 = vmax.f32 %v8799, %v8800
        %v8802 = vrot.slane %v8801, 1
        %v8803 = vmax.f32 %v8801, %v8802
        %v8804 = vsel %vm3208, %v8240, -inf
        %v8805 = vrot.slane %v8804, 4
        %v8806 = vmax.f32 %v8804, %v8805
        %v8807 = vrot.slane %v8806, 2
        %v8808 = vmax.f32 %v8806, %v8807
        %v8809 = vrot.slane %v8808, 1
        %v8810 = vmax.f32 %v8808, %v8809
        %v8811 = vsel %vm3200, %v8247, -inf
        %v8812 = vrot.slane %v8811, 4
        %v8813 = vmax.f32 %v8811, %v8812
        %v8814 = vrot.slane %v8813, 2
        %v8815 = vmax.f32 %v8813, %v8814
        %v8816 = vrot.slane %v8815, 1
        %v8817 = vmax.f32 %v8815, %v8816
        %v8818 = vsel %vm3208, %v8248, -inf
        %v8819 = vrot.slane %v8818, 4
        %v8820 = vmax.f32 %v8818, %v8819
        %v8821 = vrot.slane %v8820, 2
        %v8822 = vmax.f32 %v8820, %v8821
        %v8823 = vrot.slane %v8822, 1
        %v8824 = vmax.f32 %v8822, %v8823
        %v8825 = vsel %vm3200, %v8255, -inf
        %v8826 = vrot.slane %v8825, 4
        %v8827 = vmax.f32 %v8825, %v8826
        %v8828 = vrot.slane %v8827, 2
        %v8829 = vmax.f32 %v8827, %v8828
        %v8830 = vrot.slane %v8829, 1
        %v8831 = vmax.f32 %v8829, %v8830
        %v8832 = vsel %vm3208, %v8256, -inf
        %v8833 = vrot.slane %v8832, 4
        %v8834 = vmax.f32 %v8832, %v8833
        %v8835 = vrot.slane %v8834, 2
        %v8836 = vmax.f32 %v8834, %v8835
        %v8837 = vrot.slane %v8836, 1
        %v8838 = vmax.f32 %v8836, %v8837
        %v8839 = vsel %vm3200, %v8263, -inf
        %v8840 = vrot.slane %v8839, 4
        %v8841 = vmax.f32 %v8839, %v8840
        %v8842 = vrot.slane %v8841, 2
        %v8843 = vmax.f32 %v8841, %v8842
        %v8844 = vrot.slane %v8843, 1
        %v8845 = vmax.f32 %v8843, %v8844
        %v8846 = vsel %vm3208, %v8264, -inf
        %v8847 = vrot.slane %v8846, 4
        %v8848 = vmax.f32 %v8846, %v8847
        %v8849 = vrot.slane %v8848, 2
        %v8850 = vmax.f32 %v8848, %v8849
        %v8851 = vrot.slane %v8850, 1
        %v8852 = vmax.f32 %v8850, %v8851
        %v8853 = vsel %vm3200, %v8271, -inf
        %v8854 = vrot.slane %v8853, 4
        %v8855 = vmax.f32 %v8853, %v8854
        %v8856 = vrot.slane %v8855, 2
        %v8857 = vmax.f32 %v8855, %v8856
        %v8858 = vrot.slane %v8857, 1
        %v8859 = vmax.f32 %v8857, %v8858
        %v8860 = vsel %vm3208, %v8272, -inf
        %v8861 = vrot.slane %v8860, 4
        %v8862 = vmax.f32 %v8860, %v8861
        %v8863 = vrot.slane %v8862, 2
        %v8864 = vmax.f32 %v8862, %v8863
        %v8865 = vrot.slane %v8864, 1
        %v8866 = vmax.f32 %v8864, %v8865
        %v8867 = vsel %vm3200, %v8279, -inf
        %v8868 = vrot.slane %v8867, 4
        %v8869 = vmax.f32 %v8867, %v8868
        %v8870 = vrot.slane %v8869, 2
        %v8871 = vmax.f32 %v8869, %v8870
        %v8872 = vrot.slane %v8871, 1
        %v8873 = vmax.f32 %v8871, %v8872
        %v8874 = vsel %vm3208, %v8280, -inf
        %v8875 = vrot.slane %v8874, 4
        %v8876 = vmax.f32 %v8874, %v8875
        %v8877 = vrot.slane %v8876, 2
        %v8878 = vmax.f32 %v8876, %v8877
        %v8879 = vrot.slane %v8878, 1
        %v8880 = vmax.f32 %v8878, %v8879
        %v8881 = vsel %vm3200, %v8287, -inf
        %v8882 = vrot.slane %v8881, 4
        %v8883 = vmax.f32 %v8881, %v8882
        %v8884 = vrot.slane %v8883, 2
        %v8885 = vmax.f32 %v8883, %v8884
        %v8886 = vrot.slane %v8885, 1
        %v8887 = vmax.f32 %v8885, %v8886
        %v8888 = vsel %vm3208, %v8288, -inf
        %v8889 = vrot.slane %v8888, 4
        %v8890 = vmax.f32 %v8888, %v8889
        %v8891 = vrot.slane %v8890, 2
        %v8892 = vmax.f32 %v8890, %v8891
        %v8893 = vrot.slane %v8892, 1
        %v8894 = vmax.f32 %v8892, %v8893
        %v8895 = vsel %vm3200, %v8295, -inf
        %v8896 = vrot.slane %v8895, 4
        %v8897 = vmax.f32 %v8895, %v8896
        %v8898 = vrot.slane %v8897, 2
        %v8899 = vmax.f32 %v8897, %v8898
        %v8900 = vrot.slane %v8899, 1
        %v8901 = vmax.f32 %v8899, %v8900
        %v8902 = vsel %vm3208, %v8296, -inf
        %v8903 = vrot.slane %v8902, 4
        %v8904 = vmax.f32 %v8902, %v8903
        %v8905 = vrot.slane %v8904, 2
        %v8906 = vmax.f32 %v8904, %v8905
        %v8907 = vrot.slane %v8906, 1
        %v8908 = vmax.f32 %v8906, %v8907
        %v8909 = vsel %vm3200, %v8303, -inf
        %v8910 = vrot.slane %v8909, 4
        %v8911 = vmax.f32 %v8909, %v8910
        %v8912 = vrot.slane %v8911, 2
        %v8913 = vmax.f32 %v8911, %v8912
        %v8914 = vrot.slane %v8913, 1
        %v8915 = vmax.f32 %v8913, %v8914
        %v8916 = vsel %vm3208, %v8304, -inf
        %v8917 = vrot.slane %v8916, 4
        %v8918 = vmax.f32 %v8916, %v8917
        %v8919 = vrot.slane %v8918, 2
        %v8920 = vmax.f32 %v8918, %v8919
        %v8921 = vrot.slane %v8920, 1
        %v8922 = vmax.f32 %v8920, %v8921
        %v8923 = vsel %vm3200, %v8311, -inf
        %v8924 = vrot.slane %v8923, 4
        %v8925 = vmax.f32 %v8923, %v8924
        %v8926 = vrot.slane %v8925, 2
        %v8927 = vmax.f32 %v8925, %v8926
        %v8928 = vrot.slane %v8927, 1
        %v8929 = vmax.f32 %v8927, %v8928
        %v8930 = vsel %vm3208, %v8312, -inf
        %v8931 = vrot.slane %v8930, 4
        %v8932 = vmax.f32 %v8930, %v8931
        %v8933 = vrot.slane %v8932, 2
        %v8934 = vmax.f32 %v8932, %v8933
        %v8935 = vrot.slane %v8934, 1
        %v8936 = vmax.f32 %v8934, %v8935
        %v8937 = vsel %vm3200, %v8319, -inf
        %v8938 = vrot.slane %v8937, 4
        %v8939 = vmax.f32 %v8937, %v8938
        %v8940 = vrot.slane %v8939, 2
        %v8941 = vmax.f32 %v8939, %v8940
        %v8942 = vrot.slane %v8941, 1
        %v8943 = vmax.f32 %v8941, %v8942
        %v8944 = vsel %vm3208, %v8320, -inf
        %v8945 = vrot.slane %v8944, 4
        %v8946 = vmax.f32 %v8944, %v8945
        %v8947 = vrot.slane %v8946, 2
        %v8948 = vmax.f32 %v8946, %v8947
        %v8949 = vrot.slane %v8948, 1
        %v8950 = vmax.f32 %v8948, %v8949
        %v8951 = vsel %vm3200, %v8327, -inf
        %v8952 = vrot.slane %v8951, 4
        %v8953 = vmax.f32 %v8951, %v8952
        %v8954 = vrot.slane %v8953, 2
        %v8955 = vmax.f32 %v8953, %v8954
        %v8956 = vrot.slane %v8955, 1
        %v8957 = vmax.f32 %v8955, %v8956
        %v8958 = vsel %vm3208, %v8328, -inf
        %v8959 = vrot.slane %v8958, 4
        %v8960 = vmax.f32 %v8958, %v8959
        %v8961 = vrot.slane %v8960, 2
        %v8962 = vmax.f32 %v8960, %v8961
        %v8963 = vrot.slane %v8962, 1
        %v8964 = vmax.f32 %v8962, %v8963
        %v8965 = vsel %vm3200, %v8335, -inf
        %v8966 = vrot.slane %v8965, 4
        %v8967 = vmax.f32 %v8965, %v8966
        %v8968 = vrot.slane %v8967, 2
        %v8969 = vmax.f32 %v8967, %v8968
        %v8970 = vrot.slane %v8969, 1
        %v8971 = vmax.f32 %v8969, %v8970
        %v8972 = vsel %vm3208, %v8336, -inf
        %v8973 = vrot.slane %v8972, 4
        %v8974 = vmax.f32 %v8972, %v8973
        %v8975 = vrot.slane %v8974, 2
        %v8976 = vmax.f32 %v8974, %v8975
        %v8977 = vrot.slane %v8976, 1
        %v8978 = vmax.f32 %v8976, %v8977
        %v8979 = vsel %vm3200, %v8343, -inf
        %v8980 = vrot.slane %v8979, 4
        %v8981 = vmax.f32 %v8979, %v8980
        %v8982 = vrot.slane %v8981, 2
        %v8983 = vmax.f32 %v8981, %v8982
        %v8984 = vrot.slane %v8983, 1
        %v8985 = vmax.f32 %v8983, %v8984
        %v8986 = vsel %vm3208, %v8344, -inf
        %v8987 = vrot.slane %v8986, 4
        %v8988 = vmax.f32 %v8986, %v8987
        %v8989 = vrot.slane %v8988, 2
        %v8990 = vmax.f32 %v8988, %v8989
        %v8991 = vrot.slane %v8990, 1
        %v8992 = vmax.f32 %v8990, %v8991
        %v8993 = vsel %vm3200, %v8351, -inf
        %v8994 = vrot.slane %v8993, 4
        %v8995 = vmax.f32 %v8993, %v8994
        %v8996 = vrot.slane %v8995, 2
        %v8997 = vmax.f32 %v8995, %v8996
        %v8998 = vrot.slane %v8997, 1
        %v8999 = vmax.f32 %v8997, %v8998
        %v9000 = vsel %vm3208, %v8352, -inf
        %v9001 = vrot.slane %v9000, 4
        %v9002 = vmax.f32 %v9000, %v9001
        %v9003 = vrot.slane %v9002, 2
        %v9004 = vmax.f32 %v9002, %v9003
        %v9005 = vrot.slane %v9004, 1
        %v9006 = vmax.f32 %v9004, %v9005
        %v9007 = vsel %vm3200, %v8359, -inf
        %v9008 = vrot.slane %v9007, 4
        %v9009 = vmax.f32 %v9007, %v9008
        %v9010 = vrot.slane %v9009, 2
        %v9011 = vmax.f32 %v9009, %v9010
        %v9012 = vrot.slane %v9011, 1
        %v9013 = vmax.f32 %v9011, %v9012
        %v9014 = vsel %vm3208, %v8360, -inf
        %v9015 = vrot.slane %v9014, 4
        %v9016 = vmax.f32 %v9014, %v9015
        %v9017 = vrot.slane %v9016, 2
        %v9018 = vmax.f32 %v9016, %v9017
        %v9019 = vrot.slane %v9018, 1
        %v9020 = vmax.f32 %v9018, %v9019
        %v9021 = vsel %vm3200, %v8367, -inf
        %v9022 = vrot.slane %v9021, 4
        %v9023 = vmax.f32 %v9021, %v9022
        %v9024 = vrot.slane %v9023, 2
        %v9025 = vmax.f32 %v9023, %v9024
        %v9026 = vrot.slane %v9025, 1
        %v9027 = vmax.f32 %v9025, %v9026
        %v9028 = vsel %vm3208, %v8368, -inf
        %v9029 = vrot.slane %v9028, 4
        %v9030 = vmax.f32 %v9028, %v9029
        %v9031 = vrot.slane %v9030, 2
        %v9032 = vmax.f32 %v9030, %v9031
        %v9033 = vrot.slane %v9032, 1
        %v9034 = vmax.f32 %v9032, %v9033
        %v9035 = vsel %vm3200, %v8375, -inf
        %v9036 = vrot.slane %v9035, 4
        %v9037 = vmax.f32 %v9035, %v9036
        %v9038 = vrot.slane %v9037, 2
        %v9039 = vmax.f32 %v9037, %v9038
        %v9040 = vrot.slane %v9039, 1
        %v9041 = vmax.f32 %v9039, %v9040
        %v9042 = vsel %vm3208, %v8376, -inf
        %v9043 = vrot.slane %v9042, 4
        %v9044 = vmax.f32 %v9042, %v9043
        %v9045 = vrot.slane %v9044, 2
        %v9046 = vmax.f32 %v9044, %v9045
        %v9047 = vrot.slane %v9046, 1
        %v9048 = vmax.f32 %v9046, %v9047
        %v9049 = vsel %vm3200, %v8383, -inf
        %v9050 = vrot.slane %v9049, 4
        %v9051 = vmax.f32 %v9049, %v9050
        %v9052 = vrot.slane %v9051, 2
        %v9053 = vmax.f32 %v9051, %v9052
        %v9054 = vrot.slane %v9053, 1
        %v9055 = vmax.f32 %v9053, %v9054
        %v9056 = vsel %vm3208, %v8384, -inf
        %v9057 = vrot.slane %v9056, 4
        %v9058 = vmax.f32 %v9056, %v9057
        %v9059 = vrot.slane %v9058, 2
        %v9060 = vmax.f32 %v9058, %v9059
        %v9061 = vrot.slane %v9060, 1
        %v9062 = vmax.f32 %v9060, %v9061
        %v9063 = vsel %vm3200, %v8391, -inf
        %v9064 = vrot.slane %v9063, 4
        %v9065 = vmax.f32 %v9063, %v9064
        %v9066 = vrot.slane %v9065, 2
        %v9067 = vmax.f32 %v9065, %v9066
        %v9068 = vrot.slane %v9067, 1
        %v9069 = vmax.f32 %v9067, %v9068
        %v9070 = vsel %vm3208, %v8392, -inf
        %v9071 = vrot.slane %v9070, 4
        %v9072 = vmax.f32 %v9070, %v9071
        %v9073 = vrot.slane %v9072, 2
        %v9074 = vmax.f32 %v9072, %v9073
        %v9075 = vrot.slane %v9074, 1
        %v9076 = vmax.f32 %v9074, %v9075
        %v9077 = vsel %vm3200, %v8399, -inf
        %v9078 = vrot.slane %v9077, 4
        %v9079 = vmax.f32 %v9077, %v9078
        %v9080 = vrot.slane %v9079, 2
        %v9081 = vmax.f32 %v9079, %v9080
        %v9082 = vrot.slane %v9081, 1
        %v9083 = vmax.f32 %v9081, %v9082
        %v9084 = vsel %vm3208, %v8400, -inf
        %v9085 = vrot.slane %v9084, 4
        %v9086 = vmax.f32 %v9084, %v9085
        %v9087 = vrot.slane %v9086, 2
        %v9088 = vmax.f32 %v9086, %v9087
        %v9089 = vrot.slane %v9088, 1
        %v9090 = vmax.f32 %v9088, %v9089
        %v9091 = vsel %vm3200, %v8407, -inf
        %v9092 = vrot.slane %v9091, 4
        %v9093 = vmax.f32 %v9091, %v9092
        %v9094 = vrot.slane %v9093, 2
        %v9095 = vmax.f32 %v9093, %v9094
        %v9096 = vrot.slane %v9095, 1
        %v9097 = vmax.f32 %v9095, %v9096
        %v9098 = vsel %vm3208, %v8408, -inf
        %v9099 = vrot.slane %v9098, 4
        %v9100 = vmax.f32 %v9098, %v9099
        %v9101 = vrot.slane %v9100, 2
        %v9102 = vmax.f32 %v9100, %v9101
        %v9103 = vrot.slane %v9102, 1
        %v9104 = vmax.f32 %v9102, %v9103
        %v9105 = vsel %vm3200, %v8415, -inf
        %v9106 = vrot.slane %v9105, 4
        %v9107 = vmax.f32 %v9105, %v9106
        %v9108 = vrot.slane %v9107, 2
        %v9109 = vmax.f32 %v9107, %v9108
        %v9110 = vrot.slane %v9109, 1
        %v9111 = vmax.f32 %v9109, %v9110
        %v9112 = vsel %vm3208, %v8416, -inf
        %v9113 = vrot.slane %v9112, 4
        %v9114 = vmax.f32 %v9112, %v9113
        %v9115 = vrot.slane %v9114, 2
        %v9116 = vmax.f32 %v9114, %v9115
        %v9117 = vrot.slane %v9116, 1
        %v9118 = vmax.f32 %v9116, %v9117
        %v9119 = vsel %vm3200, %v8423, -inf
        %v9120 = vrot.slane %v9119, 4
        %v9121 = vmax.f32 %v9119, %v9120
        %v9122 = vrot.slane %v9121, 2
        %v9123 = vmax.f32 %v9121, %v9122
        %v9124 = vrot.slane %v9123, 1
        %v9125 = vmax.f32 %v9123, %v9124
        %v9126 = vsel %vm3208, %v8424, -inf
        %v9127 = vrot.slane %v9126, 4
        %v9128 = vmax.f32 %v9126, %v9127
        %v9129 = vrot.slane %v9128, 2
        %v9130 = vmax.f32 %v9128, %v9129
        %v9131 = vrot.slane %v9130, 1
        %v9132 = vmax.f32 %v9130, %v9131
        %v9133 = vsel %vm3200, %v8431, -inf
        %v9134 = vrot.slane %v9133, 4
        %v9135 = vmax.f32 %v9133, %v9134
        %v9136 = vrot.slane %v9135, 2
        %v9137 = vmax.f32 %v9135, %v9136
        %v9138 = vrot.slane %v9137, 1
        %v9139 = vmax.f32 %v9137, %v9138
        %v9140 = vsel %vm3208, %v8432, -inf
        %v9141 = vrot.slane %v9140, 4
        %v9142 = vmax.f32 %v9140, %v9141
        %v9143 = vrot.slane %v9142, 2
        %v9144 = vmax.f32 %v9142, %v9143
        %v9145 = vrot.slane %v9144, 1
        %v9146 = vmax.f32 %v9144, %v9145
        %v9147 = vsel %vm3200, %v8439, -inf
        %v9148 = vrot.slane %v9147, 4
        %v9149 = vmax.f32 %v9147, %v9148
        %v9150 = vrot.slane %v9149, 2
        %v9151 = vmax.f32 %v9149, %v9150
        %v9152 = vrot.slane %v9151, 1
        %v9153 = vmax.f32 %v9151, %v9152
        %v9154 = vsel %vm3208, %v8440, -inf
        %v9155 = vrot.slane %v9154, 4
        %v9156 = vmax.f32 %v9154, %v9155
        %v9157 = vrot.slane %v9156, 2
        %v9158 = vmax.f32 %v9156, %v9157
        %v9159 = vrot.slane %v9158, 1
        %v9160 = vmax.f32 %v9158, %v9159
        %v9161 = vsel %vm3200, %v8447, -inf
        %v9162 = vrot.slane %v9161, 4
        %v9163 = vmax.f32 %v9161, %v9162
        %v9164 = vrot.slane %v9163, 2
        %v9165 = vmax.f32 %v9163, %v9164
        %v9166 = vrot.slane %v9165, 1
        %v9167 = vmax.f32 %v9165, %v9166
        %v9168 = vsel %vm3208, %v8448, -inf
        %v9169 = vrot.slane %v9168, 4
        %v9170 = vmax.f32 %v9168, %v9169
        %v9171 = vrot.slane %v9170, 2
        %v9172 = vmax.f32 %v9170, %v9171
        %v9173 = vrot.slane %v9172, 1
        %v9174 = vmax.f32 %v9172, %v9173
        %v9175 = vsel %vm3200, %v8455, -inf
        %v9176 = vrot.slane %v9175, 4
        %v9177 = vmax.f32 %v9175, %v9176
        %v9178 = vrot.slane %v9177, 2
        %v9179 = vmax.f32 %v9177, %v9178
        %v9180 = vrot.slane %v9179, 1
        %v9181 = vmax.f32 %v9179, %v9180
        %v9182 = vsel %vm3208, %v8456, -inf
        %v9183 = vrot.slane %v9182, 4
        %v9184 = vmax.f32 %v9182, %v9183
        %v9185 = vrot.slane %v9184, 2
        %v9186 = vmax.f32 %v9184, %v9185
        %v9187 = vrot.slane %v9186, 1
        %v9188 = vmax.f32 %v9186, %v9187
        %v9189 = vsel %vm3200, %v8463, -inf
        %v9190 = vrot.slane %v9189, 4
        %v9191 = vmax.f32 %v9189, %v9190
        %v9192 = vrot.slane %v9191, 2
        %v9193 = vmax.f32 %v9191, %v9192
        %v9194 = vrot.slane %v9193, 1
        %v9195 = vmax.f32 %v9193, %v9194
        %v9196 = vsel %vm3208, %v8464, -inf
        %v9197 = vrot.slane %v9196, 4
        %v9198 = vmax.f32 %v9196, %v9197
        %v9199 = vrot.slane %v9198, 2
        %v9200 = vmax.f32 %v9198, %v9199
        %v9201 = vrot.slane %v9200, 1
        %v9202 = vmax.f32 %v9200, %v9201
        %v9203 = vsel %vm3200, %v8471, -inf
        %v9204 = vrot.slane %v9203, 4
        %v9205 = vmax.f32 %v9203, %v9204
        %v9206 = vrot.slane %v9205, 2
        %v9207 = vmax.f32 %v9205, %v9206
        %v9208 = vrot.slane %v9207, 1
        %v9209 = vmax.f32 %v9207, %v9208
        %v9210 = vsel %vm3208, %v8472, -inf
        %v9211 = vrot.slane %v9210, 4
        %v9212 = vmax.f32 %v9210, %v9211
        %v9213 = vrot.slane %v9212, 2
        %v9214 = vmax.f32 %v9212, %v9213
        %v9215 = vrot.slane %v9214, 1
        %v9216 = vmax.f32 %v9214, %v9215
        %v9217 = vsel %vm3200, %v8479, -inf
        %v9218 = vrot.slane %v9217, 4
        %v9219 = vmax.f32 %v9217, %v9218
        %v9220 = vrot.slane %v9219, 2
        %v9221 = vmax.f32 %v9219, %v9220
        %v9222 = vrot.slane %v9221, 1
        %v9223 = vmax.f32 %v9221, %v9222
        %v9224 = vsel %vm3208, %v8480, -inf
        %v9225 = vrot.slane %v9224, 4
        %v9226 = vmax.f32 %v9224, %v9225
        %v9227 = vrot.slane %v9226, 2
        %v9228 = vmax.f32 %v9226, %v9227
        %v9229 = vrot.slane %v9228, 1
        %v9230 = vmax.f32 %v9228, %v9229
        %v9231 = vsel %vm3200, %v8487, -inf
        %v9232 = vrot.slane %v9231, 4
        %v9233 = vmax.f32 %v9231, %v9232
        %v9234 = vrot.slane %v9233, 2
        %v9235 = vmax.f32 %v9233, %v9234
        %v9236 = vrot.slane %v9235, 1
        %v9237 = vmax.f32 %v9235, %v9236
        %v9238 = vsel %vm3208, %v8488, -inf
        %v9239 = vrot.slane %v9238, 4
        %v9240 = vmax.f32 %v9238, %v9239
        %v9241 = vrot.slane %v9240, 2
        %v9242 = vmax.f32 %v9240, %v9241
        %v9243 = vrot.slane %v9242, 1
        %v9244 = vmax.f32 %v9242, %v9243
        %v9245 = vsel %vm3200, %v8495, -inf
        %v9246 = vrot.slane %v9245, 4
        %v9247 = vmax.f32 %v9245, %v9246
        %v9248 = vrot.slane %v9247, 2
        %v9249 = vmax.f32 %v9247, %v9248
        %v9250 = vrot.slane %v9249, 1
        %v9251 = vmax.f32 %v9249, %v9250
        %v9252 = vsel %vm3208, %v8496, -inf
        %v9253 = vrot.slane %v9252, 4
        %v9254 = vmax.f32 %v9252, %v9253
        %v9255 = vrot.slane %v9254, 2
        %v9256 = vmax.f32 %v9254, %v9255
        %v9257 = vrot.slane %v9256, 1
        %v9258 = vmax.f32 %v9256, %v9257
        %v9259 = vsel %vm3200, %v8503, -inf
        %v9260 = vrot.slane %v9259, 4
        %v9261 = vmax.f32 %v9259, %v9260
        %v9262 = vrot.slane %v9261, 2
        %v9263 = vmax.f32 %v9261, %v9262
        %v9264 = vrot.slane %v9263, 1
        %v9265 = vmax.f32 %v9263, %v9264
        %v9266 = vsel %vm3208, %v8504, -inf
        %v9267 = vrot.slane %v9266, 4
        %v9268 = vmax.f32 %v9266, %v9267
        %v9269 = vrot.slane %v9268, 2
        %v9270 = vmax.f32 %v9268, %v9269
        %v9271 = vrot.slane %v9270, 1
        %v9272 = vmax.f32 %v9270, %v9271
        %v9369 = vsel %vm4738, %v8621, %v8607
        %v9370 = vsel %vm4740, %v8635, %v9369
        %v9371 = vsel %vm4742, %v8649, %v9370
        %v9372 = vsel %vm4744, %v8663, %v9371
        %v9373 = vsel %vm4746, %v8677, %v9372
        %v9374 = vsel %vm4748, %v8691, %v9373
        %v9375 = vsel %vm4750, %v8705, %v9374
        %v9376 = vsel %vm4738, %v8628, %v8614
        %v9377 = vsel %vm4740, %v8642, %v9376
        %v9378 = vsel %vm4742, %v8656, %v9377
        %v9379 = vsel %vm4744, %v8670, %v9378
        %v9380 = vsel %vm4746, %v8684, %v9379
        %v9381 = vsel %vm4748, %v8698, %v9380
        %v9382 = vsel %vm4750, %v8712, %v9381
        %v9383 = vsel %vm4738, %v8733, %v8719
        %v9384 = vsel %vm4740, %v8747, %v9383
        %v9385 = vsel %vm4742, %v8761, %v9384
        %v9386 = vsel %vm4744, %v8775, %v9385
        %v9387 = vsel %vm4746, %v8789, %v9386
        %v9388 = vsel %vm4748, %v8803, %v9387
        %v9389 = vsel %vm4750, %v8817, %v9388
        %v9390 = vsel %vm4738, %v8740, %v8726
        %v9391 = vsel %vm4740, %v8754, %v9390
        %v9392 = vsel %vm4742, %v8768, %v9391
        %v9393 = vsel %vm4744, %v8782, %v9392
        %v9394 = vsel %vm4746, %v8796, %v9393
        %v9395 = vsel %vm4748, %v8810, %v9394
        %v9396 = vsel %vm4750, %v8824, %v9395
        %v9397 = vsel %vm4738, %v8845, %v8831
        %v9398 = vsel %vm4740, %v8859, %v9397
        %v9399 = vsel %vm4742, %v8873, %v9398
        %v9400 = vsel %vm4744, %v8887, %v9399
        %v9401 = vsel %vm4746, %v8901, %v9400
        %v9402 = vsel %vm4748, %v8915, %v9401
        %v9403 = vsel %vm4750, %v8929, %v9402
        %v9404 = vsel %vm4738, %v8852, %v8838
        %v9405 = vsel %vm4740, %v8866, %v9404
        %v9406 = vsel %vm4742, %v8880, %v9405
        %v9407 = vsel %vm4744, %v8894, %v9406
        %v9408 = vsel %vm4746, %v8908, %v9407
        %v9409 = vsel %vm4748, %v8922, %v9408
        %v9410 = vsel %vm4750, %v8936, %v9409
        %v9411 = vsel %vm4738, %v8957, %v8943
        %v9412 = vsel %vm4740, %v8971, %v9411
        %v9413 = vsel %vm4742, %v8985, %v9412
        %v9414 = vsel %vm4744, %v8999, %v9413
        %v9415 = vsel %vm4746, %v9013, %v9414
        %v9416 = vsel %vm4748, %v9027, %v9415
        %v9417 = vsel %vm4750, %v9041, %v9416
        %v9418 = vsel %vm4738, %v8964, %v8950
        %v9419 = vsel %vm4740, %v8978, %v9418
        %v9420 = vsel %vm4742, %v8992, %v9419
        %v9421 = vsel %vm4744, %v9006, %v9420
        %v9422 = vsel %vm4746, %v9020, %v9421
        %v9423 = vsel %vm4748, %v9034, %v9422
        %v9424 = vsel %vm4750, %v9048, %v9423
        %v9425 = vsel %vm4738, %v9069, %v9055
        %v9426 = vsel %vm4740, %v9083, %v9425
        %v9427 = vsel %vm4742, %v9097, %v9426
        %v9428 = vsel %vm4744, %v9111, %v9427
        %v9429 = vsel %vm4746, %v9125, %v9428
        %v9430 = vsel %vm4748, %v9139, %v9429
        %v9431 = vsel %vm4750, %v9153, %v9430
        %v9432 = vsel %vm4738, %v9076, %v9062
        %v9433 = vsel %vm4740, %v9090, %v9432
        %v9434 = vsel %vm4742, %v9104, %v9433
        %v9435 = vsel %vm4744, %v9118, %v9434
        %v9436 = vsel %vm4746, %v9132, %v9435
        %v9437 = vsel %vm4748, %v9146, %v9436
        %v9438 = vsel %vm4750, %v9160, %v9437
        %v9439 = vsel %vm4738, %v9181, %v9167
        %v9440 = vsel %vm4740, %v9195, %v9439
        %v9441 = vsel %vm4742, %v9209, %v9440
        %v9442 = vsel %vm4744, %v9223, %v9441
        %v9443 = vsel %vm4746, %v9237, %v9442
        %v9444 = vsel %vm4748, %v9251, %v9443
        %v9445 = vsel %vm4750, %v9265, %v9444
        %v9446 = vsel %vm4738, %v9188, %v9174
        %v9447 = vsel %vm4740, %v9202, %v9446
        %v9448 = vsel %vm4742, %v9216, %v9447
        %v9449 = vsel %vm4744, %v9230, %v9448
        %v9450 = vsel %vm4746, %v9244, %v9449
        %v9451 = vsel %vm4748, %v9258, %v9450
        %v9452 = vsel %vm4750, %v9272, %v9451
        %9453 = vrot.lane.b32.xlu0 %v9375, 112
        %v9454 = vpop.permute.xlu0 %9453
        %9455 = vrot.lane.b32.xlu0 %v9382, 112
        %v9456 = vpop.permute.xlu0 %9455
        %9457 = vrot.lane.b32.xlu0 %v9389, 112
        %v9458 = vpop.permute.xlu0 %9457
        %9459 = vrot.lane.b32.xlu0 %v9396, 112
        %v9460 = vpop.permute.xlu0 %9459
        %9461 = vrot.lane.b32.xlu0 %v9403, 112
        %v9462 = vpop.permute.xlu0 %9461
        %9463 = vrot.lane.b32.xlu0 %v9410, 112
        %v9464 = vpop.permute.xlu0 %9463
        %9465 = vrot.lane.b32.xlu0 %v9417, 112
        %v9466 = vpop.permute.xlu0 %9465
        %9467 = vrot.lane.b32.xlu0 %v9424, 112
        %v9468 = vpop.permute.xlu0 %9467
        %9469 = vrot.lane.b32.xlu0 %v9431, 112
        %v9470 = vpop.permute.xlu0 %9469
        %9471 = vrot.lane.b32.xlu0 %v9438, 112
        %v9472 = vpop.permute.xlu0 %9471
        %9473 = vrot.lane.b32.xlu0 %v9445, 112
        %v9474 = vpop.permute.xlu0 %9473
        %9475 = vrot.lane.b32.xlu0 %v9452, 112
        %v9476 = vpop.permute.xlu0 %9475
        %vm9477 = vcmask 916480
        %v9478 = vsel %vm9477, %v9454, %v9456
        %v9479 = vsel %vm9477, %v9458, %v9460
        %v9480 = vsel %vm9477, %v9462, %v9464
        %v9481 = vsel %vm9477, %v9466, %v9468
        %v9482 = vsel %vm9477, %v9470, %v9472
        %v9483 = vsel %vm9477, %v9474, %v9476
        %9490 = vrot.lane.b32.xlu0 %v9375, 48
        %v9491 = vpop.permute.xlu0 %9490
        %9492 = vrot.lane.b32.xlu0 %v9389, 48
        %v9493 = vpop.permute.xlu0 %9492
        %9494 = vrot.lane.b32.xlu0 %v9403, 48
        %v9495 = vpop.permute.xlu0 %9494
        %9496 = vrot.lane.b32.xlu0 %v9417, 48
        %v9497 = vpop.permute.xlu0 %9496
        %9498 = vrot.lane.b32.xlu0 %v9431, 48
        %v9499 = vpop.permute.xlu0 %9498
        %9500 = vrot.lane.b32.xlu0 %v9445, 48
        %v9501 = vpop.permute.xlu0 %9500
        %v9508 = vsel %vm1375, %v9456, %v9491
        %v9509 = vsel %vm1375, %v9460, %v9493
        %v9510 = vsel %vm1375, %v9464, %v9495
        %v9511 = vsel %vm1375, %v9468, %v9497
        %v9512 = vsel %vm1375, %v9472, %v9499
        %v9513 = vsel %vm1375, %v9476, %v9501
        %v9520 = vrot.slane %v9478, 1
        %v9521 = vrot.slane %v9508, 1
        %v9522 = vrot.slane %v9478, 2
        %v9523 = vrot.slane %v9508, 2
        %v9524 = vrot.slane %v9478, 3
        %v9525 = vrot.slane %v9508, 3
        %v9526 = vrot.slane %v9478, 4
        %v9527 = vrot.slane %v9508, 4
        %v9528 = vrot.slane %v9478, 5
        %v9529 = vrot.slane %v9508, 5
        %v9530 = vrot.slane %v9478, 6
        %v9531 = vrot.slane %v9508, 6
        %v9532 = vrot.slane %v9478, 7
        %v9533 = vrot.slane %v9508, 7
        %v9534 = vrot.slane %v9479, 1
        %v9535 = vrot.slane %v9509, 1
        %v9536 = vrot.slane %v9479, 2
        %v9537 = vrot.slane %v9509, 2
        %v9538 = vrot.slane %v9479, 3
        %v9539 = vrot.slane %v9509, 3
        %v9540 = vrot.slane %v9479, 4
        %v9541 = vrot.slane %v9509, 4
        %v9542 = vrot.slane %v9479, 5
        %v9543 = vrot.slane %v9509, 5
        %v9544 = vrot.slane %v9479, 6
        %v9545 = vrot.slane %v9509, 6
        %v9546 = vrot.slane %v9479, 7
        %v9547 = vrot.slane %v9509, 7
        %v9548 = vrot.slane %v9480, 1
        %v9549 = vrot.slane %v9510, 1
        %v9550 = vrot.slane %v9480, 2
        %v9551 = vrot.slane %v9510, 2
        %v9552 = vrot.slane %v9480, 3
        %v9553 = vrot.slane %v9510, 3
        %v9554 = vrot.slane %v9480, 4
        %v9555 = vrot.slane %v9510, 4
        %v9556 = vrot.slane %v9480, 5
        %v9557 = vrot.slane %v9510, 5
        %v9558 = vrot.slane %v9480, 6
        %v9559 = vrot.slane %v9510, 6
        %v9560 = vrot.slane %v9480, 7
        %v9561 = vrot.slane %v9510, 7
        %v9562 = vrot.slane %v9481, 1
        %v9563 = vrot.slane %v9511, 1
        %v9564 = vrot.slane %v9481, 2
        %v9565 = vrot.slane %v9511, 2
        %v9566 = vrot.slane %v9481, 3
        %v9567 = vrot.slane %v9511, 3
        %v9568 = vrot.slane %v9481, 4
        %v9569 = vrot.slane %v9511, 4
        %v9570 = vrot.slane %v9481, 5
        %v9571 = vrot.slane %v9511, 5
        %v9572 = vrot.slane %v9481, 6
        %v9573 = vrot.slane %v9511, 6
        %v9574 = vrot.slane %v9481, 7
        %v9575 = vrot.slane %v9511, 7
        %v9576 = vrot.slane %v9482, 1
        %v9577 = vrot.slane %v9512, 1
        %v9578 = vrot.slane %v9482, 2
        %v9579 = vrot.slane %v9512, 2
        %v9580 = vrot.slane %v9482, 3
        %v9581 = vrot.slane %v9512, 3
        %v9582 = vrot.slane %v9482, 4
        %v9583 = vrot.slane %v9512, 4
        %v9584 = vrot.slane %v9482, 5
        %v9585 = vrot.slane %v9512, 5
        %v9586 = vrot.slane %v9482, 6
        %v9587 = vrot.slane %v9512, 6
        %v9588 = vrot.slane %v9482, 7
        %v9589 = vrot.slane %v9512, 7
        %v9590 = vrot.slane %v9483, 1
        %v9591 = vrot.slane %v9513, 1
        %v9592 = vrot.slane %v9483, 2
        %v9593 = vrot.slane %v9513, 2
        %v9594 = vrot.slane %v9483, 3
        %v9595 = vrot.slane %v9513, 3
        %v9596 = vrot.slane %v9483, 4
        %v9597 = vrot.slane %v9513, 4
        %v9598 = vrot.slane %v9483, 5
        %v9599 = vrot.slane %v9513, 5
        %v9600 = vrot.slane %v9483, 6
        %v9601 = vrot.slane %v9513, 6
        %v9602 = vrot.slane %v9483, 7
        %v9603 = vrot.slane %v9513, 7
        %v9700 = vmax.f32 %v8607, %v9478
        %v9701 = vmax.f32 %v8614, %v9508
        %v9702 = vmax.f32 %v8621, %v9520
        %v9703 = vmax.f32 %v8628, %v9521
        %v9704 = vmax.f32 %v8635, %v9522
        %v9705 = vmax.f32 %v8642, %v9523
        %v9706 = vmax.f32 %v8649, %v9524
        %v9707 = vmax.f32 %v8656, %v9525
        %v9708 = vmax.f32 %v8663, %v9526
        %v9709 = vmax.f32 %v8670, %v9527
        %v9710 = vmax.f32 %v8677, %v9528
        %v9711 = vmax.f32 %v8684, %v9529
        %v9712 = vmax.f32 %v8691, %v9530
        %v9713 = vmax.f32 %v8698, %v9531
        %v9714 = vmax.f32 %v8705, %v9532
        %v9715 = vmax.f32 %v8712, %v9533
        %v9716 = vmax.f32 %v8719, %v9479
        %v9717 = vmax.f32 %v8726, %v9509
        %v9718 = vmax.f32 %v8733, %v9534
        %v9719 = vmax.f32 %v8740, %v9535
        %v9720 = vmax.f32 %v8747, %v9536
        %v9721 = vmax.f32 %v8754, %v9537
        %v9722 = vmax.f32 %v8761, %v9538
        %v9723 = vmax.f32 %v8768, %v9539
        %v9724 = vmax.f32 %v8775, %v9540
        %v9725 = vmax.f32 %v8782, %v9541
        %v9726 = vmax.f32 %v8789, %v9542
        %v9727 = vmax.f32 %v8796, %v9543
        %v9728 = vmax.f32 %v8803, %v9544
        %v9729 = vmax.f32 %v8810, %v9545
        %v9730 = vmax.f32 %v8817, %v9546
        %v9731 = vmax.f32 %v8824, %v9547
        %v9732 = vmax.f32 %v8831, %v9480
        %v9733 = vmax.f32 %v8838, %v9510
        %v9734 = vmax.f32 %v8845, %v9548
        %v9735 = vmax.f32 %v8852, %v9549
        %v9736 = vmax.f32 %v8859, %v9550
        %v9737 = vmax.f32 %v8866, %v9551
        %v9738 = vmax.f32 %v8873, %v9552
        %v9739 = vmax.f32 %v8880, %v9553
        %v9740 = vmax.f32 %v8887, %v9554
        %v9741 = vmax.f32 %v8894, %v9555
        %v9742 = vmax.f32 %v8901, %v9556
        %v9743 = vmax.f32 %v8908, %v9557
        %v9744 = vmax.f32 %v8915, %v9558
        %v9745 = vmax.f32 %v8922, %v9559
        %v9746 = vmax.f32 %v8929, %v9560
        %v9747 = vmax.f32 %v8936, %v9561
        %v9748 = vmax.f32 %v8943, %v9481
        %v9749 = vmax.f32 %v8950, %v9511
        %v9750 = vmax.f32 %v8957, %v9562
        %v9751 = vmax.f32 %v8964, %v9563
        %v9752 = vmax.f32 %v8971, %v9564
        %v9753 = vmax.f32 %v8978, %v9565
        %v9754 = vmax.f32 %v8985, %v9566
        %v9755 = vmax.f32 %v8992, %v9567
        %v9756 = vmax.f32 %v8999, %v9568
        %v9757 = vmax.f32 %v9006, %v9569
        %v9758 = vmax.f32 %v9013, %v9570
        %v9759 = vmax.f32 %v9020, %v9571
        %v9760 = vmax.f32 %v9027, %v9572
        %v9761 = vmax.f32 %v9034, %v9573
        %v9762 = vmax.f32 %v9041, %v9574
        %v9763 = vmax.f32 %v9048, %v9575
        %v9764 = vmax.f32 %v9055, %v9482
        %v9765 = vmax.f32 %v9062, %v9512
        %v9766 = vmax.f32 %v9069, %v9576
        %v9767 = vmax.f32 %v9076, %v9577
        %v9768 = vmax.f32 %v9083, %v9578
        %v9769 = vmax.f32 %v9090, %v9579
        %v9770 = vmax.f32 %v9097, %v9580
        %v9771 = vmax.f32 %v9104, %v9581
        %v9772 = vmax.f32 %v9111, %v9582
        %v9773 = vmax.f32 %v9118, %v9583
        %v9774 = vmax.f32 %v9125, %v9584
        %v9775 = vmax.f32 %v9132, %v9585
        %v9776 = vmax.f32 %v9139, %v9586
        %v9777 = vmax.f32 %v9146, %v9587
        %v9778 = vmax.f32 %v9153, %v9588
        %v9779 = vmax.f32 %v9160, %v9589
        %v9780 = vmax.f32 %v9167, %v9483
        %v9781 = vmax.f32 %v9174, %v9513
        %v9782 = vmax.f32 %v9181, %v9590
        %v9783 = vmax.f32 %v9188, %v9591
        %v9784 = vmax.f32 %v9195, %v9592
        %v9785 = vmax.f32 %v9202, %v9593
        %v9786 = vmax.f32 %v9209, %v9594
        %v9787 = vmax.f32 %v9216, %v9595
        %v9788 = vmax.f32 %v9223, %v9596
        %v9789 = vmax.f32 %v9230, %v9597
        %v9790 = vmax.f32 %v9237, %v9598
        %v9791 = vmax.f32 %v9244, %v9599
        %v9792 = vmax.f32 %v9251, %v9600
        %v9793 = vmax.f32 %v9258, %v9601
        %v9794 = vmax.f32 %v9265, %v9602
        %v9795 = vmax.f32 %v9272, %v9603
        %vm9796 = vcmp.lt.s32.totalorder %v412, 0
        %v9797 = vsub.s32 0, %v412
        %v9798 = vsel %vm9796, %v9797, %v412
        %v9799 = vmul.u32.u64.compose %v9798, 2863311531
        %v9800 = vextract.low.u32 %v9799
        %v9801 = vextract.high.u32 %v9799
        %v9802 = vshrl.u32 %v9801, 2
        %v9803 = vmul.u32 %v9802, 6
        %v9804 = vsub.s32 %v9798, %v9803
        %v9805 = vsub.s32 0, %v9804
        %v9806 = vsel %vm9796, %v9805, %v9804
        %vm9807 = vcmp.lt.s32.totalorder %v413, 0
        %v9808 = vsub.s32 0, %v413
        %v9809 = vsel %vm9807, %v9808, %v413
        %v9810 = vmul.u32.u64.compose %v9809, 2863311531
        %v9811 = vextract.low.u32 %v9810
        %v9812 = vextract.high.u32 %v9810
        %v9813 = vshrl.u32 %v9812, 2
        %v9814 = vmul.u32 %v9813, 6
        %v9815 = vsub.s32 %v9809, %v9814
        %v9816 = vsub.s32 0, %v9815
        %v9817 = vsel %vm9807, %v9816, %v9815
        %vm9818 = vcmp.lt.s32.totalorder %v414, 0
        %v9819 = vsub.s32 0, %v414
        %v9820 = vsel %vm9818, %v9819, %v414
        %v9821 = vmul.u32.u64.compose %v9820, 2863311531
        %v9822 = vextract.low.u32 %v9821
        %v9823 = vextract.high.u32 %v9821
        %v9824 = vshrl.u32 %v9823, 2
        %v9825 = vmul.u32 %v9824, 6
        %v9826 = vsub.s32 %v9820, %v9825
        %v9827 = vsub.s32 0, %v9826
        %v9828 = vsel %vm9818, %v9827, %v9826
        %vm9829 = vcmp.lt.s32.totalorder %v415, 0
        %v9830 = vsub.s32 0, %v415
        %v9831 = vsel %vm9829, %v9830, %v415
        %v9832 = vmul.u32.u64.compose %v9831, 2863311531
        %v9833 = vextract.low.u32 %v9832
        %v9834 = vextract.high.u32 %v9832
        %v9835 = vshrl.u32 %v9834, 2
        %v9836 = vmul.u32 %v9835, 6
        %v9837 = vsub.s32 %v9831, %v9836
        %v9838 = vsub.s32 0, %v9837
        %v9839 = vsel %vm9829, %v9838, %v9837
        %vm9840 = vcmp.lt.s32.totalorder %v416, 0
        %v9841 = vsub.s32 0, %v416
        %v9842 = vsel %vm9840, %v9841, %v416
        %v9843 = vmul.u32.u64.compose %v9842, 2863311531
        %v9844 = vextract.low.u32 %v9843
        %v9845 = vextract.high.u32 %v9843
        %v9846 = vshrl.u32 %v9845, 2
        %v9847 = vmul.u32 %v9846, 6
        %v9848 = vsub.s32 %v9842, %v9847
        %v9849 = vsub.s32 0, %v9848
        %v9850 = vsel %vm9840, %v9849, %v9848
        %vm9851 = vcmp.lt.s32.totalorder %v417, 0
        %v9852 = vsub.s32 0, %v417
        %v9853 = vsel %vm9851, %v9852, %v417
        %v9854 = vmul.u32.u64.compose %v9853, 2863311531
        %v9855 = vextract.low.u32 %v9854
        %v9856 = vextract.high.u32 %v9854
        %v9857 = vshrl.u32 %v9856, 2
        %v9858 = vmul.u32 %v9857, 6
        %v9859 = vsub.s32 %v9853, %v9858
        %v9860 = vsub.s32 0, %v9859
        %v9861 = vsel %vm9851, %v9860, %v9859
        %vm9862 = vcmp.ne.s32.totalorder %v9806, 0
        %vm9863 = vcmp.ne.s32.totalorder %v9817, 0
        %vm9864 = vcmp.ne.s32.totalorder %v9828, 0
        %vm9865 = vcmp.ne.s32.totalorder %v9839, 0
        %vm9866 = vcmp.ne.s32.totalorder %v9850, 0
        %vm9867 = vcmp.ne.s32.totalorder %v9861, 0
        %vm9868 = vcmp.lt.s32.totalorder %v9806, 0
        %vm9869 = vcmp.lt.s32.totalorder %v9817, 0
        %vm9870 = vcmp.lt.s32.totalorder %v9828, 0
        %vm9871 = vcmp.lt.s32.totalorder %v9839, 0
        %vm9872 = vcmp.lt.s32.totalorder %v9850, 0
        %vm9873 = vcmp.lt.s32.totalorder %v9861, 0
        %vm9874 = vmand %vm9868, %vm9862
        %vm9875 = vmand %vm9869, %vm9863
        %vm9876 = vmand %vm9870, %vm9864
        %vm9877 = vmand %vm9871, %vm9865
        %vm9878 = vmand %vm9872, %vm9866
        %vm9879 = vmand %vm9873, %vm9867
        %v9880 = vadd.s32 %v9806, 6
        %v9881 = vadd.s32 %v9817, 6
        %v9882 = vadd.s32 %v9828, 6
        %v9883 = vadd.s32 %v9839, 6
        %v9884 = vadd.s32 %v9850, 6
        %v9885 = vadd.s32 %v9861, 6
        %v9886 = vsel %vm9874, %v9880, %v9806
        %v9887 = vsel %vm9875, %v9881, %v9817
        %v9888 = vsel %vm9876, %v9882, %v9828
        %v9889 = vsel %vm9877, %v9883, %v9839
        %v9890 = vsel %vm9878, %v9884, %v9850
        %v9891 = vsel %vm9879, %v9885, %v9861
        %vm9892 = vcmp.ne.s32.totalorder %v9886, 0
        %vm9893 = vcmp.ne.s32.totalorder %v9887, 0
        %vm9894 = vcmp.ne.s32.totalorder %v9888, 0
        %vm9895 = vcmp.ne.s32.totalorder %v9889, 0
        %vm9896 = vcmp.ne.s32.totalorder %v9890, 0
        %vm9897 = vcmp.ne.s32.totalorder %v9891, 0
        %v9992 = vrot.slane %v9700, 7
        %v9993 = vrot.slane %v9702, 6
        %v9994 = vsel %vm4740, %v9993, %v9992
        %v9995 = vrot.slane %v9704, 5
        %v9996 = vsel %vm4742, %v9995, %v9994
        %v9997 = vrot.slane %v9706, 4
        %v9998 = vsel %vm4744, %v9997, %v9996
        %v9999 = vrot.slane %v9708, 3
        %v10000 = vsel %vm4746, %v9999, %v9998
        %v10001 = vrot.slane %v9710, 2
        %v10002 = vsel %vm4748, %v10001, %v10000
        %v10003 = vrot.slane %v9712, 1
        %v10004 = vsel %vm4750, %v10003, %v10002
        %v10005 = vrot.slane %v9701, 7
        %v10006 = vrot.slane %v9703, 6
        %v10007 = vsel %vm4740, %v10006, %v10005
        %v10008 = vrot.slane %v9705, 5
        %v10009 = vsel %vm4742, %v10008, %v10007
        %v10010 = vrot.slane %v9707, 4
        %v10011 = vsel %vm4744, %v10010, %v10009
        %v10012 = vrot.slane %v9709, 3
        %v10013 = vsel %vm4746, %v10012, %v10011
        %v10014 = vrot.slane %v9711, 2
        %v10015 = vsel %vm4748, %v10014, %v10013
        %v10016 = vrot.slane %v9713, 1
        %v10017 = vsel %vm4750, %v10016, %v10015
        %v10018 = vrot.slane %v9716, 7
        %v10019 = vsel %vm4738, %v10018, %v9714
        %v10020 = vrot.slane %v9718, 6
        %v10021 = vsel %vm4740, %v10020, %v10019
        %v10022 = vrot.slane %v9720, 5
        %v10023 = vsel %vm4742, %v10022, %v10021
        %v10024 = vrot.slane %v9722, 4
        %v10025 = vsel %vm4744, %v10024, %v10023
        %v10026 = vrot.slane %v9724, 3
        %v10027 = vsel %vm4746, %v10026, %v10025
        %v10028 = vrot.slane %v9726, 2
        %v10029 = vsel %vm4748, %v10028, %v10027
        %v10030 = vrot.slane %v9728, 1
        %v10031 = vsel %vm4750, %v10030, %v10029
        %v10032 = vrot.slane %v9717, 7
        %v10033 = vsel %vm4738, %v10032, %v9715
        %v10034 = vrot.slane %v9719, 6
        %v10035 = vsel %vm4740, %v10034, %v10033
        %v10036 = vrot.slane %v9721, 5
        %v10037 = vsel %vm4742, %v10036, %v10035
        %v10038 = vrot.slane %v9723, 4
        %v10039 = vsel %vm4744, %v10038, %v10037
        %v10040 = vrot.slane %v9725, 3
        %v10041 = vsel %vm4746, %v10040, %v10039
        %v10042 = vrot.slane %v9727, 2
        %v10043 = vsel %vm4748, %v10042, %v10041
        %v10044 = vrot.slane %v9729, 1
        %v10045 = vsel %vm4750, %v10044, %v10043
        %v10046 = vrot.slane %v9732, 7
        %v10047 = vsel %vm4738, %v10046, %v9730
        %v10048 = vrot.slane %v9734, 6
        %v10049 = vsel %vm4740, %v10048, %v10047
        %v10050 = vrot.slane %v9736, 5
        %v10051 = vsel %vm4742, %v10050, %v10049
        %v10052 = vrot.slane %v9738, 4
        %v10053 = vsel %vm4744, %v10052, %v10051
        %v10054 = vrot.slane %v9740, 3
        %v10055 = vsel %vm4746, %v10054, %v10053
        %v10056 = vrot.slane %v9742, 2
        %v10057 = vsel %vm4748, %v10056, %v10055
        %v10058 = vrot.slane %v9744, 1
        %v10059 = vsel %vm4750, %v10058, %v10057
        %v10060 = vrot.slane %v9733, 7
        %v10061 = vsel %vm4738, %v10060, %v9731
        %v10062 = vrot.slane %v9735, 6
        %v10063 = vsel %vm4740, %v10062, %v10061
        %v10064 = vrot.slane %v9737, 5
        %v10065 = vsel %vm4742, %v10064, %v10063
        %v10066 = vrot.slane %v9739, 4
        %v10067 = vsel %vm4744, %v10066, %v10065
        %v10068 = vrot.slane %v9741, 3
        %v10069 = vsel %vm4746, %v10068, %v10067
        %v10070 = vrot.slane %v9743, 2
        %v10071 = vsel %vm4748, %v10070, %v10069
        %v10072 = vrot.slane %v9745, 1
        %v10073 = vsel %vm4750, %v10072, %v10071
        %v10074 = vrot.slane %v9748, 7
        %v10075 = vsel %vm4738, %v10074, %v9746
        %v10076 = vrot.slane %v9750, 6
        %v10077 = vsel %vm4740, %v10076, %v10075
        %v10078 = vrot.slane %v9752, 5
        %v10079 = vsel %vm4742, %v10078, %v10077
        %v10080 = vrot.slane %v9754, 4
        %v10081 = vsel %vm4744, %v10080, %v10079
        %v10082 = vrot.slane %v9756, 3
        %v10083 = vsel %vm4746, %v10082, %v10081
        %v10084 = vrot.slane %v9758, 2
        %v10085 = vsel %vm4748, %v10084, %v10083
        %v10086 = vrot.slane %v9760, 1
        %v10087 = vsel %vm4750, %v10086, %v10085
        %v10088 = vrot.slane %v9749, 7
        %v10089 = vsel %vm4738, %v10088, %v9747
        %v10090 = vrot.slane %v9751, 6
        %v10091 = vsel %vm4740, %v10090, %v10089
        %v10092 = vrot.slane %v9753, 5
        %v10093 = vsel %vm4742, %v10092, %v10091
        %v10094 = vrot.slane %v9755, 4
        %v10095 = vsel %vm4744, %v10094, %v10093
        %v10096 = vrot.slane %v9757, 3
        %v10097 = vsel %vm4746, %v10096, %v10095
        %v10098 = vrot.slane %v9759, 2
        %v10099 = vsel %vm4748, %v10098, %v10097
        %v10100 = vrot.slane %v9761, 1
        %v10101 = vsel %vm4750, %v10100, %v10099
        %v10102 = vrot.slane %v9764, 7
        %v10103 = vsel %vm4738, %v10102, %v9762
        %v10104 = vrot.slane %v9766, 6
        %v10105 = vsel %vm4740, %v10104, %v10103
        %v10106 = vrot.slane %v9768, 5
        %v10107 = vsel %vm4742, %v10106, %v10105
        %v10108 = vrot.slane %v9770, 4
        %v10109 = vsel %vm4744, %v10108, %v10107
        %v10110 = vrot.slane %v9772, 3
        %v10111 = vsel %vm4746, %v10110, %v10109
        %v10112 = vrot.slane %v9774, 2
        %v10113 = vsel %vm4748, %v10112, %v10111
        %v10114 = vrot.slane %v9776, 1
        %v10115 = vsel %vm4750, %v10114, %v10113
        %v10116 = vrot.slane %v9765, 7
        %v10117 = vsel %vm4738, %v10116, %v9763
        %v10118 = vrot.slane %v9767, 6
        %v10119 = vsel %vm4740, %v10118, %v10117
        %v10120 = vrot.slane %v9769, 5
        %v10121 = vsel %vm4742, %v10120, %v10119
        %v10122 = vrot.slane %v9771, 4
        %v10123 = vsel %vm4744, %v10122, %v10121
        %v10124 = vrot.slane %v9773, 3
        %v10125 = vsel %vm4746, %v10124, %v10123
        %v10126 = vrot.slane %v9775, 2
        %v10127 = vsel %vm4748, %v10126, %v10125
        %v10128 = vrot.slane %v9777, 1
        %v10129 = vsel %vm4750, %v10128, %v10127
        %v10130 = vrot.slane %v9780, 7
        %v10131 = vsel %vm4738, %v10130, %v9778
        %v10132 = vrot.slane %v9782, 6
        %v10133 = vsel %vm4740, %v10132, %v10131
        %v10134 = vrot.slane %v9784, 5
        %v10135 = vsel %vm4742, %v10134, %v10133
        %v10136 = vrot.slane %v9786, 4
        %v10137 = vsel %vm4744, %v10136, %v10135
        %v10138 = vrot.slane %v9788, 3
        %v10139 = vsel %vm4746, %v10138, %v10137
        %v10140 = vrot.slane %v9790, 2
        %v10141 = vsel %vm4748, %v10140, %v10139
        %v10142 = vrot.slane %v9792, 1
        %v10143 = vsel %vm4750, %v10142, %v10141
        %v10144 = vrot.slane %v9781, 7
        %v10145 = vsel %vm4738, %v10144, %v9779
        %v10146 = vrot.slane %v9783, 6
        %v10147 = vsel %vm4740, %v10146, %v10145
        %v10148 = vrot.slane %v9785, 5
        %v10149 = vsel %vm4742, %v10148, %v10147
        %v10150 = vrot.slane %v9787, 4
        %v10151 = vsel %vm4744, %v10150, %v10149
        %v10152 = vrot.slane %v9789, 3
        %v10153 = vsel %vm4746, %v10152, %v10151
        %v10154 = vrot.slane %v9791, 2
        %v10155 = vsel %vm4748, %v10154, %v10153
        %v10156 = vrot.slane %v9793, 1
        %v10157 = vsel %vm4750, %v10156, %v10155
        %v10170 = vsel %vm868, 0.0, %v10004
        %v10171 = vsel %vm868, 0.0, %v10017
        %v10172 = vsel %vm9892, 1, 0
        %v10173 = vsel %vm9893, 1, 0
        %v10174 = vsel %vm9894, 1, 0
        %v10175 = vsel %vm9895, 1, 0
        %v10176 = vsel %vm9896, 1, 0
        %v10177 = vsel %vm9897, 1, 0
        %vm10178 = vcmp.eq.s32.totalorder %v10172, 1
        %vm10179 = vcmp.eq.s32.totalorder %v10173, 1
        %vm10180 = vcmp.eq.s32.totalorder %v10174, 1
        %vm10181 = vcmp.eq.s32.totalorder %v10175, 1
        %vm10182 = vcmp.eq.s32.totalorder %v10176, 1
        %vm10183 = vcmp.eq.s32.totalorder %v10177, 1
        %v10184 = vsel %vm10178, %v10170, 0.0
        %v10185 = vsel %vm10178, %v10171, 0.0
        %v10186 = vsel %vm10179, %v10031, 0.0
        %v10187 = vsel %vm10179, %v10045, 0.0
        %v10188 = vsel %vm10180, %v10059, 0.0
        %v10189 = vsel %vm10180, %v10073, 0.0
        %v10190 = vsel %vm10181, %v10087, 0.0
        %v10191 = vsel %vm10181, %v10101, 0.0
        %v10192 = vsel %vm10182, %v10115, 0.0
        %v10193 = vsel %vm10182, %v10129, 0.0
        %v10194 = vsel %vm10183, %v10143, 0.0
        %v10195 = vsel %vm10183, %v10157, 0.0
        %vm10196 = vcmp.ne.s32.totalorder %v9886, 5
        %vm10197 = vcmp.ne.s32.totalorder %v9887, 5
        %vm10198 = vcmp.ne.s32.totalorder %v9888, 5
        %vm10199 = vcmp.ne.s32.totalorder %v9889, 5
        %vm10200 = vcmp.ne.s32.totalorder %v9890, 5
        %vm10201 = vcmp.ne.s32.totalorder %v9891, 5
        %v10204 = vrot.slane %v9704, 7
        %v10205 = vsel %vm4738, %v10204, %v9702
        %v10206 = vrot.slane %v9706, 6
        %v10207 = vsel %vm4740, %v10206, %v10205
        %v10208 = vrot.slane %v9708, 5
        %v10209 = vsel %vm4742, %v10208, %v10207
        %v10210 = vrot.slane %v9710, 4
        %v10211 = vsel %vm4744, %v10210, %v10209
        %v10212 = vrot.slane %v9712, 3
        %v10213 = vsel %vm4746, %v10212, %v10211
        %v10214 = vrot.slane %v9714, 2
        %v10215 = vsel %vm4748, %v10214, %v10213
        %v10216 = vrot.slane %v9716, 1
        %v10217 = vsel %vm4750, %v10216, %v10215
        %v10218 = vrot.slane %v9705, 7
        %v10219 = vsel %vm4738, %v10218, %v9703
        %v10220 = vrot.slane %v9707, 6
        %v10221 = vsel %vm4740, %v10220, %v10219
        %v10222 = vrot.slane %v9709, 5
        %v10223 = vsel %vm4742, %v10222, %v10221
        %v10224 = vrot.slane %v9711, 4
        %v10225 = vsel %vm4744, %v10224, %v10223
        %v10226 = vrot.slane %v9713, 3
        %v10227 = vsel %vm4746, %v10226, %v10225
        %v10228 = vrot.slane %v9715, 2
        %v10229 = vsel %vm4748, %v10228, %v10227
        %v10230 = vrot.slane %v9717, 1
        %v10231 = vsel %vm4750, %v10230, %v10229
        %v10232 = vrot.slane %v9720, 7
        %v10233 = vsel %vm4738, %v10232, %v9718
        %v10234 = vrot.slane %v9722, 6
        %v10235 = vsel %vm4740, %v10234, %v10233
        %v10236 = vrot.slane %v9724, 5
        %v10237 = vsel %vm4742, %v10236, %v10235
        %v10238 = vrot.slane %v9726, 4
        %v10239 = vsel %vm4744, %v10238, %v10237
        %v10240 = vrot.slane %v9728, 3
        %v10241 = vsel %vm4746, %v10240, %v10239
        %v10242 = vrot.slane %v9730, 2
        %v10243 = vsel %vm4748, %v10242, %v10241
        %v10244 = vrot.slane %v9732, 1
        %v10245 = vsel %vm4750, %v10244, %v10243
        %v10246 = vrot.slane %v9721, 7
        %v10247 = vsel %vm4738, %v10246, %v9719
        %v10248 = vrot.slane %v9723, 6
        %v10249 = vsel %vm4740, %v10248, %v10247
        %v10250 = vrot.slane %v9725, 5
        %v10251 = vsel %vm4742, %v10250, %v10249
        %v10252 = vrot.slane %v9727, 4
        %v10253 = vsel %vm4744, %v10252, %v10251
        %v10254 = vrot.slane %v9729, 3
        %v10255 = vsel %vm4746, %v10254, %v10253
        %v10256 = vrot.slane %v9731, 2
        %v10257 = vsel %vm4748, %v10256, %v10255
        %v10258 = vrot.slane %v9733, 1
        %v10259 = vsel %vm4750, %v10258, %v10257
        %v10260 = vrot.slane %v9736, 7
        %v10261 = vsel %vm4738, %v10260, %v9734
        %v10262 = vrot.slane %v9738, 6
        %v10263 = vsel %vm4740, %v10262, %v10261
        %v10264 = vrot.slane %v9740, 5
        %v10265 = vsel %vm4742, %v10264, %v10263
        %v10266 = vrot.slane %v9742, 4
        %v10267 = vsel %vm4744, %v10266, %v10265
        %v10268 = vrot.slane %v9744, 3
        %v10269 = vsel %vm4746, %v10268, %v10267
        %v10270 = vrot.slane %v9746, 2
        %v10271 = vsel %vm4748, %v10270, %v10269
        %v10272 = vrot.slane %v9748, 1
        %v10273 = vsel %vm4750, %v10272, %v10271
        %v10274 = vrot.slane %v9737, 7
        %v10275 = vsel %vm4738, %v10274, %v9735
        %v10276 = vrot.slane %v9739, 6
        %v10277 = vsel %vm4740, %v10276, %v10275
        %v10278 = vrot.slane %v9741, 5
        %v10279 = vsel %vm4742, %v10278, %v10277
        %v10280 = vrot.slane %v9743, 4
        %v10281 = vsel %vm4744, %v10280, %v10279
        %v10282 = vrot.slane %v9745, 3
        %v10283 = vsel %vm4746, %v10282, %v10281
        %v10284 = vrot.slane %v9747, 2
        %v10285 = vsel %vm4748, %v10284, %v10283
        %v10286 = vrot.slane %v9749, 1
        %v10287 = vsel %vm4750, %v10286, %v10285
        %v10288 = vrot.slane %v9752, 7
        %v10289 = vsel %vm4738, %v10288, %v9750
        %v10290 = vrot.slane %v9754, 6
        %v10291 = vsel %vm4740, %v10290, %v10289
        %v10292 = vrot.slane %v9756, 5
        %v10293 = vsel %vm4742, %v10292, %v10291
        %v10294 = vrot.slane %v9758, 4
        %v10295 = vsel %vm4744, %v10294, %v10293
        %v10296 = vrot.slane %v9760, 3
        %v10297 = vsel %vm4746, %v10296, %v10295
        %v10298 = vrot.slane %v9762, 2
        %v10299 = vsel %vm4748, %v10298, %v10297
        %v10300 = vrot.slane %v9764, 1
        %v10301 = vsel %vm4750, %v10300, %v10299
        %v10302 = vrot.slane %v9753, 7
        %v10303 = vsel %vm4738, %v10302, %v9751
        %v10304 = vrot.slane %v9755, 6
        %v10305 = vsel %vm4740, %v10304, %v10303
        %v10306 = vrot.slane %v9757, 5
        %v10307 = vsel %vm4742, %v10306, %v10305
        %v10308 = vrot.slane %v9759, 4
        %v10309 = vsel %vm4744, %v10308, %v10307
        %v10310 = vrot.slane %v9761, 3
        %v10311 = vsel %vm4746, %v10310, %v10309
        %v10312 = vrot.slane %v9763, 2
        %v10313 = vsel %vm4748, %v10312, %v10311
        %v10314 = vrot.slane %v9765, 1
        %v10315 = vsel %vm4750, %v10314, %v10313
        %v10316 = vrot.slane %v9768, 7
        %v10317 = vsel %vm4738, %v10316, %v9766
        %v10318 = vrot.slane %v9770, 6
        %v10319 = vsel %vm4740, %v10318, %v10317
        %v10320 = vrot.slane %v9772, 5
        %v10321 = vsel %vm4742, %v10320, %v10319
        %v10322 = vrot.slane %v9774, 4
        %v10323 = vsel %vm4744, %v10322, %v10321
        %v10324 = vrot.slane %v9776, 3
        %v10325 = vsel %vm4746, %v10324, %v10323
        %v10326 = vrot.slane %v9778, 2
        %v10327 = vsel %vm4748, %v10326, %v10325
        %v10328 = vrot.slane %v9780, 1
        %v10329 = vsel %vm4750, %v10328, %v10327
        %v10330 = vrot.slane %v9769, 7
        %v10331 = vsel %vm4738, %v10330, %v9767
        %v10332 = vrot.slane %v9771, 6
        %v10333 = vsel %vm4740, %v10332, %v10331
        %v10334 = vrot.slane %v9773, 5
        %v10335 = vsel %vm4742, %v10334, %v10333
        %v10336 = vrot.slane %v9775, 4
        %v10337 = vsel %vm4744, %v10336, %v10335
        %v10338 = vrot.slane %v9777, 3
        %v10339 = vsel %vm4746, %v10338, %v10337
        %v10340 = vrot.slane %v9779, 2
        %v10341 = vsel %vm4748, %v10340, %v10339
        %v10342 = vrot.slane %v9781, 1
        %v10343 = vsel %vm4750, %v10342, %v10341
        %v10344 = vrot.slane %v9784, 7
        %v10345 = vsel %vm4738, %v10344, %v9782
        %v10346 = vrot.slane %v9786, 6
        %v10347 = vsel %vm4740, %v10346, %v10345
        %v10348 = vrot.slane %v9788, 5
        %v10349 = vsel %vm4742, %v10348, %v10347
        %v10350 = vrot.slane %v9790, 4
        %v10351 = vsel %vm4744, %v10350, %v10349
        %v10352 = vrot.slane %v9792, 3
        %v10353 = vsel %vm4746, %v10352, %v10351
        %v10354 = vrot.slane %v9794, 2
        %v10355 = vsel %vm4748, %v10354, %v10353
        %v10356 = vrot.slane %v9785, 7
        %v10357 = vsel %vm4738, %v10356, %v9783
        %v10358 = vrot.slane %v9787, 6
        %v10359 = vsel %vm4740, %v10358, %v10357
        %v10360 = vrot.slane %v9789, 5
        %v10361 = vsel %vm4742, %v10360, %v10359
        %v10362 = vrot.slane %v9791, 4
        %v10363 = vsel %vm4744, %v10362, %v10361
        %v10364 = vrot.slane %v9793, 3
        %v10365 = vsel %vm4746, %v10364, %v10363
        %v10366 = vrot.slane %v9795, 2
        %v10367 = vsel %vm4748, %v10366, %v10365
        %v10380 = vsel %vm1037, %v10355, 0.0
        %v10381 = vsel %vm1037, %v10367, 0.0
        %v10382 = vsel %vm10196, 1, 0
        %v10383 = vsel %vm10197, 1, 0
        %v10384 = vsel %vm10198, 1, 0
        %v10385 = vsel %vm10199, 1, 0
        %v10386 = vsel %vm10200, 1, 0
        %v10387 = vsel %vm10201, 1, 0
        %vm10388 = vcmp.eq.s32.totalorder %v10382, 1
        %vm10389 = vcmp.eq.s32.totalorder %v10383, 1
        %vm10390 = vcmp.eq.s32.totalorder %v10384, 1
        %vm10391 = vcmp.eq.s32.totalorder %v10385, 1
        %vm10392 = vcmp.eq.s32.totalorder %v10386, 1
        %vm10393 = vcmp.eq.s32.totalorder %v10387, 1
        %v10394 = vsel %vm10388, %v10217, 0.0
        %v10395 = vsel %vm10388, %v10231, 0.0
        %v10396 = vsel %vm10389, %v10245, 0.0
        %v10397 = vsel %vm10389, %v10259, 0.0
        %v10398 = vsel %vm10390, %v10273, 0.0
        %v10399 = vsel %vm10390, %v10287, 0.0
        %v10400 = vsel %vm10391, %v10301, 0.0
        %v10401 = vsel %vm10391, %v10315, 0.0
        %v10402 = vsel %vm10392, %v10329, 0.0
        %v10403 = vsel %vm10392, %v10343, 0.0
        %v10404 = vsel %vm10393, %v10380, 0.0
        %v10405 = vsel %vm10393, %v10381, 0.0
        %v10406 = vrot.slane %v9702, 7
        %v10407 = vsel %vm4738, %v10406, %v9700
        %v10408 = vrot.slane %v9704, 6
        %v10409 = vsel %vm4740, %v10408, %v10407
        %v10410 = vrot.slane %v9706, 5
        %v10411 = vsel %vm4742, %v10410, %v10409
        %v10412 = vrot.slane %v9708, 4
        %v10413 = vsel %vm4744, %v10412, %v10411
        %v10414 = vrot.slane %v9710, 3
        %v10415 = vsel %vm4746, %v10414, %v10413
        %v10416 = vrot.slane %v9712, 2
        %v10417 = vsel %vm4748, %v10416, %v10415
        %v10418 = vrot.slane %v9714, 1
        %v10419 = vsel %vm4750, %v10418, %v10417
        %v10420 = vrot.slane %v9703, 7
        %v10421 = vsel %vm4738, %v10420, %v9701
        %v10422 = vrot.slane %v9705, 6
        %v10423 = vsel %vm4740, %v10422, %v10421
        %v10424 = vrot.slane %v9707, 5
        %v10425 = vsel %vm4742, %v10424, %v10423
        %v10426 = vrot.slane %v9709, 4
        %v10427 = vsel %vm4744, %v10426, %v10425
        %v10428 = vrot.slane %v9711, 3
        %v10429 = vsel %vm4746, %v10428, %v10427
        %v10430 = vrot.slane %v9713, 2
        %v10431 = vsel %vm4748, %v10430, %v10429
        %v10432 = vrot.slane %v9715, 1
        %v10433 = vsel %vm4750, %v10432, %v10431
        %v10434 = vrot.slane %v9718, 7
        %v10435 = vsel %vm4738, %v10434, %v9716
        %v10436 = vrot.slane %v9720, 6
        %v10437 = vsel %vm4740, %v10436, %v10435
        %v10438 = vrot.slane %v9722, 5
        %v10439 = vsel %vm4742, %v10438, %v10437
        %v10440 = vrot.slane %v9724, 4
        %v10441 = vsel %vm4744, %v10440, %v10439
        %v10442 = vrot.slane %v9726, 3
        %v10443 = vsel %vm4746, %v10442, %v10441
        %v10444 = vrot.slane %v9728, 2
        %v10445 = vsel %vm4748, %v10444, %v10443
        %v10446 = vrot.slane %v9730, 1
        %v10447 = vsel %vm4750, %v10446, %v10445
        %v10448 = vrot.slane %v9719, 7
        %v10449 = vsel %vm4738, %v10448, %v9717
        %v10450 = vrot.slane %v9721, 6
        %v10451 = vsel %vm4740, %v10450, %v10449
        %v10452 = vrot.slane %v9723, 5
        %v10453 = vsel %vm4742, %v10452, %v10451
        %v10454 = vrot.slane %v9725, 4
        %v10455 = vsel %vm4744, %v10454, %v10453
        %v10456 = vrot.slane %v9727, 3
        %v10457 = vsel %vm4746, %v10456, %v10455
        %v10458 = vrot.slane %v9729, 2
        %v10459 = vsel %vm4748, %v10458, %v10457
        %v10460 = vrot.slane %v9731, 1
        %v10461 = vsel %vm4750, %v10460, %v10459
        %v10462 = vrot.slane %v9734, 7
        %v10463 = vsel %vm4738, %v10462, %v9732
        %v10464 = vrot.slane %v9736, 6
        %v10465 = vsel %vm4740, %v10464, %v10463
        %v10466 = vrot.slane %v9738, 5
        %v10467 = vsel %vm4742, %v10466, %v10465
        %v10468 = vrot.slane %v9740, 4
        %v10469 = vsel %vm4744, %v10468, %v10467
        %v10470 = vrot.slane %v9742, 3
        %v10471 = vsel %vm4746, %v10470, %v10469
        %v10472 = vrot.slane %v9744, 2
        %v10473 = vsel %vm4748, %v10472, %v10471
        %v10474 = vrot.slane %v9746, 1
        %v10475 = vsel %vm4750, %v10474, %v10473
        %v10476 = vrot.slane %v9735, 7
        %v10477 = vsel %vm4738, %v10476, %v9733
        %v10478 = vrot.slane %v9737, 6
        %v10479 = vsel %vm4740, %v10478, %v10477
        %v10480 = vrot.slane %v9739, 5
        %v10481 = vsel %vm4742, %v10480, %v10479
        %v10482 = vrot.slane %v9741, 4
        %v10483 = vsel %vm4744, %v10482, %v10481
        %v10484 = vrot.slane %v9743, 3
        %v10485 = vsel %vm4746, %v10484, %v10483
        %v10486 = vrot.slane %v9745, 2
        %v10487 = vsel %vm4748, %v10486, %v10485
        %v10488 = vrot.slane %v9747, 1
        %v10489 = vsel %vm4750, %v10488, %v10487
        %v10490 = vrot.slane %v9750, 7
        %v10491 = vsel %vm4738, %v10490, %v9748
        %v10492 = vrot.slane %v9752, 6
        %v10493 = vsel %vm4740, %v10492, %v10491
        %v10494 = vrot.slane %v9754, 5
        %v10495 = vsel %vm4742, %v10494, %v10493
        %v10496 = vrot.slane %v9756, 4
        %v10497 = vsel %vm4744, %v10496, %v10495
        %v10498 = vrot.slane %v9758, 3
        %v10499 = vsel %vm4746, %v10498, %v10497
        %v10500 = vrot.slane %v9760, 2
        %v10501 = vsel %vm4748, %v10500, %v10499
        %v10502 = vrot.slane %v9762, 1
        %v10503 = vsel %vm4750, %v10502, %v10501
        %v10504 = vrot.slane %v9751, 7
        %v10505 = vsel %vm4738, %v10504, %v9749
        %v10506 = vrot.slane %v9753, 6
        %v10507 = vsel %vm4740, %v10506, %v10505
        %v10508 = vrot.slane %v9755, 5
        %v10509 = vsel %vm4742, %v10508, %v10507
        %v10510 = vrot.slane %v9757, 4
        %v10511 = vsel %vm4744, %v10510, %v10509
        %v10512 = vrot.slane %v9759, 3
        %v10513 = vsel %vm4746, %v10512, %v10511
        %v10514 = vrot.slane %v9761, 2
        %v10515 = vsel %vm4748, %v10514, %v10513
        %v10516 = vrot.slane %v9763, 1
        %v10517 = vsel %vm4750, %v10516, %v10515
        %v10518 = vrot.slane %v9766, 7
        %v10519 = vsel %vm4738, %v10518, %v9764
        %v10520 = vrot.slane %v9768, 6
        %v10521 = vsel %vm4740, %v10520, %v10519
        %v10522 = vrot.slane %v9770, 5
        %v10523 = vsel %vm4742, %v10522, %v10521
        %v10524 = vrot.slane %v9772, 4
        %v10525 = vsel %vm4744, %v10524, %v10523
        %v10526 = vrot.slane %v9774, 3
        %v10527 = vsel %vm4746, %v10526, %v10525
        %v10528 = vrot.slane %v9776, 2
        %v10529 = vsel %vm4748, %v10528, %v10527
        %v10530 = vrot.slane %v9778, 1
        %v10531 = vsel %vm4750, %v10530, %v10529
        %v10532 = vrot.slane %v9767, 7
        %v10533 = vsel %vm4738, %v10532, %v9765
        %v10534 = vrot.slane %v9769, 6
        %v10535 = vsel %vm4740, %v10534, %v10533
        %v10536 = vrot.slane %v9771, 5
        %v10537 = vsel %vm4742, %v10536, %v10535
        %v10538 = vrot.slane %v9773, 4
        %v10539 = vsel %vm4744, %v10538, %v10537
        %v10540 = vrot.slane %v9775, 3
        %v10541 = vsel %vm4746, %v10540, %v10539
        %v10542 = vrot.slane %v9777, 2
        %v10543 = vsel %vm4748, %v10542, %v10541
        %v10544 = vrot.slane %v9779, 1
        %v10545 = vsel %vm4750, %v10544, %v10543
        %v10546 = vrot.slane %v9782, 7
        %v10547 = vsel %vm4738, %v10546, %v9780
        %v10548 = vrot.slane %v9784, 6
        %v10549 = vsel %vm4740, %v10548, %v10547
        %v10550 = vrot.slane %v9786, 5
        %v10551 = vsel %vm4742, %v10550, %v10549
        %v10552 = vrot.slane %v9788, 4
        %v10553 = vsel %vm4744, %v10552, %v10551
        %v10554 = vrot.slane %v9790, 3
        %v10555 = vsel %vm4746, %v10554, %v10553
        %v10556 = vrot.slane %v9792, 2
        %v10557 = vsel %vm4748, %v10556, %v10555
        %v10558 = vrot.slane %v9794, 1
        %v10559 = vsel %vm4750, %v10558, %v10557
        %v10560 = vrot.slane %v9783, 7
        %v10561 = vsel %vm4738, %v10560, %v9781
        %v10562 = vrot.slane %v9785, 6
        %v10563 = vsel %vm4740, %v10562, %v10561
        %v10564 = vrot.slane %v9787, 5
        %v10565 = vsel %vm4742, %v10564, %v10563
        %v10566 = vrot.slane %v9789, 4
        %v10567 = vsel %vm4744, %v10566, %v10565
        %v10568 = vrot.slane %v9791, 3
        %v10569 = vsel %vm4746, %v10568, %v10567
        %v10570 = vrot.slane %v9793, 2
        %v10571 = vsel %vm4748, %v10570, %v10569
        %v10572 = vrot.slane %v9795, 1
        %v10573 = vsel %vm4750, %v10572, %v10571
        %10574 = vrot.lane.b32.xlu0 %v10419, 64
        %v10575 = vpop.permute.xlu0 %10574
        %10576 = vrot.lane.b32.xlu0 %v10433, 64
        %v10577 = vpop.permute.xlu0 %10576
        %10578 = vrot.lane.b32.xlu0 %v10447, 64
        %v10579 = vpop.permute.xlu0 %10578
        %10580 = vrot.lane.b32.xlu0 %v10461, 64
        %v10581 = vpop.permute.xlu0 %10580
        %10582 = vrot.lane.b32.xlu0 %v10475, 64
        %v10583 = vpop.permute.xlu0 %10582
        %10584 = vrot.lane.b32.xlu0 %v10489, 64
        %v10585 = vpop.permute.xlu0 %10584
        %10586 = vrot.lane.b32.xlu0 %v10503, 64
        %v10587 = vpop.permute.xlu0 %10586
        %10588 = vrot.lane.b32.xlu0 %v10517, 64
        %v10589 = vpop.permute.xlu0 %10588
        %10590 = vrot.lane.b32.xlu0 %v10531, 64
        %v10591 = vpop.permute.xlu0 %10590
        %10592 = vrot.lane.b32.xlu0 %v10545, 64
        %v10593 = vpop.permute.xlu0 %10592
        %10594 = vrot.lane.b32.xlu0 %v10559, 64
        %v10595 = vpop.permute.xlu0 %10594
        %10596 = vrot.lane.b32.xlu0 %v10573, 64
        %v10597 = vpop.permute.xlu0 %10596
        %v10598 = vsel %vm7205, %v10575, %v10577
        %v10599 = vsel %vm7205, %v10579, %v10581
        %v10600 = vsel %vm7205, %v10583, %v10585
        %v10601 = vsel %vm7205, %v10587, %v10589
        %v10602 = vsel %vm7205, %v10591, %v10593
        %v10603 = vsel %vm7205, %v10595, %v10597
        %v10616 = vsel %vm7205, %v10185, %v10575
        %v10617 = vsel %vm7205, %v10187, %v10579
        %v10618 = vsel %vm7205, %v10189, %v10583
        %v10619 = vsel %vm7205, %v10191, %v10587
        %v10620 = vsel %vm7205, %v10193, %v10591
        %v10621 = vsel %vm7205, %v10195, %v10595
        %v10622 = vld [vmem:[%s5] sm:$0xff]
        %v10623 = vld [vmem:[%s5 + $0x8] sm:$0xff]
        %v10624 = vld [vmem:[%s5 + $0x10] sm:$0xff]
        %v10625 = vld [vmem:[%s5 + $0x18] sm:$0xff]
        %v10626 = vld [vmem:[%s5 + $0x20] sm:$0xff]
        %v10627 = vld [vmem:[%s5 + $0x28] sm:$0xff]
        %v10628 = vld [vmem:[%s5 + $0x30] sm:$0xff]
        %v10629 = vld [vmem:[%s5 + $0x38] sm:$0xff]
        %v10630 = vld [vmem:[%s5 + $0x40] sm:$0xff]
        %v10631 = vld [vmem:[%s5 + $0x48] sm:$0xff]
        %v10632 = vld [vmem:[%s5 + $0x50] sm:$0xff]
        %v10633 = vld [vmem:[%s5 + $0x58] sm:$0xff]
        %v10634 = vld [vmem:[%s5 + $0x60] sm:$0xff]
        %v10635 = vld [vmem:[%s5 + $0x68] sm:$0xff]
        %v10636 = vld [vmem:[%s5 + $0x70] sm:$0xff]
        %v10637 = vld [vmem:[%s5 + $0x78] sm:$0xff]
        %v10638 = vld [vmem:[%s5 + $0x80] sm:$0xff]
        %v10639 = vld [vmem:[%s5 + $0x88] sm:$0xff]
        %v10640 = vld [vmem:[%s5 + $0x90] sm:$0xff]
        %v10641 = vld [vmem:[%s5 + $0x98] sm:$0xff]
        %v10642 = vld [vmem:[%s5 + $0xa0] sm:$0xff]
        %v10643 = vld [vmem:[%s5 + $0xa8] sm:$0xff]
        %v10644 = vld [vmem:[%s5 + $0xb0] sm:$0xff]
        %v10645 = vld [vmem:[%s5 + $0xb8] sm:$0xff]
        %v10646 = vld [vmem:[%s5 + $0xc0] sm:$0xff]
        %v10647 = vld [vmem:[%s5 + $0xc8] sm:$0xff]
        %v10648 = vld [vmem:[%s5 + $0xd0] sm:$0xff]
        %v10649 = vld [vmem:[%s5 + $0xd8] sm:$0xff]
        %v10650 = vld [vmem:[%s5 + $0xe0] sm:$0xff]
        %v10651 = vld [vmem:[%s5 + $0xe8] sm:$0xff]
        %v10652 = vld [vmem:[%s5 + $0xf0] sm:$0xff]
        %v10653 = vld [vmem:[%s5 + $0xf8] sm:$0xff]
        %v10654 = vld [vmem:[%s5 + $0x100] sm:$0xff]
        %v10655 = vld [vmem:[%s5 + $0x108] sm:$0xff]
        %v10656 = vld [vmem:[%s5 + $0x110] sm:$0xff]
        %v10657 = vld [vmem:[%s5 + $0x118] sm:$0xff]
        %v10658 = vld [vmem:[%s5 + $0x120] sm:$0xff]
        %v10659 = vld [vmem:[%s5 + $0x128] sm:$0xff]
        %v10660 = vld [vmem:[%s5 + $0x130] sm:$0xff]
        %v10661 = vld [vmem:[%s5 + $0x138] sm:$0xff]
        %v10662 = vld [vmem:[%s5 + $0x140] sm:$0xff]
        %v10663 = vld [vmem:[%s5 + $0x148] sm:$0xff]
        %v10664 = vld [vmem:[%s5 + $0x150] sm:$0xff]
        %v10665 = vld [vmem:[%s5 + $0x158] sm:$0xff]
        %v10666 = vld [vmem:[%s5 + $0x160] sm:$0xff]
        %v10667 = vld [vmem:[%s5 + $0x168] sm:$0xff]
        %v10668 = vld [vmem:[%s5 + $0x170] sm:$0xff]
        %v10669 = vld [vmem:[%s5 + $0x178] sm:$0xff]
        %v10670 = vld [vmem:[%s5 + $0x180] sm:$0xff]
        %v10671 = vld [vmem:[%s5 + $0x188] sm:$0xff]
        %v10672 = vld [vmem:[%s5 + $0x190] sm:$0xff]
        %v10673 = vld [vmem:[%s5 + $0x198] sm:$0xff]
        %v10674 = vld [vmem:[%s5 + $0x1a0] sm:$0xff]
        %v10675 = vld [vmem:[%s5 + $0x1a8] sm:$0xff]
        %v10676 = vld [vmem:[%s5 + $0x1b0] sm:$0xff]
        %v10677 = vld [vmem:[%s5 + $0x1b8] sm:$0xff]
        %v10678 = vld [vmem:[%s5 + $0x1c0] sm:$0xff]
        %v10679 = vld [vmem:[%s5 + $0x1c8] sm:$0xff]
        %v10680 = vld [vmem:[%s5 + $0x1d0] sm:$0xff]
        %v10681 = vld [vmem:[%s5 + $0x1d8] sm:$0xff]
        %v10682 = vld [vmem:[%s5 + $0x1e0] sm:$0xff]
        %v10683 = vld [vmem:[%s5 + $0x1e8] sm:$0xff]
        %v10684 = vld [vmem:[%s5 + $0x1f0] sm:$0xff]
        %v10685 = vld [vmem:[%s5 + $0x1f8] sm:$0xff]
        %v10686 = vld [vmem:[%s5 + $0x200] sm:$0xff]
        %v10687 = vld [vmem:[%s5 + $0x208] sm:$0xff]
        %v10688 = vld [vmem:[%s5 + $0x210] sm:$0xff]
        %v10689 = vld [vmem:[%s5 + $0x218] sm:$0xff]
        %v10690 = vld [vmem:[%s5 + $0x220] sm:$0xff]
        %v10691 = vld [vmem:[%s5 + $0x228] sm:$0xff]
        %v10692 = vld [vmem:[%s5 + $0x230] sm:$0xff]
        %v10693 = vld [vmem:[%s5 + $0x238] sm:$0xff]
        %v10694 = vld [vmem:[%s5 + $0x240] sm:$0xff]
        %v10695 = vld [vmem:[%s5 + $0x248] sm:$0xff]
        %v10696 = vld [vmem:[%s5 + $0x250] sm:$0xff]
        %v10697 = vld [vmem:[%s5 + $0x258] sm:$0xff]
        %v10698 = vld [vmem:[%s5 + $0x260] sm:$0xff]
        %v10699 = vld [vmem:[%s5 + $0x268] sm:$0xff]
        %v10700 = vld [vmem:[%s5 + $0x270] sm:$0xff]
        %v10701 = vld [vmem:[%s5 + $0x278] sm:$0xff]
        %v10702 = vld [vmem:[%s5 + $0x280] sm:$0xff]
        %v10703 = vld [vmem:[%s5 + $0x288] sm:$0xff]
        %v10704 = vld [vmem:[%s5 + $0x290] sm:$0xff]
        %v10705 = vld [vmem:[%s5 + $0x298] sm:$0xff]
        %v10706 = vld [vmem:[%s5 + $0x2a0] sm:$0xff]
        %v10707 = vld [vmem:[%s5 + $0x2a8] sm:$0xff]
        %v10708 = vld [vmem:[%s5 + $0x2b0] sm:$0xff]
        %v10709 = vld [vmem:[%s5 + $0x2b8] sm:$0xff]
        %v10710 = vld [vmem:[%s5 + $0x2c0] sm:$0xff]
        %v10711 = vld [vmem:[%s5 + $0x2c8] sm:$0xff]
        %v10712 = vld [vmem:[%s5 + $0x2d0] sm:$0xff]
        %v10713 = vld [vmem:[%s5 + $0x2d8] sm:$0xff]
        %v10714 = vld [vmem:[%s5 + $0x2e0] sm:$0xff]
        %v10715 = vld [vmem:[%s5 + $0x2e8] sm:$0xff]
        %v10716 = vld [vmem:[%s5 + $0x2f0] sm:$0xff]
        %v10717 = vld [vmem:[%s5 + $0x2f8] sm:$0xff]
        %v10718 = vld [vmem:[%s5 + $0x300] sm:$0xff]
        %v10719 = vld [vmem:[%s5 + $0x308] sm:$0xff]
        %v10720 = vld [vmem:[%s5 + $0x310] sm:$0xff]
        %v10721 = vld [vmem:[%s5 + $0x318] sm:$0xff]
        %v10722 = vld [vmem:[%s5 + $0x320] sm:$0xff]
        %v10723 = vld [vmem:[%s5 + $0x328] sm:$0xff]
        %v10724 = vld [vmem:[%s5 + $0x330] sm:$0xff]
        %v10725 = vld [vmem:[%s5 + $0x338] sm:$0xff]
        %v10726 = vld [vmem:[%s5 + $0x340] sm:$0xff]
        %v10727 = vld [vmem:[%s5 + $0x348] sm:$0xff]
        %v10728 = vld [vmem:[%s5 + $0x350] sm:$0xff]
        %v10729 = vld [vmem:[%s5 + $0x358] sm:$0xff]
        %v10730 = vld [vmem:[%s5 + $0x360] sm:$0xff]
        %v10731 = vld [vmem:[%s5 + $0x368] sm:$0xff]
        %v10732 = vld [vmem:[%s5 + $0x370] sm:$0xff]
        %v10733 = vld [vmem:[%s5 + $0x378] sm:$0xff]
        %v10734 = vld [vmem:[%s5 + $0x380] sm:$0xff]
        %v10735 = vld [vmem:[%s5 + $0x388] sm:$0xff]
        %v10736 = vld [vmem:[%s5 + $0x390] sm:$0xff]
        %v10737 = vld [vmem:[%s5 + $0x398] sm:$0xff]
        %v10738 = vld [vmem:[%s5 + $0x3a0] sm:$0xff]
        %v10739 = vld [vmem:[%s5 + $0x3a8] sm:$0xff]
        %v10740 = vld [vmem:[%s5 + $0x3b0] sm:$0xff]
        %v10741 = vld [vmem:[%s5 + $0x3b8] sm:$0xff]
        %v10742 = vld [vmem:[%s5 + $0x3c0] sm:$0xff]
        %v10743 = vld [vmem:[%s5 + $0x3c8] sm:$0xff]
        %v10744 = vld [vmem:[%s5 + $0x3d0] sm:$0xff]
        %v10745 = vld [vmem:[%s5 + $0x3d8] sm:$0xff]
        %v10746 = vld [vmem:[%s5 + $0x3e0] sm:$0xff]
        %v10747 = vld [vmem:[%s5 + $0x3e8] sm:$0xff]
        %v10748 = vld [vmem:[%s5 + $0x3f0] sm:$0xff]
        %v10749 = vld [vmem:[%s5 + $0x3f8] sm:$0xff]
        %v10750 = vld [vmem:[%s5 + $0x400] sm:$0xff]
        %v10751 = vld [vmem:[%s5 + $0x408] sm:$0xff]
        %v10752 = vld [vmem:[%s5 + $0x410] sm:$0xff]
        %v10753 = vld [vmem:[%s5 + $0x418] sm:$0xff]
        %v10754 = vld [vmem:[%s5 + $0x420] sm:$0xff]
        %v10755 = vld [vmem:[%s5 + $0x428] sm:$0xff]
        %v10756 = vld [vmem:[%s5 + $0x430] sm:$0xff]
        %v10757 = vld [vmem:[%s5 + $0x438] sm:$0xff]
        %v10758 = vld [vmem:[%s5 + $0x440] sm:$0xff]
        %v10759 = vld [vmem:[%s5 + $0x448] sm:$0xff]
        %v10760 = vld [vmem:[%s5 + $0x450] sm:$0xff]
        %v10761 = vld [vmem:[%s5 + $0x458] sm:$0xff]
        %v10762 = vld [vmem:[%s5 + $0x460] sm:$0xff]
        %v10763 = vld [vmem:[%s5 + $0x468] sm:$0xff]
        %v10764 = vld [vmem:[%s5 + $0x470] sm:$0xff]
        %v10765 = vld [vmem:[%s5 + $0x478] sm:$0xff]
        %v10766 = vld [vmem:[%s6] sm:$0x3]
        %v10768 = vlaneseq
        %v10769 = vshrl.u32 %v10768, 7
        %v10770 = vsub.s32 0, %v10769
        %v10771 = vrot.slane %v10766, %v10770
        %v10772 = vlaneseq
        %v10773 = vshrl.u32 %v10772, 7
        %v10774 = vsub.s32 1, %v10773
        %v10775 = vrot.slane %v10766, %v10774
        %v10779 = vsel %vm7205, %v10395, 0
        %v10782 = vsel %vm7205, %v10397, 0
        %v10785 = vsel %vm7205, %v10399, 0
        %v10788 = vsel %vm7205, %v10401, 0
        %v10791 = vsel %vm7205, %v10403, 0
        %v10794 = vsel %vm7205, %v10405, 0
        %10796 = vmatprep.subr.mxu0 %v10623
        %10797 = vmatpush1.msra.mxu0 %v10622
        %10798 = vmatprep.subr.mxu0 %v10625
        %10799 = vmatpush1.msra.mxu0 %v10624
        %10800 = vmatprep.subr.mxu0 %v10627
        %10801 = vmatpush1.msra.mxu0 %v10626
        %10802 = vmatprep.subr.mxu0 %v10629
        %10803 = vmatpush1.msra.mxu0 %v10628
        %10804 = vmatprep.subr.mxu0 %v10631
        %10805 = vmatpush1.msra.mxu0 %v10630
        %10806 = vmatprep.subr.mxu0 %v10633
        %10807 = vmatpush1.msra.mxu0 %v10632
        %10808 = vmatprep.subr.mxu0 %v10635
        %10809 = vmatpush1.msra.mxu0 %v10634
        %10810 = vmatprep.subr.mxu0 %v10637
        %10811 = vmatpush1.msra.mxu0 %v10636
        %10812 = vmatprep.subr.mxu0 %v10639
        %10813 = vmatpush1.msra.mxu0 %v10638
        %10814 = vmatprep.subr.mxu0 %v10641
        %10815 = vmatpush1.msra.mxu0 %v10640
        %10816 = vmatprep.subr.mxu0 %v10643
        %10817 = vmatpush1.msra.mxu0 %v10642
        %10818 = vmatprep.subr.mxu0 %v10645
        %10819 = vmatpush1.msra.mxu0 %v10644
        %10820 = vmatprep.subr.mxu0 %v10647
        %10821 = vmatpush1.msra.mxu0 %v10646
        %10822 = vmatprep.subr.mxu0 %v10649
        %10823 = vmatpush1.msra.mxu0 %v10648
        %10824 = vmatprep.subr.mxu0 %v10651
        %10825 = vmatpush1.msra.mxu0 %v10650
        %10826 = vmatprep.subr.mxu0 %v10653
        %10827 = vmatpush1.msra.mxu0 %v10652
        %10828 = vmatprep.subr.mxu0 %v10655
        %10829 = vmatpush1.msra.mxu0 %v10654
        %10830 = vmatprep.subr.mxu0 %v10657
        %10831 = vmatpush1.msra.mxu0 %v10656
        %10832 = vmatprep.subr.mxu0 %v10659
        %10833 = vmatpush1.msra.mxu0 %v10658
        %10834 = vmatprep.subr.mxu0 %v10661
        %10835 = vmatpush1.msra.mxu0 %v10660
        %10836 = vmatprep.subr.mxu0 %v10663
        %10837 = vmatpush1.msra.mxu0 %v10662
        %10838 = vmatprep.subr.mxu0 %v10665
        %10839 = vmatpush1.msra.mxu0 %v10664
        %10840 = vmatprep.subr.mxu0 %v10667
        %10841 = vmatpush1.msra.mxu0 %v10666
        %10842 = vmatprep.subr.mxu0 %v10669
        %10843 = vmatpush1.msra.mxu0 %v10668
        %10844 = vmatprep.subr.mxu0 %v10671
        %10845 = vmatpush1.msra.mxu0 %v10670
        %10846 = vmatprep.subr.mxu0 %v10673
        %10847 = vmatpush1.msra.mxu0 %v10672
        %10848 = vmatprep.subr.mxu0 %v10675
        %10849 = vmatpush1.msra.mxu0 %v10674
        %10850 = vmatprep.subr.mxu0 %v10677
        %10851 = vmatpush1.msra.mxu0 %v10676
        %10852 = vmatprep.subr.mxu0 %v10679
        %10853 = vmatpush1.msra.mxu0 %v10678
        %10854 = vmatprep.subr.mxu0 %v10681
        %10855 = vmatpush1.msra.mxu0 %v10680
        %10856 = vmatprep.subr.mxu0 %v10683
        %10857 = vmatpush1.msra.mxu0 %v10682
        %10858 = vmatprep.subr.mxu0 %v10685
        %10859 = vmatpush1.msra.mxu0 %v10684
        %10860 = vmatprep.mubr.f32.mxu0 %v10616
        %10861 = vmatmul.mubr.f32.gmra.mrb[0].mxu0 %v10184
        %v10862 = vpop.f32.mrb[0].mxu0
        %v10863 = vadd.f32 %v10771, %v10862
        %v10864 = vpop.f32.mrb[0].mxu0
        %v10865 = vadd.f32 %v10775, %v10864
        %10866 = vmatprep.mubr.f32.mxu0 %v10617
        %10867 = vmatmul.mubr.f32.gmra.mrb[0].mxu0 %v10186
        %v10868 = vpop.f32.mrb[0].mxu0
        %v10869 = vadd.f32 %v10771, %v10868
        %v10870 = vpop.f32.mrb[0].mxu0
        %v10871 = vadd.f32 %v10775, %v10870
        %10872 = vmatprep.mubr.f32.mxu0 %v10618
        %10873 = vmatmul.mubr.f32.gmra.mrb[0].mxu0 %v10188
        %v10874 = vpop.f32.mrb[0].mxu0
        %v10875 = vadd.f32 %v10771, %v10874
        %v10876 = vpop.f32.mrb[0].mxu0
        %v10877 = vadd.f32 %v10775, %v10876
        %10878 = vmatprep.mubr.f32.mxu0 %v10619
        %10879 = vmatmul.mubr.f32.gmra.mrb[0].mxu0 %v10190
        %v10880 = vpop.f32.mrb[0].mxu0
        %v10881 = vadd.f32 %v10771, %v10880
        %v10882 = vpop.f32.mrb[0].mxu0
        %v10883 = vadd.f32 %v10775, %v10882
        %10884 = vmatprep.mubr.f32.mxu0 %v10620
        %10885 = vmatmul.mubr.f32.gmra.mrb[0].mxu0 %v10192
        %v10886 = vpop.f32.mrb[0].mxu0
        %v10887 = vadd.f32 %v10771, %v10886
        %v10888 = vpop.f32.mrb[0].mxu0
        %v10889 = vadd.f32 %v10775, %v10888
        %10890 = vmatprep.mubr.f32.mxu0 %v10621
        %10891 = vmatmul.mubr.f32.gmra.mrb[0].mxu0 %v10194
        %v10892 = vpop.f32.mrb[0].mxu0
        %v10893 = vadd.f32 %v10771, %v10892
        %v10894 = vpop.f32.mrb[0].mxu0
        %v10895 = vadd.f32 %v10775, %v10894
        %10896 = vdwg.mxu0
        %10897 = vmatprep.subr.mxu0 %v10687
        %10898 = vmatpush1.msra.mxu0 %v10686
        %10899 = vmatprep.subr.mxu0 %v10689
        %10900 = vmatpush1.msra.mxu0 %v10688
        %10901 = vmatprep.subr.mxu0 %v10691
        %10902 = vmatpush1.msra.mxu0 %v10690
        %10903 = vmatprep.subr.mxu0 %v10693
        %10904 = vmatpush1.msra.mxu0 %v10692
        %10905 = vmatprep.subr.mxu0 %v10695
        %10906 = vmatpush1.msra.mxu0 %v10694
        %10907 = vmatprep.subr.mxu0 %v10697
        %10908 = vmatpush1.msra.mxu0 %v10696
        %10909 = vmatprep.subr.mxu0 %v10699
        %10910 = vmatpush1.msra.mxu0 %v10698
        %10911 = vmatprep.subr.mxu0 %v10701
        %10912 = vmatpush1.msra.mxu0 %v10700
        %10913 = vmatprep.subr.mxu0 %v10703
        %10914 = vmatpush1.msra.mxu0 %v10702
        %10915 = vmatprep.subr.mxu0 %v10705
        %10916 = vmatpush1.msra.mxu0 %v10704
        %10917 = vmatprep.subr.mxu0 %v10707
        %10918 = vmatpush1.msra.mxu0 %v10706
        %10919 = vmatprep.subr.mxu0 %v10709
        %10920 = vmatpush1.msra.mxu0 %v10708
        %10921 = vmatprep.subr.mxu0 %v10711
        %10922 = vmatpush1.msra.mxu0 %v10710
        %10923 = vmatprep.subr.mxu0 %v10713
        %10924 = vmatpush1.msra.mxu0 %v10712
        %10925 = vmatprep.subr.mxu0 %v10715
        %10926 = vmatpush1.msra.mxu0 %v10714
        %10927 = vmatprep.subr.mxu0 %v10717
        %10928 = vmatpush1.msra.mxu0 %v10716
        %10929 = vmatprep.subr.mxu0 %v10719
        %10930 = vmatpush1.msra.mxu0 %v10718
        %10931 = vmatprep.subr.mxu0 %v10721
        %10932 = vmatpush1.msra.mxu0 %v10720
        %10933 = vmatprep.subr.mxu0 %v10723
        %10934 = vmatpush1.msra.mxu0 %v10722
        %10935 = vmatprep.subr.mxu0 %v10725
        %10936 = vmatpush1.msra.mxu0 %v10724
        %10937 = vmatprep.subr.mxu0 %v10727
        %10938 = vmatpush1.msra.mxu0 %v10726
        %10939 = vmatprep.subr.mxu0 %v10729
        %10940 = vmatpush1.msra.mxu0 %v10728
        %10941 = vmatprep.subr.mxu0 %v10731
        %10942 = vmatpush1.msra.mxu0 %v10730
        %10943 = vmatprep.subr.mxu0 %v10733
        %10944 = vmatpush1.msra.mxu0 %v10732
        %10945 = vmatprep.subr.mxu0 %v10735
        %10946 = vmatpush1.msra.mxu0 %v10734
        %10947 = vmatprep.subr.mxu0 %v10737
        %10948 = vmatpush1.msra.mxu0 %v10736
        %10949 = vmatprep.subr.mxu0 %v10739
        %10950 = vmatpush1.msra.mxu0 %v10738
        %10951 = vmatprep.subr.mxu0 %v10741
        %10952 = vmatpush1.msra.mxu0 %v10740
        %10953 = vmatprep.subr.mxu0 %v10743
        %10954 = vmatpush1.msra.mxu0 %v10742
        %10955 = vmatprep.subr.mxu0 %v10745
        %10956 = vmatpush1.msra.mxu0 %v10744
        %10957 = vmatprep.subr.mxu0 %v10747
        %10958 = vmatpush1.msra.mxu0 %v10746
        %10959 = vmatprep.subr.mxu0 %v10749
        %10960 = vmatpush1.msra.mxu0 %v10748
        %10961 = vmatprep.mubr.f32.mxu0 %v10394
        %10962 = vmatmul.mubr.f32.gmra.mrb[0].mxu0 %v10598
        %v10963 = vpop.f32.mrb[0].mxu0
        %v10964 = vadd.f32 %v10863, %v10963
        %v10965 = vpop.f32.mrb[0].mxu0
        %v10966 = vadd.f32 %v10865, %v10965
        %10967 = vmatprep.mubr.f32.mxu0 %v10396
        %10968 = vmatmul.mubr.f32.gmra.mrb[0].mxu0 %v10599
        %v10969 = vpop.f32.mrb[0].mxu0
        %v10970 = vadd.f32 %v10869, %v10969
        %v10971 = vpop.f32.mrb[0].mxu0
        %v10972 = vadd.f32 %v10871, %v10971
        %10973 = vmatprep.mubr.f32.mxu0 %v10398
        %10974 = vmatmul.mubr.f32.gmra.mrb[0].mxu0 %v10600
        %v10975 = vpop.f32.mrb[0].mxu0
        %v10976 = vadd.f32 %v10875, %v10975
        %v10977 = vpop.f32.mrb[0].mxu0
        %v10978 = vadd.f32 %v10877, %v10977
        %10979 = vmatprep.mubr.f32.mxu0 %v10400
        %10980 = vmatmul.mubr.f32.gmra.mrb[0].mxu0 %v10601
        %v10981 = vpop.f32.mrb[0].mxu0
        %v10982 = vadd.f32 %v10881, %v10981
        %v10983 = vpop.f32.mrb[0].mxu0
        %v10984 = vadd.f32 %v10883, %v10983
        %10985 = vmatprep.mubr.f32.mxu0 %v10402
        %10986 = vmatmul.mubr.f32.gmra.mrb[0].mxu0 %v10602
        %v10987 = vpop.f32.mrb[0].mxu0
        %v10988 = vadd.f32 %v10887, %v10987
        %v10989 = vpop.f32.mrb[0].mxu0
        %v10990 = vadd.f32 %v10889, %v10989
        %10991 = vmatprep.mubr.f32.mxu0 %v10404
        %10992 = vmatmul.mubr.f32.gmra.mrb[0].mxu0 %v10603
        %v10993 = vpop.f32.mrb[0].mxu0
        %v10994 = vadd.f32 %v10893, %v10993
        %v10995 = vpop.f32.mrb[0].mxu0
        %v10996 = vadd.f32 %v10895, %v10995
        %10997 = vdwg.mxu0
        %10998 = vmatprep.subr.mxu0 %v10751
        %10999 = vmatpush1.msra.mxu0 %v10750
        %11000 = vmatprep.subr.mxu0 %v10753
        %11001 = vmatpush1.msra.mxu0 %v10752
        %11002 = vmatprep.subr.mxu0 %v10755
        %11003 = vmatpush1.msra.mxu0 %v10754
        %11004 = vmatprep.subr.mxu0 %v10757
        %11005 = vmatpush1.msra.mxu0 %v10756
        %11006 = vmatprep.subr.mxu0 %v10759
        %11007 = vmatpush1.msra.mxu0 %v10758
        %11008 = vmatprep.subr.mxu0 %v10761
        %11009 = vmatpush1.msra.mxu0 %v10760
        %11010 = vmatprep.subr.mxu0 %v10763
        %11011 = vmatpush1.msra.mxu0 %v10762
        %11012 = vmatprep.subr.mxu0 %v10765
        %11013 = vmatpush1.msra.mxu0 %v10764
        %11014 = vmatprep.subr.mxu0 0.0
        %11015 = vmatpush1.msra.mxu0 0.0
        %11016 = vmatprep.subr.mxu0 0.0
        %11017 = vmatpush1.msra.mxu0 0.0
        %11018 = vmatprep.subr.mxu0 0.0
        %11019 = vmatpush1.msra.mxu0 0.0
        %11020 = vmatprep.subr.mxu0 0.0
        %11021 = vmatpush1.msra.mxu0 0.0
        %11022 = vmatprep.subr.mxu0 0.0
        %11023 = vmatpush1.msra.mxu0 0.0
        %11024 = vmatprep.subr.mxu0 0.0
        %11025 = vmatpush1.msra.mxu0 0.0
        %11026 = vmatprep.subr.mxu0 0.0
        %11027 = vmatpush1.msra.mxu0 0.0
        %11028 = vmatprep.subr.mxu0 0.0
        %11029 = vmatpush1.msra.mxu0 0.0
        %11030 = vmatprep.subr.mxu0 0.0
        %11031 = vmatpush1.msra.mxu0 0.0
        %11032 = vmatprep.subr.mxu0 0.0
        %11033 = vmatpush1.msra.mxu0 0.0
        %11034 = vmatprep.subr.mxu0 0.0
        %11035 = vmatpush1.msra.mxu0 0.0
        %11036 = vmatprep.subr.mxu0 0.0
        %11037 = vmatpush1.msra.mxu0 0.0
        %11038 = vmatprep.subr.mxu0 0.0
        %11039 = vmatpush1.msra.mxu0 0.0
        %11040 = vmatprep.subr.mxu0 0.0
        %11041 = vmatpush1.msra.mxu0 0.0
        %11042 = vmatprep.subr.mxu0 0.0
        %11043 = vmatpush1.msra.mxu0 0.0
        %11044 = vmatprep.subr.mxu0 0.0
        %11045 = vmatpush1.msra.mxu0 0.0
        %11046 = vmatprep.subr.mxu0 0.0
        %11047 = vmatpush1.msra.mxu0 0.0
        %11048 = vmatprep.subr.mxu0 0.0
        %11049 = vmatpush1.msra.mxu0 0.0
        %11050 = vmatprep.subr.mxu0 0.0
        %11051 = vmatpush1.msra.mxu0 0.0
        %11052 = vmatprep.subr.mxu0 0.0
        %11053 = vmatpush1.msra.mxu0 0.0
        %11054 = vmatprep.subr.mxu0 0.0
        %11055 = vmatpush1.msra.mxu0 0.0
        %11056 = vmatprep.subr.mxu0 0.0
        %11057 = vmatpush1.msra.mxu0 0.0
        %11058 = vmatprep.subr.mxu0 0.0
        %11059 = vmatpush1.msra.mxu0 0.0
        %11060 = vmatprep.subr.mxu0 0.0
        %11061 = vmatpush1.msra.mxu0 0.0
        %11062 = vmatprep.mubr.f32.mxu0 0.0
        %11063 = vmatmul.mubr.f32.gmra.mrb[0].mxu0 %v10779
        %v11064 = vpop.f32.mrb[0].mxu0
        %v11065 = vadd.f32 %v10964, %v11064
        %v11066 = vpop.f32.mrb[0].mxu0
        %v11067 = vadd.f32 %v10966, %v11066
        %11068 = vmatprep.mubr.f32.mxu0 0.0
        %11069 = vmatmul.mubr.f32.gmra.mrb[0].mxu0 %v10782
        %v11070 = vpop.f32.mrb[0].mxu0
        %v11071 = vadd.f32 %v10970, %v11070
        %v11072 = vpop.f32.mrb[0].mxu0
        %v11073 = vadd.f32 %v10972, %v11072
        %11074 = vmatprep.mubr.f32.mxu0 0.0
        %11075 = vmatmul.mubr.f32.gmra.mrb[0].mxu0 %v10785
        %v11076 = vpop.f32.mrb[0].mxu0
        %v11077 = vadd.f32 %v10976, %v11076
        %v11078 = vpop.f32.mrb[0].mxu0
        %v11079 = vadd.f32 %v10978, %v11078
        %11080 = vmatprep.mubr.f32.mxu0 0.0
        %11081 = vmatmul.mubr.f32.gmra.mrb[0].mxu0 %v10788
        %v11082 = vpop.f32.mrb[0].mxu0
        %v11083 = vadd.f32 %v10982, %v11082
        %v11084 = vpop.f32.mrb[0].mxu0
        %v11085 = vadd.f32 %v10984, %v11084
        %11086 = vmatprep.mubr.f32.mxu0 0.0
        %11087 = vmatmul.mubr.f32.gmra.mrb[0].mxu0 %v10791
        %v11088 = vpop.f32.mrb[0].mxu0
        %v11089 = vadd.f32 %v10988, %v11088
        %v11090 = vpop.f32.mrb[0].mxu0
        %v11091 = vadd.f32 %v10990, %v11090
        %11092 = vmatprep.mubr.f32.mxu0 0.0
        %11093 = vmatmul.mubr.f32.gmra.mrb[0].mxu0 %v10794
        %v11094 = vpop.f32.mrb[0].mxu0
        %v11095 = vadd.f32 %v10994, %v11094
        %v11096 = vpop.f32.mrb[0].mxu0
        %v11097 = vadd.f32 %v10996, %v11096
        %11098 = vdwg.mxu0
        %v11099 = vmax.f32 %v11065, 0.0
        %v11100 = vmax.f32 %v11067, 0.0
        %v11101 = vmax.f32 %v11071, 0.0
        %v11102 = vmax.f32 %v11073, 0.0
        %v11103 = vmax.f32 %v11077, 0.0
        %v11104 = vmax.f32 %v11079, 0.0
        %v11105 = vmax.f32 %v11083, 0.0
        %v11106 = vmax.f32 %v11085, 0.0
        %v11107 = vmax.f32 %v11089, 0.0
        %v11108 = vmax.f32 %v11091, 0.0
        %v11109 = vmax.f32 %v11095, 0.0
        %v11110 = vmax.f32 %v11097, 0.0
        %v11123 = vcombine.low %v11099, %v11100
        %v11124 = vcombine.high %v11099, %v11100
        %v11126 = vunpack.c.l.s4 1983009808
        %v11127 = vunpack.c.0.s8 %v11126
        %v11128 = vlaneseq
        %v11129 = vshrl.u32 %v11128, 7
        %v11130 = vsub.s32 %v11127, %v11129
        %v11131 = vrot.slane %v11123, %v11130
        %v11133 = vunpack.c.l.s4 1983009808
        %v11134 = vunpack.c.0.s8 %v11133
        %v11135 = vlaneseq
        %v11136 = vshrl.u32 %v11135, 7
        %v11137 = vsub.s32 %v11134, %v11136
        %v11138 = vrot.slane %v11124, %v11137
        %v11139 = vcombine.high %v11131, %v11131
        %v11140 = vcombine.high %v11138, %v11138
        %v11141 = vcombine.low %v11101, %v11102
        %v11142 = vcombine.high %v11101, %v11102
        %v11144 = vunpack.c.l.s4 1983009808
        %v11145 = vunpack.c.0.s8 %v11144
        %v11146 = vlaneseq
        %v11147 = vshrl.u32 %v11146, 7
        %v11148 = vsub.s32 %v11145, %v11147
        %v11149 = vrot.slane %v11141, %v11148
        %v11151 = vunpack.c.l.s4 1983009808
        %v11152 = vunpack.c.0.s8 %v11151
        %v11153 = vlaneseq
        %v11154 = vshrl.u32 %v11153, 7
        %v11155 = vsub.s32 %v11152, %v11154
        %v11156 = vrot.slane %v11142, %v11155
        %v11157 = vcombine.high %v11149, %v11149
        %v11158 = vcombine.high %v11156, %v11156
        %v11159 = vcombine.low %v11103, %v11104
        %v11160 = vcombine.high %v11103, %v11104
        %v11162 = vunpack.c.l.s4 1983009808
        %v11163 = vunpack.c.0.s8 %v11162
        %v11164 = vlaneseq
        %v11165 = vshrl.u32 %v11164, 7
        %v11166 = vsub.s32 %v11163, %v11165
        %v11167 = vrot.slane %v11159, %v11166
        %v11169 = vunpack.c.l.s4 1983009808
        %v11170 = vunpack.c.0.s8 %v11169
        %v11171 = vlaneseq
        %v11172 = vshrl.u32 %v11171, 7
        %v11173 = vsub.s32 %v11170, %v11172
        %v11174 = vrot.slane %v11160, %v11173
        %v11175 = vcombine.high %v11167, %v11167
        %v11176 = vcombine.high %v11174, %v11174
        %v11177 = vcombine.low %v11105, %v11106
        %v11178 = vcombine.high %v11105, %v11106
        %v11180 = vunpack.c.l.s4 1983009808
        %v11181 = vunpack.c.0.s8 %v11180
        %v11182 = vlaneseq
        %v11183 = vshrl.u32 %v11182, 7
        %v11184 = vsub.s32 %v11181, %v11183
        %v11185 = vrot.slane %v11177, %v11184
        %v11187 = vunpack.c.l.s4 1983009808
        %v11188 = vunpack.c.0.s8 %v11187
        %v11189 = vlaneseq
        %v11190 = vshrl.u32 %v11189, 7
        %v11191 = vsub.s32 %v11188, %v11190
        %v11192 = vrot.slane %v11178, %v11191
        %v11193 = vcombine.high %v11185, %v11185
        %v11194 = vcombine.high %v11192, %v11192
        %v11195 = vcombine.low %v11107, %v11108
        %v11196 = vcombine.high %v11107, %v11108
        %v11198 = vunpack.c.l.s4 1983009808
        %v11199 = vunpack.c.0.s8 %v11198
        %v11200 = vlaneseq
        %v11201 = vshrl.u32 %v11200, 7
        %v11202 = vsub.s32 %v11199, %v11201
        %v11203 = vrot.slane %v11195, %v11202
        %v11205 = vunpack.c.l.s4 1983009808
        %v11206 = vunpack.c.0.s8 %v11205
        %v11207 = vlaneseq
        %v11208 = vshrl.u32 %v11207, 7
        %v11209 = vsub.s32 %v11206, %v11208
        %v11210 = vrot.slane %v11196, %v11209
        %v11211 = vcombine.high %v11203, %v11203
        %v11212 = vcombine.high %v11210, %v11210
        %v11213 = vcombine.low %v11109, %v11110
        %v11214 = vcombine.high %v11109, %v11110
        %v11216 = vunpack.c.l.s4 1983009808
        %v11217 = vunpack.c.0.s8 %v11216
        %v11218 = vlaneseq
        %v11219 = vshrl.u32 %v11218, 7
        %v11220 = vsub.s32 %v11217, %v11219
        %v11221 = vrot.slane %v11213, %v11220
        %v11223 = vunpack.c.l.s4 1983009808
        %v11224 = vunpack.c.0.s8 %v11223
        %v11225 = vlaneseq
        %v11226 = vshrl.u32 %v11225, 7
        %v11227 = vsub.s32 %v11224, %v11226
        %v11228 = vrot.slane %v11214, %v11227
        %v11229 = vcombine.high %v11221, %v11221
        %v11230 = vcombine.high %v11228, %v11228
        %v11232 = vunpack.c.l.s4 1983009808
        %v11233 = vunpack.c.0.s8 %v11232
        %v11234 = vlaneseq
        %v11235 = vshrl.u32 %v11234, 7
        %v11236 = vsub.s32 %v11233, %v11235
        %v11237 = vrot.slane %v11131, %v11236
        %v11238 = vcombine.high %v11237, %v11237
        %v11240 = vunpack.c.l.s4 1983009808
        %v11241 = vunpack.c.0.s8 %v11240
        %v11242 = vlaneseq
        %v11243 = vshrl.u32 %v11242, 7
        %v11244 = vsub.s32 %v11241, %v11243
        %v11245 = vrot.slane %v11139, %v11244
        %v11246 = vcombine.high %v11245, %v11245
        %v11248 = vunpack.c.l.s4 1983009808
        %v11249 = vunpack.c.0.s8 %v11248
        %v11250 = vlaneseq
        %v11251 = vshrl.u32 %v11250, 7
        %v11252 = vsub.s32 %v11249, %v11251
        %v11253 = vrot.slane %v11138, %v11252
        %v11254 = vcombine.high %v11253, %v11253
        %v11256 = vunpack.c.l.s4 1983009808
        %v11257 = vunpack.c.0.s8 %v11256
        %v11258 = vlaneseq
        %v11259 = vshrl.u32 %v11258, 7
        %v11260 = vsub.s32 %v11257, %v11259
        %v11261 = vrot.slane %v11140, %v11260
        %v11262 = vcombine.high %v11261, %v11261
        %v11264 = vunpack.c.l.s4 1983009808
        %v11265 = vunpack.c.0.s8 %v11264
        %v11266 = vlaneseq
        %v11267 = vshrl.u32 %v11266, 7
        %v11268 = vsub.s32 %v11265, %v11267
        %v11269 = vrot.slane %v11149, %v11268
        %v11270 = vcombine.high %v11269, %v11269
        %v11272 = vunpack.c.l.s4 1983009808
        %v11273 = vunpack.c.0.s8 %v11272
        %v11274 = vlaneseq
        %v11275 = vshrl.u32 %v11274, 7
        %v11276 = vsub.s32 %v11273, %v11275
        %v11277 = vrot.slane %v11157, %v11276
        %v11278 = vcombine.high %v11277, %v11277
        %v11280 = vunpack.c.l.s4 1983009808
        %v11281 = vunpack.c.0.s8 %v11280
        %v11282 = vlaneseq
        %v11283 = vshrl.u32 %v11282, 7
        %v11284 = vsub.s32 %v11281, %v11283
        %v11285 = vrot.slane %v11156, %v11284
        %v11286 = vcombine.high %v11285, %v11285
        %v11288 = vunpack.c.l.s4 1983009808
        %v11289 = vunpack.c.0.s8 %v11288
        %v11290 = vlaneseq
        %v11291 = vshrl.u32 %v11290, 7
        %v11292 = vsub.s32 %v11289, %v11291
        %v11293 = vrot.slane %v11158, %v11292
        %v11294 = vcombine.high %v11293, %v11293
        %v11296 = vunpack.c.l.s4 1983009808
        %v11297 = vunpack.c.0.s8 %v11296
        %v11298 = vlaneseq
        %v11299 = vshrl.u32 %v11298, 7
        %v11300 = vsub.s32 %v11297, %v11299
        %v11301 = vrot.slane %v11167, %v11300
        %v11302 = vcombine.high %v11301, %v11301
        %v11304 = vunpack.c.l.s4 1983009808
        %v11305 = vunpack.c.0.s8 %v11304
        %v11306 = vlaneseq
        %v11307 = vshrl.u32 %v11306, 7
        %v11308 = vsub.s32 %v11305, %v11307
        %v11309 = vrot.slane %v11175, %v11308
        %v11310 = vcombine.high %v11309, %v11309
        %v11312 = vunpack.c.l.s4 1983009808
        %v11313 = vunpack.c.0.s8 %v11312
        %v11314 = vlaneseq
        %v11315 = vshrl.u32 %v11314, 7
        %v11316 = vsub.s32 %v11313, %v11315
        %v11317 = vrot.slane %v11174, %v11316
        %v11318 = vcombine.high %v11317, %v11317
        %v11320 = vunpack.c.l.s4 1983009808
        %v11321 = vunpack.c.0.s8 %v11320
        %v11322 = vlaneseq
        %v11323 = vshrl.u32 %v11322, 7
        %v11324 = vsub.s32 %v11321, %v11323
        %v11325 = vrot.slane %v11176, %v11324
        %v11326 = vcombine.high %v11325, %v11325
        %v11328 = vunpack.c.l.s4 1983009808
        %v11329 = vunpack.c.0.s8 %v11328
        %v11330 = vlaneseq
        %v11331 = vshrl.u32 %v11330, 7
        %v11332 = vsub.s32 %v11329, %v11331
        %v11333 = vrot.slane %v11185, %v11332
        %v11334 = vcombine.high %v11333, %v11333
        %v11336 = vunpack.c.l.s4 1983009808
        %v11337 = vunpack.c.0.s8 %v11336
        %v11338 = vlaneseq
        %v11339 = vshrl.u32 %v11338, 7
        %v11340 = vsub.s32 %v11337, %v11339
        %v11341 = vrot.slane %v11193, %v11340
        %v11342 = vcombine.high %v11341, %v11341
        %v11344 = vunpack.c.l.s4 1983009808
        %v11345 = vunpack.c.0.s8 %v11344
        %v11346 = vlaneseq
        %v11347 = vshrl.u32 %v11346, 7
        %v11348 = vsub.s32 %v11345, %v11347
        %v11349 = vrot.slane %v11192, %v11348
        %v11350 = vcombine.high %v11349, %v11349
        %v11352 = vunpack.c.l.s4 1983009808
        %v11353 = vunpack.c.0.s8 %v11352
        %v11354 = vlaneseq
        %v11355 = vshrl.u32 %v11354, 7
        %v11356 = vsub.s32 %v11353, %v11355
        %v11357 = vrot.slane %v11194, %v11356
        %v11358 = vcombine.high %v11357, %v11357
        %v11360 = vunpack.c.l.s4 1983009808
        %v11361 = vunpack.c.0.s8 %v11360
        %v11362 = vlaneseq
        %v11363 = vshrl.u32 %v11362, 7
        %v11364 = vsub.s32 %v11361, %v11363
        %v11365 = vrot.slane %v11203, %v11364
        %v11366 = vcombine.high %v11365, %v11365
        %v11368 = vunpack.c.l.s4 1983009808
        %v11369 = vunpack.c.0.s8 %v11368
        %v11370 = vlaneseq
        %v11371 = vshrl.u32 %v11370, 7
        %v11372 = vsub.s32 %v11369, %v11371
        %v11373 = vrot.slane %v11211, %v11372
        %v11374 = vcombine.high %v11373, %v11373
        %v11376 = vunpack.c.l.s4 1983009808
        %v11377 = vunpack.c.0.s8 %v11376
        %v11378 = vlaneseq
        %v11379 = vshrl.u32 %v11378, 7
        %v11380 = vsub.s32 %v11377, %v11379
        %v11381 = vrot.slane %v11210, %v11380
        %v11382 = vcombine.high %v11381, %v11381
        %v11384 = vunpack.c.l.s4 1983009808
        %v11385 = vunpack.c.0.s8 %v11384
        %v11386 = vlaneseq
        %v11387 = vshrl.u32 %v11386, 7
        %v11388 = vsub.s32 %v11385, %v11387
        %v11389 = vrot.slane %v11212, %v11388
        %v11390 = vcombine.high %v11389, %v11389
        %v11392 = vunpack.c.l.s4 1983009808
        %v11393 = vunpack.c.0.s8 %v11392
        %v11394 = vlaneseq
        %v11395 = vshrl.u32 %v11394, 7
        %v11396 = vsub.s32 %v11393, %v11395
        %v11397 = vrot.slane %v11221, %v11396
        %v11398 = vcombine.high %v11397, %v11397
        %v11400 = vunpack.c.l.s4 1983009808
        %v11401 = vunpack.c.0.s8 %v11400
        %v11402 = vlaneseq
        %v11403 = vshrl.u32 %v11402, 7
        %v11404 = vsub.s32 %v11401, %v11403
        %v11405 = vrot.slane %v11229, %v11404
        %v11406 = vcombine.high %v11405, %v11405
        %v11408 = vunpack.c.l.s4 1983009808
        %v11409 = vunpack.c.0.s8 %v11408
        %v11410 = vlaneseq
        %v11411 = vshrl.u32 %v11410, 7
        %v11412 = vsub.s32 %v11409, %v11411
        %v11413 = vrot.slane %v11228, %v11412
        %v11414 = vcombine.high %v11413, %v11413
        %v11416 = vunpack.c.l.s4 1983009808
        %v11417 = vunpack.c.0.s8 %v11416
        %v11418 = vlaneseq
        %v11419 = vshrl.u32 %v11418, 7
        %v11420 = vsub.s32 %v11417, %v11419
        %v11421 = vrot.slane %v11230, %v11420
        %v11422 = vcombine.high %v11421, %v11421
        %v11471 = vsel %vm3200, %v11237, -inf
        %v11472 = vrot.slane %v11471, 4
        %v11473 = vmax.f32 %v11471, %v11472
        %v11474 = vrot.slane %v11473, 2
        %v11475 = vmax.f32 %v11473, %v11474
        %v11476 = vrot.slane %v11475, 1
        %v11477 = vmax.f32 %v11475, %v11476
        %v11478 = vsel %vm3208, %v11238, -inf
        %v11479 = vrot.slane %v11478, 4
        %v11480 = vmax.f32 %v11478, %v11479
        %v11481 = vrot.slane %v11480, 2
        %v11482 = vmax.f32 %v11480, %v11481
        %v11483 = vrot.slane %v11482, 1
        %v11484 = vmax.f32 %v11482, %v11483
        %v11485 = vsel %vm3200, %v11245, -inf
        %v11486 = vrot.slane %v11485, 4
        %v11487 = vmax.f32 %v11485, %v11486
        %v11488 = vrot.slane %v11487, 2
        %v11489 = vmax.f32 %v11487, %v11488
        %v11490 = vrot.slane %v11489, 1
        %v11491 = vmax.f32 %v11489, %v11490
        %v11492 = vsel %vm3208, %v11246, -inf
        %v11493 = vrot.slane %v11492, 4
        %v11494 = vmax.f32 %v11492, %v11493
        %v11495 = vrot.slane %v11494, 2
        %v11496 = vmax.f32 %v11494, %v11495
        %v11497 = vrot.slane %v11496, 1
        %v11498 = vmax.f32 %v11496, %v11497
        %v11499 = vsel %vm3200, %v11253, -inf
        %v11500 = vrot.slane %v11499, 4
        %v11501 = vmax.f32 %v11499, %v11500
        %v11502 = vrot.slane %v11501, 2
        %v11503 = vmax.f32 %v11501, %v11502
        %v11504 = vrot.slane %v11503, 1
        %v11505 = vmax.f32 %v11503, %v11504
        %v11506 = vsel %vm3208, %v11254, -inf
        %v11507 = vrot.slane %v11506, 4
        %v11508 = vmax.f32 %v11506, %v11507
        %v11509 = vrot.slane %v11508, 2
        %v11510 = vmax.f32 %v11508, %v11509
        %v11511 = vrot.slane %v11510, 1
        %v11512 = vmax.f32 %v11510, %v11511
        %v11513 = vsel %vm3200, %v11261, -inf
        %v11514 = vrot.slane %v11513, 4
        %v11515 = vmax.f32 %v11513, %v11514
        %v11516 = vrot.slane %v11515, 2
        %v11517 = vmax.f32 %v11515, %v11516
        %v11518 = vrot.slane %v11517, 1
        %v11519 = vmax.f32 %v11517, %v11518
        %v11520 = vsel %vm3208, %v11262, -inf
        %v11521 = vrot.slane %v11520, 4
        %v11522 = vmax.f32 %v11520, %v11521
        %v11523 = vrot.slane %v11522, 2
        %v11524 = vmax.f32 %v11522, %v11523
        %v11525 = vrot.slane %v11524, 1
        %v11526 = vmax.f32 %v11524, %v11525
        %v11527 = vsel %vm3200, %v11269, -inf
        %v11528 = vrot.slane %v11527, 4
        %v11529 = vmax.f32 %v11527, %v11528
        %v11530 = vrot.slane %v11529, 2
        %v11531 = vmax.f32 %v11529, %v11530
        %v11532 = vrot.slane %v11531, 1
        %v11533 = vmax.f32 %v11531, %v11532
        %v11534 = vsel %vm3208, %v11270, -inf
        %v11535 = vrot.slane %v11534, 4
        %v11536 = vmax.f32 %v11534, %v11535
        %v11537 = vrot.slane %v11536, 2
        %v11538 = vmax.f32 %v11536, %v11537
        %v11539 = vrot.slane %v11538, 1
        %v11540 = vmax.f32 %v11538, %v11539
        %v11541 = vsel %vm3200, %v11277, -inf
        %v11542 = vrot.slane %v11541, 4
        %v11543 = vmax.f32 %v11541, %v11542
        %v11544 = vrot.slane %v11543, 2
        %v11545 = vmax.f32 %v11543, %v11544
        %v11546 = vrot.slane %v11545, 1
        %v11547 = vmax.f32 %v11545, %v11546
        %v11548 = vsel %vm3208, %v11278, -inf
        %v11549 = vrot.slane %v11548, 4
        %v11550 = vmax.f32 %v11548, %v11549
        %v11551 = vrot.slane %v11550, 2
        %v11552 = vmax.f32 %v11550, %v11551
        %v11553 = vrot.slane %v11552, 1
        %v11554 = vmax.f32 %v11552, %v11553
        %v11555 = vsel %vm3200, %v11285, -inf
        %v11556 = vrot.slane %v11555, 4
        %v11557 = vmax.f32 %v11555, %v11556
        %v11558 = vrot.slane %v11557, 2
        %v11559 = vmax.f32 %v11557, %v11558
        %v11560 = vrot.slane %v11559, 1
        %v11561 = vmax.f32 %v11559, %v11560
        %v11562 = vsel %vm3208, %v11286, -inf
        %v11563 = vrot.slane %v11562, 4
        %v11564 = vmax.f32 %v11562, %v11563
        %v11565 = vrot.slane %v11564, 2
        %v11566 = vmax.f32 %v11564, %v11565
        %v11567 = vrot.slane %v11566, 1
        %v11568 = vmax.f32 %v11566, %v11567
        %v11569 = vsel %vm3200, %v11293, -inf
        %v11570 = vrot.slane %v11569, 4
        %v11571 = vmax.f32 %v11569, %v11570
        %v11572 = vrot.slane %v11571, 2
        %v11573 = vmax.f32 %v11571, %v11572
        %v11574 = vrot.slane %v11573, 1
        %v11575 = vmax.f32 %v11573, %v11574
        %v11576 = vsel %vm3208, %v11294, -inf
        %v11577 = vrot.slane %v11576, 4
        %v11578 = vmax.f32 %v11576, %v11577
        %v11579 = vrot.slane %v11578, 2
        %v11580 = vmax.f32 %v11578, %v11579
        %v11581 = vrot.slane %v11580, 1
        %v11582 = vmax.f32 %v11580, %v11581
        %v11583 = vsel %vm3200, %v11301, -inf
        %v11584 = vrot.slane %v11583, 4
        %v11585 = vmax.f32 %v11583, %v11584
        %v11586 = vrot.slane %v11585, 2
        %v11587 = vmax.f32 %v11585, %v11586
        %v11588 = vrot.slane %v11587, 1
        %v11589 = vmax.f32 %v11587, %v11588
        %v11590 = vsel %vm3208, %v11302, -inf
        %v11591 = vrot.slane %v11590, 4
        %v11592 = vmax.f32 %v11590, %v11591
        %v11593 = vrot.slane %v11592, 2
        %v11594 = vmax.f32 %v11592, %v11593
        %v11595 = vrot.slane %v11594, 1
        %v11596 = vmax.f32 %v11594, %v11595
        %v11597 = vsel %vm3200, %v11309, -inf
        %v11598 = vrot.slane %v11597, 4
        %v11599 = vmax.f32 %v11597, %v11598
        %v11600 = vrot.slane %v11599, 2
        %v11601 = vmax.f32 %v11599, %v11600
        %v11602 = vrot.slane %v11601, 1
        %v11603 = vmax.f32 %v11601, %v11602
        %v11604 = vsel %vm3208, %v11310, -inf
        %v11605 = vrot.slane %v11604, 4
        %v11606 = vmax.f32 %v11604, %v11605
        %v11607 = vrot.slane %v11606, 2
        %v11608 = vmax.f32 %v11606, %v11607
        %v11609 = vrot.slane %v11608, 1
        %v11610 = vmax.f32 %v11608, %v11609
        %v11611 = vsel %vm3200, %v11317, -inf
        %v11612 = vrot.slane %v11611, 4
        %v11613 = vmax.f32 %v11611, %v11612
        %v11614 = vrot.slane %v11613, 2
        %v11615 = vmax.f32 %v11613, %v11614
        %v11616 = vrot.slane %v11615, 1
        %v11617 = vmax.f32 %v11615, %v11616
        %v11618 = vsel %vm3208, %v11318, -inf
        %v11619 = vrot.slane %v11618, 4
        %v11620 = vmax.f32 %v11618, %v11619
        %v11621 = vrot.slane %v11620, 2
        %v11622 = vmax.f32 %v11620, %v11621
        %v11623 = vrot.slane %v11622, 1
        %v11624 = vmax.f32 %v11622, %v11623
        %v11625 = vsel %vm3200, %v11325, -inf
        %v11626 = vrot.slane %v11625, 4
        %v11627 = vmax.f32 %v11625, %v11626
        %v11628 = vrot.slane %v11627, 2
        %v11629 = vmax.f32 %v11627, %v11628
        %v11630 = vrot.slane %v11629, 1
        %v11631 = vmax.f32 %v11629, %v11630
        %v11632 = vsel %vm3208, %v11326, -inf
        %v11633 = vrot.slane %v11632, 4
        %v11634 = vmax.f32 %v11632, %v11633
        %v11635 = vrot.slane %v11634, 2
        %v11636 = vmax.f32 %v11634, %v11635
        %v11637 = vrot.slane %v11636, 1
        %v11638 = vmax.f32 %v11636, %v11637
        %v11639 = vsel %vm3200, %v11333, -inf
        %v11640 = vrot.slane %v11639, 4
        %v11641 = vmax.f32 %v11639, %v11640
        %v11642 = vrot.slane %v11641, 2
        %v11643 = vmax.f32 %v11641, %v11642
        %v11644 = vrot.slane %v11643, 1
        %v11645 = vmax.f32 %v11643, %v11644
        %v11646 = vsel %vm3208, %v11334, -inf
        %v11647 = vrot.slane %v11646, 4
        %v11648 = vmax.f32 %v11646, %v11647
        %v11649 = vrot.slane %v11648, 2
        %v11650 = vmax.f32 %v11648, %v11649
        %v11651 = vrot.slane %v11650, 1
        %v11652 = vmax.f32 %v11650, %v11651
        %v11653 = vsel %vm3200, %v11341, -inf
        %v11654 = vrot.slane %v11653, 4
        %v11655 = vmax.f32 %v11653, %v11654
        %v11656 = vrot.slane %v11655, 2
        %v11657 = vmax.f32 %v11655, %v11656
        %v11658 = vrot.slane %v11657, 1
        %v11659 = vmax.f32 %v11657, %v11658
        %v11660 = vsel %vm3208, %v11342, -inf
        %v11661 = vrot.slane %v11660, 4
        %v11662 = vmax.f32 %v11660, %v11661
        %v11663 = vrot.slane %v11662, 2
        %v11664 = vmax.f32 %v11662, %v11663
        %v11665 = vrot.slane %v11664, 1
        %v11666 = vmax.f32 %v11664, %v11665
        %v11667 = vsel %vm3200, %v11349, -inf
        %v11668 = vrot.slane %v11667, 4
        %v11669 = vmax.f32 %v11667, %v11668
        %v11670 = vrot.slane %v11669, 2
        %v11671 = vmax.f32 %v11669, %v11670
        %v11672 = vrot.slane %v11671, 1
        %v11673 = vmax.f32 %v11671, %v11672
        %v11674 = vsel %vm3208, %v11350, -inf
        %v11675 = vrot.slane %v11674, 4
        %v11676 = vmax.f32 %v11674, %v11675
        %v11677 = vrot.slane %v11676, 2
        %v11678 = vmax.f32 %v11676, %v11677
        %v11679 = vrot.slane %v11678, 1
        %v11680 = vmax.f32 %v11678, %v11679
        %v11681 = vsel %vm3200, %v11357, -inf
        %v11682 = vrot.slane %v11681, 4
        %v11683 = vmax.f32 %v11681, %v11682
        %v11684 = vrot.slane %v11683, 2
        %v11685 = vmax.f32 %v11683, %v11684
        %v11686 = vrot.slane %v11685, 1
        %v11687 = vmax.f32 %v11685, %v11686
        %v11688 = vsel %vm3208, %v11358, -inf
        %v11689 = vrot.slane %v11688, 4
        %v11690 = vmax.f32 %v11688, %v11689
        %v11691 = vrot.slane %v11690, 2
        %v11692 = vmax.f32 %v11690, %v11691
        %v11693 = vrot.slane %v11692, 1
        %v11694 = vmax.f32 %v11692, %v11693
        %v11695 = vsel %vm3200, %v11365, -inf
        %v11696 = vrot.slane %v11695, 4
        %v11697 = vmax.f32 %v11695, %v11696
        %v11698 = vrot.slane %v11697, 2
        %v11699 = vmax.f32 %v11697, %v11698
        %v11700 = vrot.slane %v11699, 1
        %v11701 = vmax.f32 %v11699, %v11700
        %v11702 = vsel %vm3208, %v11366, -inf
        %v11703 = vrot.slane %v11702, 4
        %v11704 = vmax.f32 %v11702, %v11703
        %v11705 = vrot.slane %v11704, 2
        %v11706 = vmax.f32 %v11704, %v11705
        %v11707 = vrot.slane %v11706, 1
        %v11708 = vmax.f32 %v11706, %v11707
        %v11709 = vsel %vm3200, %v11373, -inf
        %v11710 = vrot.slane %v11709, 4
        %v11711 = vmax.f32 %v11709, %v11710
        %v11712 = vrot.slane %v11711, 2
        %v11713 = vmax.f32 %v11711, %v11712
        %v11714 = vrot.slane %v11713, 1
        %v11715 = vmax.f32 %v11713, %v11714
        %v11716 = vsel %vm3208, %v11374, -inf
        %v11717 = vrot.slane %v11716, 4
        %v11718 = vmax.f32 %v11716, %v11717
        %v11719 = vrot.slane %v11718, 2
        %v11720 = vmax.f32 %v11718, %v11719
        %v11721 = vrot.slane %v11720, 1
        %v11722 = vmax.f32 %v11720, %v11721
        %v11723 = vsel %vm3200, %v11381, -inf
        %v11724 = vrot.slane %v11723, 4
        %v11725 = vmax.f32 %v11723, %v11724
        %v11726 = vrot.slane %v11725, 2
        %v11727 = vmax.f32 %v11725, %v11726
        %v11728 = vrot.slane %v11727, 1
        %v11729 = vmax.f32 %v11727, %v11728
        %v11730 = vsel %vm3208, %v11382, -inf
        %v11731 = vrot.slane %v11730, 4
        %v11732 = vmax.f32 %v11730, %v11731
        %v11733 = vrot.slane %v11732, 2
        %v11734 = vmax.f32 %v11732, %v11733
        %v11735 = vrot.slane %v11734, 1
        %v11736 = vmax.f32 %v11734, %v11735
        %v11737 = vsel %vm3200, %v11389, -inf
        %v11738 = vrot.slane %v11737, 4
        %v11739 = vmax.f32 %v11737, %v11738
        %v11740 = vrot.slane %v11739, 2
        %v11741 = vmax.f32 %v11739, %v11740
        %v11742 = vrot.slane %v11741, 1
        %v11743 = vmax.f32 %v11741, %v11742
        %v11744 = vsel %vm3208, %v11390, -inf
        %v11745 = vrot.slane %v11744, 4
        %v11746 = vmax.f32 %v11744, %v11745
        %v11747 = vrot.slane %v11746, 2
        %v11748 = vmax.f32 %v11746, %v11747
        %v11749 = vrot.slane %v11748, 1
        %v11750 = vmax.f32 %v11748, %v11749
        %v11751 = vsel %vm3200, %v11397, -inf
        %v11752 = vrot.slane %v11751, 4
        %v11753 = vmax.f32 %v11751, %v11752
        %v11754 = vrot.slane %v11753, 2
        %v11755 = vmax.f32 %v11753, %v11754
        %v11756 = vrot.slane %v11755, 1
        %v11757 = vmax.f32 %v11755, %v11756
        %v11758 = vsel %vm3208, %v11398, -inf
        %v11759 = vrot.slane %v11758, 4
        %v11760 = vmax.f32 %v11758, %v11759
        %v11761 = vrot.slane %v11760, 2
        %v11762 = vmax.f32 %v11760, %v11761
        %v11763 = vrot.slane %v11762, 1
        %v11764 = vmax.f32 %v11762, %v11763
        %v11765 = vsel %vm3200, %v11405, -inf
        %v11766 = vrot.slane %v11765, 4
        %v11767 = vmax.f32 %v11765, %v11766
        %v11768 = vrot.slane %v11767, 2
        %v11769 = vmax.f32 %v11767, %v11768
        %v11770 = vrot.slane %v11769, 1
        %v11771 = vmax.f32 %v11769, %v11770
        %v11772 = vsel %vm3208, %v11406, -inf
        %v11773 = vrot.slane %v11772, 4
        %v11774 = vmax.f32 %v11772, %v11773
        %v11775 = vrot.slane %v11774, 2
        %v11776 = vmax.f32 %v11774, %v11775
        %v11777 = vrot.slane %v11776, 1
        %v11778 = vmax.f32 %v11776, %v11777
        %v11779 = vsel %vm3200, %v11413, -inf
        %v11780 = vrot.slane %v11779, 4
        %v11781 = vmax.f32 %v11779, %v11780
        %v11782 = vrot.slane %v11781, 2
        %v11783 = vmax.f32 %v11781, %v11782
        %v11784 = vrot.slane %v11783, 1
        %v11785 = vmax.f32 %v11783, %v11784
        %v11786 = vsel %vm3208, %v11414, -inf
        %v11787 = vrot.slane %v11786, 4
        %v11788 = vmax.f32 %v11786, %v11787
        %v11789 = vrot.slane %v11788, 2
        %v11790 = vmax.f32 %v11788, %v11789
        %v11791 = vrot.slane %v11790, 1
        %v11792 = vmax.f32 %v11790, %v11791
        %v11793 = vsel %vm3200, %v11421, -inf
        %v11794 = vrot.slane %v11793, 4
        %v11795 = vmax.f32 %v11793, %v11794
        %v11796 = vrot.slane %v11795, 2
        %v11797 = vmax.f32 %v11795, %v11796
        %v11798 = vrot.slane %v11797, 1
        %v11799 = vmax.f32 %v11797, %v11798
        %v11800 = vsel %vm3208, %v11422, -inf
        %v11801 = vrot.slane %v11800, 4
        %v11802 = vmax.f32 %v11800, %v11801
        %v11803 = vrot.slane %v11802, 2
        %v11804 = vmax.f32 %v11802, %v11803
        %v11805 = vrot.slane %v11804, 1
        %v11806 = vmax.f32 %v11804, %v11805
        %v11855 = vsel %vm4738, %v11491, %v11477
        %v11856 = vsel %vm4740, %v11505, %v11855
        %v11857 = vsel %vm4742, %v11519, %v11856
        %v11858 = vsel %vm4744, %v11533, %v11857
        %v11859 = vsel %vm4746, %v11547, %v11858
        %v11860 = vsel %vm4748, %v11561, %v11859
        %v11861 = vsel %vm4750, %v11575, %v11860
        %v11862 = vsel %vm4738, %v11498, %v11484
        %v11863 = vsel %vm4740, %v11512, %v11862
        %v11864 = vsel %vm4742, %v11526, %v11863
        %v11865 = vsel %vm4744, %v11540, %v11864
        %v11866 = vsel %vm4746, %v11554, %v11865
        %v11867 = vsel %vm4748, %v11568, %v11866
        %v11868 = vsel %vm4750, %v11582, %v11867
        %v11869 = vsel %vm4738, %v11603, %v11589
        %v11870 = vsel %vm4740, %v11617, %v11869
        %v11871 = vsel %vm4742, %v11631, %v11870
        %v11872 = vsel %vm4744, %v11645, %v11871
        %v11873 = vsel %vm4746, %v11659, %v11872
        %v11874 = vsel %vm4748, %v11673, %v11873
        %v11875 = vsel %vm4750, %v11687, %v11874
        %v11876 = vsel %vm4738, %v11610, %v11596
        %v11877 = vsel %vm4740, %v11624, %v11876
        %v11878 = vsel %vm4742, %v11638, %v11877
        %v11879 = vsel %vm4744, %v11652, %v11878
        %v11880 = vsel %vm4746, %v11666, %v11879
        %v11881 = vsel %vm4748, %v11680, %v11880
        %v11882 = vsel %vm4750, %v11694, %v11881
        %v11883 = vsel %vm4738, %v11715, %v11701
        %v11884 = vsel %vm4740, %v11729, %v11883
        %v11885 = vsel %vm4742, %v11743, %v11884
        %v11886 = vsel %vm4744, %v11757, %v11885
        %v11887 = vsel %vm4746, %v11771, %v11886
        %v11888 = vsel %vm4748, %v11785, %v11887
        %v11889 = vsel %vm4750, %v11799, %v11888
        %v11890 = vsel %vm4738, %v11722, %v11708
        %v11891 = vsel %vm4740, %v11736, %v11890
        %v11892 = vsel %vm4742, %v11750, %v11891
        %v11893 = vsel %vm4744, %v11764, %v11892
        %v11894 = vsel %vm4746, %v11778, %v11893
        %v11895 = vsel %vm4748, %v11792, %v11894
        %v11896 = vsel %vm4750, %v11806, %v11895
        %11897 = vrot.lane.b32.xlu0 %v11861, 96
        %v11898 = vpop.permute.xlu0 %11897
        %11899 = vrot.lane.b32.xlu0 %v11868, 96
        %v11900 = vpop.permute.xlu0 %11899
        %11901 = vrot.lane.b32.xlu0 %v11875, 96
        %v11902 = vpop.permute.xlu0 %11901
        %11903 = vrot.lane.b32.xlu0 %v11882, 96
        %v11904 = vpop.permute.xlu0 %11903
        %11905 = vrot.lane.b32.xlu0 %v11889, 96
        %v11906 = vpop.permute.xlu0 %11905
        %11907 = vrot.lane.b32.xlu0 %v11896, 96
        %v11908 = vpop.permute.xlu0 %11907
        %vm11909 = vcmask 785408
        %v11910 = vsel %vm11909, %v11898, %v11900
        %v11911 = vsel %vm11909, %v11902, %v11904
        %v11912 = vsel %vm11909, %v11906, %v11908
        %11916 = vrot.lane.b32.xlu0 %v11861, 32
        %v11917 = vpop.permute.xlu0 %11916
        %11918 = vrot.lane.b32.xlu0 %v11875, 32
        %v11919 = vpop.permute.xlu0 %11918
        %11920 = vrot.lane.b32.xlu0 %v11889, 32
        %v11921 = vpop.permute.xlu0 %11920
        %vm11925 = vcmask 261120
        %v11926 = vsel %vm11925, %v11900, %v11917
        %v11927 = vsel %vm11925, %v11904, %v11919
        %v11928 = vsel %vm11925, %v11908, %v11921
        %v11932 = vrot.slane %v11910, 1
        %v11933 = vrot.slane %v11926, 1
        %v11934 = vrot.slane %v11910, 2
        %v11935 = vrot.slane %v11926, 2
        %v11936 = vrot.slane %v11910, 3
        %v11937 = vrot.slane %v11926, 3
        %v11938 = vrot.slane %v11910, 4
        %v11939 = vrot.slane %v11926, 4
        %v11940 = vrot.slane %v11910, 5
        %v11941 = vrot.slane %v11926, 5
        %v11942 = vrot.slane %v11910, 6
        %v11943 = vrot.slane %v11926, 6
        %v11944 = vrot.slane %v11910, 7
        %v11945 = vrot.slane %v11926, 7
        %v11946 = vrot.slane %v11911, 1
        %v11947 = vrot.slane %v11927, 1
        %v11948 = vrot.slane %v11911, 2
        %v11949 = vrot.slane %v11927, 2
        %v11950 = vrot.slane %v11911, 3
        %v11951 = vrot.slane %v11927, 3
        %v11952 = vrot.slane %v11911, 4
        %v11953 = vrot.slane %v11927, 4
        %v11954 = vrot.slane %v11911, 5
        %v11955 = vrot.slane %v11927, 5
        %v11956 = vrot.slane %v11911, 6
        %v11957 = vrot.slane %v11927, 6
        %v11958 = vrot.slane %v11911, 7
        %v11959 = vrot.slane %v11927, 7
        %v11960 = vrot.slane %v11912, 1
        %v11961 = vrot.slane %v11928, 1
        %v11962 = vrot.slane %v11912, 2
        %v11963 = vrot.slane %v11928, 2
        %v11964 = vrot.slane %v11912, 3
        %v11965 = vrot.slane %v11928, 3
        %v11966 = vrot.slane %v11912, 4
        %v11967 = vrot.slane %v11928, 4
        %v11968 = vrot.slane %v11912, 5
        %v11969 = vrot.slane %v11928, 5
        %v11970 = vrot.slane %v11912, 6
        %v11971 = vrot.slane %v11928, 6
        %v11972 = vrot.slane %v11912, 7
        %v11973 = vrot.slane %v11928, 7
        %v12022 = vmax.f32 %v11477, %v11910
        %v12023 = vmax.f32 %v11484, %v11926
        %v12024 = vmax.f32 %v11491, %v11932
        %v12025 = vmax.f32 %v11498, %v11933
        %v12026 = vmax.f32 %v11505, %v11934
        %v12027 = vmax.f32 %v11512, %v11935
        %v12028 = vmax.f32 %v11519, %v11936
        %v12029 = vmax.f32 %v11526, %v11937
        %v12030 = vmax.f32 %v11533, %v11938
        %v12031 = vmax.f32 %v11540, %v11939
        %v12032 = vmax.f32 %v11547, %v11940
        %v12033 = vmax.f32 %v11554, %v11941
        %v12034 = vmax.f32 %v11561, %v11942
        %v12035 = vmax.f32 %v11568, %v11943
        %v12036 = vmax.f32 %v11575, %v11944
        %v12037 = vmax.f32 %v11582, %v11945
        %v12038 = vmax.f32 %v11589, %v11911
        %v12039 = vmax.f32 %v11596, %v11927
        %v12040 = vmax.f32 %v11603, %v11946
        %v12041 = vmax.f32 %v11610, %v11947
        %v12042 = vmax.f32 %v11617, %v11948
        %v12043 = vmax.f32 %v11624, %v11949
        %v12044 = vmax.f32 %v11631, %v11950
        %v12045 = vmax.f32 %v11638, %v11951
        %v12046 = vmax.f32 %v11645, %v11952
        %v12047 = vmax.f32 %v11652, %v11953
        %v12048 = vmax.f32 %v11659, %v11954
        %v12049 = vmax.f32 %v11666, %v11955
        %v12050 = vmax.f32 %v11673, %v11956
        %v12051 = vmax.f32 %v11680, %v11957
        %v12052 = vmax.f32 %v11687, %v11958
        %v12053 = vmax.f32 %v11694, %v11959
        %v12054 = vmax.f32 %v11701, %v11912
        %v12055 = vmax.f32 %v11708, %v11928
        %v12056 = vmax.f32 %v11715, %v11960
        %v12057 = vmax.f32 %v11722, %v11961
        %v12058 = vmax.f32 %v11729, %v11962
        %v12059 = vmax.f32 %v11736, %v11963
        %v12060 = vmax.f32 %v11743, %v11964
        %v12061 = vmax.f32 %v11750, %v11965
        %v12062 = vmax.f32 %v11757, %v11966
        %v12063 = vmax.f32 %v11764, %v11967
        %v12064 = vmax.f32 %v11771, %v11968
        %v12065 = vmax.f32 %v11778, %v11969
        %v12066 = vmax.f32 %v11785, %v11970
        %v12067 = vmax.f32 %v11792, %v11971
        %v12068 = vmax.f32 %v11799, %v11972
        %v12069 = vmax.f32 %v11806, %v11973
        %v12086 = vrot.slane %v12028, 7
        %v12087 = vsel %vm4738, %v12086, %v12022
        %v12088 = vrot.slane %v12034, 6
        %v12089 = vsel %vm4740, %v12088, %v12087
        %v12090 = vrot.slane %v12040, 5
        %v12091 = vsel %vm4742, %v12090, %v12089
        %v12092 = vrot.slane %v12046, 4
        %v12093 = vsel %vm4744, %v12092, %v12091
        %v12094 = vrot.slane %v12052, 3
        %v12095 = vsel %vm4746, %v12094, %v12093
        %v12096 = vrot.slane %v12058, 2
        %v12097 = vsel %vm4748, %v12096, %v12095
        %v12098 = vrot.slane %v12064, 1
        %v12099 = vsel %vm4750, %v12098, %v12097
        %v12100 = vrot.slane %v12029, 7
        %v12101 = vsel %vm4738, %v12100, %v12023
        %v12102 = vrot.slane %v12035, 6
        %v12103 = vsel %vm4740, %v12102, %v12101
        %v12104 = vrot.slane %v12041, 5
        %v12105 = vsel %vm4742, %v12104, %v12103
        %v12106 = vrot.slane %v12047, 4
        %v12107 = vsel %vm4744, %v12106, %v12105
        %v12108 = vrot.slane %v12053, 3
        %v12109 = vsel %vm4746, %v12108, %v12107
        %v12110 = vrot.slane %v12059, 2
        %v12111 = vsel %vm4748, %v12110, %v12109
        %v12112 = vrot.slane %v12065, 1
        %v12113 = vsel %vm4750, %v12112, %v12111
        %v12132 = vrot.slane %v12030, 7
        %v12133 = vsel %vm4738, %v12132, %v12024
        %v12134 = vrot.slane %v12036, 6
        %v12135 = vsel %vm4740, %v12134, %v12133
        %v12136 = vrot.slane %v12042, 5
        %v12137 = vsel %vm4742, %v12136, %v12135
        %v12138 = vrot.slane %v12048, 4
        %v12139 = vsel %vm4744, %v12138, %v12137
        %v12140 = vrot.slane %v12054, 3
        %v12141 = vsel %vm4746, %v12140, %v12139
        %v12142 = vrot.slane %v12060, 2
        %v12143 = vsel %vm4748, %v12142, %v12141
        %v12144 = vrot.slane %v12066, 1
        %v12145 = vsel %vm4750, %v12144, %v12143
        %v12146 = vrot.slane %v12031, 7
        %v12147 = vsel %vm4738, %v12146, %v12025
        %v12148 = vrot.slane %v12037, 6
        %v12149 = vsel %vm4740, %v12148, %v12147
        %v12150 = vrot.slane %v12043, 5
        %v12151 = vsel %vm4742, %v12150, %v12149
        %v12152 = vrot.slane %v12049, 4
        %v12153 = vsel %vm4744, %v12152, %v12151
        %v12154 = vrot.slane %v12055, 3
        %v12155 = vsel %vm4746, %v12154, %v12153
        %v12156 = vrot.slane %v12061, 2
        %v12157 = vsel %vm4748, %v12156, %v12155
        %v12158 = vrot.slane %v12067, 1
        %v12159 = vsel %vm4750, %v12158, %v12157
        %12160 = vrot.lane.b32.xlu0 %v12145, 64
        %v12161 = vpop.permute.xlu0 %12160
        %12162 = vrot.lane.b32.xlu0 %v12159, 64
        %v12163 = vpop.permute.xlu0 %12162
        %v12164 = vsel %vm7205, %v12161, %v12163
        %v12183 = vrot.slane %v12032, 7
        %v12184 = vsel %vm4738, %v12183, %v12026
        %v12185 = vrot.slane %v12038, 6
        %v12186 = vsel %vm4740, %v12185, %v12184
        %v12187 = vrot.slane %v12044, 5
        %v12188 = vsel %vm4742, %v12187, %v12186
        %v12189 = vrot.slane %v12050, 4
        %v12190 = vsel %vm4744, %v12189, %v12188
        %v12191 = vrot.slane %v12056, 3
        %v12192 = vsel %vm4746, %v12191, %v12190
        %v12193 = vrot.slane %v12062, 2
        %v12194 = vsel %vm4748, %v12193, %v12192
        %v12195 = vrot.slane %v12068, 1
        %v12196 = vsel %vm4750, %v12195, %v12194
        %v12197 = vrot.slane %v12033, 7
        %v12198 = vsel %vm4738, %v12197, %v12027
        %v12199 = vrot.slane %v12039, 6
        %v12200 = vsel %vm4740, %v12199, %v12198
        %v12201 = vrot.slane %v12045, 5
        %v12202 = vsel %vm4742, %v12201, %v12200
        %v12203 = vrot.slane %v12051, 4
        %v12204 = vsel %vm4744, %v12203, %v12202
        %v12205 = vrot.slane %v12057, 3
        %v12206 = vsel %vm4746, %v12205, %v12204
        %v12207 = vrot.slane %v12063, 2
        %v12208 = vsel %vm4748, %v12207, %v12206
        %v12209 = vrot.slane %v12069, 1
        %v12210 = vsel %vm4750, %v12209, %v12208
        %v12212 = vsel %vm7205, %v12113, %v12161
        %v12213 = vld [vmem:[%s7] sm:$0xff]
        %v12214 = vld [vmem:[%s7 + $0x8] sm:$0xff]
        %v12215 = vld [vmem:[%s7 + $0x10] sm:$0xff]
        %v12216 = vld [vmem:[%s7 + $0x18] sm:$0xff]
        %v12217 = vld [vmem:[%s7 + $0x20] sm:$0xff]
        %v12218 = vld [vmem:[%s7 + $0x28] sm:$0xff]
        %v12219 = vld [vmem:[%s7 + $0x30] sm:$0xff]
        %v12220 = vld [vmem:[%s7 + $0x38] sm:$0xff]
        %v12221 = vld [vmem:[%s7 + $0x40] sm:$0xff]
        %v12222 = vld [vmem:[%s7 + $0x48] sm:$0xff]
        %v12223 = vld [vmem:[%s7 + $0x50] sm:$0xff]
        %v12224 = vld [vmem:[%s7 + $0x58] sm:$0xff]
        %v12225 = vld [vmem:[%s7 + $0x60] sm:$0xff]
        %v12226 = vld [vmem:[%s7 + $0x68] sm:$0xff]
        %v12227 = vld [vmem:[%s7 + $0x70] sm:$0xff]
        %v12228 = vld [vmem:[%s7 + $0x78] sm:$0xff]
        %v12229 = vld [vmem:[%s7 + $0x80] sm:$0xff]
        %v12230 = vld [vmem:[%s7 + $0x88] sm:$0xff]
        %v12231 = vld [vmem:[%s7 + $0x90] sm:$0xff]
        %v12232 = vld [vmem:[%s7 + $0x98] sm:$0xff]
        %v12233 = vld [vmem:[%s7 + $0xa0] sm:$0xff]
        %v12234 = vld [vmem:[%s7 + $0xa8] sm:$0xff]
        %v12235 = vld [vmem:[%s7 + $0xb0] sm:$0xff]
        %v12236 = vld [vmem:[%s7 + $0xb8] sm:$0xff]
        %v12237 = vld [vmem:[%s7 + $0xc0] sm:$0xff]
        %v12238 = vld [vmem:[%s7 + $0xc8] sm:$0xff]
        %v12239 = vld [vmem:[%s7 + $0xd0] sm:$0xff]
        %v12240 = vld [vmem:[%s7 + $0xd8] sm:$0xff]
        %v12241 = vld [vmem:[%s7 + $0xe0] sm:$0xff]
        %v12242 = vld [vmem:[%s7 + $0xe8] sm:$0xff]
        %v12243 = vld [vmem:[%s7 + $0xf0] sm:$0xff]
        %v12244 = vld [vmem:[%s7 + $0xf8] sm:$0xff]
        %v12245 = vld [vmem:[%s7 + $0x100] sm:$0xff]
        %v12246 = vld [vmem:[%s7 + $0x108] sm:$0xff]
        %v12247 = vld [vmem:[%s7 + $0x110] sm:$0xff]
        %v12248 = vld [vmem:[%s7 + $0x118] sm:$0xff]
        %v12249 = vld [vmem:[%s7 + $0x120] sm:$0xff]
        %v12250 = vld [vmem:[%s7 + $0x128] sm:$0xff]
        %v12251 = vld [vmem:[%s7 + $0x130] sm:$0xff]
        %v12252 = vld [vmem:[%s7 + $0x138] sm:$0xff]
        %v12253 = vld [vmem:[%s7 + $0x140] sm:$0xff]
        %v12254 = vld [vmem:[%s7 + $0x148] sm:$0xff]
        %v12255 = vld [vmem:[%s7 + $0x150] sm:$0xff]
        %v12256 = vld [vmem:[%s7 + $0x158] sm:$0xff]
        %v12257 = vld [vmem:[%s7 + $0x160] sm:$0xff]
        %v12258 = vld [vmem:[%s7 + $0x168] sm:$0xff]
        %v12259 = vld [vmem:[%s7 + $0x170] sm:$0xff]
        %v12260 = vld [vmem:[%s7 + $0x178] sm:$0xff]
        %v12261 = vld [vmem:[%s7 + $0x180] sm:$0xff]
        %v12262 = vld [vmem:[%s7 + $0x188] sm:$0xff]
        %v12263 = vld [vmem:[%s7 + $0x190] sm:$0xff]
        %v12264 = vld [vmem:[%s7 + $0x198] sm:$0xff]
        %v12265 = vld [vmem:[%s7 + $0x1a0] sm:$0xff]
        %v12266 = vld [vmem:[%s7 + $0x1a8] sm:$0xff]
        %v12267 = vld [vmem:[%s7 + $0x1b0] sm:$0xff]
        %v12268 = vld [vmem:[%s7 + $0x1b8] sm:$0xff]
        %v12269 = vld [vmem:[%s7 + $0x1c0] sm:$0xff]
        %v12270 = vld [vmem:[%s7 + $0x1c8] sm:$0xff]
        %v12271 = vld [vmem:[%s7 + $0x1d0] sm:$0xff]
        %v12272 = vld [vmem:[%s7 + $0x1d8] sm:$0xff]
        %v12273 = vld [vmem:[%s7 + $0x1e0] sm:$0xff]
        %v12274 = vld [vmem:[%s7 + $0x1e8] sm:$0xff]
        %v12275 = vld [vmem:[%s7 + $0x1f0] sm:$0xff]
        %v12276 = vld [vmem:[%s7 + $0x1f8] sm:$0xff]
        %v12277 = vld [vmem:[%s7 + $0x200] sm:$0xff]
        %v12278 = vld [vmem:[%s7 + $0x208] sm:$0xff]
        %v12279 = vld [vmem:[%s7 + $0x210] sm:$0xff]
        %v12280 = vld [vmem:[%s7 + $0x218] sm:$0xff]
        %v12281 = vld [vmem:[%s7 + $0x220] sm:$0xff]
        %v12282 = vld [vmem:[%s7 + $0x228] sm:$0xff]
        %v12283 = vld [vmem:[%s7 + $0x230] sm:$0xff]
        %v12284 = vld [vmem:[%s7 + $0x238] sm:$0xff]
        %v12285 = vld [vmem:[%s8] sm:$0x1]
        %v12287 = vlaneseq
        %v12288 = vshrl.u32 %v12287, 7
        %v12289 = vsub.s32 0, %v12288
        %v12290 = vrot.slane %v12285, %v12289
        %v12292 = vsel %vm7205, %v12210, 0
        %12294 = vmatprep.subr.mxu0 0.0
        %12295 = vmatpush1.msra.mxu0 %v12213
        %12296 = vmatprep.subr.mxu0 0.0
        %12297 = vmatpush1.msra.mxu0 %v12214
        %12298 = vmatprep.subr.mxu0 0.0
        %12299 = vmatpush1.msra.mxu0 %v12215
        %12300 = vmatprep.subr.mxu0 0.0
        %12301 = vmatpush1.msra.mxu0 %v12216
        %12302 = vmatprep.subr.mxu0 0.0
        %12303 = vmatpush1.msra.mxu0 %v12217
        %12304 = vmatprep.subr.mxu0 0.0
        %12305 = vmatpush1.msra.mxu0 %v12218
        %12306 = vmatprep.subr.mxu0 0.0
        %12307 = vmatpush1.msra.mxu0 %v12219
        %12308 = vmatprep.subr.mxu0 0.0
        %12309 = vmatpush1.msra.mxu0 %v12220
        %12310 = vmatprep.subr.mxu0 0.0
        %12311 = vmatpush1.msra.mxu0 %v12221
        %12312 = vmatprep.subr.mxu0 0.0
        %12313 = vmatpush1.msra.mxu0 %v12222
        %12314 = vmatprep.subr.mxu0 0.0
        %12315 = vmatpush1.msra.mxu0 %v12223
        %12316 = vmatprep.subr.mxu0 0.0
        %12317 = vmatpush1.msra.mxu0 %v12224
        %12318 = vmatprep.subr.mxu0 0.0
        %12319 = vmatpush1.msra.mxu0 %v12225
        %12320 = vmatprep.subr.mxu0 0.0
        %12321 = vmatpush1.msra.mxu0 %v12226
        %12322 = vmatprep.subr.mxu0 0.0
        %12323 = vmatpush1.msra.mxu0 %v12227
        %12324 = vmatprep.subr.mxu0 0.0
        %12325 = vmatpush1.msra.mxu0 %v12228
        %12326 = vmatprep.subr.mxu0 0.0
        %12327 = vmatpush1.msra.mxu0 %v12229
        %12328 = vmatprep.subr.mxu0 0.0
        %12329 = vmatpush1.msra.mxu0 %v12230
        %12330 = vmatprep.subr.mxu0 0.0
        %12331 = vmatpush1.msra.mxu0 %v12231
        %12332 = vmatprep.subr.mxu0 0.0
        %12333 = vmatpush1.msra.mxu0 %v12232
        %12334 = vmatprep.subr.mxu0 0.0
        %12335 = vmatpush1.msra.mxu0 %v12233
        %12336 = vmatprep.subr.mxu0 0.0
        %12337 = vmatpush1.msra.mxu0 %v12234
        %12338 = vmatprep.subr.mxu0 0.0
        %12339 = vmatpush1.msra.mxu0 %v12235
        %12340 = vmatprep.subr.mxu0 0.0
        %12341 = vmatpush1.msra.mxu0 %v12236
        %12342 = vmatprep.subr.mxu0 0.0
        %12343 = vmatpush1.msra.mxu0 %v12237
        %12344 = vmatprep.subr.mxu0 0.0
        %12345 = vmatpush1.msra.mxu0 %v12238
        %12346 = vmatprep.subr.mxu0 0.0
        %12347 = vmatpush1.msra.mxu0 %v12239
        %12348 = vmatprep.subr.mxu0 0.0
        %12349 = vmatpush1.msra.mxu0 %v12240
        %12350 = vmatprep.subr.mxu0 0.0
        %12351 = vmatpush1.msra.mxu0 %v12241
        %12352 = vmatprep.subr.mxu0 0.0
        %12353 = vmatpush1.msra.mxu0 %v12242
        %12354 = vmatprep.subr.mxu0 0.0
        %12355 = vmatpush1.msra.mxu0 %v12243
        %12356 = vmatprep.subr.mxu0 0.0
        %12357 = vmatpush1.msra.mxu0 %v12244
        %12358 = vmatprep.mubr.f32.mxu0 %v12212
        %12359 = vmatmul.mubr.f32.gmra.mrb[0].mxu0 %v12099
        %v12360 = vpop.f32.mrb[0].mxu0
        %v12361 = vadd.f32 %v12290, %v12360
        %v12362 = vpop.f32.mrb[0].mxu0
        %12363 = vdwg.mxu0
        %12364 = vmatprep.subr.mxu0 0.0
        %12365 = vmatpush1.msra.mxu0 %v12245
        %12366 = vmatprep.subr.mxu0 0.0
        %12367 = vmatpush1.msra.mxu0 %v12246
        %12368 = vmatprep.subr.mxu0 0.0
        %12369 = vmatpush1.msra.mxu0 %v12247
        %12370 = vmatprep.subr.mxu0 0.0
        %12371 = vmatpush1.msra.mxu0 %v12248
        %12372 = vmatprep.subr.mxu0 0.0
        %12373 = vmatpush1.msra.mxu0 %v12249
        %12374 = vmatprep.subr.mxu0 0.0
        %12375 = vmatpush1.msra.mxu0 %v12250
        %12376 = vmatprep.subr.mxu0 0.0
        %12377 = vmatpush1.msra.mxu0 %v12251
        %12378 = vmatprep.subr.mxu0 0.0
        %12379 = vmatpush1.msra.mxu0 %v12252
        %12380 = vmatprep.subr.mxu0 0.0
        %12381 = vmatpush1.msra.mxu0 %v12253
        %12382 = vmatprep.subr.mxu0 0.0
        %12383 = vmatpush1.msra.mxu0 %v12254
        %12384 = vmatprep.subr.mxu0 0.0
        %12385 = vmatpush1.msra.mxu0 %v12255
        %12386 = vmatprep.subr.mxu0 0.0
        %12387 = vmatpush1.msra.mxu0 %v12256
        %12388 = vmatprep.subr.mxu0 0.0
        %12389 = vmatpush1.msra.mxu0 %v12257
        %12390 = vmatprep.subr.mxu0 0.0
        %12391 = vmatpush1.msra.mxu0 %v12258
        %12392 = vmatprep.subr.mxu0 0.0
        %12393 = vmatpush1.msra.mxu0 %v12259
        %12394 = vmatprep.subr.mxu0 0.0
        %12395 = vmatpush1.msra.mxu0 %v12260
        %12396 = vmatprep.subr.mxu0 0.0
        %12397 = vmatpush1.msra.mxu0 %v12261
        %12398 = vmatprep.subr.mxu0 0.0
        %12399 = vmatpush1.msra.mxu0 %v12262
        %12400 = vmatprep.subr.mxu0 0.0
        %12401 = vmatpush1.msra.mxu0 %v12263
        %12402 = vmatprep.subr.mxu0 0.0
        %12403 = vmatpush1.msra.mxu0 %v12264
        %12404 = vmatprep.subr.mxu0 0.0
        %12405 = vmatpush1.msra.mxu0 %v12265
        %12406 = vmatprep.subr.mxu0 0.0
        %12407 = vmatpush1.msra.mxu0 %v12266
        %12408 = vmatprep.subr.mxu0 0.0
        %12409 = vmatpush1.msra.mxu0 %v12267
        %12410 = vmatprep.subr.mxu0 0.0
        %12411 = vmatpush1.msra.mxu0 %v12268
        %12412 = vmatprep.subr.mxu0 0.0
        %12413 = vmatpush1.msra.mxu0 %v12269
        %12414 = vmatprep.subr.mxu0 0.0
        %12415 = vmatpush1.msra.mxu0 %v12270
        %12416 = vmatprep.subr.mxu0 0.0
        %12417 = vmatpush1.msra.mxu0 %v12271
        %12418 = vmatprep.subr.mxu0 0.0
        %12419 = vmatpush1.msra.mxu0 %v12272
        %12420 = vmatprep.subr.mxu0 0.0
        %12421 = vmatpush1.msra.mxu0 %v12273
        %12422 = vmatprep.subr.mxu0 0.0
        %12423 = vmatpush1.msra.mxu0 %v12274
        %12424 = vmatprep.subr.mxu0 0.0
        %12425 = vmatpush1.msra.mxu0 %v12275
        %12426 = vmatprep.subr.mxu0 0.0
        %12427 = vmatpush1.msra.mxu0 %v12276
        %12428 = vmatprep.mubr.f32.mxu0 %v12196
        %12429 = vmatmul.mubr.f32.gmra.mrb[0].mxu0 %v12164
        %v12430 = vpop.f32.mrb[0].mxu0
        %v12431 = vadd.f32 %v12361, %v12430
        %v12432 = vpop.f32.mrb[0].mxu0
        %12433 = vdwg.mxu0
        %12434 = vmatprep.subr.mxu0 0.0
        %12435 = vmatpush1.msra.mxu0 %v12277
        %12436 = vmatprep.subr.mxu0 0.0
        %12437 = vmatpush1.msra.mxu0 %v12278
        %12438 = vmatprep.subr.mxu0 0.0
        %12439 = vmatpush1.msra.mxu0 %v12279
        %12440 = vmatprep.subr.mxu0 0.0
        %12441 = vmatpush1.msra.mxu0 %v12280
        %12442 = vmatprep.subr.mxu0 0.0
        %12443 = vmatpush1.msra.mxu0 %v12281
        %12444 = vmatprep.subr.mxu0 0.0
        %12445 = vmatpush1.msra.mxu0 %v12282
        %12446 = vmatprep.subr.mxu0 0.0
        %12447 = vmatpush1.msra.mxu0 %v12283
        %12448 = vmatprep.subr.mxu0 0.0
        %12449 = vmatpush1.msra.mxu0 %v12284
        %12450 = vmatprep.subr.mxu0 0.0
        %12451 = vmatpush1.msra.mxu0 0.0
        %12452 = vmatprep.subr.mxu0 0.0
        %12453 = vmatpush1.msra.mxu0 0.0
        %12454 = vmatprep.subr.mxu0 0.0
        %12455 = vmatpush1.msra.mxu0 0.0
        %12456 = vmatprep.subr.mxu0 0.0
        %12457 = vmatpush1.msra.mxu0 0.0
        %12458 = vmatprep.subr.mxu0 0.0
        %12459 = vmatpush1.msra.mxu0 0.0
        %12460 = vmatprep.subr.mxu0 0.0
        %12461 = vmatpush1.msra.mxu0 0.0
        %12462 = vmatprep.subr.mxu0 0.0
        %12463 = vmatpush1.msra.mxu0 0.0
        %12464 = vmatprep.subr.mxu0 0.0
        %12465 = vmatpush1.msra.mxu0 0.0
        %12466 = vmatprep.subr.mxu0 0.0
        %12467 = vmatpush1.msra.mxu0 0.0
        %12468 = vmatprep.subr.mxu0 0.0
        %12469 = vmatpush1.msra.mxu0 0.0
        %12470 = vmatprep.subr.mxu0 0.0
        %12471 = vmatpush1.msra.mxu0 0.0
        %12472 = vmatprep.subr.mxu0 0.0
        %12473 = vmatpush1.msra.mxu0 0.0
        %12474 = vmatprep.subr.mxu0 0.0
        %12475 = vmatpush1.msra.mxu0 0.0
        %12476 = vmatprep.subr.mxu0 0.0
        %12477 = vmatpush1.msra.mxu0 0.0
        %12478 = vmatprep.subr.mxu0 0.0
        %12479 = vmatpush1.msra.mxu0 0.0
        %12480 = vmatprep.subr.mxu0 0.0
        %12481 = vmatpush1.msra.mxu0 0.0
        %12482 = vmatprep.subr.mxu0 0.0
        %12483 = vmatpush1.msra.mxu0 0.0
        %12484 = vmatprep.subr.mxu0 0.0
        %12485 = vmatpush1.msra.mxu0 0.0
        %12486 = vmatprep.subr.mxu0 0.0
        %12487 = vmatpush1.msra.mxu0 0.0
        %12488 = vmatprep.subr.mxu0 0.0
        %12489 = vmatpush1.msra.mxu0 0.0
        %12490 = vmatprep.subr.mxu0 0.0
        %12491 = vmatpush1.msra.mxu0 0.0
        %12492 = vmatprep.subr.mxu0 0.0
        %12493 = vmatpush1.msra.mxu0 0.0
        %12494 = vmatprep.subr.mxu0 0.0
        %12495 = vmatpush1.msra.mxu0 0.0
        %12496 = vmatprep.subr.mxu0 0.0
        %12497 = vmatpush1.msra.mxu0 0.0
        %12498 = vmatprep.mubr.f32.mxu0 0.0
        %12499 = vmatmul.mubr.f32.gmra.mrb[0].mxu0 %v12292
        %v12500 = vpop.f32.mrb[0].mxu0
        %v12501 = vadd.f32 %v12431, %v12500
        %v12502 = vpop.f32.mrb[0].mxu0
        %12503 = vdwg.mxu0
        %v12504 = vmax.f32 %v12501, 0.0
        %v12505 = vld [vmem:[%s9] sm:$0xff]
        %v12506 = vld [vmem:[%s9 + $0x8] sm:$0xff]
        %v12507 = vld [vmem:[%s9 + $0x10] sm:$0xff]
        %v12508 = vld [vmem:[%s9 + $0x18] sm:$0xff]
        %v12509 = vld [vmem:[%s9 + $0x20] sm:$0xff]
        %v12510 = vld [vmem:[%s9 + $0x28] sm:$0xff]
        %v12511 = vld [vmem:[%s9 + $0x30] sm:$0xff]
        %v12512 = vld [vmem:[%s9 + $0x38] sm:$0xff]
        %v12513 = vld [vmem:[%s9 + $0x40] sm:$0xff]
        %v12514 = vld [vmem:[%s9 + $0x48] sm:$0xff]
        %v12515 = vld [vmem:[%s9 + $0x50] sm:$0xff]
        %v12516 = vld [vmem:[%s9 + $0x58] sm:$0xff]
        %v12517 = vld [vmem:[%s9 + $0x60] sm:$0xff]
        %v12518 = vld [vmem:[%s9 + $0x68] sm:$0xff]
        %v12519 = vld [vmem:[%s9 + $0x70] sm:$0xff]
        %v12520 = vld [vmem:[%s9 + $0x78] sm:$0xff]
        %v12521 = vld [vmem:[%s10] sm:$0x1]
        %v12523 = vlaneseq
        %v12524 = vshrl.u32 %v12523, 7
        %v12525 = vsub.s32 0, %v12524
        %v12526 = vrot.slane %v12521, %v12525
        %12528 = vmatprep.subr.mxu0 0.0
        %12529 = vmatpush1.msra.mxu0 %v12505
        %12530 = vmatprep.subr.mxu0 0.0
        %12531 = vmatpush1.msra.mxu0 %v12506
        %12532 = vmatprep.subr.mxu0 0.0
        %12533 = vmatpush1.msra.mxu0 %v12507
        %12534 = vmatprep.subr.mxu0 0.0
        %12535 = vmatpush1.msra.mxu0 %v12508
        %12536 = vmatprep.subr.mxu0 0.0
        %12537 = vmatpush1.msra.mxu0 %v12509
        %12538 = vmatprep.subr.mxu0 0.0
        %12539 = vmatpush1.msra.mxu0 %v12510
        %12540 = vmatprep.subr.mxu0 0.0
        %12541 = vmatpush1.msra.mxu0 %v12511
        %12542 = vmatprep.subr.mxu0 0.0
        %12543 = vmatpush1.msra.mxu0 %v12512
        %12544 = vmatprep.subr.mxu0 0.0
        %12545 = vmatpush1.msra.mxu0 %v12513
        %12546 = vmatprep.subr.mxu0 0.0
        %12547 = vmatpush1.msra.mxu0 %v12514
        %12548 = vmatprep.subr.mxu0 0.0
        %12549 = vmatpush1.msra.mxu0 %v12515
        %12550 = vmatprep.subr.mxu0 0.0
        %12551 = vmatpush1.msra.mxu0 %v12516
        %12552 = vmatprep.subr.mxu0 0.0
        %12553 = vmatpush1.msra.mxu0 %v12517
        %12554 = vmatprep.subr.mxu0 0.0
        %12555 = vmatpush1.msra.mxu0 %v12518
        %12556 = vmatprep.subr.mxu0 0.0
        %12557 = vmatpush1.msra.mxu0 %v12519
        %12558 = vmatprep.subr.mxu0 0.0
        %12559 = vmatpush1.msra.mxu0 %v12520
        %12560 = vmatprep.subr.mxu0 0.0
        %12561 = vmatpush1.msra.mxu0 0.0
        %12562 = vmatprep.subr.mxu0 0.0
        %12563 = vmatpush1.msra.mxu0 0.0
        %12564 = vmatprep.subr.mxu0 0.0
        %12565 = vmatpush1.msra.mxu0 0.0
        %12566 = vmatprep.subr.mxu0 0.0
        %12567 = vmatpush1.msra.mxu0 0.0
        %12568 = vmatprep.subr.mxu0 0.0
        %12569 = vmatpush1.msra.mxu0 0.0
        %12570 = vmatprep.subr.mxu0 0.0
        %12571 = vmatpush1.msra.mxu0 0.0
        %12572 = vmatprep.subr.mxu0 0.0
        %12573 = vmatpush1.msra.mxu0 0.0
        %12574 = vmatprep.subr.mxu0 0.0
        %12575 = vmatpush1.msra.mxu0 0.0
        %12576 = vmatprep.subr.mxu0 0.0
        %12577 = vmatpush1.msra.mxu0 0.0
        %12578 = vmatprep.subr.mxu0 0.0
        %12579 = vmatpush1.msra.mxu0 0.0
        %12580 = vmatprep.subr.mxu0 0.0
        %12581 = vmatpush1.msra.mxu0 0.0
        %12582 = vmatprep.subr.mxu0 0.0
        %12583 = vmatpush1.msra.mxu0 0.0
        %12584 = vmatprep.subr.mxu0 0.0
        %12585 = vmatpush1.msra.mxu0 0.0
        %12586 = vmatprep.subr.mxu0 0.0
        %12587 = vmatpush1.msra.mxu0 0.0
        %12588 = vmatprep.subr.mxu0 0.0
        %12589 = vmatpush1.msra.mxu0 0.0
        %12590 = vmatprep.subr.mxu0 0.0
        %12591 = vmatpush1.msra.mxu0 0.0
        %12592 = vmatprep.mubr.f32.mxu0 0.0
        %12593 = vmatmul.mubr.f32.gmra.mrb[0].mxu0 %v12504
        %v12594 = vpop.f32.mrb[0].mxu0
        %v12595 = vadd.f32 %v12526, %v12594
        %v12596 = vpop.f32.mrb[0].mxu0
        %12597 = vdwg.mxu0
        %12598 = vst [vmem:[%s380] sm:$0xff] %v12595
        %s12599 = sand.u32 %s269, 1
        %s12600 = scalar_lea.sflag [#allocation3], %s12599
        %s12601 = sand.u32 %s269, 1
        %s12602 = smul.addr %s12601, 8
        %s12603 = scalar_lea.vmem [#allocation2], %s12602
        // Predicated region
        $region65: #{emnist_forward.1} parent=63 // pred_check
          %p12604 = pneg %p279
        $region66: #{emnist_forward.1} parent=63 // pred_check_branch
          %12606 = sbr.rel (%p12604) target = $region68
        $region67: #{emnist_forward.1} parent=63 // pred_region
          %s12608 = ssub.s32 128, 128
          %12609 = vsyncadd %s12600, %s12608
          %s12610 = smul.addr %s25, 128
          %s12611 = scalar_lea.hbm %s11, %s12610
          %s12613 = sshll.u32 %s12603, 4
          %s12614 = int_to_ptr.vmem [resolvable:$true] %s12613
          %12616 = dma.vmem_to_hbm [thread:$0]  %s12614, 128, %s12611, %s12600
        $region68: #{emnist_forward.1} parent=63 // pred_fallthru
          _
      $region64: #{emnist_forward.1} parent=5 // pred_fallthru
        _
      %p12617 = scmp.le.s32.totalorder 2, %s20
      // Predicated region
      $region69: #{emnist_forward.1} parent=5 // pred_check
        %p12618 = pneg %p12617
      $region70: #{emnist_forward.1} parent=5 // pred_check_branch
        %12620 = sbr.rel (%p12618) target = $region72
      $region71: #{emnist_forward.1} parent=5 // pred_region
        %s12621 = ssub.s32 %s20, 2
        // Predicated region
        $region73: #{emnist_forward.1} parent=71 // pred_check
          %p12622 = pneg %p285
        $region74: #{emnist_forward.1} parent=71 // pred_check_branch
          %12624 = sbr.rel (%p12622) target = $region76
        $region75: #{emnist_forward.1} parent=71 // pred_region
          %s12625 = sand.u32 %s270, 1
          %s12626 = scalar_lea.sflag [#allocation3], %s12625
          %s12627 = sand.u32 %s270, 1
          %s12628 = smul.addr %s12627, 8
          %s12629 = scalar_lea.vmem [#allocation2], %s12628
          %12630 = dma.done %s12626, 128
        $region76: #{emnist_forward.1} parent=71 // pred_fallthru
          _
      $region72: #{emnist_forward.1} parent=5 // pred_fallthru
        _
    $region6: #{emnist_forward.1} parent=1 // loop_footer
      %s24 = sadd.s32 1, %s20
    $region7: #{emnist_forward.1} parent=1 // loop_footer_branch
      %19 = sbr.rel target = $region3
    $region8: #{emnist_forward.1} parent=1 // loop_exit
      _
    %12631 = vsyncpa [#allocation3], 1
    %s12632 = scalar_lea.sflag [#allocation3], 1
    %12633 = vsyncpa %s12632, 1

</llo_original>
